<compile_context>
chip_gen: v5e
topology: v5e:2x2
jax: 0.10.0
libtpu: 0.0.40
codegen_flags: <defaults>
</compile_context>

<pallas_src>
import functools

import jax
import jax.numpy as jnp
from jax import lax
from jax.experimental import pallas as pl
from jax.experimental.pallas import tpu as pltpu

EPS = 1e-5
LANE = 128


@functools.lru_cache(maxsize=1)
def _vmem_limit_bytes():
    """Scoped-VMEM budget: ~7/8 of physical, capped at 112 MiB.

    v5e/v6e: 128 MiB physical -> 112 MiB (whole-item blocks keep fitting).
    v7x    :  64 MiB physical ->  56 MiB (headroom for Mosaic scratch).
    """
    try:
        cap = int(pltpu.get_tpu_info().vmem_capacity_bytes)
    except Exception:
        cap = 64 * 1024 * 1024
    return int(min(cap * 7 // 8, 112 * 1024 * 1024))


# ----------------------------- Pallas kernel -------------------------------

def _resnet_block_kernel(x_ref, col_ref, w1_ref, b1_ref, w2_ref, b2_ref,
                         o_ref, pb_ref, *, H, W, Cp, compute_dtype):
    """Fused ResnetBlock body for one batch item.

    Layout: flattened reflect-padded spatial grid (row-major, Hp*Wp rows),
    channels-last, channels padded to Cp lanes.
      x_ref : (S, Cp) f32   flattened reflect-padded input (no extension)
      col_ref:(S, 1)  int32 column index of each padded-grid position
      w*_ref: (9, Cp, Cp)   conv taps, [k=ky*3+kx][ci][co], compute_dtype
      b*_ref: (1, Cp) f32
      o_ref : (S, Cp) f32   output on the padded grid (border rows are junk)
      pb_ref: (Sext, Cp) compute_dtype  padded-activation scratch (reused for
              conv1's input and conv2's reflect-padded hidden state)
    """
    Hp, Wp = H + 2, W + 2
    S = Hp * Wp                  # flattened padded grid
    E = 2 * Wp                   # zero guard rows on each side of the scratch
    inv_n = 1.0 / (H * W)
    offs = [(ky - 1) * Wp + (kx - 1) for ky in range(3) for kx in range(3)]

    # Border / interior masks over padded-grid positions (shape (S, 1)).
    pidx = lax.broadcasted_iota(jnp.int32, (S, 1), 0)
    col = col_ref[...]
    is_top, is_bot = pidx < Wp, pidx >= S - Wp
    is_left, is_right = col == 0, col == Wp - 1
    interior = jnp.logical_not(is_top | is_bot | is_left | is_right)

    def conv3x3(w_ref, b_ref):
        # 3x3 conv = 9 accumulated (S, Cp) x (Cp, Cp) MXU matmuls over
        # statically shifted slices of the bf16 padded-activation scratch.
        acc = None
        for k, o in enumerate(offs):
            d = jnp.dot(pb_ref[E + o:E + o + S, :], w_ref[k],
                        preferred_element_type=jnp.float32)
            acc = d if acc is None else acc + d
        return acc + b_ref[...]                         # (S, Cp) f32

    def instance_norm(acc):
        # One-pass masked stats (padded-border rows excluded), biased var.
        m = jnp.where(interior, acc, 0.0)
        s1 = jnp.sum(m, axis=0, keepdims=True)
        s2 = jnp.sum(m * acc, axis=0, keepdims=True)
        mean = s1 * inv_n
        var = jnp.maximum(s2 * inv_n - mean * mean, 0.0)
        return (acc - mean) * lax.rsqrt(var + EPS)

    # Zero the row guard bands once (read only by masked border-row outputs).
    zext = jnp.zeros((E, Cp), compute_dtype)
    pb_ref[0:E, :] = zext
    pb_ref[E + S:E + S + E, :] = zext

    # -------- conv1 -> InstanceNorm -> ReLU (all resident in VMEM) ---------
    pb_ref[E:E + S, :] = x_ref[...].astype(compute_dtype)   # cast x ONCE
    h = jnp.maximum(instance_norm(conv3x3(w1_ref, b1_ref)), 0.0)
    # TODO(synk): use_dropout=True branch (nn.Dropout(0.5)) not implemented;
    #             the typical CycleGAN config uses use_dropout=False.

    # -------- in-VMEM ReflectionPad2d(1) of h's valid region ---------------
    # Columns first (else-branch is the h value itself -> no extra re-read),
    # then the top/bottom rows are copied from the already column-fixed rows
    # 2 and Hp-3, which also fixes the four corners.
    h16 = h.astype(compute_dtype)
    pb_ref[E:E + S, :] = h16
    left_v = pb_ref[E + 2:E + 2 + S, :]                    # value at p+2
    right_v = pb_ref[E - 2:E - 2 + S, :]                   # value at p-2
    pb_ref[E:E + S, :] = jnp.where(is_left, left_v,
                                   jnp.where(is_right, right_v, h16))
    pb_ref[E:E + Wp, :] = pb_ref[E + 2 * Wp:E + 3 * Wp, :]            # top
    pb_ref[E + S - Wp:E + S, :] = pb_ref[E + S - 3 * Wp:E + S - 2 * Wp, :]

    # -------- conv2 -> InstanceNorm -> residual add (f32) ------------------
    y = instance_norm(conv3x3(w2_ref, b2_ref))
    o_ref[...] = (x_ref[...] + y).astype(o_ref.dtype)


# ------------------------------- wrapper ------------------------------------

@functools.partial(jax.jit, static_argnames=("compute_dtype",))
def resnet_block_forward(x_nchw, w1, b1, w2, b2, compute_dtype=jnp.bfloat16):
    """ResnetBlock forward. x_nchw: (N, C, H, W) float32; returns NCHW."""
    N, C, H, W = x_nchw.shape
    Hp, Wp = H + 2, W + 2
    S = Hp * Wp
    E = 2 * Wp
    Sext = S + 2 * E
    Cp = ((C + LANE - 1) // LANE) * LANE            # lane-dense channel count

    # NCHW -> flattened channels-last reflect-padded layout (no extension pad
    # any more: the kernel builds the guard bands while casting x to bf16).
    # TODO(synk): only padding_type='reflect' and InstanceNorm2d(affine=False)
    #             are implemented (replicate/zero pad, BatchNorm not needed
    #             for the typical CycleGAN instantiation).
    x_nhwc = jnp.transpose(x_nchw, (0, 2, 3, 1)).astype(jnp.float32)
    xp = jnp.pad(x_nhwc, ((0, 0), (1, 1), (1, 1), (0, 0)), mode="reflect")
    if Cp != C:
        xp = jnp.pad(xp, ((0, 0), (0, 0), (0, 0), (0, Cp - C)))
    x_flat = xp.reshape(N, S, Cp)

    def prep_w(w):   # OIHW -> (9, Cp, Cp) with [k=ky*3+kx][ci][co]
        wpad = jnp.pad(w, ((0, Cp - C), (0, Cp - C), (0, 0), (0, 0)))
        return (jnp.transpose(wpad, (2, 3, 1, 0))
                .reshape(9, Cp, Cp).astype(compute_dtype))

    def prep_b(b):
        return jnp.pad(b, (0, Cp - C)).reshape(1, Cp).astype(jnp.float32)

    colidx = (jnp.arange(S, dtype=jnp.int32) % Wp).reshape(S, 1)

    kernel = functools.partial(_resnet_block_kernel, H=H, W=W, Cp=Cp,
                               compute_dtype=compute_dtype)
    out_pad = pl.pallas_call(
        kernel,
        out_shape=jax.ShapeDtypeStruct((N, S, Cp), jnp.float32),
        grid=(N,),
        in_specs=[
            pl.BlockSpec((None, S, Cp), lambda n: (n, 0, 0)),   # x (padded)
            pl.BlockSpec((S, 1), lambda n: (0, 0)),             # col index
            pl.BlockSpec((9, Cp, Cp), lambda n: (0, 0, 0)),     # w1
            pl.BlockSpec((1, Cp), lambda n: (0, 0)),            # b1
            pl.BlockSpec((9, Cp, Cp), lambda n: (0, 0, 0)),     # w2
            pl.BlockSpec((1, Cp), lambda n: (0, 0)),            # b2
        ],
        out_specs=pl.BlockSpec((None, S, Cp), lambda n: (n, 0, 0)),
        scratch_shapes=[pltpu.VMEM((Sext, Cp), compute_dtype)],
        compiler_params=pltpu.CompilerParams(
            dimension_semantics=("parallel",),
            vmem_limit_bytes=_vmem_limit_bytes()),
    )(x_flat, colidx, prep_w(w1), prep_b(b1), prep_w(w2), prep_b(b2))

    out = out_pad.reshape(N, Hp, Wp, Cp)[:, 1:Hp - 1, 1:Wp - 1, :C]
    return jnp.transpose(out, (0, 3, 1, 2))


# ------------------------------ reference -----------------------------------

def _ref_forward(x, w1, b1, w2, b2):
    def pad_reflect(z):
        return jnp.pad(z, ((0, 0), (0, 0), (1, 1), (1, 1)), mode="reflect")

    def conv(z, w, b):
        out = lax.conv_general_dilated(
            z, w, window_strides=(1, 1), padding="VALID",
            dimension_numbers=("NCHW", "OIHW", "NCHW"))
        return out + b[None, :, None, None]

    def inorm(z):
        m = jnp.mean(z, axis=(2, 3), keepdims=True)
        v = jnp.mean((z - m) ** 2, axis=(2, 3), keepdims=True)
        return (z - m) * lax.rsqrt(v + EPS)

    h = jax.nn.relu(inorm(conv(pad_reflect(x), w1, b1)))
    h = inorm(conv(pad_reflect(h), w2, b2))
    return x + h


# --------------------------------- main --------------------------------------

if __name__ == "__main__":
    key = jax.random.PRNGKey(0)
    k_x, k_w1, k_b1, k_w2, k_b2 = jax.random.split(key, 5)

    N, C, H, W = 2, 4, 16, 16   # dim = 4
    x = jax.random.normal(k_x, (N, C, H, W), dtype=jnp.float32)

    # Conv2d(dim, dim, kernel_size=3, bias=True) parameter shapes.
    w1 = 0.1 * jax.random.normal(k_w1, (C, C, 3, 3), dtype=jnp.float32)
    b1 = 0.05 * jax.random.normal(k_b1, (C,), dtype=jnp.float32)
    w2 = 0.1 * jax.random.normal(k_w2, (C, C, 3, 3), dtype=jnp.float32)
    b2 = 0.05 * jax.random.normal(k_b2, (C,), dtype=jnp.float32)

    ref = jax.block_until_ready(_ref_forward(x, w1, b1, w2, b2))

    # f32-compute path: must match the pure-f32 reference tightly.
    out_f32 = jax.block_until_ready(
        resnet_block_forward(x, w1, b1, w2, b2, compute_dtype=jnp.float32))
    assert out_f32.shape == (N, C, H, W)
    err_f32 = float(jnp.max(jnp.abs(out_f32 - ref)))
    if err_f32 > 1e-4:
        raise AssertionError(f"f32 path mismatch vs reference: {err_f32}")

    # Default bf16-MXU path: looser bound (bf16 operand rounding in the convs;
    # accumulation, InstanceNorm and residual add stay f32).
    out_bf16 = jax.block_until_ready(resnet_block_forward(x, w1, b1, w2, b2))
    assert out_bf16.shape == (N, C, H, W)
    err_bf16 = float(jnp.max(jnp.abs(out_bf16 - ref)))
    if err_bf16 > 5e-2:
        raise AssertionError(f"bf16 path mismatch vs reference: {err_bf16}")

    print("KERNEL_OK")
</pallas_src>

<mosaic_0001>
module attributes {stable_mosaic.version = 11 : i64} {
  func.func @_resnet_block_kernel(%arg0: i32, %arg1: memref<1x324x128xf32, #tpu.memory_space<vmem>>, %arg2: memref<324x1xi32, #tpu.memory_space<vmem>>, %arg3: memref<9x128x128xf32, #tpu.memory_space<vmem>>, %arg4: memref<1x128xf32, #tpu.memory_space<vmem>>, %arg5: memref<9x128x128xf32, #tpu.memory_space<vmem>>, %arg6: memref<1x128xf32, #tpu.memory_space<vmem>>, %arg7: memref<1x324x128xf32, #tpu.memory_space<vmem>>, %arg8: memref<396x128xf32, #tpu.memory_space<vmem>>) attributes {dimension_semantics = [#tpu.dimension_semantics<parallel>], iteration_bounds = array<i64: 2>, scalar_prefetch = 0 : i64, scratch_operands = 1 : i64, tpu.core_type = #tpu.core_type<tc>, window_params = [{transform_indices = @transform_0, window_bounds = array<i64: 1, 324, 128>}, {pipeline_mode = #tpu.pipeline_mode<synchronous>, transform_indices = @transform_1, window_bounds = array<i64: 324, 1>}, {pipeline_mode = #tpu.pipeline_mode<synchronous>, transform_indices = @transform_2, window_bounds = array<i64: 9, 128, 128>}, {pipeline_mode = #tpu.pipeline_mode<synchronous>, transform_indices = @transform_3, window_bounds = array<i64: 1, 128>}, {pipeline_mode = #tpu.pipeline_mode<synchronous>, transform_indices = @transform_4, window_bounds = array<i64: 9, 128, 128>}, {pipeline_mode = #tpu.pipeline_mode<synchronous>, transform_indices = @transform_5, window_bounds = array<i64: 1, 128>}, {transform_indices = @transform_6, window_bounds = array<i64: 1, 324, 128>}]} {
    %0 = tpu.iota {dimensions = array<i32: 0>} : vector<324x1xi32>
    %c0 = arith.constant 0 : index
    %c0_0 = arith.constant 0 : index
    %1 = vector.load %arg2[%c0, %c0_0] : memref<324x1xi32, #tpu.memory_space<vmem>>, vector<324x1xi32>
    %c18_i32 = arith.constant 18 : i32
    %2 = vector.broadcast %c18_i32 : i32 to vector<324x1xi32>
    %3 = arith.cmpi slt, %0, %2 : vector<324x1xi32>
    %c306_i32 = arith.constant 306 : i32
    %4 = vector.broadcast %c306_i32 : i32 to vector<324x1xi32>
    %5 = arith.cmpi sge, %0, %4 : vector<324x1xi32>
    %c0_i32 = arith.constant 0 : i32
    %6 = vector.broadcast %c0_i32 : i32 to vector<324x1xi32>
    %7 = arith.cmpi eq, %1, %6 : vector<324x1xi32>
    %c17_i32 = arith.constant 17 : i32
    %8 = vector.broadcast %c17_i32 : i32 to vector<324x1xi32>
    %9 = arith.cmpi eq, %1, %8 : vector<324x1xi32>
    %10 = arith.ori %3, %5 : vector<324x1xi1>
    %11 = arith.ori %10, %7 : vector<324x1xi1>
    %12 = arith.ori %11, %9 : vector<324x1xi1>
    %cst = arith.constant dense<true> : vector<324x1xi1>
    %13 = arith.xori %12, %cst : vector<324x1xi1>
    %cst_1 = arith.constant 0.000000e+00 : f32
    %14 = vector.broadcast %cst_1 : f32 to vector<36x128xf32>
    %c0_2 = arith.constant 0 : index
    %c0_3 = arith.constant 0 : index
    %15 = vector.load %arg8[%c0_2, %c0_3] : memref<396x128xf32, #tpu.memory_space<vmem>>, vector<36x128xf32>
    tpu.vector_store %arg8[%c0_2, %c0_3], %14 {strides = array<i32>} : memref<396x128xf32, #tpu.memory_space<vmem>>, vector<36x128xf32>,
    %c360 = arith.constant 360 : index
    %c0_4 = arith.constant 0 : index
    %16 = vector.load %arg8[%c360, %c0_4] : memref<396x128xf32, #tpu.memory_space<vmem>>, vector<36x128xf32>
    tpu.vector_store %arg8[%c360, %c0_4], %14 {strides = array<i32>} : memref<396x128xf32, #tpu.memory_space<vmem>>, vector<36x128xf32>,
    %c0_5 = arith.constant 0 : index
    %c0_6 = arith.constant 0 : index
    %c0_7 = arith.constant 0 : index
    %17 = vector.load %arg1[%c0_5, %c0_6, %c0_7] : memref<1x324x128xf32, #tpu.memory_space<vmem>>, vector<1x324x128xf32>
    %18 = vector.shape_cast %17 : vector<1x324x128xf32> to vector<324x128xf32>
    %c36 = arith.constant 36 : index
    %c0_8 = arith.constant 0 : index
    %19 = vector.load %arg8[%c36, %c0_8] : memref<396x128xf32, #tpu.memory_space<vmem>>, vector<324x128xf32>
    tpu.vector_store %arg8[%c36, %c0_8], %18 {strides = array<i32>} : memref<396x128xf32, #tpu.memory_space<vmem>>, vector<324x128xf32>,
    %c17 = arith.constant 17 : index
    %c0_9 = arith.constant 0 : index
    %20 = vector.load %arg8[%c17, %c0_9] : memref<396x128xf32, #tpu.memory_space<vmem>>, vector<324x128xf32>
    %c0_10 = arith.constant 0 : index
    %c0_11 = arith.constant 0 : index
    %c0_12 = arith.constant 0 : index
    %21 = vector.load %arg3[%c0_10, %c0_11, %c0_12] : memref<9x128x128xf32, #tpu.memory_space<vmem>>, vector<1x128x128xf32>
    %22 = vector.shape_cast %21 : vector<1x128x128xf32> to vector<128x128xf32>
    %cst_13 = arith.constant dense<0.000000e+00> : vector<324x128xf32>
    %23 = tpu.matmul %20, %22, %cst_13 {dimension_numbers = #tpu.dot_dimension_numbers<[1], [0], [0], [1], [0, 0, 1, 1], [], []>} : vector<324x128xf32>, vector<128x128xf32>, vector<324x128xf32> -> vector<324x128xf32>
    %c18 = arith.constant 18 : index
    %c0_14 = arith.constant 0 : index
    %24 = vector.load %arg8[%c18, %c0_14] : memref<396x128xf32, #tpu.memory_space<vmem>>, vector<324x128xf32>
    %c1 = arith.constant 1 : index
    %c0_15 = arith.constant 0 : index
    %c0_16 = arith.constant 0 : index
    %25 = vector.load %arg3[%c1, %c0_15, %c0_16] : memref<9x128x128xf32, #tpu.memory_space<vmem>>, vector<1x128x128xf32>
    %26 = vector.shape_cast %25 : vector<1x128x128xf32> to vector<128x128xf32>
    %cst_17 = arith.constant dense<0.000000e+00> : vector<324x128xf32>
    %27 = tpu.matmul %24, %26, %cst_17 {dimension_numbers = #tpu.dot_dimension_numbers<[1], [0], [0], [1], [0, 0, 1, 1], [], []>} : vector<324x128xf32>, vector<128x128xf32>, vector<324x128xf32> -> vector<324x128xf32>
    %28 = arith.addf %23, %27 : vector<324x128xf32>
    %c19 = arith.constant 19 : index
    %c0_18 = arith.constant 0 : index
    %29 = vector.load %arg8[%c19, %c0_18] : memref<396x128xf32, #tpu.memory_space<vmem>>, vector<324x128xf32>
    %c2 = arith.constant 2 : index
    %c0_19 = arith.constant 0 : index
    %c0_20 = arith.constant 0 : index
    %30 = vector.load %arg3[%c2, %c0_19, %c0_20] : memref<9x128x128xf32, #tpu.memory_space<vmem>>, vector<1x128x128xf32>
    %31 = vector.shape_cast %30 : vector<1x128x128xf32> to vector<128x128xf32>
    %cst_21 = arith.constant dense<0.000000e+00> : vector<324x128xf32>
    %32 = tpu.matmul %29, %31, %cst_21 {dimension_numbers = #tpu.dot_dimension_numbers<[1], [0], [0], [1], [0, 0, 1, 1], [], []>} : vector<324x128xf32>, vector<128x128xf32>, vector<324x128xf32> -> vector<324x128xf32>
    %33 = arith.addf %28, %32 : vector<324x128xf32>
    %c35 = arith.constant 35 : index
    %c0_22 = arith.constant 0 : index
    %34 = vector.load %arg8[%c35, %c0_22] : memref<396x128xf32, #tpu.memory_space<vmem>>, vector<324x128xf32>
    %c3 = arith.constant 3 : index
    %c0_23 = arith.constant 0 : index
    %c0_24 = arith.constant 0 : index
    %35 = vector.load %arg3[%c3, %c0_23, %c0_24] : memref<9x128x128xf32, #tpu.memory_space<vmem>>, vector<1x128x128xf32>
    %36 = vector.shape_cast %35 : vector<1x128x128xf32> to vector<128x128xf32>
    %cst_25 = arith.constant dense<0.000000e+00> : vector<324x128xf32>
    %37 = tpu.matmul %34, %36, %cst_25 {dimension_numbers = #tpu.dot_dimension_numbers<[1], [0], [0], [1], [0, 0, 1, 1], [], []>} : vector<324x128xf32>, vector<128x128xf32>, vector<324x128xf32> -> vector<324x128xf32>
    %38 = arith.addf %33, %37 : vector<324x128xf32>
    %c36_26 = arith.constant 36 : index
    %c0_27 = arith.constant 0 : index
    %39 = vector.load %arg8[%c36_26, %c0_27] : memref<396x128xf32, #tpu.memory_space<vmem>>, vector<324x128xf32>
    %c4 = arith.constant 4 : index
    %c0_28 = arith.constant 0 : index
    %c0_29 = arith.constant 0 : index
    %40 = vector.load %arg3[%c4, %c0_28, %c0_29] : memref<9x128x128xf32, #tpu.memory_space<vmem>>, vector<1x128x128xf32>
    %41 = vector.shape_cast %40 : vector<1x128x128xf32> to vector<128x128xf32>
    %cst_30 = arith.constant dense<0.000000e+00> : vector<324x128xf32>
    %42 = tpu.matmul %39, %41, %cst_30 {dimension_numbers = #tpu.dot_dimension_numbers<[1], [0], [0], [1], [0, 0, 1, 1], [], []>} : vector<324x128xf32>, vector<128x128xf32>, vector<324x128xf32> -> vector<324x128xf32>
    %43 = arith.addf %38, %42 : vector<324x128xf32>
    %c37 = arith.constant 37 : index
    %c0_31 = arith.constant 0 : index
    %44 = vector.load %arg8[%c37, %c0_31] : memref<396x128xf32, #tpu.memory_space<vmem>>, vector<324x128xf32>
    %c5 = arith.constant 5 : index
    %c0_32 = arith.constant 0 : index
    %c0_33 = arith.constant 0 : index
    %45 = vector.load %arg3[%c5, %c0_32, %c0_33] : memref<9x128x128xf32, #tpu.memory_space<vmem>>, vector<1x128x128xf32>
    %46 = vector.shape_cast %45 : vector<1x128x128xf32> to vector<128x128xf32>
    %cst_34 = arith.constant dense<0.000000e+00> : vector<324x128xf32>
    %47 = tpu.matmul %44, %46, %cst_34 {dimension_numbers = #tpu.dot_dimension_numbers<[1], [0], [0], [1], [0, 0, 1, 1], [], []>} : vector<324x128xf32>, vector<128x128xf32>, vector<324x128xf32> -> vector<324x128xf32>
    %48 = arith.addf %43, %47 : vector<324x128xf32>
    %c53 = arith.constant 53 : index
    %c0_35 = arith.constant 0 : index
    %49 = vector.load %arg8[%c53, %c0_35] : memref<396x128xf32, #tpu.memory_space<vmem>>, vector<324x128xf32>
    %c6 = arith.constant 6 : index
    %c0_36 = arith.constant 0 : index
    %c0_37 = arith.constant 0 : index
    %50 = vector.load %arg3[%c6, %c0_36, %c0_37] : memref<9x128x128xf32, #tpu.memory_space<vmem>>, vector<1x128x128xf32>
    %51 = vector.shape_cast %50 : vector<1x128x128xf32> to vector<128x128xf32>
    %cst_38 = arith.constant dense<0.000000e+00> : vector<324x128xf32>
    %52 = tpu.matmul %49, %51, %cst_38 {dimension_numbers = #tpu.dot_dimension_numbers<[1], [0], [0], [1], [0, 0, 1, 1], [], []>} : vector<324x128xf32>, vector<128x128xf32>, vector<324x128xf32> -> vector<324x128xf32>
    %53 = arith.addf %48, %52 : vector<324x128xf32>
    %c54 = arith.constant 54 : index
    %c0_39 = arith.constant 0 : index
    %54 = vector.load %arg8[%c54, %c0_39] : memref<396x128xf32, #tpu.memory_space<vmem>>, vector<324x128xf32>
    %c7 = arith.constant 7 : index
    %c0_40 = arith.constant 0 : index
    %c0_41 = arith.constant 0 : index
    %55 = vector.load %arg3[%c7, %c0_40, %c0_41] : memref<9x128x128xf32, #tpu.memory_space<vmem>>, vector<1x128x128xf32>
    %56 = vector.shape_cast %55 : vector<1x128x128xf32> to vector<128x128xf32>
    %cst_42 = arith.constant dense<0.000000e+00> : vector<324x128xf32>
    %57 = tpu.matmul %54, %56, %cst_42 {dimension_numbers = #tpu.dot_dimension_numbers<[1], [0], [0], [1], [0, 0, 1, 1], [], []>} : vector<324x128xf32>, vector<128x128xf32>, vector<324x128xf32> -> vector<324x128xf32>
    %58 = arith.addf %53, %57 : vector<324x128xf32>
    %c55 = arith.constant 55 : index
    %c0_43 = arith.constant 0 : index
    %59 = vector.load %arg8[%c55, %c0_43] : memref<396x128xf32, #tpu.memory_space<vmem>>, vector<324x128xf32>
    %c8 = arith.constant 8 : index
    %c0_44 = arith.constant 0 : index
    %c0_45 = arith.constant 0 : index
    %60 = vector.load %arg3[%c8, %c0_44, %c0_45] : memref<9x128x128xf32, #tpu.memory_space<vmem>>, vector<1x128x128xf32>
    %61 = vector.shape_cast %60 : vector<1x128x128xf32> to vector<128x128xf32>
    %cst_46 = arith.constant dense<0.000000e+00> : vector<324x128xf32>
    %62 = tpu.matmul %59, %61, %cst_46 {dimension_numbers = #tpu.dot_dimension_numbers<[1], [0], [0], [1], [0, 0, 1, 1], [], []>} : vector<324x128xf32>, vector<128x128xf32>, vector<324x128xf32> -> vector<324x128xf32>
    %63 = arith.addf %58, %62 : vector<324x128xf32>
    %c0_47 = arith.constant 0 : index
    %c0_48 = arith.constant 0 : index
    %64 = vector.load %arg4[%c0_47, %c0_48] : memref<1x128xf32, #tpu.memory_space<vmem>>, vector<1x128xf32>
    %65 = vector.broadcast %64 : vector<1x128xf32> to vector<324x128xf32>
    %66 = arith.addf %63, %65 : vector<324x128xf32>
    %cst_49 = arith.constant 0.000000e+00 : f32
    %67 = vector.shape_cast %13 : vector<324x1xi1> to vector<324x1xi1>
    %68 = vector.broadcast %67 : vector<324x1xi1> to vector<324x128xi1>
    %69 = vector.broadcast %cst_49 : f32 to vector<324x128xf32>
    %70 = arith.select %68, %66, %69 : vector<324x128xi1>, vector<324x128xf32>
    %cst_50 = arith.constant dense<0.000000e+00> : vector<128xf32>
    %71 = vector.multi_reduction <add>, %70, %cst_50 [0] : vector<324x128xf32> to vector<128xf32>
    %72 = vector.shape_cast %71 : vector<128xf32> to vector<1x128xf32>
    %73 = arith.mulf %70, %66 : vector<324x128xf32>
    %cst_51 = arith.constant dense<0.000000e+00> : vector<128xf32>
    %74 = vector.multi_reduction <add>, %73, %cst_51 [0] : vector<324x128xf32> to vector<128xf32>
    %75 = vector.shape_cast %74 : vector<128xf32> to vector<1x128xf32>
    %cst_52 = arith.constant 3.906250e-03 : f32
    %76 = vector.broadcast %cst_52 : f32 to vector<1x128xf32>
    %77 = arith.mulf %72, %76 : vector<1x128xf32>
    %cst_53 = arith.constant 3.906250e-03 : f32
    %78 = vector.broadcast %cst_53 : f32 to vector<1x128xf32>
    %79 = arith.mulf %75, %78 : vector<1x128xf32>
    %80 = arith.mulf %77, %77 : vector<1x128xf32>
    %81 = arith.subf %79, %80 : vector<1x128xf32>
    %cst_54 = arith.constant 0.000000e+00 : f32
    %82 = vector.broadcast %cst_54 : f32 to vector<1x128xf32>
    %83 = arith.maximumf %81, %82 : vector<1x128xf32>
    %84 = vector.broadcast %77 : vector<1x128xf32> to vector<324x128xf32>
    %85 = arith.subf %66, %84 : vector<324x128xf32>
    %cst_55 = arith.constant 9.99999974E-6 : f32
    %86 = vector.broadcast %cst_55 : f32 to vector<1x128xf32>
    %87 = arith.addf %83, %86 : vector<1x128xf32>
    %88 = math.rsqrt %87 : vector<1x128xf32>
    %89 = vector.broadcast %88 : vector<1x128xf32> to vector<324x128xf32>
    %90 = arith.mulf %85, %89 : vector<324x128xf32>
    %cst_56 = arith.constant 0.000000e+00 : f32
    %91 = vector.broadcast %cst_56 : f32 to vector<324x128xf32>
    %92 = arith.maximumf %90, %91 : vector<324x128xf32>
    %c36_57 = arith.constant 36 : index
    %c0_58 = arith.constant 0 : index
    %93 = vector.load %arg8[%c36_57, %c0_58] : memref<396x128xf32, #tpu.memory_space<vmem>>, vector<324x128xf32>
    tpu.vector_store %arg8[%c36_57, %c0_58], %92 {strides = array<i32>} : memref<396x128xf32, #tpu.memory_space<vmem>>, vector<324x128xf32>,
    %c38 = arith.constant 38 : index
    %c0_59 = arith.constant 0 : index
    %94 = vector.load %arg8[%c38, %c0_59] : memref<396x128xf32, #tpu.memory_space<vmem>>, vector<324x128xf32>
    %c34 = arith.constant 34 : index
    %c0_60 = arith.constant 0 : index
    %95 = vector.load %arg8[%c34, %c0_60] : memref<396x128xf32, #tpu.memory_space<vmem>>, vector<324x128xf32>
    %96 = vector.shape_cast %9 : vector<324x1xi1> to vector<324x1xi1>
    %97 = vector.broadcast %96 : vector<324x1xi1> to vector<324x128xi1>
    %98 = arith.select %97, %95, %92 : vector<324x128xi1>, vector<324x128xf32>
    %99 = vector.shape_cast %7 : vector<324x1xi1> to vector<324x1xi1>
    %100 = vector.broadcast %99 : vector<324x1xi1> to vector<324x128xi1>
    %101 = arith.select %100, %94, %98 : vector<324x128xi1>, vector<324x128xf32>
    %c36_61 = arith.constant 36 : index
    %c0_62 = arith.constant 0 : index
    %102 = vector.load %arg8[%c36_61, %c0_62] : memref<396x128xf32, #tpu.memory_space<vmem>>, vector<324x128xf32>
    tpu.vector_store %arg8[%c36_61, %c0_62], %101 {strides = array<i32>} : memref<396x128xf32, #tpu.memory_space<vmem>>, vector<324x128xf32>,
    %c72 = arith.constant 72 : index
    %c0_63 = arith.constant 0 : index
    %103 = vector.load %arg8[%c72, %c0_63] : memref<396x128xf32, #tpu.memory_space<vmem>>, vector<18x128xf32>
    %c36_64 = arith.constant 36 : index
    %c0_65 = arith.constant 0 : index
    %104 = vector.load %arg8[%c36_64, %c0_65] : memref<396x128xf32, #tpu.memory_space<vmem>>, vector<18x128xf32>
    tpu.vector_store %arg8[%c36_64, %c0_65], %103 {strides = array<i32>} : memref<396x128xf32, #tpu.memory_space<vmem>>, vector<18x128xf32>,
    %c306 = arith.constant 306 : index
    %c0_66 = arith.constant 0 : index
    %105 = vector.load %arg8[%c306, %c0_66] : memref<396x128xf32, #tpu.memory_space<vmem>>, vector<18x128xf32>
    %c342 = arith.constant 342 : index
    %c0_67 = arith.constant 0 : index
    %106 = vector.load %arg8[%c342, %c0_67] : memref<396x128xf32, #tpu.memory_space<vmem>>, vector<18x128xf32>
    tpu.vector_store %arg8[%c342, %c0_67], %105 {strides = array<i32>} : memref<396x128xf32, #tpu.memory_space<vmem>>, vector<18x128xf32>,
    %c17_68 = arith.constant 17 : index
    %c0_69 = arith.constant 0 : index
    %107 = vector.load %arg8[%c17_68, %c0_69] : memref<396x128xf32, #tpu.memory_space<vmem>>, vector<324x128xf32>
    %c0_70 = arith.constant 0 : index
    %c0_71 = arith.constant 0 : index
    %c0_72 = arith.constant 0 : index
    %108 = vector.load %arg5[%c0_70, %c0_71, %c0_72] : memref<9x128x128xf32, #tpu.memory_space<vmem>>, vector<1x128x128xf32>
    %109 = vector.shape_cast %108 : vector<1x128x128xf32> to vector<128x128xf32>
    %cst_73 = arith.constant dense<0.000000e+00> : vector<324x128xf32>
    %110 = tpu.matmul %107, %109, %cst_73 {dimension_numbers = #tpu.dot_dimension_numbers<[1], [0], [0], [1], [0, 0, 1, 1], [], []>} : vector<324x128xf32>, vector<128x128xf32>, vector<324x128xf32> -> vector<324x128xf32>
    %c18_74 = arith.constant 18 : index
    %c0_75 = arith.constant 0 : index
    %111 = vector.load %arg8[%c18_74, %c0_75] : memref<396x128xf32, #tpu.memory_space<vmem>>, vector<324x128xf32>
    %c1_76 = arith.constant 1 : index
    %c0_77 = arith.constant 0 : index
    %c0_78 = arith.constant 0 : index
    %112 = vector.load %arg5[%c1_76, %c0_77, %c0_78] : memref<9x128x128xf32, #tpu.memory_space<vmem>>, vector<1x128x128xf32>
    %113 = vector.shape_cast %112 : vector<1x128x128xf32> to vector<128x128xf32>
    %cst_79 = arith.constant dense<0.000000e+00> : vector<324x128xf32>
    %114 = tpu.matmul %111, %113, %cst_79 {dimension_numbers = #tpu.dot_dimension_numbers<[1], [0], [0], [1], [0, 0, 1, 1], [], []>} : vector<324x128xf32>, vector<128x128xf32>, vector<324x128xf32> -> vector<324x128xf32>
    %115 = arith.addf %110, %114 : vector<324x128xf32>
    %c19_80 = arith.constant 19 : index
    %c0_81 = arith.constant 0 : index
    %116 = vector.load %arg8[%c19_80, %c0_81] : memref<396x128xf32, #tpu.memory_space<vmem>>, vector<324x128xf32>
    %c2_82 = arith.constant 2 : index
    %c0_83 = arith.constant 0 : index
    %c0_84 = arith.constant 0 : index
    %117 = vector.load %arg5[%c2_82, %c0_83, %c0_84] : memref<9x128x128xf32, #tpu.memory_space<vmem>>, vector<1x128x128xf32>
    %118 = vector.shape_cast %117 : vector<1x128x128xf32> to vector<128x128xf32>
    %cst_85 = arith.constant dense<0.000000e+00> : vector<324x128xf32>
    %119 = tpu.matmul %116, %118, %cst_85 {dimension_numbers = #tpu.dot_dimension_numbers<[1], [0], [0], [1], [0, 0, 1, 1], [], []>} : vector<324x128xf32>, vector<128x128xf32>, vector<324x128xf32> -> vector<324x128xf32>
    %120 = arith.addf %115, %119 : vector<324x128xf32>
    %c35_86 = arith.constant 35 : index
    %c0_87 = arith.constant 0 : index
    %121 = vector.load %arg8[%c35_86, %c0_87] : memref<396x128xf32, #tpu.memory_space<vmem>>, vector<324x128xf32>
    %c3_88 = arith.constant 3 : index
    %c0_89 = arith.constant 0 : index
    %c0_90 = arith.constant 0 : index
    %122 = vector.load %arg5[%c3_88, %c0_89, %c0_90] : memref<9x128x128xf32, #tpu.memory_space<vmem>>, vector<1x128x128xf32>
    %123 = vector.shape_cast %122 : vector<1x128x128xf32> to vector<128x128xf32>
    %cst_91 = arith.constant dense<0.000000e+00> : vector<324x128xf32>
    %124 = tpu.matmul %121, %123, %cst_91 {dimension_numbers = #tpu.dot_dimension_numbers<[1], [0], [0], [1], [0, 0, 1, 1], [], []>} : vector<324x128xf32>, vector<128x128xf32>, vector<324x128xf32> -> vector<324x128xf32>
    %125 = arith.addf %120, %124 : vector<324x128xf32>
    %c36_92 = arith.constant 36 : index
    %c0_93 = arith.constant 0 : index
    %126 = vector.load %arg8[%c36_92, %c0_93] : memref<396x128xf32, #tpu.memory_space<vmem>>, vector<324x128xf32>
    %c4_94 = arith.constant 4 : index
    %c0_95 = arith.constant 0 : index
    %c0_96 = arith.constant 0 : index
    %127 = vector.load %arg5[%c4_94, %c0_95, %c0_96] : memref<9x128x128xf32, #tpu.memory_space<vmem>>, vector<1x128x128xf32>
    %128 = vector.shape_cast %127 : vector<1x128x128xf32> to vector<128x128xf32>
    %cst_97 = arith.constant dense<0.000000e+00> : vector<324x128xf32>
    %129 = tpu.matmul %126, %128, %cst_97 {dimension_numbers = #tpu.dot_dimension_numbers<[1], [0], [0], [1], [0, 0, 1, 1], [], []>} : vector<324x128xf32>, vector<128x128xf32>, vector<324x128xf32> -> vector<324x128xf32>
    %130 = arith.addf %125, %129 : vector<324x128xf32>
    %c37_98 = arith.constant 37 : index
    %c0_99 = arith.constant 0 : index
    %131 = vector.load %arg8[%c37_98, %c0_99] : memref<396x128xf32, #tpu.memory_space<vmem>>, vector<324x128xf32>
    %c5_100 = arith.constant 5 : index
    %c0_101 = arith.constant 0 : index
    %c0_102 = arith.constant 0 : index
    %132 = vector.load %arg5[%c5_100, %c0_101, %c0_102] : memref<9x128x128xf32, #tpu.memory_space<vmem>>, vector<1x128x128xf32>
    %133 = vector.shape_cast %132 : vector<1x128x128xf32> to vector<128x128xf32>
    %cst_103 = arith.constant dense<0.000000e+00> : vector<324x128xf32>
    %134 = tpu.matmul %131, %133, %cst_103 {dimension_numbers = #tpu.dot_dimension_numbers<[1], [0], [0], [1], [0, 0, 1, 1], [], []>} : vector<324x128xf32>, vector<128x128xf32>, vector<324x128xf32> -> vector<324x128xf32>
    %135 = arith.addf %130, %134 : vector<324x128xf32>
    %c53_104 = arith.constant 53 : index
    %c0_105 = arith.constant 0 : index
    %136 = vector.load %arg8[%c53_104, %c0_105] : memref<396x128xf32, #tpu.memory_space<vmem>>, vector<324x128xf32>
    %c6_106 = arith.constant 6 : index
    %c0_107 = arith.constant 0 : index
    %c0_108 = arith.constant 0 : index
    %137 = vector.load %arg5[%c6_106, %c0_107, %c0_108] : memref<9x128x128xf32, #tpu.memory_space<vmem>>, vector<1x128x128xf32>
    %138 = vector.shape_cast %137 : vector<1x128x128xf32> to vector<128x128xf32>
    %cst_109 = arith.constant dense<0.000000e+00> : vector<324x128xf32>
    %139 = tpu.matmul %136, %138, %cst_109 {dimension_numbers = #tpu.dot_dimension_numbers<[1], [0], [0], [1], [0, 0, 1, 1], [], []>} : vector<324x128xf32>, vector<128x128xf32>, vector<324x128xf32> -> vector<324x128xf32>
    %140 = arith.addf %135, %139 : vector<324x128xf32>
    %c54_110 = arith.constant 54 : index
    %c0_111 = arith.constant 0 : index
    %141 = vector.load %arg8[%c54_110, %c0_111] : memref<396x128xf32, #tpu.memory_space<vmem>>, vector<324x128xf32>
    %c7_112 = arith.constant 7 : index
    %c0_113 = arith.constant 0 : index
    %c0_114 = arith.constant 0 : index
    %142 = vector.load %arg5[%c7_112, %c0_113, %c0_114] : memref<9x128x128xf32, #tpu.memory_space<vmem>>, vector<1x128x128xf32>
    %143 = vector.shape_cast %142 : vector<1x128x128xf32> to vector<128x128xf32>
    %cst_115 = arith.constant dense<0.000000e+00> : vector<324x128xf32>
    %144 = tpu.matmul %141, %143, %cst_115 {dimension_numbers = #tpu.dot_dimension_numbers<[1], [0], [0], [1], [0, 0, 1, 1], [], []>} : vector<324x128xf32>, vector<128x128xf32>, vector<324x128xf32> -> vector<324x128xf32>
    %145 = arith.addf %140, %144 : vector<324x128xf32>
    %c55_116 = arith.constant 55 : index
    %c0_117 = arith.constant 0 : index
    %146 = vector.load %arg8[%c55_116, %c0_117] : memref<396x128xf32, #tpu.memory_space<vmem>>, vector<324x128xf32>
    %c8_118 = arith.constant 8 : index
    %c0_119 = arith.constant 0 : index
    %c0_120 = arith.constant 0 : index
    %147 = vector.load %arg5[%c8_118, %c0_119, %c0_120] : memref<9x128x128xf32, #tpu.memory_space<vmem>>, vector<1x128x128xf32>
    %148 = vector.shape_cast %147 : vector<1x128x128xf32> to vector<128x128xf32>
    %cst_121 = arith.constant dense<0.000000e+00> : vector<324x128xf32>
    %149 = tpu.matmul %146, %148, %cst_121 {dimension_numbers = #tpu.dot_dimension_numbers<[1], [0], [0], [1], [0, 0, 1, 1], [], []>} : vector<324x128xf32>, vector<128x128xf32>, vector<324x128xf32> -> vector<324x128xf32>
    %150 = arith.addf %145, %149 : vector<324x128xf32>
    %c0_122 = arith.constant 0 : index
    %c0_123 = arith.constant 0 : index
    %151 = vector.load %arg6[%c0_122, %c0_123] : memref<1x128xf32, #tpu.memory_space<vmem>>, vector<1x128xf32>
    %152 = vector.broadcast %151 : vector<1x128xf32> to vector<324x128xf32>
    %153 = arith.addf %150, %152 : vector<324x128xf32>
    %cst_124 = arith.constant 0.000000e+00 : f32
    %154 = vector.shape_cast %13 : vector<324x1xi1> to vector<324x1xi1>
    %155 = vector.broadcast %154 : vector<324x1xi1> to vector<324x128xi1>
    %156 = vector.broadcast %cst_124 : f32 to vector<324x128xf32>
    %157 = arith.select %155, %153, %156 : vector<324x128xi1>, vector<324x128xf32>
    %cst_125 = arith.constant dense<0.000000e+00> : vector<128xf32>
    %158 = vector.multi_reduction <add>, %157, %cst_125 [0] : vector<324x128xf32> to vector<128xf32>
    %159 = vector.shape_cast %158 : vector<128xf32> to vector<1x128xf32>
    %160 = arith.mulf %157, %153 : vector<324x128xf32>
    %cst_126 = arith.constant dense<0.000000e+00> : vector<128xf32>
    %161 = vector.multi_reduction <add>, %160, %cst_126 [0] : vector<324x128xf32> to vector<128xf32>
    %162 = vector.shape_cast %161 : vector<128xf32> to vector<1x128xf32>
    %cst_127 = arith.constant 3.906250e-03 : f32
    %163 = vector.broadcast %cst_127 : f32 to vector<1x128xf32>
    %164 = arith.mulf %159, %163 : vector<1x128xf32>
    %cst_128 = arith.constant 3.906250e-03 : f32
    %165 = vector.broadcast %cst_128 : f32 to vector<1x128xf32>
    %166 = arith.mulf %162, %165 : vector<1x128xf32>
    %167 = arith.mulf %164, %164 : vector<1x128xf32>
    %168 = arith.subf %166, %167 : vector<1x128xf32>
    %cst_129 = arith.constant 0.000000e+00 : f32
    %169 = vector.broadcast %cst_129 : f32 to vector<1x128xf32>
    %170 = arith.maximumf %168, %169 : vector<1x128xf32>
    %171 = vector.broadcast %164 : vector<1x128xf32> to vector<324x128xf32>
    %172 = arith.subf %153, %171 : vector<324x128xf32>
    %cst_130 = arith.constant 9.99999974E-6 : f32
    %173 = vector.broadcast %cst_130 : f32 to vector<1x128xf32>
    %174 = arith.addf %170, %173 : vector<1x128xf32>
    %175 = math.rsqrt %174 : vector<1x128xf32>
    %176 = vector.broadcast %175 : vector<1x128xf32> to vector<324x128xf32>
    %177 = arith.mulf %172, %176 : vector<324x128xf32>
    %c0_131 = arith.constant 0 : index
    %c0_132 = arith.constant 0 : index
    %c0_133 = arith.constant 0 : index
    %178 = vector.load %arg1[%c0_131, %c0_132, %c0_133] : memref<1x324x128xf32, #tpu.memory_space<vmem>>, vector<1x324x128xf32>
    %179 = vector.shape_cast %178 : vector<1x324x128xf32> to vector<324x128xf32>
    %180 = arith.addf %179, %177 : vector<324x128xf32>
    %c0_134 = arith.constant 0 : index
    %c0_135 = arith.constant 0 : index
    %c0_136 = arith.constant 0 : index
    %181 = vector.load %arg7[%c0_134, %c0_135, %c0_136] : memref<1x324x128xf32, #tpu.memory_space<vmem>>, vector<1x324x128xf32>
    %182 = vector.shape_cast %181 : vector<1x324x128xf32> to vector<324x128xf32>
    %183 = vector.shape_cast %180 : vector<324x128xf32> to vector<1x324x128xf32>
    tpu.vector_store %arg7[%c0_134, %c0_135, %c0_136], %183 {strides = array<i32>} : memref<1x324x128xf32, #tpu.memory_space<vmem>>, vector<1x324x128xf32>,
    return
  }
  func.func @transform_0(%arg0: i32) -> (i32, i32, i32) {
    %c0_i32 = arith.constant 0 : i32
    %c0_i32_0 = arith.constant 0 : i32
    %c0_i32_1 = arith.constant 0 : i32
    return %arg0, %c0_i32, %c0_i32_0 : i32, i32, i32
  }
  func.func @transform_1(%arg0: i32) -> (i32, i32) {
    %c0_i32 = arith.constant 0 : i32
    %c0_i32_0 = arith.constant 0 : i32
    %c0_i32_1 = arith.constant 0 : i32
    return %c0_i32, %c0_i32_0 : i32, i32
  }
  func.func @transform_2(%arg0: i32) -> (i32, i32, i32) {
    %c0_i32 = arith.constant 0 : i32
    %c0_i32_0 = arith.constant 0 : i32
    %c0_i32_1 = arith.constant 0 : i32
    %c0_i32_2 = arith.constant 0 : i32
    return %c0_i32, %c0_i32_0, %c0_i32_1 : i32, i32, i32
  }
  func.func @transform_3(%arg0: i32) -> (i32, i32) {
    %c0_i32 = arith.constant 0 : i32
    %c0_i32_0 = arith.constant 0 : i32
    %c0_i32_1 = arith.constant 0 : i32
    return %c0_i32, %c0_i32_0 : i32, i32
  }
  func.func @transform_4(%arg0: i32) -> (i32, i32, i32) {
    %c0_i32 = arith.constant 0 : i32
    %c0_i32_0 = arith.constant 0 : i32
    %c0_i32_1 = arith.constant 0 : i32
    %c0_i32_2 = arith.constant 0 : i32
    return %c0_i32, %c0_i32_0, %c0_i32_1 : i32, i32, i32
  }
  func.func @transform_5(%arg0: i32) -> (i32, i32) {
    %c0_i32 = arith.constant 0 : i32
    %c0_i32_0 = arith.constant 0 : i32
    %c0_i32_1 = arith.constant 0 : i32
    return %c0_i32, %c0_i32_0 : i32, i32
  }
  func.func @transform_6(%arg0: i32) -> (i32, i32, i32) {
    %c0_i32 = arith.constant 0 : i32
    %c0_i32_0 = arith.constant 0 : i32
    %c0_i32_1 = arith.constant 0 : i32
    return %arg0, %c0_i32, %c0_i32_0 : i32, i32, i32
  }
}

</mosaic_0001>

<llo_original>
// kernel: resnet_block_forward.1
$region0: #{resnet_block_forward.1}
  #allocation0 [shape = 'u32[]', space=smem, size = 0x4, offset = 0x4, fixed_abs, tag = 'smem constant byte address 0x4 - core index']
  #allocation1 [shape = 'u32[72,128]{1,0:T(1,128)}', space=vmem, size = 0x9000, scoped, tag = 'internal scratch']
  #allocation2 [shape = 'f32[396,128]{1,0:T(8,128)}', space=vmem, size = 0x32000, scoped, tag = 'scratch operand']
  %s0 = inlined_call_operand.vmem [shape: f32[2,324,128], index: 0, kind: input, shape index: {}]
  %s1 = inlined_call_operand.vmem [shape: s32[324,1], index: 1, kind: input, shape index: {}]
  %s2 = inlined_call_operand.vmem [shape: f32[9,128,128], index: 2, kind: input, shape index: {}]
  %s3 = inlined_call_operand.vmem [shape: f32[1,128], index: 3, kind: input, shape index: {}]
  %s4 = inlined_call_operand.vmem [shape: f32[9,128,128], index: 4, kind: input, shape index: {}]
  %s5 = inlined_call_operand.vmem [shape: f32[1,128], index: 5, kind: input, shape index: {}]
  %s6 = inlined_call_operand.vmem [shape: f32[2,324,128], index: 6, kind: output, shape index: {}]
  %s7 = sld [smem:[#allocation0]]
  $region57: #{resnet_block_forward.1} parent=0
    _
  %s9 = ssub.s32 1, %s7
  %s10 = scalar_select 0, %s9, %s7
  loop: start=0, step=1, limit=4
  $region2: #{resnet_block_forward.1} parent=0 // loop_pre_header
    _
  $region3: #{resnet_block_forward.1} parent=0 // loop_header
    %s12 = sphi 0, %s16
    %p13 = scmp.ge.s32.totalorder %s12, 4
    %s22 = sphi 0, %s24
    %s25 = sphi 0, %s22
    %s26 = sphi 0, %s25
    %s42 = sphi 0, %s26
    %s46 = sphi 0, %s46
    %s48 = sphi 0, %s46
    %s49 = sphi 0, %s48
    %s63 = sphi 0, %s49
    %s67 = sphi 0, %s67
    %s69 = sphi 0, %s67
    %s70 = sphi 0, %s69
    %s84 = sphi 0, %s70
    %s88 = sphi 0, %s88
    %s90 = sphi 0, %s88
    %s91 = sphi 0, %s90
    %s105 = sphi 0, %s91
    %s109 = sphi 0, %s109
    %s111 = sphi 0, %s109
    %s112 = sphi 0, %s111
    %s126 = sphi 0, %s112
    %s130 = sphi 0, %s130
    %s132 = sphi 0, %s130
    %s133 = sphi 0, %s132
    %s147 = sphi 0, %s133
    %s153 = sphi 0, %s155
    %s156 = sphi 0, %s153
    %s157 = sphi 0, %s156
    %s173 = sphi 0, %s157
  $region4: #{resnet_block_forward.1} parent=0 // loop_header_branch
    %15 = sbr.rel (%p13) target = $region8
  $region5: #{resnet_block_forward.1} parent=0 // loop_body
    %s17 = ssub.s32 %s12, 1
    %s18 = ssub.s32 %s12, 2
    %s19 = sadd.s32 %s12, 1
    %s20 = ssub.s32 %s12, %s19
    %p21 = scmp.eq.s32.totalorder %s20, 0
    %s23 = sadd.s32 %s22, 1
    %s24 = scalar_select %p21, %s22, %s23
    %p27 = pneg %p21
    %p28 = scmp.eq.s32.totalorder %s12, 1
    %p29 = por %p27, %p28
    %p30 = scmp.ne.s32.totalorder %s22, %s25
    %p31 = scmp.eq.s32.totalorder %s12, 0
    %p32 = por %p30, %p31
    %p33 = scmp.ne.s32.totalorder %s22, %s25
    %p34 = scmp.eq.s32.totalorder %s17, 1
    %p35 = por %p33, %p34
    %p36 = scmp.ne.s32.totalorder %s25, %s26
    %p37 = scmp.eq.s32.totalorder %s17, 0
    %p38 = por %p36, %p37
    %p39 = scmp.ne.s32.totalorder %s25, %s26
    %p40 = scmp.eq.s32.totalorder %s18, 1
    %p41 = por %p39, %p40
    %p43 = scmp.ne.s32.totalorder %s26, %s42
    %p44 = scmp.eq.s32.totalorder %s18, 0
    %p45 = por %p43, %p44
    %s47 = sadd.s32 %s46, 1
    %p50 = scmp.eq.s32.totalorder %s12, 1
    %p51 = scmp.ne.s32.totalorder %s46, %s48
    %p52 = scmp.eq.s32.totalorder %s12, 0
    %p53 = por %p51, %p52
    %p54 = scmp.ne.s32.totalorder %s46, %s48
    %p55 = scmp.eq.s32.totalorder %s17, 1
    %p56 = por %p54, %p55
    %p57 = scmp.ne.s32.totalorder %s48, %s49
    %p58 = scmp.eq.s32.totalorder %s17, 0
    %p59 = por %p57, %p58
    %p60 = scmp.ne.s32.totalorder %s48, %s49
    %p61 = scmp.eq.s32.totalorder %s18, 1
    %p62 = por %p60, %p61
    %p64 = scmp.ne.s32.totalorder %s49, %s63
    %p65 = scmp.eq.s32.totalorder %s18, 0
    %p66 = por %p64, %p65
    %s68 = sadd.s32 %s67, 1
    %p71 = scmp.eq.s32.totalorder %s12, 1
    %p72 = scmp.ne.s32.totalorder %s67, %s69
    %p73 = scmp.eq.s32.totalorder %s12, 0
    %p74 = por %p72, %p73
    %p75 = scmp.ne.s32.totalorder %s67, %s69
    %p76 = scmp.eq.s32.totalorder %s17, 1
    %p77 = por %p75, %p76
    %p78 = scmp.ne.s32.totalorder %s69, %s70
    %p79 = scmp.eq.s32.totalorder %s17, 0
    %p80 = por %p78, %p79
    %p81 = scmp.ne.s32.totalorder %s69, %s70
    %p82 = scmp.eq.s32.totalorder %s18, 1
    %p83 = por %p81, %p82
    %p85 = scmp.ne.s32.totalorder %s70, %s84
    %p86 = scmp.eq.s32.totalorder %s18, 0
    %p87 = por %p85, %p86
    %s89 = sadd.s32 %s88, 1
    %p92 = scmp.eq.s32.totalorder %s12, 1
    %p93 = scmp.ne.s32.totalorder %s88, %s90
    %p94 = scmp.eq.s32.totalorder %s12, 0
    %p95 = por %p93, %p94
    %p96 = scmp.ne.s32.totalorder %s88, %s90
    %p97 = scmp.eq.s32.totalorder %s17, 1
    %p98 = por %p96, %p97
    %p99 = scmp.ne.s32.totalorder %s90, %s91
    %p100 = scmp.eq.s32.totalorder %s17, 0
    %p101 = por %p99, %p100
    %p102 = scmp.ne.s32.totalorder %s90, %s91
    %p103 = scmp.eq.s32.totalorder %s18, 1
    %p104 = por %p102, %p103
    %p106 = scmp.ne.s32.totalorder %s91, %s105
    %p107 = scmp.eq.s32.totalorder %s18, 0
    %p108 = por %p106, %p107
    %s110 = sadd.s32 %s109, 1
    %p113 = scmp.eq.s32.totalorder %s12, 1
    %p114 = scmp.ne.s32.totalorder %s109, %s111
    %p115 = scmp.eq.s32.totalorder %s12, 0
    %p116 = por %p114, %p115
    %p117 = scmp.ne.s32.totalorder %s109, %s111
    %p118 = scmp.eq.s32.totalorder %s17, 1
    %p119 = por %p117, %p118
    %p120 = scmp.ne.s32.totalorder %s111, %s112
    %p121 = scmp.eq.s32.totalorder %s17, 0
    %p122 = por %p120, %p121
    %p123 = scmp.ne.s32.totalorder %s111, %s112
    %p124 = scmp.eq.s32.totalorder %s18, 1
    %p125 = por %p123, %p124
    %p127 = scmp.ne.s32.totalorder %s112, %s126
    %p128 = scmp.eq.s32.totalorder %s18, 0
    %p129 = por %p127, %p128
    %s131 = sadd.s32 %s130, 1
    %p134 = scmp.eq.s32.totalorder %s12, 1
    %p135 = scmp.ne.s32.totalorder %s130, %s132
    %p136 = scmp.eq.s32.totalorder %s12, 0
    %p137 = por %p135, %p136
    %p138 = scmp.ne.s32.totalorder %s130, %s132
    %p139 = scmp.eq.s32.totalorder %s17, 1
    %p140 = por %p138, %p139
    %p141 = scmp.ne.s32.totalorder %s132, %s133
    %p142 = scmp.eq.s32.totalorder %s17, 0
    %p143 = por %p141, %p142
    %p144 = scmp.ne.s32.totalorder %s132, %s133
    %p145 = scmp.eq.s32.totalorder %s18, 1
    %p146 = por %p144, %p145
    %p148 = scmp.ne.s32.totalorder %s133, %s147
    %p149 = scmp.eq.s32.totalorder %s18, 0
    %p150 = por %p148, %p149
    %s151 = ssub.s32 %s12, %s19
    %p152 = scmp.eq.s32.totalorder %s151, 0
    %s154 = sadd.s32 %s153, 1
    %s155 = scalar_select %p152, %s153, %s154
    %p158 = pneg %p152
    %p159 = scmp.eq.s32.totalorder %s12, 1
    %p160 = por %p158, %p159
    %p161 = scmp.ne.s32.totalorder %s153, %s156
    %p162 = scmp.eq.s32.totalorder %s12, 0
    %p163 = por %p161, %p162
    %p164 = scmp.ne.s32.totalorder %s153, %s156
    %p165 = scmp.eq.s32.totalorder %s17, 1
    %p166 = por %p164, %p165
    %p167 = scmp.ne.s32.totalorder %s156, %s157
    %p168 = scmp.eq.s32.totalorder %s17, 0
    %p169 = por %p167, %p168
    %p170 = scmp.ne.s32.totalorder %s156, %s157
    %p171 = scmp.eq.s32.totalorder %s18, 1
    %p172 = por %p170, %p171
    %p174 = scmp.ne.s32.totalorder %s157, %s173
    %p175 = scmp.eq.s32.totalorder %s18, 0
    %p176 = por %p174, %p175
    %p177 = scmp.le.s32.totalorder 1, %s12
    %p178 = scmp.lt.s32.totalorder %s12, 3
    %p179 = pnand %p177, %p178
    %p180 = pneg %p179
    // Predicated region
    $region9: #{resnet_block_forward.1} parent=5 // pred_check
      _
    $region10: #{resnet_block_forward.1} parent=5 // pred_check_branch
      %182 = sbr.rel (%p179) target = $region12
    $region11: #{resnet_block_forward.1} parent=5 // pred_region
      %s183 = ssub.s32 %s12, 1
      // Predicated region
      $region13: #{resnet_block_forward.1} parent=11 // pred_check
        %p184 = pneg %p59
      $region14: #{resnet_block_forward.1} parent=11 // pred_check_branch
        %186 = sbr.rel (%p184) target = $region16
      $region15: #{resnet_block_forward.1} parent=11 // pred_region
        _
      $region16: #{resnet_block_forward.1} parent=11 // pred_fallthru
        _
      // Predicated region
      $region17: #{resnet_block_forward.1} parent=11 // pred_check
        %p187 = pneg %p80
      $region18: #{resnet_block_forward.1} parent=11 // pred_check_branch
        %189 = sbr.rel (%p187) target = $region20
      $region19: #{resnet_block_forward.1} parent=11 // pred_region
        _
      $region20: #{resnet_block_forward.1} parent=11 // pred_fallthru
        _
      // Predicated region
      $region21: #{resnet_block_forward.1} parent=11 // pred_check
        %p190 = pneg %p101
      $region22: #{resnet_block_forward.1} parent=11 // pred_check_branch
        %192 = sbr.rel (%p190) target = $region24
      $region23: #{resnet_block_forward.1} parent=11 // pred_region
        _
      $region24: #{resnet_block_forward.1} parent=11 // pred_fallthru
        _
      // Predicated region
      $region25: #{resnet_block_forward.1} parent=11 // pred_check
        %p193 = pneg %p122
      $region26: #{resnet_block_forward.1} parent=11 // pred_check_branch
        %195 = sbr.rel (%p193) target = $region28
      $region27: #{resnet_block_forward.1} parent=11 // pred_region
        _
      $region28: #{resnet_block_forward.1} parent=11 // pred_fallthru
        _
      // Predicated region
      $region29: #{resnet_block_forward.1} parent=11 // pred_check
        %p196 = pneg %p143
      $region30: #{resnet_block_forward.1} parent=11 // pred_check_branch
        %198 = sbr.rel (%p196) target = $region32
      $region31: #{resnet_block_forward.1} parent=11 // pred_region
        _
      $region32: #{resnet_block_forward.1} parent=11 // pred_fallthru
        _
    $region12: #{resnet_block_forward.1} parent=5 // pred_fallthru
      _
    %p199 = scmp.lt.s32.totalorder %s12, 2
    // Predicated region
    $region33: #{resnet_block_forward.1} parent=5 // pred_check
      %p200 = pneg %p199
    $region34: #{resnet_block_forward.1} parent=5 // pred_check_branch
      %202 = sbr.rel (%p200) target = $region36
    $region35: #{resnet_block_forward.1} parent=5 // pred_region
      // Predicated region
      $region37: #{resnet_block_forward.1} parent=35 // pred_check
        %p203 = pneg %p32
      $region38: #{resnet_block_forward.1} parent=35 // pred_check_branch
        %205 = sbr.rel (%p203) target = $region40
      $region39: #{resnet_block_forward.1} parent=35 // pred_region
        %p206 = scmp.lt.s32.totalorder %s12, 1
        %s207 = scalar_select %p206, %s12, 1
        %s208 = smul.addr %s207, 41
        %s209 = smul.addr %s208, 8
        %s210 = scalar_lea.vmem %s0, %s209
      $region40: #{resnet_block_forward.1} parent=35 // pred_fallthru
        _
    $region36: #{resnet_block_forward.1} parent=5 // pred_fallthru
      _
    %p211 = scmp.le.s32.totalorder 1, %s12
    %p212 = scmp.lt.s32.totalorder %s12, 3
    %p213 = pnand %p211, %p212
    %p214 = pneg %p213
    // Predicated region
    $region41: #{resnet_block_forward.1} parent=5 // pred_check
      _
    $region42: #{resnet_block_forward.1} parent=5 // pred_check_branch
      %216 = sbr.rel (%p213) target = $region44
    $region43: #{resnet_block_forward.1} parent=5 // pred_region
      %s217 = ssub.s32 %s12, 1
      %p218 = scmp.lt.s32.totalorder %s17, 1
      %s219 = scalar_select %p218, %s17, 1
      %s220 = smul.addr %s219, 41
      %s221 = smul.addr %s220, 8
      %s222 = scalar_lea.vmem %s0, %s221
      %p223 = pneg %p38
      %p224 = pneg %p35
      %p225 = pneg %p59
      %p226 = pneg %p56
      %p227 = pneg %p80
      %p228 = pneg %p77
      %p229 = pneg %p101
      %p230 = pneg %p98
      %p231 = pneg %p122
      %p232 = pneg %p119
      %p233 = pneg %p143
      %p234 = pneg %p140
      %p235 = pneg %p169
      %p236 = pneg %p166
      %p237 = scmp.lt.s32.totalorder %s17, 1
      %s238 = scalar_select %p237, %s17, 1
      %s239 = smul.addr %s238, 41
      %s240 = smul.addr %s239, 8
      %s241 = scalar_lea.vmem %s6, %s240
      %p242 = scmp.lt.s32.totalorder %s17, 1
      %s243 = scalar_select %p242, %s17, 1
      %s244 = smul.addr %s243, 41
      %s245 = smul.addr %s244, 8
      %s246 = scalar_lea.vmem %s0, %s245
      %p247 = scmp.lt.s32.totalorder %s17, 1
      %s248 = scalar_select %p247, %s17, 1
      %s249 = smul.addr %s248, 41
      %s250 = smul.addr %s249, 8
      %s251 = scalar_lea.vmem %s6, %s250
      %v252 = vlaneseq
      %v253 = vshrl.u32 %v252, 7
      %v254 = vadd.s32 %v253, 8
      %v255 = vadd.s32 %v253, 16
      %v256 = vadd.s32 %v253, 24
      %v257 = vadd.s32 %v253, 32
      %v258 = vadd.s32 %v253, 40
      %v259 = vadd.s32 %v253, 48
      %v260 = vadd.s32 %v253, 56
      %v261 = vadd.s32 %v253, 64
      %v262 = vadd.s32 %v253, 72
      %v263 = vadd.s32 %v253, 80
      %v264 = vadd.s32 %v253, 88
      %v265 = vadd.s32 %v253, 96
      %v266 = vadd.s32 %v253, 104
      %v267 = vadd.s32 %v253, 112
      %v268 = vadd.s32 %v253, 120
      %v269 = vadd.s32 %v253, 128
      %v270 = vadd.s32 %v253, 136
      %v271 = vadd.s32 %v253, 144
      %v272 = vadd.s32 %v253, 152
      %v273 = vadd.s32 %v253, 160
      %v274 = vadd.s32 %v253, 168
      %v275 = vadd.s32 %v253, 176
      %v276 = vadd.s32 %v253, 184
      %v277 = vadd.s32 %v253, 192
      %v278 = vadd.s32 %v253, 200
      %v279 = vadd.s32 %v253, 208
      %v280 = vadd.s32 %v253, 216
      %v281 = vadd.s32 %v253, 224
      %v282 = vadd.s32 %v253, 232
      %v283 = vadd.s32 %v253, 240
      %v284 = vadd.s32 %v253, 248
      %v285 = vadd.s32 %v253, 256
      %v286 = vadd.s32 %v253, 264
      %v287 = vadd.s32 %v253, 272
      %v288 = vadd.s32 %v253, 280
      %v289 = vadd.s32 %v253, 288
      %v290 = vadd.s32 %v253, 296
      %v291 = vadd.s32 %v253, 304
      %v292 = vadd.s32 %v253, 312
      %v293 = vadd.s32 %v253, 320
      %v294 = vld [vmem:[%s1] sm:$0xff]
      %v295 = vld [vmem:[%s1 + $0x8] sm:$0xff]
      %v296 = vld [vmem:[%s1 + $0x10] sm:$0xff]
      %v297 = vld [vmem:[%s1 + $0x18] sm:$0xff]
      %v298 = vld [vmem:[%s1 + $0x20] sm:$0xff]
      %v299 = vld [vmem:[%s1 + $0x28] sm:$0xff]
      %v300 = vld [vmem:[%s1 + $0x30] sm:$0xff]
      %v301 = vld [vmem:[%s1 + $0x38] sm:$0xff]
      %v302 = vld [vmem:[%s1 + $0x40] sm:$0xff]
      %v303 = vld [vmem:[%s1 + $0x48] sm:$0xff]
      %v304 = vld [vmem:[%s1 + $0x50] sm:$0xff]
      %v305 = vld [vmem:[%s1 + $0x58] sm:$0xff]
      %v306 = vld [vmem:[%s1 + $0x60] sm:$0xff]
      %v307 = vld [vmem:[%s1 + $0x68] sm:$0xff]
      %v308 = vld [vmem:[%s1 + $0x70] sm:$0xff]
      %v309 = vld [vmem:[%s1 + $0x78] sm:$0xff]
      %v310 = vld [vmem:[%s1 + $0x80] sm:$0xff]
      %v311 = vld [vmem:[%s1 + $0x88] sm:$0xff]
      %v312 = vld [vmem:[%s1 + $0x90] sm:$0xff]
      %v313 = vld [vmem:[%s1 + $0x98] sm:$0xff]
      %v314 = vld [vmem:[%s1 + $0xa0] sm:$0xff]
      %v315 = vld [vmem:[%s1 + $0xa8] sm:$0xff]
      %v316 = vld [vmem:[%s1 + $0xb0] sm:$0xff]
      %v317 = vld [vmem:[%s1 + $0xb8] sm:$0xff]
      %v318 = vld [vmem:[%s1 + $0xc0] sm:$0xff]
      %v319 = vld [vmem:[%s1 + $0xc8] sm:$0xff]
      %v320 = vld [vmem:[%s1 + $0xd0] sm:$0xff]
      %v321 = vld [vmem:[%s1 + $0xd8] sm:$0xff]
      %v322 = vld [vmem:[%s1 + $0xe0] sm:$0xff]
      %v323 = vld [vmem:[%s1 + $0xe8] sm:$0xff]
      %v324 = vld [vmem:[%s1 + $0xf0] sm:$0xff]
      %v325 = vld [vmem:[%s1 + $0xf8] sm:$0xff]
      %v326 = vld [vmem:[%s1 + $0x100] sm:$0xff]
      %v327 = vld [vmem:[%s1 + $0x108] sm:$0xff]
      %v328 = vld [vmem:[%s1 + $0x110] sm:$0xff]
      %v329 = vld [vmem:[%s1 + $0x118] sm:$0xff]
      %v330 = vld [vmem:[%s1 + $0x120] sm:$0xff]
      %v331 = vld [vmem:[%s1 + $0x128] sm:$0xff]
      %v332 = vld [vmem:[%s1 + $0x130] sm:$0xff]
      %v333 = vld [vmem:[%s1 + $0x138] sm:$0xff]
      %v334 = vld [vmem:[%s1 + $0x140] sm:$0xf]
      %vm335 = vcmp.lt.s32.totalorder %v253, 18
      %vm336 = vcmp.lt.s32.totalorder %v254, 18
      %vm337 = vcmp.lt.s32.totalorder %v255, 18
      %vm338 = vcmp.lt.s32.totalorder %v256, 18
      %vm339 = vcmp.lt.s32.totalorder %v257, 18
      %vm340 = vcmp.lt.s32.totalorder %v258, 18
      %vm341 = vcmp.lt.s32.totalorder %v259, 18
      %vm342 = vcmp.lt.s32.totalorder %v260, 18
      %vm343 = vcmp.lt.s32.totalorder %v261, 18
      %vm344 = vcmp.lt.s32.totalorder %v262, 18
      %vm345 = vcmp.lt.s32.totalorder %v263, 18
      %vm346 = vcmp.lt.s32.totalorder %v264, 18
      %vm347 = vcmp.lt.s32.totalorder %v265, 18
      %vm348 = vcmp.lt.s32.totalorder %v266, 18
      %vm349 = vcmp.lt.s32.totalorder %v267, 18
      %vm350 = vcmp.lt.s32.totalorder %v268, 18
      %vm351 = vcmp.lt.s32.totalorder %v269, 18
      %vm352 = vcmp.lt.s32.totalorder %v270, 18
      %vm353 = vcmp.lt.s32.totalorder %v271, 18
      %vm354 = vcmp.lt.s32.totalorder %v272, 18
      %vm355 = vcmp.lt.s32.totalorder %v273, 18
      %vm356 = vcmp.lt.s32.totalorder %v274, 18
      %vm357 = vcmp.lt.s32.totalorder %v275, 18
      %vm358 = vcmp.lt.s32.totalorder %v276, 18
      %vm359 = vcmp.lt.s32.totalorder %v277, 18
      %vm360 = vcmp.lt.s32.totalorder %v278, 18
      %vm361 = vcmp.lt.s32.totalorder %v279, 18
      %vm362 = vcmp.lt.s32.totalorder %v280, 18
      %vm363 = vcmp.lt.s32.totalorder %v281, 18
      %vm364 = vcmp.lt.s32.totalorder %v282, 18
      %vm365 = vcmp.lt.s32.totalorder %v283, 18
      %vm366 = vcmp.lt.s32.totalorder %v284, 18
      %vm367 = vcmp.lt.s32.totalorder %v285, 18
      %vm368 = vcmp.lt.s32.totalorder %v286, 18
      %vm369 = vcmp.lt.s32.totalorder %v287, 18
      %vm370 = vcmp.lt.s32.totalorder %v288, 18
      %vm371 = vcmp.lt.s32.totalorder %v289, 18
      %vm372 = vcmp.lt.s32.totalorder %v290, 18
      %vm373 = vcmp.lt.s32.totalorder %v291, 18
      %vm374 = vcmp.lt.s32.totalorder %v292, 18
      %vm375 = vcmp.lt.s32.totalorder %v293, 18
      %vm376 = vcmp.ge.s32.totalorder %v253, 306
      %vm377 = vcmp.ge.s32.totalorder %v254, 306
      %vm378 = vcmp.ge.s32.totalorder %v255, 306
      %vm379 = vcmp.ge.s32.totalorder %v256, 306
      %vm380 = vcmp.ge.s32.totalorder %v257, 306
      %vm381 = vcmp.ge.s32.totalorder %v258, 306
      %vm382 = vcmp.ge.s32.totalorder %v259, 306
      %vm383 = vcmp.ge.s32.totalorder %v260, 306
      %vm384 = vcmp.ge.s32.totalorder %v261, 306
      %vm385 = vcmp.ge.s32.totalorder %v262, 306
      %vm386 = vcmp.ge.s32.totalorder %v263, 306
      %vm387 = vcmp.ge.s32.totalorder %v264, 306
      %vm388 = vcmp.ge.s32.totalorder %v265, 306
      %vm389 = vcmp.ge.s32.totalorder %v266, 306
      %vm390 = vcmp.ge.s32.totalorder %v267, 306
      %vm391 = vcmp.ge.s32.totalorder %v268, 306
      %vm392 = vcmp.ge.s32.totalorder %v269, 306
      %vm393 = vcmp.ge.s32.totalorder %v270, 306
      %vm394 = vcmp.ge.s32.totalorder %v271, 306
      %vm395 = vcmp.ge.s32.totalorder %v272, 306
      %vm396 = vcmp.ge.s32.totalorder %v273, 306
      %vm397 = vcmp.ge.s32.totalorder %v274, 306
      %vm398 = vcmp.ge.s32.totalorder %v275, 306
      %vm399 = vcmp.ge.s32.totalorder %v276, 306
      %vm400 = vcmp.ge.s32.totalorder %v277, 306
      %vm401 = vcmp.ge.s32.totalorder %v278, 306
      %vm402 = vcmp.ge.s32.totalorder %v279, 306
      %vm403 = vcmp.ge.s32.totalorder %v280, 306
      %vm404 = vcmp.ge.s32.totalorder %v281, 306
      %vm405 = vcmp.ge.s32.totalorder %v282, 306
      %vm406 = vcmp.ge.s32.totalorder %v283, 306
      %vm407 = vcmp.ge.s32.totalorder %v284, 306
      %vm408 = vcmp.ge.s32.totalorder %v285, 306
      %vm409 = vcmp.ge.s32.totalorder %v286, 306
      %vm410 = vcmp.ge.s32.totalorder %v287, 306
      %vm411 = vcmp.ge.s32.totalorder %v288, 306
      %vm412 = vcmp.ge.s32.totalorder %v289, 306
      %vm413 = vcmp.ge.s32.totalorder %v290, 306
      %vm414 = vcmp.ge.s32.totalorder %v291, 306
      %vm415 = vcmp.ge.s32.totalorder %v292, 306
      %vm416 = vcmp.ge.s32.totalorder %v293, 306
      %vm417 = vcmp.eq.s32.totalorder %v294, 0
      %vm418 = vcmp.eq.s32.totalorder %v295, 0
      %vm419 = vcmp.eq.s32.totalorder %v296, 0
      %vm420 = vcmp.eq.s32.totalorder %v297, 0
      %vm421 = vcmp.eq.s32.totalorder %v298, 0
      %vm422 = vcmp.eq.s32.totalorder %v299, 0
      %vm423 = vcmp.eq.s32.totalorder %v300, 0
      %vm424 = vcmp.eq.s32.totalorder %v301, 0
      %vm425 = vcmp.eq.s32.totalorder %v302, 0
      %vm426 = vcmp.eq.s32.totalorder %v303, 0
      %vm427 = vcmp.eq.s32.totalorder %v304, 0
      %vm428 = vcmp.eq.s32.totalorder %v305, 0
      %vm429 = vcmp.eq.s32.totalorder %v306, 0
      %vm430 = vcmp.eq.s32.totalorder %v307, 0
      %vm431 = vcmp.eq.s32.totalorder %v308, 0
      %vm432 = vcmp.eq.s32.totalorder %v309, 0
      %vm433 = vcmp.eq.s32.totalorder %v310, 0
      %vm434 = vcmp.eq.s32.totalorder %v311, 0
      %vm435 = vcmp.eq.s32.totalorder %v312, 0
      %vm436 = vcmp.eq.s32.totalorder %v313, 0
      %vm437 = vcmp.eq.s32.totalorder %v314, 0
      %vm438 = vcmp.eq.s32.totalorder %v315, 0
      %vm439 = vcmp.eq.s32.totalorder %v316, 0
      %vm440 = vcmp.eq.s32.totalorder %v317, 0
      %vm441 = vcmp.eq.s32.totalorder %v318, 0
      %vm442 = vcmp.eq.s32.totalorder %v319, 0
      %vm443 = vcmp.eq.s32.totalorder %v320, 0
      %vm444 = vcmp.eq.s32.totalorder %v321, 0
      %vm445 = vcmp.eq.s32.totalorder %v322, 0
      %vm446 = vcmp.eq.s32.totalorder %v323, 0
      %vm447 = vcmp.eq.s32.totalorder %v324, 0
      %vm448 = vcmp.eq.s32.totalorder %v325, 0
      %vm449 = vcmp.eq.s32.totalorder %v326, 0
      %vm450 = vcmp.eq.s32.totalorder %v327, 0
      %vm451 = vcmp.eq.s32.totalorder %v328, 0
      %vm452 = vcmp.eq.s32.totalorder %v329, 0
      %vm453 = vcmp.eq.s32.totalorder %v330, 0
      %vm454 = vcmp.eq.s32.totalorder %v331, 0
      %vm455 = vcmp.eq.s32.totalorder %v332, 0
      %vm456 = vcmp.eq.s32.totalorder %v333, 0
      %vm457 = vcmp.eq.s32.totalorder %v334, 0
      %vm458 = vcmp.eq.s32.totalorder %v294, 17
      %vm459 = vcmp.eq.s32.totalorder %v295, 17
      %vm460 = vcmp.eq.s32.totalorder %v296, 17
      %vm461 = vcmp.eq.s32.totalorder %v297, 17
      %vm462 = vcmp.eq.s32.totalorder %v298, 17
      %vm463 = vcmp.eq.s32.totalorder %v299, 17
      %vm464 = vcmp.eq.s32.totalorder %v300, 17
      %vm465 = vcmp.eq.s32.totalorder %v301, 17
      %vm466 = vcmp.eq.s32.totalorder %v302, 17
      %vm467 = vcmp.eq.s32.totalorder %v303, 17
      %vm468 = vcmp.eq.s32.totalorder %v304, 17
      %vm469 = vcmp.eq.s32.totalorder %v305, 17
      %vm470 = vcmp.eq.s32.totalorder %v306, 17
      %vm471 = vcmp.eq.s32.totalorder %v307, 17
      %vm472 = vcmp.eq.s32.totalorder %v308, 17
      %vm473 = vcmp.eq.s32.totalorder %v309, 17
      %vm474 = vcmp.eq.s32.totalorder %v310, 17
      %vm475 = vcmp.eq.s32.totalorder %v311, 17
      %vm476 = vcmp.eq.s32.totalorder %v312, 17
      %vm477 = vcmp.eq.s32.totalorder %v313, 17
      %vm478 = vcmp.eq.s32.totalorder %v314, 17
      %vm479 = vcmp.eq.s32.totalorder %v315, 17
      %vm480 = vcmp.eq.s32.totalorder %v316, 17
      %vm481 = vcmp.eq.s32.totalorder %v317, 17
      %vm482 = vcmp.eq.s32.totalorder %v318, 17
      %vm483 = vcmp.eq.s32.totalorder %v319, 17
      %vm484 = vcmp.eq.s32.totalorder %v320, 17
      %vm485 = vcmp.eq.s32.totalorder %v321, 17
      %vm486 = vcmp.eq.s32.totalorder %v322, 17
      %vm487 = vcmp.eq.s32.totalorder %v323, 17
      %vm488 = vcmp.eq.s32.totalorder %v324, 17
      %vm489 = vcmp.eq.s32.totalorder %v325, 17
      %vm490 = vcmp.eq.s32.totalorder %v326, 17
      %vm491 = vcmp.eq.s32.totalorder %v327, 17
      %vm492 = vcmp.eq.s32.totalorder %v328, 17
      %vm493 = vcmp.eq.s32.totalorder %v329, 17
      %vm494 = vcmp.eq.s32.totalorder %v330, 17
      %vm495 = vcmp.eq.s32.totalorder %v331, 17
      %vm496 = vcmp.eq.s32.totalorder %v332, 17
      %vm497 = vcmp.eq.s32.totalorder %v333, 17
      %vm498 = vcmp.eq.s32.totalorder %v334, 17
      %vm499 = vmor %vm335, %vm376
      %vm500 = vmor %vm336, %vm377
      %vm501 = vmor %vm337, %vm378
      %vm502 = vmor %vm338, %vm379
      %vm503 = vmor %vm339, %vm380
      %vm504 = vmor %vm340, %vm381
      %vm505 = vmor %vm341, %vm382
      %vm506 = vmor %vm342, %vm383
      %vm507 = vmor %vm343, %vm384
      %vm508 = vmor %vm344, %vm385
      %vm509 = vmor %vm345, %vm386
      %vm510 = vmor %vm346, %vm387
      %vm511 = vmor %vm347, %vm388
      %vm512 = vmor %vm348, %vm389
      %vm513 = vmor %vm349, %vm390
      %vm514 = vmor %vm350, %vm391
      %vm515 = vmor %vm351, %vm392
      %vm516 = vmor %vm352, %vm393
      %vm517 = vmor %vm353, %vm394
      %vm518 = vmor %vm354, %vm395
      %vm519 = vmor %vm355, %vm396
      %vm520 = vmor %vm356, %vm397
      %vm521 = vmor %vm357, %vm398
      %vm522 = vmor %vm358, %vm399
      %vm523 = vmor %vm359, %vm400
      %vm524 = vmor %vm360, %vm401
      %vm525 = vmor %vm361, %vm402
      %vm526 = vmor %vm362, %vm403
      %vm527 = vmor %vm363, %vm404
      %vm528 = vmor %vm364, %vm405
      %vm529 = vmor %vm365, %vm406
      %vm530 = vmor %vm366, %vm407
      %vm531 = vmor %vm367, %vm408
      %vm532 = vmor %vm368, %vm409
      %vm533 = vmor %vm369, %vm410
      %vm534 = vmor %vm370, %vm411
      %vm535 = vmor %vm371, %vm412
      %vm536 = vmor %vm372, %vm413
      %vm537 = vmor %vm373, %vm414
      %vm538 = vmor %vm374, %vm415
      %vm539 = vmor %vm375, %vm416
      %vm540 = vmor %vm499, %vm417
      %vm541 = vmor %vm500, %vm418
      %vm542 = vmor %vm501, %vm419
      %vm543 = vmor %vm502, %vm420
      %vm544 = vmor %vm503, %vm421
      %vm545 = vmor %vm504, %vm422
      %vm546 = vmor %vm505, %vm423
      %vm547 = vmor %vm506, %vm424
      %vm548 = vmor %vm507, %vm425
      %vm549 = vmor %vm508, %vm426
      %vm550 = vmor %vm509, %vm427
      %vm551 = vmor %vm510, %vm428
      %vm552 = vmor %vm511, %vm429
      %vm553 = vmor %vm512, %vm430
      %vm554 = vmor %vm513, %vm431
      %vm555 = vmor %vm514, %vm432
      %vm556 = vmor %vm515, %vm433
      %vm557 = vmor %vm516, %vm434
      %vm558 = vmor %vm517, %vm435
      %vm559 = vmor %vm518, %vm436
      %vm560 = vmor %vm519, %vm437
      %vm561 = vmor %vm520, %vm438
      %vm562 = vmor %vm521, %vm439
      %vm563 = vmor %vm522, %vm440
      %vm564 = vmor %vm523, %vm441
      %vm565 = vmor %vm524, %vm442
      %vm566 = vmor %vm525, %vm443
      %vm567 = vmor %vm526, %vm444
      %vm568 = vmor %vm527, %vm445
      %vm569 = vmor %vm528, %vm446
      %vm570 = vmor %vm529, %vm447
      %vm571 = vmor %vm530, %vm448
      %vm572 = vmor %vm531, %vm449
      %vm573 = vmor %vm532, %vm450
      %vm574 = vmor %vm533, %vm451
      %vm575 = vmor %vm534, %vm452
      %vm576 = vmor %vm535, %vm453
      %vm577 = vmor %vm536, %vm454
      %vm578 = vmor %vm537, %vm455
      %vm579 = vmor %vm538, %vm456
      %vm580 = vmor %vm539, %vm457
      %vm581 = vmor %vm540, %vm458
      %vm582 = vmor %vm541, %vm459
      %vm583 = vmor %vm542, %vm460
      %vm584 = vmor %vm543, %vm461
      %vm585 = vmor %vm544, %vm462
      %vm586 = vmor %vm545, %vm463
      %vm587 = vmor %vm546, %vm464
      %vm588 = vmor %vm547, %vm465
      %vm589 = vmor %vm548, %vm466
      %vm590 = vmor %vm549, %vm467
      %vm591 = vmor %vm550, %vm468
      %vm592 = vmor %vm551, %vm469
      %vm593 = vmor %vm552, %vm470
      %vm594 = vmor %vm553, %vm471
      %vm595 = vmor %vm554, %vm472
      %vm596 = vmor %vm555, %vm473
      %vm597 = vmor %vm556, %vm474
      %vm598 = vmor %vm557, %vm475
      %vm599 = vmor %vm558, %vm476
      %vm600 = vmor %vm559, %vm477
      %vm601 = vmor %vm560, %vm478
      %vm602 = vmor %vm561, %vm479
      %vm603 = vmor %vm562, %vm480
      %vm604 = vmor %vm563, %vm481
      %vm605 = vmor %vm564, %vm482
      %vm606 = vmor %vm565, %vm483
      %vm607 = vmor %vm566, %vm484
      %vm608 = vmor %vm567, %vm485
      %vm609 = vmor %vm568, %vm486
      %vm610 = vmor %vm569, %vm487
      %vm611 = vmor %vm570, %vm488
      %vm612 = vmor %vm571, %vm489
      %vm613 = vmor %vm572, %vm490
      %vm614 = vmor %vm573, %vm491
      %vm615 = vmor %vm574, %vm492
      %vm616 = vmor %vm575, %vm493
      %vm617 = vmor %vm576, %vm494
      %vm618 = vmor %vm577, %vm495
      %vm619 = vmor %vm578, %vm496
      %vm620 = vmor %vm579, %vm497
      %vm621 = vmor %vm580, %vm498
      %vm622 = vmxor %vm581, 1
      %vm623 = vmxor %vm582, 1
      %vm624 = vmxor %vm583, 1
      %vm625 = vmxor %vm584, 1
      %vm626 = vmxor %vm585, 1
      %vm627 = vmxor %vm586, 1
      %vm628 = vmxor %vm587, 1
      %vm629 = vmxor %vm588, 1
      %vm630 = vmxor %vm589, 1
      %vm631 = vmxor %vm590, 1
      %vm632 = vmxor %vm591, 1
      %vm633 = vmxor %vm592, 1
      %vm634 = vmxor %vm593, 1
      %vm635 = vmxor %vm594, 1
      %vm636 = vmxor %vm595, 1
      %vm637 = vmxor %vm596, 1
      %vm638 = vmxor %vm597, 1
      %vm639 = vmxor %vm598, 1
      %vm640 = vmxor %vm599, 1
      %vm641 = vmxor %vm600, 1
      %vm642 = vmxor %vm601, 1
      %vm643 = vmxor %vm602, 1
      %vm644 = vmxor %vm603, 1
      %vm645 = vmxor %vm604, 1
      %vm646 = vmxor %vm605, 1
      %vm647 = vmxor %vm606, 1
      %vm648 = vmxor %vm607, 1
      %vm649 = vmxor %vm608, 1
      %vm650 = vmxor %vm609, 1
      %vm651 = vmxor %vm610, 1
      %vm652 = vmxor %vm611, 1
      %vm653 = vmxor %vm612, 1
      %vm654 = vmxor %vm613, 1
      %vm655 = vmxor %vm614, 1
      %vm656 = vmxor %vm615, 1
      %vm657 = vmxor %vm616, 1
      %vm658 = vmxor %vm617, 1
      %vm659 = vmxor %vm618, 1
      %vm660 = vmxor %vm619, 1
      %vm661 = vmxor %vm620, 1
      %vm662 = vmxor %vm621, 1
      %663 = vst [vmem:[#allocation2] sm:$0xff] 0.0
      %664 = vst [vmem:[#allocation2 + $0x8] sm:$0xff] 0.0
      %665 = vst [vmem:[#allocation2 + $0x10] sm:$0xff] 0.0
      %666 = vst [vmem:[#allocation2 + $0x18] sm:$0xff] 0.0
      %667 = vst [vmem:[#allocation2 + $0x20] sm:$0xf] 0.0
      %668 = vst [vmem:[#allocation2 + $0x168] sm:$0xff] 0.0
      %669 = vst [vmem:[#allocation2 + $0x170] sm:$0xff] 0.0
      %670 = vst [vmem:[#allocation2 + $0x178] sm:$0xff] 0.0
      %671 = vst [vmem:[#allocation2 + $0x180] sm:$0xff] 0.0
      %672 = vst [vmem:[#allocation2 + $0x188] sm:$0xf] 0.0
      %v673 = vld [vmem:[%s246] sm:$0xff]
      %v674 = vld [vmem:[%s246 + $0x8] sm:$0xff]
      %v675 = vld [vmem:[%s246 + $0x10] sm:$0xff]
      %v676 = vld [vmem:[%s246 + $0x18] sm:$0xff]
      %v677 = vld [vmem:[%s246 + $0x20] sm:$0xff]
      %v678 = vld [vmem:[%s246 + $0x28] sm:$0xff]
      %v679 = vld [vmem:[%s246 + $0x30] sm:$0xff]
      %v680 = vld [vmem:[%s246 + $0x38] sm:$0xff]
      %v681 = vld [vmem:[%s246 + $0x40] sm:$0xff]
      %v682 = vld [vmem:[%s246 + $0x48] sm:$0xff]
      %v683 = vld [vmem:[%s246 + $0x50] sm:$0xff]
      %v684 = vld [vmem:[%s246 + $0x58] sm:$0xff]
      %v685 = vld [vmem:[%s246 + $0x60] sm:$0xff]
      %v686 = vld [vmem:[%s246 + $0x68] sm:$0xff]
      %v687 = vld [vmem:[%s246 + $0x70] sm:$0xff]
      %v688 = vld [vmem:[%s246 + $0x78] sm:$0xff]
      %v689 = vld [vmem:[%s246 + $0x80] sm:$0xff]
      %v690 = vld [vmem:[%s246 + $0x88] sm:$0xff]
      %v691 = vld [vmem:[%s246 + $0x90] sm:$0xff]
      %v692 = vld [vmem:[%s246 + $0x98] sm:$0xff]
      %v693 = vld [vmem:[%s246 + $0xa0] sm:$0xff]
      %v694 = vld [vmem:[%s246 + $0xa8] sm:$0xff]
      %v695 = vld [vmem:[%s246 + $0xb0] sm:$0xff]
      %v696 = vld [vmem:[%s246 + $0xb8] sm:$0xff]
      %v697 = vld [vmem:[%s246 + $0xc0] sm:$0xff]
      %v698 = vld [vmem:[%s246 + $0xc8] sm:$0xff]
      %v699 = vld [vmem:[%s246 + $0xd0] sm:$0xff]
      %v700 = vld [vmem:[%s246 + $0xd8] sm:$0xff]
      %v701 = vld [vmem:[%s246 + $0xe0] sm:$0xff]
      %v702 = vld [vmem:[%s246 + $0xe8] sm:$0xff]
      %v703 = vld [vmem:[%s246 + $0xf0] sm:$0xff]
      %v704 = vld [vmem:[%s246 + $0xf8] sm:$0xff]
      %v705 = vld [vmem:[%s246 + $0x100] sm:$0xff]
      %v706 = vld [vmem:[%s246 + $0x108] sm:$0xff]
      %v707 = vld [vmem:[%s246 + $0x110] sm:$0xff]
      %v708 = vld [vmem:[%s246 + $0x118] sm:$0xff]
      %v709 = vld [vmem:[%s246 + $0x120] sm:$0xff]
      %v710 = vld [vmem:[%s246 + $0x128] sm:$0xff]
      %v711 = vld [vmem:[%s246 + $0x130] sm:$0xff]
      %v712 = vld [vmem:[%s246 + $0x138] sm:$0xff]
      %v713 = vld [vmem:[%s246 + $0x140] sm:$0xf]
      %714 = vst [vmem:[#allocation2 + $0x24] sm:$0xff] %v673
      %715 = vst [vmem:[#allocation2 + $0x2c] sm:$0xff] %v674
      %716 = vst [vmem:[#allocation2 + $0x34] sm:$0xff] %v675
      %717 = vst [vmem:[#allocation2 + $0x3c] sm:$0xff] %v676
      %718 = vst [vmem:[#allocation2 + $0x44] sm:$0xff] %v677
      %719 = vst [vmem:[#allocation2 + $0x4c] sm:$0xff] %v678
      %720 = vst [vmem:[#allocation2 + $0x54] sm:$0xff] %v679
      %721 = vst [vmem:[#allocation2 + $0x5c] sm:$0xff] %v680
      %722 = vst [vmem:[#allocation2 + $0x64] sm:$0xff] %v681
      %723 = vst [vmem:[#allocation2 + $0x6c] sm:$0xff] %v682
      %724 = vst [vmem:[#allocation2 + $0x74] sm:$0xff] %v683
      %725 = vst [vmem:[#allocation2 + $0x7c] sm:$0xff] %v684
      %726 = vst [vmem:[#allocation2 + $0x84] sm:$0xff] %v685
      %727 = vst [vmem:[#allocation2 + $0x8c] sm:$0xff] %v686
      %728 = vst [vmem:[#allocation2 + $0x94] sm:$0xff] %v687
      %729 = vst [vmem:[#allocation2 + $0x9c] sm:$0xff] %v688
      %730 = vst [vmem:[#allocation2 + $0xa4] sm:$0xff] %v689
      %731 = vst [vmem:[#allocation2 + $0xac] sm:$0xff] %v690
      %732 = vst [vmem:[#allocation2 + $0xb4] sm:$0xff] %v691
      %733 = vst [vmem:[#allocation2 + $0xbc] sm:$0xff] %v692
      %734 = vst [vmem:[#allocation2 + $0xc4] sm:$0xff] %v693
      %735 = vst [vmem:[#allocation2 + $0xcc] sm:$0xff] %v694
      %736 = vst [vmem:[#allocation2 + $0xd4] sm:$0xff] %v695
      %737 = vst [vmem:[#allocation2 + $0xdc] sm:$0xff] %v696
      %738 = vst [vmem:[#allocation2 + $0xe4] sm:$0xff] %v697
      %739 = vst [vmem:[#allocation2 + $0xec] sm:$0xff] %v698
      %740 = vst [vmem:[#allocation2 + $0xf4] sm:$0xff] %v699
      %741 = vst [vmem:[#allocation2 + $0xfc] sm:$0xff] %v700
      %742 = vst [vmem:[#allocation2 + $0x104] sm:$0xff] %v701
      %743 = vst [vmem:[#allocation2 + $0x10c] sm:$0xff] %v702
      %744 = vst [vmem:[#allocation2 + $0x114] sm:$0xff] %v703
      %745 = vst [vmem:[#allocation2 + $0x11c] sm:$0xff] %v704
      %746 = vst [vmem:[#allocation2 + $0x124] sm:$0xff] %v705
      %747 = vst [vmem:[#allocation2 + $0x12c] sm:$0xff] %v706
      %748 = vst [vmem:[#allocation2 + $0x134] sm:$0xff] %v707
      %749 = vst [vmem:[#allocation2 + $0x13c] sm:$0xff] %v708
      %750 = vst [vmem:[#allocation2 + $0x144] sm:$0xff] %v709
      %751 = vst [vmem:[#allocation2 + $0x14c] sm:$0xff] %v710
      %752 = vst [vmem:[#allocation2 + $0x154] sm:$0xff] %v711
      %753 = vst [vmem:[#allocation2 + $0x15c] sm:$0xff] %v712
      %754 = vst [vmem:[#allocation2 + $0x164] sm:$0xf] %v713
      %v755 = vld [vmem:[#allocation2 + $0x11] sm:$0xff]
      %v756 = vld [vmem:[#allocation2 + $0x19] sm:$0xff]
      %v757 = vld [vmem:[#allocation2 + $0x21] sm:$0xff]
      %v758 = vld [vmem:[#allocation2 + $0x29] sm:$0xff]
      %v759 = vld [vmem:[#allocation2 + $0x31] sm:$0xff]
      %v760 = vld [vmem:[#allocation2 + $0x39] sm:$0xff]
      %v761 = vld [vmem:[#allocation2 + $0x41] sm:$0xff]
      %v762 = vld [vmem:[#allocation2 + $0x49] sm:$0xff]
      %v763 = vld [vmem:[#allocation2 + $0x51] sm:$0xff]
      %v764 = vld [vmem:[#allocation2 + $0x59] sm:$0xff]
      %v765 = vld [vmem:[#allocation2 + $0x61] sm:$0xff]
      %v766 = vld [vmem:[#allocation2 + $0x69] sm:$0xff]
      %v767 = vld [vmem:[#allocation2 + $0x71] sm:$0xff]
      %v768 = vld [vmem:[#allocation2 + $0x79] sm:$0xff]
      %v769 = vld [vmem:[#allocation2 + $0x81] sm:$0xff]
      %v770 = vld [vmem:[#allocation2 + $0x89] sm:$0xff]
      %v771 = vld [vmem:[#allocation2 + $0x91] sm:$0xff]
      %v772 = vld [vmem:[#allocation2 + $0x99] sm:$0xff]
      %v773 = vld [vmem:[#allocation2 + $0xa1] sm:$0xff]
      %v774 = vld [vmem:[#allocation2 + $0xa9] sm:$0xff]
      %v775 = vld [vmem:[#allocation2 + $0xb1] sm:$0xff]
      %v776 = vld [vmem:[#allocation2 + $0xb9] sm:$0xff]
      %v777 = vld [vmem:[#allocation2 + $0xc1] sm:$0xff]
      %v778 = vld [vmem:[#allocation2 + $0xc9] sm:$0xff]
      %v779 = vld [vmem:[#allocation2 + $0xd1] sm:$0xff]
      %v780 = vld [vmem:[#allocation2 + $0xd9] sm:$0xff]
      %v781 = vld [vmem:[#allocation2 + $0xe1] sm:$0xff]
      %v782 = vld [vmem:[#allocation2 + $0xe9] sm:$0xff]
      %v783 = vld [vmem:[#allocation2 + $0xf1] sm:$0xff]
      %v784 = vld [vmem:[#allocation2 + $0xf9] sm:$0xff]
      %v785 = vld [vmem:[#allocation2 + $0x101] sm:$0xff]
      %v786 = vld [vmem:[#allocation2 + $0x109] sm:$0xff]
      %v787 = vld [vmem:[#allocation2 + $0x111] sm:$0xff]
      %v788 = vld [vmem:[#allocation2 + $0x119] sm:$0xff]
      %v789 = vld [vmem:[#allocation2 + $0x121] sm:$0xff]
      %v790 = vld [vmem:[#allocation2 + $0x129] sm:$0xff]
      %v791 = vld [vmem:[#allocation2 + $0x131] sm:$0xff]
      %v792 = vld [vmem:[#allocation2 + $0x139] sm:$0xff]
      %v793 = vld [vmem:[#allocation2 + $0x141] sm:$0xff]
      %v794 = vld [vmem:[#allocation2 + $0x149] sm:$0xff]
      %v795 = vld [vmem:[#allocation2 + $0x151] sm:$0xf]
      %v796 = vld [vmem:[%s2] sm:$0xff]
      %v797 = vld [vmem:[%s2 + $0x8] sm:$0xff]
      %v798 = vld [vmem:[%s2 + $0x10] sm:$0xff]
      %v799 = vld [vmem:[%s2 + $0x18] sm:$0xff]
      %v800 = vld [vmem:[%s2 + $0x20] sm:$0xff]
      %v801 = vld [vmem:[%s2 + $0x28] sm:$0xff]
      %v802 = vld [vmem:[%s2 + $0x30] sm:$0xff]
      %v803 = vld [vmem:[%s2 + $0x38] sm:$0xff]
      %v804 = vld [vmem:[%s2 + $0x40] sm:$0xff]
      %v805 = vld [vmem:[%s2 + $0x48] sm:$0xff]
      %v806 = vld [vmem:[%s2 + $0x50] sm:$0xff]
      %v807 = vld [vmem:[%s2 + $0x58] sm:$0xff]
      %v808 = vld [vmem:[%s2 + $0x60] sm:$0xff]
      %v809 = vld [vmem:[%s2 + $0x68] sm:$0xff]
      %v810 = vld [vmem:[%s2 + $0x70] sm:$0xff]
      %v811 = vld [vmem:[%s2 + $0x78] sm:$0xff]
      %v812 = vld [vmem:[#allocation2 + $0x12] sm:$0xff]
      %v813 = vld [vmem:[#allocation2 + $0x1a] sm:$0xff]
      %v814 = vld [vmem:[#allocation2 + $0x22] sm:$0xff]
      %v815 = vld [vmem:[#allocation2 + $0x2a] sm:$0xff]
      %v816 = vld [vmem:[#allocation2 + $0x32] sm:$0xff]
      %v817 = vld [vmem:[#allocation2 + $0x3a] sm:$0xff]
      %v818 = vld [vmem:[#allocation2 + $0x42] sm:$0xff]
      %v819 = vld [vmem:[#allocation2 + $0x4a] sm:$0xff]
      %v820 = vld [vmem:[#allocation2 + $0x52] sm:$0xff]
      %v821 = vld [vmem:[#allocation2 + $0x5a] sm:$0xff]
      %v822 = vld [vmem:[#allocation2 + $0x62] sm:$0xff]
      %v823 = vld [vmem:[#allocation2 + $0x6a] sm:$0xff]
      %v824 = vld [vmem:[#allocation2 + $0x72] sm:$0xff]
      %v825 = vld [vmem:[#allocation2 + $0x7a] sm:$0xff]
      %v826 = vld [vmem:[#allocation2 + $0x82] sm:$0xff]
      %v827 = vld [vmem:[#allocation2 + $0x8a] sm:$0xff]
      %v828 = vld [vmem:[#allocation2 + $0x92] sm:$0xff]
      %v829 = vld [vmem:[#allocation2 + $0x9a] sm:$0xff]
      %v830 = vld [vmem:[#allocation2 + $0xa2] sm:$0xff]
      %v831 = vld [vmem:[#allocation2 + $0xaa] sm:$0xff]
      %v832 = vld [vmem:[#allocation2 + $0xb2] sm:$0xff]
      %v833 = vld [vmem:[#allocation2 + $0xba] sm:$0xff]
      %v834 = vld [vmem:[#allocation2 + $0xc2] sm:$0xff]
      %v835 = vld [vmem:[#allocation2 + $0xca] sm:$0xff]
      %v836 = vld [vmem:[#allocation2 + $0xd2] sm:$0xff]
      %v837 = vld [vmem:[#allocation2 + $0xda] sm:$0xff]
      %v838 = vld [vmem:[#allocation2 + $0xe2] sm:$0xff]
      %v839 = vld [vmem:[#allocation2 + $0xea] sm:$0xff]
      %v840 = vld [vmem:[#allocation2 + $0xf2] sm:$0xff]
      %v841 = vld [vmem:[#allocation2 + $0xfa] sm:$0xff]
      %v842 = vld [vmem:[#allocation2 + $0x102] sm:$0xff]
      %v843 = vld [vmem:[#allocation2 + $0x10a] sm:$0xff]
      %v844 = vld [vmem:[#allocation2 + $0x112] sm:$0xff]
      %v845 = vld [vmem:[#allocation2 + $0x11a] sm:$0xff]
      %v846 = vld [vmem:[#allocation2 + $0x122] sm:$0xff]
      %v847 = vld [vmem:[#allocation2 + $0x12a] sm:$0xff]
      %v848 = vld [vmem:[#allocation2 + $0x132] sm:$0xff]
      %v849 = vld [vmem:[#allocation2 + $0x13a] sm:$0xff]
      %v850 = vld [vmem:[#allocation2 + $0x142] sm:$0xff]
      %v851 = vld [vmem:[#allocation2 + $0x14a] sm:$0xff]
      %v852 = vld [vmem:[#allocation2 + $0x152] sm:$0xf]
      %s853 = scalar_lea.vmem %s2, 128
      %v854 = vld [vmem:[%s853] sm:$0xff]
      %v855 = vld [vmem:[%s853 + $0x8] sm:$0xff]
      %v856 = vld [vmem:[%s853 + $0x10] sm:$0xff]
      %v857 = vld [vmem:[%s853 + $0x18] sm:$0xff]
      %v858 = vld [vmem:[%s853 + $0x20] sm:$0xff]
      %v859 = vld [vmem:[%s853 + $0x28] sm:$0xff]
      %v860 = vld [vmem:[%s853 + $0x30] sm:$0xff]
      %v861 = vld [vmem:[%s853 + $0x38] sm:$0xff]
      %v862 = vld [vmem:[%s853 + $0x40] sm:$0xff]
      %v863 = vld [vmem:[%s853 + $0x48] sm:$0xff]
      %v864 = vld [vmem:[%s853 + $0x50] sm:$0xff]
      %v865 = vld [vmem:[%s853 + $0x58] sm:$0xff]
      %v866 = vld [vmem:[%s853 + $0x60] sm:$0xff]
      %v867 = vld [vmem:[%s853 + $0x68] sm:$0xff]
      %v868 = vld [vmem:[%s853 + $0x70] sm:$0xff]
      %v869 = vld [vmem:[%s853 + $0x78] sm:$0xff]
      %870 = vmatpush.msra.mxu0 %v869
      %871 = vmatpush.msra.mxu0 %v868
      %872 = vmatpush.msra.mxu0 %v867
      %873 = vmatpush.msra.mxu0 %v866
      %874 = vmatpush.msra.mxu0 %v865
      %875 = vmatpush.msra.mxu0 %v864
      %876 = vmatpush.msra.mxu0 %v863
      %877 = vmatpush.msra.mxu0 %v862
      %878 = vmatpush.msra.mxu0 %v861
      %879 = vmatpush.msra.mxu0 %v860
      %880 = vmatpush.msra.mxu0 %v859
      %881 = vmatpush.msra.mxu0 %v858
      %882 = vmatpush.msra.mxu0 %v857
      %883 = vmatpush.msra.mxu0 %v856
      %884 = vmatpush.msra.mxu0 %v855
      %885 = vmatpush.msra.mxu0 %v854
      %886 = vmatmul.f32.gmra.mxu0 %v812
      %v887 = vpop.f32.mrf.mxu0
      %v888 = vadd.f32 0.0, %v887
      %889 = vmatmul.f32.gmra.mxu0 %v813
      %v890 = vpop.f32.mrf.mxu0
      %v891 = vadd.f32 0.0, %v890
      %892 = vmatmul.f32.gmra.mxu0 %v814
      %v893 = vpop.f32.mrf.mxu0
      %v894 = vadd.f32 0.0, %v893
      %895 = vmatmul.f32.gmra.mxu0 %v815
      %v896 = vpop.f32.mrf.mxu0
      %v897 = vadd.f32 0.0, %v896
      %898 = vmatmul.f32.gmra.mxu0 %v816
      %v899 = vpop.f32.mrf.mxu0
      %v900 = vadd.f32 0.0, %v899
      %901 = vmatmul.f32.gmra.mxu0 %v817
      %v902 = vpop.f32.mrf.mxu0
      %v903 = vadd.f32 0.0, %v902
      %904 = vmatmul.f32.gmra.mxu0 %v818
      %v905 = vpop.f32.mrf.mxu0
      %v906 = vadd.f32 0.0, %v905
      %907 = vmatmul.f32.gmra.mxu0 %v819
      %v908 = vpop.f32.mrf.mxu0
      %v909 = vadd.f32 0.0, %v908
      %910 = vmatmul.f32.gmra.mxu0 %v820
      %v911 = vpop.f32.mrf.mxu0
      %v912 = vadd.f32 0.0, %v911
      %913 = vmatmul.f32.gmra.mxu0 %v821
      %v914 = vpop.f32.mrf.mxu0
      %v915 = vadd.f32 0.0, %v914
      %916 = vmatmul.f32.gmra.mxu0 %v822
      %v917 = vpop.f32.mrf.mxu0
      %v918 = vadd.f32 0.0, %v917
      %919 = vmatmul.f32.gmra.mxu0 %v823
      %v920 = vpop.f32.mrf.mxu0
      %v921 = vadd.f32 0.0, %v920
      %922 = vmatmul.f32.gmra.mxu0 %v824
      %v923 = vpop.f32.mrf.mxu0
      %v924 = vadd.f32 0.0, %v923
      %925 = vmatmul.f32.gmra.mxu0 %v825
      %v926 = vpop.f32.mrf.mxu0
      %v927 = vadd.f32 0.0, %v926
      %928 = vmatmul.f32.gmra.mxu0 %v826
      %v929 = vpop.f32.mrf.mxu0
      %v930 = vadd.f32 0.0, %v929
      %931 = vmatmul.f32.gmra.mxu0 %v827
      %v932 = vpop.f32.mrf.mxu0
      %v933 = vadd.f32 0.0, %v932
      %934 = vmatmul.f32.gmra.mxu0 %v828
      %v935 = vpop.f32.mrf.mxu0
      %v936 = vadd.f32 0.0, %v935
      %937 = vmatmul.f32.gmra.mxu0 %v829
      %v938 = vpop.f32.mrf.mxu0
      %v939 = vadd.f32 0.0, %v938
      %940 = vmatmul.f32.gmra.mxu0 %v830
      %v941 = vpop.f32.mrf.mxu0
      %v942 = vadd.f32 0.0, %v941
      %943 = vmatmul.f32.gmra.mxu0 %v831
      %v944 = vpop.f32.mrf.mxu0
      %v945 = vadd.f32 0.0, %v944
      %946 = vmatmul.f32.gmra.mxu0 %v832
      %v947 = vpop.f32.mrf.mxu0
      %v948 = vadd.f32 0.0, %v947
      %949 = vmatmul.f32.gmra.mxu0 %v833
      %v950 = vpop.f32.mrf.mxu0
      %v951 = vadd.f32 0.0, %v950
      %952 = vmatmul.f32.gmra.mxu0 %v834
      %v953 = vpop.f32.mrf.mxu0
      %v954 = vadd.f32 0.0, %v953
      %955 = vmatmul.f32.gmra.mxu0 %v835
      %v956 = vpop.f32.mrf.mxu0
      %v957 = vadd.f32 0.0, %v956
      %958 = vmatmul.f32.gmra.mxu0 %v836
      %v959 = vpop.f32.mrf.mxu0
      %v960 = vadd.f32 0.0, %v959
      %961 = vmatmul.f32.gmra.mxu0 %v837
      %v962 = vpop.f32.mrf.mxu0
      %v963 = vadd.f32 0.0, %v962
      %964 = vmatmul.f32.gmra.mxu0 %v838
      %v965 = vpop.f32.mrf.mxu0
      %v966 = vadd.f32 0.0, %v965
      %967 = vmatmul.f32.gmra.mxu0 %v839
      %v968 = vpop.f32.mrf.mxu0
      %v969 = vadd.f32 0.0, %v968
      %970 = vmatmul.f32.gmra.mxu0 %v840
      %v971 = vpop.f32.mrf.mxu0
      %v972 = vadd.f32 0.0, %v971
      %973 = vmatmul.f32.gmra.mxu0 %v841
      %v974 = vpop.f32.mrf.mxu0
      %v975 = vadd.f32 0.0, %v974
      %976 = vmatmul.f32.gmra.mxu0 %v842
      %v977 = vpop.f32.mrf.mxu0
      %v978 = vadd.f32 0.0, %v977
      %979 = vmatmul.f32.gmra.mxu0 %v843
      %v980 = vpop.f32.mrf.mxu0
      %v981 = vadd.f32 0.0, %v980
      %982 = vmatmul.f32.gmra.mxu0 %v844
      %v983 = vpop.f32.mrf.mxu0
      %v984 = vadd.f32 0.0, %v983
      %985 = vmatmul.f32.gmra.mxu0 %v845
      %v986 = vpop.f32.mrf.mxu0
      %v987 = vadd.f32 0.0, %v986
      %988 = vmatmul.f32.gmra.mxu0 %v846
      %v989 = vpop.f32.mrf.mxu0
      %v990 = vadd.f32 0.0, %v989
      %991 = vmatmul.f32.gmra.mxu0 %v847
      %v992 = vpop.f32.mrf.mxu0
      %v993 = vadd.f32 0.0, %v992
      %994 = vmatmul.f32.gmra.mxu0 %v848
      %v995 = vpop.f32.mrf.mxu0
      %v996 = vadd.f32 0.0, %v995
      %997 = vmatmul.f32.gmra.mxu0 %v849
      %v998 = vpop.f32.mrf.mxu0
      %v999 = vadd.f32 0.0, %v998
      %1000 = vmatmul.f32.gmra.mxu0 %v850
      %v1001 = vpop.f32.mrf.mxu0
      %v1002 = vadd.f32 0.0, %v1001
      %1003 = vmatmul.f32.gmra.mxu0 %v851
      %v1004 = vpop.f32.mrf.mxu0
      %v1005 = vadd.f32 0.0, %v1004
      %1006 = vmatmul.f32.gmra.mxu0 %v852
      %v1007 = vpop.f32.mrf.mxu0
      %v1008 = vadd.f32 0.0, %v1007
      %1009 = vdwg.mxu0
      %1010 = vmatpush.msra.mxu0 %v811
      %1011 = vmatpush.msra.mxu0 %v810
      %1012 = vmatpush.msra.mxu0 %v809
      %1013 = vmatpush.msra.mxu0 %v808
      %1014 = vmatpush.msra.mxu0 %v807
      %1015 = vmatpush.msra.mxu0 %v806
      %1016 = vmatpush.msra.mxu0 %v805
      %1017 = vmatpush.msra.mxu0 %v804
      %1018 = vmatpush.msra.mxu0 %v803
      %1019 = vmatpush.msra.mxu0 %v802
      %1020 = vmatpush.msra.mxu0 %v801
      %1021 = vmatpush.msra.mxu0 %v800
      %1022 = vmatpush.msra.mxu0 %v799
      %1023 = vmatpush.msra.mxu0 %v798
      %1024 = vmatpush.msra.mxu0 %v797
      %1025 = vmatpush.msra.mxu0 %v796
      %1026 = vmatmul.f32.gmra.mxu0 %v755
      %v1027 = vpop.f32.mrf.mxu0
      %v1028 = vadd.f32 %v888, %v1027
      %1029 = vmatmul.f32.gmra.mxu0 %v756
      %v1030 = vpop.f32.mrf.mxu0
      %v1031 = vadd.f32 %v891, %v1030
      %1032 = vmatmul.f32.gmra.mxu0 %v757
      %v1033 = vpop.f32.mrf.mxu0
      %v1034 = vadd.f32 %v894, %v1033
      %1035 = vmatmul.f32.gmra.mxu0 %v758
      %v1036 = vpop.f32.mrf.mxu0
      %v1037 = vadd.f32 %v897, %v1036
      %1038 = vmatmul.f32.gmra.mxu0 %v759
      %v1039 = vpop.f32.mrf.mxu0
      %v1040 = vadd.f32 %v900, %v1039
      %1041 = vmatmul.f32.gmra.mxu0 %v760
      %v1042 = vpop.f32.mrf.mxu0
      %v1043 = vadd.f32 %v903, %v1042
      %1044 = vmatmul.f32.gmra.mxu0 %v761
      %v1045 = vpop.f32.mrf.mxu0
      %v1046 = vadd.f32 %v906, %v1045
      %1047 = vmatmul.f32.gmra.mxu0 %v762
      %v1048 = vpop.f32.mrf.mxu0
      %v1049 = vadd.f32 %v909, %v1048
      %1050 = vmatmul.f32.gmra.mxu0 %v763
      %v1051 = vpop.f32.mrf.mxu0
      %v1052 = vadd.f32 %v912, %v1051
      %1053 = vmatmul.f32.gmra.mxu0 %v764
      %v1054 = vpop.f32.mrf.mxu0
      %v1055 = vadd.f32 %v915, %v1054
      %1056 = vmatmul.f32.gmra.mxu0 %v765
      %v1057 = vpop.f32.mrf.mxu0
      %v1058 = vadd.f32 %v918, %v1057
      %1059 = vmatmul.f32.gmra.mxu0 %v766
      %v1060 = vpop.f32.mrf.mxu0
      %v1061 = vadd.f32 %v921, %v1060
      %1062 = vmatmul.f32.gmra.mxu0 %v767
      %v1063 = vpop.f32.mrf.mxu0
      %v1064 = vadd.f32 %v924, %v1063
      %1065 = vmatmul.f32.gmra.mxu0 %v768
      %v1066 = vpop.f32.mrf.mxu0
      %v1067 = vadd.f32 %v927, %v1066
      %1068 = vmatmul.f32.gmra.mxu0 %v769
      %v1069 = vpop.f32.mrf.mxu0
      %v1070 = vadd.f32 %v930, %v1069
      %1071 = vmatmul.f32.gmra.mxu0 %v770
      %v1072 = vpop.f32.mrf.mxu0
      %v1073 = vadd.f32 %v933, %v1072
      %1074 = vmatmul.f32.gmra.mxu0 %v771
      %v1075 = vpop.f32.mrf.mxu0
      %v1076 = vadd.f32 %v936, %v1075
      %1077 = vmatmul.f32.gmra.mxu0 %v772
      %v1078 = vpop.f32.mrf.mxu0
      %v1079 = vadd.f32 %v939, %v1078
      %1080 = vmatmul.f32.gmra.mxu0 %v773
      %v1081 = vpop.f32.mrf.mxu0
      %v1082 = vadd.f32 %v942, %v1081
      %1083 = vmatmul.f32.gmra.mxu0 %v774
      %v1084 = vpop.f32.mrf.mxu0
      %v1085 = vadd.f32 %v945, %v1084
      %1086 = vmatmul.f32.gmra.mxu0 %v775
      %v1087 = vpop.f32.mrf.mxu0
      %v1088 = vadd.f32 %v948, %v1087
      %1089 = vmatmul.f32.gmra.mxu0 %v776
      %v1090 = vpop.f32.mrf.mxu0
      %v1091 = vadd.f32 %v951, %v1090
      %1092 = vmatmul.f32.gmra.mxu0 %v777
      %v1093 = vpop.f32.mrf.mxu0
      %v1094 = vadd.f32 %v954, %v1093
      %1095 = vmatmul.f32.gmra.mxu0 %v778
      %v1096 = vpop.f32.mrf.mxu0
      %v1097 = vadd.f32 %v957, %v1096
      %1098 = vmatmul.f32.gmra.mxu0 %v779
      %v1099 = vpop.f32.mrf.mxu0
      %v1100 = vadd.f32 %v960, %v1099
      %1101 = vmatmul.f32.gmra.mxu0 %v780
      %v1102 = vpop.f32.mrf.mxu0
      %v1103 = vadd.f32 %v963, %v1102
      %1104 = vmatmul.f32.gmra.mxu0 %v781
      %v1105 = vpop.f32.mrf.mxu0
      %v1106 = vadd.f32 %v966, %v1105
      %1107 = vmatmul.f32.gmra.mxu0 %v782
      %v1108 = vpop.f32.mrf.mxu0
      %v1109 = vadd.f32 %v969, %v1108
      %1110 = vmatmul.f32.gmra.mxu0 %v783
      %v1111 = vpop.f32.mrf.mxu0
      %v1112 = vadd.f32 %v972, %v1111
      %1113 = vmatmul.f32.gmra.mxu0 %v784
      %v1114 = vpop.f32.mrf.mxu0
      %v1115 = vadd.f32 %v975, %v1114
      %1116 = vmatmul.f32.gmra.mxu0 %v785
      %v1117 = vpop.f32.mrf.mxu0
      %v1118 = vadd.f32 %v978, %v1117
      %1119 = vmatmul.f32.gmra.mxu0 %v786
      %v1120 = vpop.f32.mrf.mxu0
      %v1121 = vadd.f32 %v981, %v1120
      %1122 = vmatmul.f32.gmra.mxu0 %v787
      %v1123 = vpop.f32.mrf.mxu0
      %v1124 = vadd.f32 %v984, %v1123
      %1125 = vmatmul.f32.gmra.mxu0 %v788
      %v1126 = vpop.f32.mrf.mxu0
      %v1127 = vadd.f32 %v987, %v1126
      %1128 = vmatmul.f32.gmra.mxu0 %v789
      %v1129 = vpop.f32.mrf.mxu0
      %v1130 = vadd.f32 %v990, %v1129
      %1131 = vmatmul.f32.gmra.mxu0 %v790
      %v1132 = vpop.f32.mrf.mxu0
      %v1133 = vadd.f32 %v993, %v1132
      %1134 = vmatmul.f32.gmra.mxu0 %v791
      %v1135 = vpop.f32.mrf.mxu0
      %v1136 = vadd.f32 %v996, %v1135
      %1137 = vmatmul.f32.gmra.mxu0 %v792
      %v1138 = vpop.f32.mrf.mxu0
      %v1139 = vadd.f32 %v999, %v1138
      %1140 = vmatmul.f32.gmra.mxu0 %v793
      %v1141 = vpop.f32.mrf.mxu0
      %v1142 = vadd.f32 %v1002, %v1141
      %1143 = vmatmul.f32.gmra.mxu0 %v794
      %v1144 = vpop.f32.mrf.mxu0
      %v1145 = vadd.f32 %v1005, %v1144
      %1146 = vmatmul.f32.gmra.mxu0 %v795
      %v1147 = vpop.f32.mrf.mxu0
      %v1148 = vadd.f32 %v1008, %v1147
      %1149 = vdwg.mxu0
      %v1150 = vld [vmem:[#allocation2 + $0x13] sm:$0xff]
      %v1151 = vld [vmem:[#allocation2 + $0x1b] sm:$0xff]
      %v1152 = vld [vmem:[#allocation2 + $0x23] sm:$0xff]
      %v1153 = vld [vmem:[#allocation2 + $0x2b] sm:$0xff]
      %v1154 = vld [vmem:[#allocation2 + $0x33] sm:$0xff]
      %v1155 = vld [vmem:[#allocation2 + $0x3b] sm:$0xff]
      %v1156 = vld [vmem:[#allocation2 + $0x43] sm:$0xff]
      %v1157 = vld [vmem:[#allocation2 + $0x4b] sm:$0xff]
      %v1158 = vld [vmem:[#allocation2 + $0x53] sm:$0xff]
      %v1159 = vld [vmem:[#allocation2 + $0x5b] sm:$0xff]
      %v1160 = vld [vmem:[#allocation2 + $0x63] sm:$0xff]
      %v1161 = vld [vmem:[#allocation2 + $0x6b] sm:$0xff]
      %v1162 = vld [vmem:[#allocation2 + $0x73] sm:$0xff]
      %v1163 = vld [vmem:[#allocation2 + $0x7b] sm:$0xff]
      %v1164 = vld [vmem:[#allocation2 + $0x83] sm:$0xff]
      %v1165 = vld [vmem:[#allocation2 + $0x8b] sm:$0xff]
      %v1166 = vld [vmem:[#allocation2 + $0x93] sm:$0xff]
      %v1167 = vld [vmem:[#allocation2 + $0x9b] sm:$0xff]
      %v1168 = vld [vmem:[#allocation2 + $0xa3] sm:$0xff]
      %v1169 = vld [vmem:[#allocation2 + $0xab] sm:$0xff]
      %v1170 = vld [vmem:[#allocation2 + $0xb3] sm:$0xff]
      %v1171 = vld [vmem:[#allocation2 + $0xbb] sm:$0xff]
      %v1172 = vld [vmem:[#allocation2 + $0xc3] sm:$0xff]
      %v1173 = vld [vmem:[#allocation2 + $0xcb] sm:$0xff]
      %v1174 = vld [vmem:[#allocation2 + $0xd3] sm:$0xff]
      %v1175 = vld [vmem:[#allocation2 + $0xdb] sm:$0xff]
      %v1176 = vld [vmem:[#allocation2 + $0xe3] sm:$0xff]
      %v1177 = vld [vmem:[#allocation2 + $0xeb] sm:$0xff]
      %v1178 = vld [vmem:[#allocation2 + $0xf3] sm:$0xff]
      %v1179 = vld [vmem:[#allocation2 + $0xfb] sm:$0xff]
      %v1180 = vld [vmem:[#allocation2 + $0x103] sm:$0xff]
      %v1181 = vld [vmem:[#allocation2 + $0x10b] sm:$0xff]
      %v1182 = vld [vmem:[#allocation2 + $0x113] sm:$0xff]
      %v1183 = vld [vmem:[#allocation2 + $0x11b] sm:$0xff]
      %v1184 = vld [vmem:[#allocation2 + $0x123] sm:$0xff]
      %v1185 = vld [vmem:[#allocation2 + $0x12b] sm:$0xff]
      %v1186 = vld [vmem:[#allocation2 + $0x133] sm:$0xff]
      %v1187 = vld [vmem:[#allocation2 + $0x13b] sm:$0xff]
      %v1188 = vld [vmem:[#allocation2 + $0x143] sm:$0xff]
      %v1189 = vld [vmem:[#allocation2 + $0x14b] sm:$0xff]
      %v1190 = vld [vmem:[#allocation2 + $0x153] sm:$0xf]
      %s1191 = scalar_lea.vmem %s2, 256
      %v1192 = vld [vmem:[%s1191] sm:$0xff]
      %v1193 = vld [vmem:[%s1191 + $0x8] sm:$0xff]
      %v1194 = vld [vmem:[%s1191 + $0x10] sm:$0xff]
      %v1195 = vld [vmem:[%s1191 + $0x18] sm:$0xff]
      %v1196 = vld [vmem:[%s1191 + $0x20] sm:$0xff]
      %v1197 = vld [vmem:[%s1191 + $0x28] sm:$0xff]
      %v1198 = vld [vmem:[%s1191 + $0x30] sm:$0xff]
      %v1199 = vld [vmem:[%s1191 + $0x38] sm:$0xff]
      %v1200 = vld [vmem:[%s1191 + $0x40] sm:$0xff]
      %v1201 = vld [vmem:[%s1191 + $0x48] sm:$0xff]
      %v1202 = vld [vmem:[%s1191 + $0x50] sm:$0xff]
      %v1203 = vld [vmem:[%s1191 + $0x58] sm:$0xff]
      %v1204 = vld [vmem:[%s1191 + $0x60] sm:$0xff]
      %v1205 = vld [vmem:[%s1191 + $0x68] sm:$0xff]
      %v1206 = vld [vmem:[%s1191 + $0x70] sm:$0xff]
      %v1207 = vld [vmem:[%s1191 + $0x78] sm:$0xff]
      %1208 = vmatpush.msra.mxu0 %v1207
      %1209 = vmatpush.msra.mxu0 %v1206
      %1210 = vmatpush.msra.mxu0 %v1205
      %1211 = vmatpush.msra.mxu0 %v1204
      %1212 = vmatpush.msra.mxu0 %v1203
      %1213 = vmatpush.msra.mxu0 %v1202
      %1214 = vmatpush.msra.mxu0 %v1201
      %1215 = vmatpush.msra.mxu0 %v1200
      %1216 = vmatpush.msra.mxu0 %v1199
      %1217 = vmatpush.msra.mxu0 %v1198
      %1218 = vmatpush.msra.mxu0 %v1197
      %1219 = vmatpush.msra.mxu0 %v1196
      %1220 = vmatpush.msra.mxu0 %v1195
      %1221 = vmatpush.msra.mxu0 %v1194
      %1222 = vmatpush.msra.mxu0 %v1193
      %1223 = vmatpush.msra.mxu0 %v1192
      %1224 = vmatmul.f32.gmra.mxu0 %v1150
      %v1225 = vpop.f32.mrf.mxu0
      %v1226 = vadd.f32 0.0, %v1225
      %1227 = vmatmul.f32.gmra.mxu0 %v1151
      %v1228 = vpop.f32.mrf.mxu0
      %v1229 = vadd.f32 0.0, %v1228
      %1230 = vmatmul.f32.gmra.mxu0 %v1152
      %v1231 = vpop.f32.mrf.mxu0
      %v1232 = vadd.f32 0.0, %v1231
      %1233 = vmatmul.f32.gmra.mxu0 %v1153
      %v1234 = vpop.f32.mrf.mxu0
      %v1235 = vadd.f32 0.0, %v1234
      %1236 = vmatmul.f32.gmra.mxu0 %v1154
      %v1237 = vpop.f32.mrf.mxu0
      %v1238 = vadd.f32 0.0, %v1237
      %1239 = vmatmul.f32.gmra.mxu0 %v1155
      %v1240 = vpop.f32.mrf.mxu0
      %v1241 = vadd.f32 0.0, %v1240
      %1242 = vmatmul.f32.gmra.mxu0 %v1156
      %v1243 = vpop.f32.mrf.mxu0
      %v1244 = vadd.f32 0.0, %v1243
      %1245 = vmatmul.f32.gmra.mxu0 %v1157
      %v1246 = vpop.f32.mrf.mxu0
      %v1247 = vadd.f32 0.0, %v1246
      %1248 = vmatmul.f32.gmra.mxu0 %v1158
      %v1249 = vpop.f32.mrf.mxu0
      %v1250 = vadd.f32 0.0, %v1249
      %1251 = vmatmul.f32.gmra.mxu0 %v1159
      %v1252 = vpop.f32.mrf.mxu0
      %v1253 = vadd.f32 0.0, %v1252
      %1254 = vmatmul.f32.gmra.mxu0 %v1160
      %v1255 = vpop.f32.mrf.mxu0
      %v1256 = vadd.f32 0.0, %v1255
      %1257 = vmatmul.f32.gmra.mxu0 %v1161
      %v1258 = vpop.f32.mrf.mxu0
      %v1259 = vadd.f32 0.0, %v1258
      %1260 = vmatmul.f32.gmra.mxu0 %v1162
      %v1261 = vpop.f32.mrf.mxu0
      %v1262 = vadd.f32 0.0, %v1261
      %1263 = vmatmul.f32.gmra.mxu0 %v1163
      %v1264 = vpop.f32.mrf.mxu0
      %v1265 = vadd.f32 0.0, %v1264
      %1266 = vmatmul.f32.gmra.mxu0 %v1164
      %v1267 = vpop.f32.mrf.mxu0
      %v1268 = vadd.f32 0.0, %v1267
      %1269 = vmatmul.f32.gmra.mxu0 %v1165
      %v1270 = vpop.f32.mrf.mxu0
      %v1271 = vadd.f32 0.0, %v1270
      %1272 = vmatmul.f32.gmra.mxu0 %v1166
      %v1273 = vpop.f32.mrf.mxu0
      %v1274 = vadd.f32 0.0, %v1273
      %1275 = vmatmul.f32.gmra.mxu0 %v1167
      %v1276 = vpop.f32.mrf.mxu0
      %v1277 = vadd.f32 0.0, %v1276
      %1278 = vmatmul.f32.gmra.mxu0 %v1168
      %v1279 = vpop.f32.mrf.mxu0
      %v1280 = vadd.f32 0.0, %v1279
      %1281 = vmatmul.f32.gmra.mxu0 %v1169
      %v1282 = vpop.f32.mrf.mxu0
      %v1283 = vadd.f32 0.0, %v1282
      %1284 = vmatmul.f32.gmra.mxu0 %v1170
      %v1285 = vpop.f32.mrf.mxu0
      %v1286 = vadd.f32 0.0, %v1285
      %1287 = vmatmul.f32.gmra.mxu0 %v1171
      %v1288 = vpop.f32.mrf.mxu0
      %v1289 = vadd.f32 0.0, %v1288
      %1290 = vmatmul.f32.gmra.mxu0 %v1172
      %v1291 = vpop.f32.mrf.mxu0
      %v1292 = vadd.f32 0.0, %v1291
      %1293 = vmatmul.f32.gmra.mxu0 %v1173
      %v1294 = vpop.f32.mrf.mxu0
      %v1295 = vadd.f32 0.0, %v1294
      %1296 = vmatmul.f32.gmra.mxu0 %v1174
      %v1297 = vpop.f32.mrf.mxu0
      %v1298 = vadd.f32 0.0, %v1297
      %1299 = vmatmul.f32.gmra.mxu0 %v1175
      %v1300 = vpop.f32.mrf.mxu0
      %v1301 = vadd.f32 0.0, %v1300
      %1302 = vmatmul.f32.gmra.mxu0 %v1176
      %v1303 = vpop.f32.mrf.mxu0
      %v1304 = vadd.f32 0.0, %v1303
      %1305 = vmatmul.f32.gmra.mxu0 %v1177
      %v1306 = vpop.f32.mrf.mxu0
      %v1307 = vadd.f32 0.0, %v1306
      %1308 = vmatmul.f32.gmra.mxu0 %v1178
      %v1309 = vpop.f32.mrf.mxu0
      %v1310 = vadd.f32 0.0, %v1309
      %1311 = vmatmul.f32.gmra.mxu0 %v1179
      %v1312 = vpop.f32.mrf.mxu0
      %v1313 = vadd.f32 0.0, %v1312
      %1314 = vmatmul.f32.gmra.mxu0 %v1180
      %v1315 = vpop.f32.mrf.mxu0
      %v1316 = vadd.f32 0.0, %v1315
      %1317 = vmatmul.f32.gmra.mxu0 %v1181
      %v1318 = vpop.f32.mrf.mxu0
      %v1319 = vadd.f32 0.0, %v1318
      %1320 = vmatmul.f32.gmra.mxu0 %v1182
      %v1321 = vpop.f32.mrf.mxu0
      %v1322 = vadd.f32 0.0, %v1321
      %1323 = vmatmul.f32.gmra.mxu0 %v1183
      %v1324 = vpop.f32.mrf.mxu0
      %v1325 = vadd.f32 0.0, %v1324
      %1326 = vmatmul.f32.gmra.mxu0 %v1184
      %v1327 = vpop.f32.mrf.mxu0
      %v1328 = vadd.f32 0.0, %v1327
      %1329 = vmatmul.f32.gmra.mxu0 %v1185
      %v1330 = vpop.f32.mrf.mxu0
      %v1331 = vadd.f32 0.0, %v1330
      %1332 = vmatmul.f32.gmra.mxu0 %v1186
      %v1333 = vpop.f32.mrf.mxu0
      %v1334 = vadd.f32 0.0, %v1333
      %1335 = vmatmul.f32.gmra.mxu0 %v1187
      %v1336 = vpop.f32.mrf.mxu0
      %v1337 = vadd.f32 0.0, %v1336
      %1338 = vmatmul.f32.gmra.mxu0 %v1188
      %v1339 = vpop.f32.mrf.mxu0
      %v1340 = vadd.f32 0.0, %v1339
      %1341 = vmatmul.f32.gmra.mxu0 %v1189
      %v1342 = vpop.f32.mrf.mxu0
      %v1343 = vadd.f32 0.0, %v1342
      %1344 = vmatmul.f32.gmra.mxu0 %v1190
      %v1345 = vpop.f32.mrf.mxu0
      %v1346 = vadd.f32 0.0, %v1345
      %1347 = vdwg.mxu0
      %v1348 = vadd.f32 %v1028, %v1226
      %v1349 = vadd.f32 %v1031, %v1229
      %v1350 = vadd.f32 %v1034, %v1232
      %v1351 = vadd.f32 %v1037, %v1235
      %v1352 = vadd.f32 %v1040, %v1238
      %v1353 = vadd.f32 %v1043, %v1241
      %v1354 = vadd.f32 %v1046, %v1244
      %v1355 = vadd.f32 %v1049, %v1247
      %v1356 = vadd.f32 %v1052, %v1250
      %v1357 = vadd.f32 %v1055, %v1253
      %v1358 = vadd.f32 %v1058, %v1256
      %v1359 = vadd.f32 %v1061, %v1259
      %v1360 = vadd.f32 %v1064, %v1262
      %v1361 = vadd.f32 %v1067, %v1265
      %v1362 = vadd.f32 %v1070, %v1268
      %v1363 = vadd.f32 %v1073, %v1271
      %v1364 = vadd.f32 %v1076, %v1274
      %v1365 = vadd.f32 %v1079, %v1277
      %v1366 = vadd.f32 %v1082, %v1280
      %v1367 = vadd.f32 %v1085, %v1283
      %v1368 = vadd.f32 %v1088, %v1286
      %v1369 = vadd.f32 %v1091, %v1289
      %v1370 = vadd.f32 %v1094, %v1292
      %v1371 = vadd.f32 %v1097, %v1295
      %v1372 = vadd.f32 %v1100, %v1298
      %v1373 = vadd.f32 %v1103, %v1301
      %v1374 = vadd.f32 %v1106, %v1304
      %v1375 = vadd.f32 %v1109, %v1307
      %v1376 = vadd.f32 %v1112, %v1310
      %v1377 = vadd.f32 %v1115, %v1313
      %v1378 = vadd.f32 %v1118, %v1316
      %v1379 = vadd.f32 %v1121, %v1319
      %v1380 = vadd.f32 %v1124, %v1322
      %v1381 = vadd.f32 %v1127, %v1325
      %v1382 = vadd.f32 %v1130, %v1328
      %v1383 = vadd.f32 %v1133, %v1331
      %v1384 = vadd.f32 %v1136, %v1334
      %v1385 = vadd.f32 %v1139, %v1337
      %v1386 = vadd.f32 %v1142, %v1340
      %v1387 = vadd.f32 %v1145, %v1343
      %v1388 = vadd.f32 %v1148, %v1346
      %v1389 = vld [vmem:[#allocation2 + $0x23] sm:$0xff]
      %v1390 = vld [vmem:[#allocation2 + $0x2b] sm:$0xff]
      %v1391 = vld [vmem:[#allocation2 + $0x33] sm:$0xff]
      %v1392 = vld [vmem:[#allocation2 + $0x3b] sm:$0xff]
      %v1393 = vld [vmem:[#allocation2 + $0x43] sm:$0xff]
      %v1394 = vld [vmem:[#allocation2 + $0x4b] sm:$0xff]
      %v1395 = vld [vmem:[#allocation2 + $0x53] sm:$0xff]
      %v1396 = vld [vmem:[#allocation2 + $0x5b] sm:$0xff]
      %v1397 = vld [vmem:[#allocation2 + $0x63] sm:$0xff]
      %v1398 = vld [vmem:[#allocation2 + $0x6b] sm:$0xff]
      %v1399 = vld [vmem:[#allocation2 + $0x73] sm:$0xff]
      %v1400 = vld [vmem:[#allocation2 + $0x7b] sm:$0xff]
      %v1401 = vld [vmem:[#allocation2 + $0x83] sm:$0xff]
      %v1402 = vld [vmem:[#allocation2 + $0x8b] sm:$0xff]
      %v1403 = vld [vmem:[#allocation2 + $0x93] sm:$0xff]
      %v1404 = vld [vmem:[#allocation2 + $0x9b] sm:$0xff]
      %v1405 = vld [vmem:[#allocation2 + $0xa3] sm:$0xff]
      %v1406 = vld [vmem:[#allocation2 + $0xab] sm:$0xff]
      %v1407 = vld [vmem:[#allocation2 + $0xb3] sm:$0xff]
      %v1408 = vld [vmem:[#allocation2 + $0xbb] sm:$0xff]
      %v1409 = vld [vmem:[#allocation2 + $0xc3] sm:$0xff]
      %v1410 = vld [vmem:[#allocation2 + $0xcb] sm:$0xff]
      %v1411 = vld [vmem:[#allocation2 + $0xd3] sm:$0xff]
      %v1412 = vld [vmem:[#allocation2 + $0xdb] sm:$0xff]
      %v1413 = vld [vmem:[#allocation2 + $0xe3] sm:$0xff]
      %v1414 = vld [vmem:[#allocation2 + $0xeb] sm:$0xff]
      %v1415 = vld [vmem:[#allocation2 + $0xf3] sm:$0xff]
      %v1416 = vld [vmem:[#allocation2 + $0xfb] sm:$0xff]
      %v1417 = vld [vmem:[#allocation2 + $0x103] sm:$0xff]
      %v1418 = vld [vmem:[#allocation2 + $0x10b] sm:$0xff]
      %v1419 = vld [vmem:[#allocation2 + $0x113] sm:$0xff]
      %v1420 = vld [vmem:[#allocation2 + $0x11b] sm:$0xff]
      %v1421 = vld [vmem:[#allocation2 + $0x123] sm:$0xff]
      %v1422 = vld [vmem:[#allocation2 + $0x12b] sm:$0xff]
      %v1423 = vld [vmem:[#allocation2 + $0x133] sm:$0xff]
      %v1424 = vld [vmem:[#allocation2 + $0x13b] sm:$0xff]
      %v1425 = vld [vmem:[#allocation2 + $0x143] sm:$0xff]
      %v1426 = vld [vmem:[#allocation2 + $0x14b] sm:$0xff]
      %v1427 = vld [vmem:[#allocation2 + $0x153] sm:$0xff]
      %v1428 = vld [vmem:[#allocation2 + $0x15b] sm:$0xff]
      %v1429 = vld [vmem:[#allocation2 + $0x163] sm:$0xf]
      %s1430 = scalar_lea.vmem %s2, 384
      %v1431 = vld [vmem:[%s1430] sm:$0xff]
      %v1432 = vld [vmem:[%s1430 + $0x8] sm:$0xff]
      %v1433 = vld [vmem:[%s1430 + $0x10] sm:$0xff]
      %v1434 = vld [vmem:[%s1430 + $0x18] sm:$0xff]
      %v1435 = vld [vmem:[%s1430 + $0x20] sm:$0xff]
      %v1436 = vld [vmem:[%s1430 + $0x28] sm:$0xff]
      %v1437 = vld [vmem:[%s1430 + $0x30] sm:$0xff]
      %v1438 = vld [vmem:[%s1430 + $0x38] sm:$0xff]
      %v1439 = vld [vmem:[%s1430 + $0x40] sm:$0xff]
      %v1440 = vld [vmem:[%s1430 + $0x48] sm:$0xff]
      %v1441 = vld [vmem:[%s1430 + $0x50] sm:$0xff]
      %v1442 = vld [vmem:[%s1430 + $0x58] sm:$0xff]
      %v1443 = vld [vmem:[%s1430 + $0x60] sm:$0xff]
      %v1444 = vld [vmem:[%s1430 + $0x68] sm:$0xff]
      %v1445 = vld [vmem:[%s1430 + $0x70] sm:$0xff]
      %v1446 = vld [vmem:[%s1430 + $0x78] sm:$0xff]
      %1447 = vmatpush.msra.mxu0 %v1446
      %1448 = vmatpush.msra.mxu0 %v1445
      %1449 = vmatpush.msra.mxu0 %v1444
      %1450 = vmatpush.msra.mxu0 %v1443
      %1451 = vmatpush.msra.mxu0 %v1442
      %1452 = vmatpush.msra.mxu0 %v1441
      %1453 = vmatpush.msra.mxu0 %v1440
      %1454 = vmatpush.msra.mxu0 %v1439
      %1455 = vmatpush.msra.mxu0 %v1438
      %1456 = vmatpush.msra.mxu0 %v1437
      %1457 = vmatpush.msra.mxu0 %v1436
      %1458 = vmatpush.msra.mxu0 %v1435
      %1459 = vmatpush.msra.mxu0 %v1434
      %1460 = vmatpush.msra.mxu0 %v1433
      %1461 = vmatpush.msra.mxu0 %v1432
      %1462 = vmatpush.msra.mxu0 %v1431
      %1463 = vmatmul.f32.gmra.mxu0 %v1389
      %v1464 = vpop.f32.mrf.mxu0
      %v1465 = vadd.f32 0.0, %v1464
      %1466 = vmatmul.f32.gmra.mxu0 %v1390
      %v1467 = vpop.f32.mrf.mxu0
      %v1468 = vadd.f32 0.0, %v1467
      %1469 = vmatmul.f32.gmra.mxu0 %v1391
      %v1470 = vpop.f32.mrf.mxu0
      %v1471 = vadd.f32 0.0, %v1470
      %1472 = vmatmul.f32.gmra.mxu0 %v1392
      %v1473 = vpop.f32.mrf.mxu0
      %v1474 = vadd.f32 0.0, %v1473
      %1475 = vmatmul.f32.gmra.mxu0 %v1393
      %v1476 = vpop.f32.mrf.mxu0
      %v1477 = vadd.f32 0.0, %v1476
      %1478 = vmatmul.f32.gmra.mxu0 %v1394
      %v1479 = vpop.f32.mrf.mxu0
      %v1480 = vadd.f32 0.0, %v1479
      %1481 = vmatmul.f32.gmra.mxu0 %v1395
      %v1482 = vpop.f32.mrf.mxu0
      %v1483 = vadd.f32 0.0, %v1482
      %1484 = vmatmul.f32.gmra.mxu0 %v1396
      %v1485 = vpop.f32.mrf.mxu0
      %v1486 = vadd.f32 0.0, %v1485
      %1487 = vmatmul.f32.gmra.mxu0 %v1397
      %v1488 = vpop.f32.mrf.mxu0
      %v1489 = vadd.f32 0.0, %v1488
      %1490 = vmatmul.f32.gmra.mxu0 %v1398
      %v1491 = vpop.f32.mrf.mxu0
      %v1492 = vadd.f32 0.0, %v1491
      %1493 = vmatmul.f32.gmra.mxu0 %v1399
      %v1494 = vpop.f32.mrf.mxu0
      %v1495 = vadd.f32 0.0, %v1494
      %1496 = vmatmul.f32.gmra.mxu0 %v1400
      %v1497 = vpop.f32.mrf.mxu0
      %v1498 = vadd.f32 0.0, %v1497
      %1499 = vmatmul.f32.gmra.mxu0 %v1401
      %v1500 = vpop.f32.mrf.mxu0
      %v1501 = vadd.f32 0.0, %v1500
      %1502 = vmatmul.f32.gmra.mxu0 %v1402
      %v1503 = vpop.f32.mrf.mxu0
      %v1504 = vadd.f32 0.0, %v1503
      %1505 = vmatmul.f32.gmra.mxu0 %v1403
      %v1506 = vpop.f32.mrf.mxu0
      %v1507 = vadd.f32 0.0, %v1506
      %1508 = vmatmul.f32.gmra.mxu0 %v1404
      %v1509 = vpop.f32.mrf.mxu0
      %v1510 = vadd.f32 0.0, %v1509
      %1511 = vmatmul.f32.gmra.mxu0 %v1405
      %v1512 = vpop.f32.mrf.mxu0
      %v1513 = vadd.f32 0.0, %v1512
      %1514 = vmatmul.f32.gmra.mxu0 %v1406
      %v1515 = vpop.f32.mrf.mxu0
      %v1516 = vadd.f32 0.0, %v1515
      %1517 = vmatmul.f32.gmra.mxu0 %v1407
      %v1518 = vpop.f32.mrf.mxu0
      %v1519 = vadd.f32 0.0, %v1518
      %1520 = vmatmul.f32.gmra.mxu0 %v1408
      %v1521 = vpop.f32.mrf.mxu0
      %v1522 = vadd.f32 0.0, %v1521
      %1523 = vmatmul.f32.gmra.mxu0 %v1409
      %v1524 = vpop.f32.mrf.mxu0
      %v1525 = vadd.f32 0.0, %v1524
      %1526 = vmatmul.f32.gmra.mxu0 %v1410
      %v1527 = vpop.f32.mrf.mxu0
      %v1528 = vadd.f32 0.0, %v1527
      %1529 = vmatmul.f32.gmra.mxu0 %v1411
      %v1530 = vpop.f32.mrf.mxu0
      %v1531 = vadd.f32 0.0, %v1530
      %1532 = vmatmul.f32.gmra.mxu0 %v1412
      %v1533 = vpop.f32.mrf.mxu0
      %v1534 = vadd.f32 0.0, %v1533
      %1535 = vmatmul.f32.gmra.mxu0 %v1413
      %v1536 = vpop.f32.mrf.mxu0
      %v1537 = vadd.f32 0.0, %v1536
      %1538 = vmatmul.f32.gmra.mxu0 %v1414
      %v1539 = vpop.f32.mrf.mxu0
      %v1540 = vadd.f32 0.0, %v1539
      %1541 = vmatmul.f32.gmra.mxu0 %v1415
      %v1542 = vpop.f32.mrf.mxu0
      %v1543 = vadd.f32 0.0, %v1542
      %1544 = vmatmul.f32.gmra.mxu0 %v1416
      %v1545 = vpop.f32.mrf.mxu0
      %v1546 = vadd.f32 0.0, %v1545
      %1547 = vmatmul.f32.gmra.mxu0 %v1417
      %v1548 = vpop.f32.mrf.mxu0
      %v1549 = vadd.f32 0.0, %v1548
      %1550 = vmatmul.f32.gmra.mxu0 %v1418
      %v1551 = vpop.f32.mrf.mxu0
      %v1552 = vadd.f32 0.0, %v1551
      %1553 = vmatmul.f32.gmra.mxu0 %v1419
      %v1554 = vpop.f32.mrf.mxu0
      %v1555 = vadd.f32 0.0, %v1554
      %1556 = vmatmul.f32.gmra.mxu0 %v1420
      %v1557 = vpop.f32.mrf.mxu0
      %v1558 = vadd.f32 0.0, %v1557
      %1559 = vmatmul.f32.gmra.mxu0 %v1421
      %v1560 = vpop.f32.mrf.mxu0
      %v1561 = vadd.f32 0.0, %v1560
      %1562 = vmatmul.f32.gmra.mxu0 %v1422
      %v1563 = vpop.f32.mrf.mxu0
      %v1564 = vadd.f32 0.0, %v1563
      %1565 = vmatmul.f32.gmra.mxu0 %v1423
      %v1566 = vpop.f32.mrf.mxu0
      %v1567 = vadd.f32 0.0, %v1566
      %1568 = vmatmul.f32.gmra.mxu0 %v1424
      %v1569 = vpop.f32.mrf.mxu0
      %v1570 = vadd.f32 0.0, %v1569
      %1571 = vmatmul.f32.gmra.mxu0 %v1425
      %v1572 = vpop.f32.mrf.mxu0
      %v1573 = vadd.f32 0.0, %v1572
      %1574 = vmatmul.f32.gmra.mxu0 %v1426
      %v1575 = vpop.f32.mrf.mxu0
      %v1576 = vadd.f32 0.0, %v1575
      %1577 = vmatmul.f32.gmra.mxu0 %v1427
      %v1578 = vpop.f32.mrf.mxu0
      %v1579 = vadd.f32 0.0, %v1578
      %1580 = vmatmul.f32.gmra.mxu0 %v1428
      %v1581 = vpop.f32.mrf.mxu0
      %v1582 = vadd.f32 0.0, %v1581
      %1583 = vmatmul.f32.gmra.mxu0 %v1429
      %v1584 = vpop.f32.mrf.mxu0
      %v1585 = vadd.f32 0.0, %v1584
      %1586 = vdwg.mxu0
      %v1587 = vadd.f32 %v1348, %v1465
      %v1588 = vadd.f32 %v1349, %v1468
      %v1589 = vadd.f32 %v1350, %v1471
      %v1590 = vadd.f32 %v1351, %v1474
      %v1591 = vadd.f32 %v1352, %v1477
      %v1592 = vadd.f32 %v1353, %v1480
      %v1593 = vadd.f32 %v1354, %v1483
      %v1594 = vadd.f32 %v1355, %v1486
      %v1595 = vadd.f32 %v1356, %v1489
      %v1596 = vadd.f32 %v1357, %v1492
      %v1597 = vadd.f32 %v1358, %v1495
      %v1598 = vadd.f32 %v1359, %v1498
      %v1599 = vadd.f32 %v1360, %v1501
      %v1600 = vadd.f32 %v1361, %v1504
      %v1601 = vadd.f32 %v1362, %v1507
      %v1602 = vadd.f32 %v1363, %v1510
      %v1603 = vadd.f32 %v1364, %v1513
      %v1604 = vadd.f32 %v1365, %v1516
      %v1605 = vadd.f32 %v1366, %v1519
      %v1606 = vadd.f32 %v1367, %v1522
      %v1607 = vadd.f32 %v1368, %v1525
      %v1608 = vadd.f32 %v1369, %v1528
      %v1609 = vadd.f32 %v1370, %v1531
      %v1610 = vadd.f32 %v1371, %v1534
      %v1611 = vadd.f32 %v1372, %v1537
      %v1612 = vadd.f32 %v1373, %v1540
      %v1613 = vadd.f32 %v1374, %v1543
      %v1614 = vadd.f32 %v1375, %v1546
      %v1615 = vadd.f32 %v1376, %v1549
      %v1616 = vadd.f32 %v1377, %v1552
      %v1617 = vadd.f32 %v1378, %v1555
      %v1618 = vadd.f32 %v1379, %v1558
      %v1619 = vadd.f32 %v1380, %v1561
      %v1620 = vadd.f32 %v1381, %v1564
      %v1621 = vadd.f32 %v1382, %v1567
      %v1622 = vadd.f32 %v1383, %v1570
      %v1623 = vadd.f32 %v1384, %v1573
      %v1624 = vadd.f32 %v1385, %v1576
      %v1625 = vadd.f32 %v1386, %v1579
      %v1626 = vadd.f32 %v1387, %v1582
      %v1627 = vadd.f32 %v1388, %v1585
      %v1628 = vld [vmem:[#allocation2 + $0x24] sm:$0xff]
      %v1629 = vld [vmem:[#allocation2 + $0x2c] sm:$0xff]
      %v1630 = vld [vmem:[#allocation2 + $0x34] sm:$0xff]
      %v1631 = vld [vmem:[#allocation2 + $0x3c] sm:$0xff]
      %v1632 = vld [vmem:[#allocation2 + $0x44] sm:$0xff]
      %v1633 = vld [vmem:[#allocation2 + $0x4c] sm:$0xff]
      %v1634 = vld [vmem:[#allocation2 + $0x54] sm:$0xff]
      %v1635 = vld [vmem:[#allocation2 + $0x5c] sm:$0xff]
      %v1636 = vld [vmem:[#allocation2 + $0x64] sm:$0xff]
      %v1637 = vld [vmem:[#allocation2 + $0x6c] sm:$0xff]
      %v1638 = vld [vmem:[#allocation2 + $0x74] sm:$0xff]
      %v1639 = vld [vmem:[#allocation2 + $0x7c] sm:$0xff]
      %v1640 = vld [vmem:[#allocation2 + $0x84] sm:$0xff]
      %v1641 = vld [vmem:[#allocation2 + $0x8c] sm:$0xff]
      %v1642 = vld [vmem:[#allocation2 + $0x94] sm:$0xff]
      %v1643 = vld [vmem:[#allocation2 + $0x9c] sm:$0xff]
      %v1644 = vld [vmem:[#allocation2 + $0xa4] sm:$0xff]
      %v1645 = vld [vmem:[#allocation2 + $0xac] sm:$0xff]
      %v1646 = vld [vmem:[#allocation2 + $0xb4] sm:$0xff]
      %v1647 = vld [vmem:[#allocation2 + $0xbc] sm:$0xff]
      %v1648 = vld [vmem:[#allocation2 + $0xc4] sm:$0xff]
      %v1649 = vld [vmem:[#allocation2 + $0xcc] sm:$0xff]
      %v1650 = vld [vmem:[#allocation2 + $0xd4] sm:$0xff]
      %v1651 = vld [vmem:[#allocation2 + $0xdc] sm:$0xff]
      %v1652 = vld [vmem:[#allocation2 + $0xe4] sm:$0xff]
      %v1653 = vld [vmem:[#allocation2 + $0xec] sm:$0xff]
      %v1654 = vld [vmem:[#allocation2 + $0xf4] sm:$0xff]
      %v1655 = vld [vmem:[#allocation2 + $0xfc] sm:$0xff]
      %v1656 = vld [vmem:[#allocation2 + $0x104] sm:$0xff]
      %v1657 = vld [vmem:[#allocation2 + $0x10c] sm:$0xff]
      %v1658 = vld [vmem:[#allocation2 + $0x114] sm:$0xff]
      %v1659 = vld [vmem:[#allocation2 + $0x11c] sm:$0xff]
      %v1660 = vld [vmem:[#allocation2 + $0x124] sm:$0xff]
      %v1661 = vld [vmem:[#allocation2 + $0x12c] sm:$0xff]
      %v1662 = vld [vmem:[#allocation2 + $0x134] sm:$0xff]
      %v1663 = vld [vmem:[#allocation2 + $0x13c] sm:$0xff]
      %v1664 = vld [vmem:[#allocation2 + $0x144] sm:$0xff]
      %v1665 = vld [vmem:[#allocation2 + $0x14c] sm:$0xff]
      %v1666 = vld [vmem:[#allocation2 + $0x154] sm:$0xff]
      %v1667 = vld [vmem:[#allocation2 + $0x15c] sm:$0xff]
      %v1668 = vld [vmem:[#allocation2 + $0x164] sm:$0xf]
      %s1669 = scalar_lea.vmem %s2, 512
      %v1670 = vld [vmem:[%s1669] sm:$0xff]
      %v1671 = vld [vmem:[%s1669 + $0x8] sm:$0xff]
      %v1672 = vld [vmem:[%s1669 + $0x10] sm:$0xff]
      %v1673 = vld [vmem:[%s1669 + $0x18] sm:$0xff]
      %v1674 = vld [vmem:[%s1669 + $0x20] sm:$0xff]
      %v1675 = vld [vmem:[%s1669 + $0x28] sm:$0xff]
      %v1676 = vld [vmem:[%s1669 + $0x30] sm:$0xff]
      %v1677 = vld [vmem:[%s1669 + $0x38] sm:$0xff]
      %v1678 = vld [vmem:[%s1669 + $0x40] sm:$0xff]
      %v1679 = vld [vmem:[%s1669 + $0x48] sm:$0xff]
      %v1680 = vld [vmem:[%s1669 + $0x50] sm:$0xff]
      %v1681 = vld [vmem:[%s1669 + $0x58] sm:$0xff]
      %v1682 = vld [vmem:[%s1669 + $0x60] sm:$0xff]
      %v1683 = vld [vmem:[%s1669 + $0x68] sm:$0xff]
      %v1684 = vld [vmem:[%s1669 + $0x70] sm:$0xff]
      %v1685 = vld [vmem:[%s1669 + $0x78] sm:$0xff]
      %1686 = vmatpush.msra.mxu0 %v1685
      %1687 = vmatpush.msra.mxu0 %v1684
      %1688 = vmatpush.msra.mxu0 %v1683
      %1689 = vmatpush.msra.mxu0 %v1682
      %1690 = vmatpush.msra.mxu0 %v1681
      %1691 = vmatpush.msra.mxu0 %v1680
      %1692 = vmatpush.msra.mxu0 %v1679
      %1693 = vmatpush.msra.mxu0 %v1678
      %1694 = vmatpush.msra.mxu0 %v1677
      %1695 = vmatpush.msra.mxu0 %v1676
      %1696 = vmatpush.msra.mxu0 %v1675
      %1697 = vmatpush.msra.mxu0 %v1674
      %1698 = vmatpush.msra.mxu0 %v1673
      %1699 = vmatpush.msra.mxu0 %v1672
      %1700 = vmatpush.msra.mxu0 %v1671
      %1701 = vmatpush.msra.mxu0 %v1670
      %1702 = vmatmul.f32.gmra.mxu0 %v1628
      %v1703 = vpop.f32.mrf.mxu0
      %v1704 = vadd.f32 0.0, %v1703
      %1705 = vmatmul.f32.gmra.mxu0 %v1629
      %v1706 = vpop.f32.mrf.mxu0
      %v1707 = vadd.f32 0.0, %v1706
      %1708 = vmatmul.f32.gmra.mxu0 %v1630
      %v1709 = vpop.f32.mrf.mxu0
      %v1710 = vadd.f32 0.0, %v1709
      %1711 = vmatmul.f32.gmra.mxu0 %v1631
      %v1712 = vpop.f32.mrf.mxu0
      %v1713 = vadd.f32 0.0, %v1712
      %1714 = vmatmul.f32.gmra.mxu0 %v1632
      %v1715 = vpop.f32.mrf.mxu0
      %v1716 = vadd.f32 0.0, %v1715
      %1717 = vmatmul.f32.gmra.mxu0 %v1633
      %v1718 = vpop.f32.mrf.mxu0
      %v1719 = vadd.f32 0.0, %v1718
      %1720 = vmatmul.f32.gmra.mxu0 %v1634
      %v1721 = vpop.f32.mrf.mxu0
      %v1722 = vadd.f32 0.0, %v1721
      %1723 = vmatmul.f32.gmra.mxu0 %v1635
      %v1724 = vpop.f32.mrf.mxu0
      %v1725 = vadd.f32 0.0, %v1724
      %1726 = vmatmul.f32.gmra.mxu0 %v1636
      %v1727 = vpop.f32.mrf.mxu0
      %v1728 = vadd.f32 0.0, %v1727
      %1729 = vmatmul.f32.gmra.mxu0 %v1637
      %v1730 = vpop.f32.mrf.mxu0
      %v1731 = vadd.f32 0.0, %v1730
      %1732 = vmatmul.f32.gmra.mxu0 %v1638
      %v1733 = vpop.f32.mrf.mxu0
      %v1734 = vadd.f32 0.0, %v1733
      %1735 = vmatmul.f32.gmra.mxu0 %v1639
      %v1736 = vpop.f32.mrf.mxu0
      %v1737 = vadd.f32 0.0, %v1736
      %1738 = vmatmul.f32.gmra.mxu0 %v1640
      %v1739 = vpop.f32.mrf.mxu0
      %v1740 = vadd.f32 0.0, %v1739
      %1741 = vmatmul.f32.gmra.mxu0 %v1641
      %v1742 = vpop.f32.mrf.mxu0
      %v1743 = vadd.f32 0.0, %v1742
      %1744 = vmatmul.f32.gmra.mxu0 %v1642
      %v1745 = vpop.f32.mrf.mxu0
      %v1746 = vadd.f32 0.0, %v1745
      %1747 = vmatmul.f32.gmra.mxu0 %v1643
      %v1748 = vpop.f32.mrf.mxu0
      %v1749 = vadd.f32 0.0, %v1748
      %1750 = vmatmul.f32.gmra.mxu0 %v1644
      %v1751 = vpop.f32.mrf.mxu0
      %v1752 = vadd.f32 0.0, %v1751
      %1753 = vmatmul.f32.gmra.mxu0 %v1645
      %v1754 = vpop.f32.mrf.mxu0
      %v1755 = vadd.f32 0.0, %v1754
      %1756 = vmatmul.f32.gmra.mxu0 %v1646
      %v1757 = vpop.f32.mrf.mxu0
      %v1758 = vadd.f32 0.0, %v1757
      %1759 = vmatmul.f32.gmra.mxu0 %v1647
      %v1760 = vpop.f32.mrf.mxu0
      %v1761 = vadd.f32 0.0, %v1760
      %1762 = vmatmul.f32.gmra.mxu0 %v1648
      %v1763 = vpop.f32.mrf.mxu0
      %v1764 = vadd.f32 0.0, %v1763
      %1765 = vmatmul.f32.gmra.mxu0 %v1649
      %v1766 = vpop.f32.mrf.mxu0
      %v1767 = vadd.f32 0.0, %v1766
      %1768 = vmatmul.f32.gmra.mxu0 %v1650
      %v1769 = vpop.f32.mrf.mxu0
      %v1770 = vadd.f32 0.0, %v1769
      %1771 = vmatmul.f32.gmra.mxu0 %v1651
      %v1772 = vpop.f32.mrf.mxu0
      %v1773 = vadd.f32 0.0, %v1772
      %1774 = vmatmul.f32.gmra.mxu0 %v1652
      %v1775 = vpop.f32.mrf.mxu0
      %v1776 = vadd.f32 0.0, %v1775
      %1777 = vmatmul.f32.gmra.mxu0 %v1653
      %v1778 = vpop.f32.mrf.mxu0
      %v1779 = vadd.f32 0.0, %v1778
      %1780 = vmatmul.f32.gmra.mxu0 %v1654
      %v1781 = vpop.f32.mrf.mxu0
      %v1782 = vadd.f32 0.0, %v1781
      %1783 = vmatmul.f32.gmra.mxu0 %v1655
      %v1784 = vpop.f32.mrf.mxu0
      %v1785 = vadd.f32 0.0, %v1784
      %1786 = vmatmul.f32.gmra.mxu0 %v1656
      %v1787 = vpop.f32.mrf.mxu0
      %v1788 = vadd.f32 0.0, %v1787
      %1789 = vmatmul.f32.gmra.mxu0 %v1657
      %v1790 = vpop.f32.mrf.mxu0
      %v1791 = vadd.f32 0.0, %v1790
      %1792 = vmatmul.f32.gmra.mxu0 %v1658
      %v1793 = vpop.f32.mrf.mxu0
      %v1794 = vadd.f32 0.0, %v1793
      %1795 = vmatmul.f32.gmra.mxu0 %v1659
      %v1796 = vpop.f32.mrf.mxu0
      %v1797 = vadd.f32 0.0, %v1796
      %1798 = vmatmul.f32.gmra.mxu0 %v1660
      %v1799 = vpop.f32.mrf.mxu0
      %v1800 = vadd.f32 0.0, %v1799
      %1801 = vmatmul.f32.gmra.mxu0 %v1661
      %v1802 = vpop.f32.mrf.mxu0
      %v1803 = vadd.f32 0.0, %v1802
      %1804 = vmatmul.f32.gmra.mxu0 %v1662
      %v1805 = vpop.f32.mrf.mxu0
      %v1806 = vadd.f32 0.0, %v1805
      %1807 = vmatmul.f32.gmra.mxu0 %v1663
      %v1808 = vpop.f32.mrf.mxu0
      %v1809 = vadd.f32 0.0, %v1808
      %1810 = vmatmul.f32.gmra.mxu0 %v1664
      %v1811 = vpop.f32.mrf.mxu0
      %v1812 = vadd.f32 0.0, %v1811
      %1813 = vmatmul.f32.gmra.mxu0 %v1665
      %v1814 = vpop.f32.mrf.mxu0
      %v1815 = vadd.f32 0.0, %v1814
      %1816 = vmatmul.f32.gmra.mxu0 %v1666
      %v1817 = vpop.f32.mrf.mxu0
      %v1818 = vadd.f32 0.0, %v1817
      %1819 = vmatmul.f32.gmra.mxu0 %v1667
      %v1820 = vpop.f32.mrf.mxu0
      %v1821 = vadd.f32 0.0, %v1820
      %1822 = vmatmul.f32.gmra.mxu0 %v1668
      %v1823 = vpop.f32.mrf.mxu0
      %v1824 = vadd.f32 0.0, %v1823
      %1825 = vdwg.mxu0
      %v1826 = vadd.f32 %v1587, %v1704
      %v1827 = vadd.f32 %v1588, %v1707
      %v1828 = vadd.f32 %v1589, %v1710
      %v1829 = vadd.f32 %v1590, %v1713
      %v1830 = vadd.f32 %v1591, %v1716
      %v1831 = vadd.f32 %v1592, %v1719
      %v1832 = vadd.f32 %v1593, %v1722
      %v1833 = vadd.f32 %v1594, %v1725
      %v1834 = vadd.f32 %v1595, %v1728
      %v1835 = vadd.f32 %v1596, %v1731
      %v1836 = vadd.f32 %v1597, %v1734
      %v1837 = vadd.f32 %v1598, %v1737
      %v1838 = vadd.f32 %v1599, %v1740
      %v1839 = vadd.f32 %v1600, %v1743
      %v1840 = vadd.f32 %v1601, %v1746
      %v1841 = vadd.f32 %v1602, %v1749
      %v1842 = vadd.f32 %v1603, %v1752
      %v1843 = vadd.f32 %v1604, %v1755
      %v1844 = vadd.f32 %v1605, %v1758
      %v1845 = vadd.f32 %v1606, %v1761
      %v1846 = vadd.f32 %v1607, %v1764
      %v1847 = vadd.f32 %v1608, %v1767
      %v1848 = vadd.f32 %v1609, %v1770
      %v1849 = vadd.f32 %v1610, %v1773
      %v1850 = vadd.f32 %v1611, %v1776
      %v1851 = vadd.f32 %v1612, %v1779
      %v1852 = vadd.f32 %v1613, %v1782
      %v1853 = vadd.f32 %v1614, %v1785
      %v1854 = vadd.f32 %v1615, %v1788
      %v1855 = vadd.f32 %v1616, %v1791
      %v1856 = vadd.f32 %v1617, %v1794
      %v1857 = vadd.f32 %v1618, %v1797
      %v1858 = vadd.f32 %v1619, %v1800
      %v1859 = vadd.f32 %v1620, %v1803
      %v1860 = vadd.f32 %v1621, %v1806
      %v1861 = vadd.f32 %v1622, %v1809
      %v1862 = vadd.f32 %v1623, %v1812
      %v1863 = vadd.f32 %v1624, %v1815
      %v1864 = vadd.f32 %v1625, %v1818
      %v1865 = vadd.f32 %v1626, %v1821
      %v1866 = vadd.f32 %v1627, %v1824
      %v1867 = vld [vmem:[#allocation2 + $0x25] sm:$0xff]
      %v1868 = vld [vmem:[#allocation2 + $0x2d] sm:$0xff]
      %v1869 = vld [vmem:[#allocation2 + $0x35] sm:$0xff]
      %v1870 = vld [vmem:[#allocation2 + $0x3d] sm:$0xff]
      %v1871 = vld [vmem:[#allocation2 + $0x45] sm:$0xff]
      %v1872 = vld [vmem:[#allocation2 + $0x4d] sm:$0xff]
      %v1873 = vld [vmem:[#allocation2 + $0x55] sm:$0xff]
      %v1874 = vld [vmem:[#allocation2 + $0x5d] sm:$0xff]
      %v1875 = vld [vmem:[#allocation2 + $0x65] sm:$0xff]
      %v1876 = vld [vmem:[#allocation2 + $0x6d] sm:$0xff]
      %v1877 = vld [vmem:[#allocation2 + $0x75] sm:$0xff]
      %v1878 = vld [vmem:[#allocation2 + $0x7d] sm:$0xff]
      %v1879 = vld [vmem:[#allocation2 + $0x85] sm:$0xff]
      %v1880 = vld [vmem:[#allocation2 + $0x8d] sm:$0xff]
      %v1881 = vld [vmem:[#allocation2 + $0x95] sm:$0xff]
      %v1882 = vld [vmem:[#allocation2 + $0x9d] sm:$0xff]
      %v1883 = vld [vmem:[#allocation2 + $0xa5] sm:$0xff]
      %v1884 = vld [vmem:[#allocation2 + $0xad] sm:$0xff]
      %v1885 = vld [vmem:[#allocation2 + $0xb5] sm:$0xff]
      %v1886 = vld [vmem:[#allocation2 + $0xbd] sm:$0xff]
      %v1887 = vld [vmem:[#allocation2 + $0xc5] sm:$0xff]
      %v1888 = vld [vmem:[#allocation2 + $0xcd] sm:$0xff]
      %v1889 = vld [vmem:[#allocation2 + $0xd5] sm:$0xff]
      %v1890 = vld [vmem:[#allocation2 + $0xdd] sm:$0xff]
      %v1891 = vld [vmem:[#allocation2 + $0xe5] sm:$0xff]
      %v1892 = vld [vmem:[#allocation2 + $0xed] sm:$0xff]
      %v1893 = vld [vmem:[#allocation2 + $0xf5] sm:$0xff]
      %v1894 = vld [vmem:[#allocation2 + $0xfd] sm:$0xff]
      %v1895 = vld [vmem:[#allocation2 + $0x105] sm:$0xff]
      %v1896 = vld [vmem:[#allocation2 + $0x10d] sm:$0xff]
      %v1897 = vld [vmem:[#allocation2 + $0x115] sm:$0xff]
      %v1898 = vld [vmem:[#allocation2 + $0x11d] sm:$0xff]
      %v1899 = vld [vmem:[#allocation2 + $0x125] sm:$0xff]
      %v1900 = vld [vmem:[#allocation2 + $0x12d] sm:$0xff]
      %v1901 = vld [vmem:[#allocation2 + $0x135] sm:$0xff]
      %v1902 = vld [vmem:[#allocation2 + $0x13d] sm:$0xff]
      %v1903 = vld [vmem:[#allocation2 + $0x145] sm:$0xff]
      %v1904 = vld [vmem:[#allocation2 + $0x14d] sm:$0xff]
      %v1905 = vld [vmem:[#allocation2 + $0x155] sm:$0xff]
      %v1906 = vld [vmem:[#allocation2 + $0x15d] sm:$0xff]
      %v1907 = vld [vmem:[#allocation2 + $0x165] sm:$0xf]
      %s1908 = scalar_lea.vmem %s2, 640
      %v1909 = vld [vmem:[%s1908] sm:$0xff]
      %v1910 = vld [vmem:[%s1908 + $0x8] sm:$0xff]
      %v1911 = vld [vmem:[%s1908 + $0x10] sm:$0xff]
      %v1912 = vld [vmem:[%s1908 + $0x18] sm:$0xff]
      %v1913 = vld [vmem:[%s1908 + $0x20] sm:$0xff]
      %v1914 = vld [vmem:[%s1908 + $0x28] sm:$0xff]
      %v1915 = vld [vmem:[%s1908 + $0x30] sm:$0xff]
      %v1916 = vld [vmem:[%s1908 + $0x38] sm:$0xff]
      %v1917 = vld [vmem:[%s1908 + $0x40] sm:$0xff]
      %v1918 = vld [vmem:[%s1908 + $0x48] sm:$0xff]
      %v1919 = vld [vmem:[%s1908 + $0x50] sm:$0xff]
      %v1920 = vld [vmem:[%s1908 + $0x58] sm:$0xff]
      %v1921 = vld [vmem:[%s1908 + $0x60] sm:$0xff]
      %v1922 = vld [vmem:[%s1908 + $0x68] sm:$0xff]
      %v1923 = vld [vmem:[%s1908 + $0x70] sm:$0xff]
      %v1924 = vld [vmem:[%s1908 + $0x78] sm:$0xff]
      %1925 = vmatpush.msra.mxu0 %v1924
      %1926 = vmatpush.msra.mxu0 %v1923
      %1927 = vmatpush.msra.mxu0 %v1922
      %1928 = vmatpush.msra.mxu0 %v1921
      %1929 = vmatpush.msra.mxu0 %v1920
      %1930 = vmatpush.msra.mxu0 %v1919
      %1931 = vmatpush.msra.mxu0 %v1918
      %1932 = vmatpush.msra.mxu0 %v1917
      %1933 = vmatpush.msra.mxu0 %v1916
      %1934 = vmatpush.msra.mxu0 %v1915
      %1935 = vmatpush.msra.mxu0 %v1914
      %1936 = vmatpush.msra.mxu0 %v1913
      %1937 = vmatpush.msra.mxu0 %v1912
      %1938 = vmatpush.msra.mxu0 %v1911
      %1939 = vmatpush.msra.mxu0 %v1910
      %1940 = vmatpush.msra.mxu0 %v1909
      %1941 = vmatmul.f32.gmra.mxu0 %v1867
      %v1942 = vpop.f32.mrf.mxu0
      %v1943 = vadd.f32 0.0, %v1942
      %1944 = vmatmul.f32.gmra.mxu0 %v1868
      %v1945 = vpop.f32.mrf.mxu0
      %v1946 = vadd.f32 0.0, %v1945
      %1947 = vmatmul.f32.gmra.mxu0 %v1869
      %v1948 = vpop.f32.mrf.mxu0
      %v1949 = vadd.f32 0.0, %v1948
      %1950 = vmatmul.f32.gmra.mxu0 %v1870
      %v1951 = vpop.f32.mrf.mxu0
      %v1952 = vadd.f32 0.0, %v1951
      %1953 = vmatmul.f32.gmra.mxu0 %v1871
      %v1954 = vpop.f32.mrf.mxu0
      %v1955 = vadd.f32 0.0, %v1954
      %1956 = vmatmul.f32.gmra.mxu0 %v1872
      %v1957 = vpop.f32.mrf.mxu0
      %v1958 = vadd.f32 0.0, %v1957
      %1959 = vmatmul.f32.gmra.mxu0 %v1873
      %v1960 = vpop.f32.mrf.mxu0
      %v1961 = vadd.f32 0.0, %v1960
      %1962 = vmatmul.f32.gmra.mxu0 %v1874
      %v1963 = vpop.f32.mrf.mxu0
      %v1964 = vadd.f32 0.0, %v1963
      %1965 = vmatmul.f32.gmra.mxu0 %v1875
      %v1966 = vpop.f32.mrf.mxu0
      %v1967 = vadd.f32 0.0, %v1966
      %1968 = vmatmul.f32.gmra.mxu0 %v1876
      %v1969 = vpop.f32.mrf.mxu0
      %v1970 = vadd.f32 0.0, %v1969
      %1971 = vmatmul.f32.gmra.mxu0 %v1877
      %v1972 = vpop.f32.mrf.mxu0
      %v1973 = vadd.f32 0.0, %v1972
      %1974 = vmatmul.f32.gmra.mxu0 %v1878
      %v1975 = vpop.f32.mrf.mxu0
      %v1976 = vadd.f32 0.0, %v1975
      %1977 = vmatmul.f32.gmra.mxu0 %v1879
      %v1978 = vpop.f32.mrf.mxu0
      %v1979 = vadd.f32 0.0, %v1978
      %1980 = vmatmul.f32.gmra.mxu0 %v1880
      %v1981 = vpop.f32.mrf.mxu0
      %v1982 = vadd.f32 0.0, %v1981
      %1983 = vmatmul.f32.gmra.mxu0 %v1881
      %v1984 = vpop.f32.mrf.mxu0
      %v1985 = vadd.f32 0.0, %v1984
      %1986 = vmatmul.f32.gmra.mxu0 %v1882
      %v1987 = vpop.f32.mrf.mxu0
      %v1988 = vadd.f32 0.0, %v1987
      %1989 = vmatmul.f32.gmra.mxu0 %v1883
      %v1990 = vpop.f32.mrf.mxu0
      %v1991 = vadd.f32 0.0, %v1990
      %1992 = vmatmul.f32.gmra.mxu0 %v1884
      %v1993 = vpop.f32.mrf.mxu0
      %v1994 = vadd.f32 0.0, %v1993
      %1995 = vmatmul.f32.gmra.mxu0 %v1885
      %v1996 = vpop.f32.mrf.mxu0
      %v1997 = vadd.f32 0.0, %v1996
      %1998 = vmatmul.f32.gmra.mxu0 %v1886
      %v1999 = vpop.f32.mrf.mxu0
      %v2000 = vadd.f32 0.0, %v1999
      %2001 = vmatmul.f32.gmra.mxu0 %v1887
      %v2002 = vpop.f32.mrf.mxu0
      %v2003 = vadd.f32 0.0, %v2002
      %2004 = vmatmul.f32.gmra.mxu0 %v1888
      %v2005 = vpop.f32.mrf.mxu0
      %v2006 = vadd.f32 0.0, %v2005
      %2007 = vmatmul.f32.gmra.mxu0 %v1889
      %v2008 = vpop.f32.mrf.mxu0
      %v2009 = vadd.f32 0.0, %v2008
      %2010 = vmatmul.f32.gmra.mxu0 %v1890
      %v2011 = vpop.f32.mrf.mxu0
      %v2012 = vadd.f32 0.0, %v2011
      %2013 = vmatmul.f32.gmra.mxu0 %v1891
      %v2014 = vpop.f32.mrf.mxu0
      %v2015 = vadd.f32 0.0, %v2014
      %2016 = vmatmul.f32.gmra.mxu0 %v1892
      %v2017 = vpop.f32.mrf.mxu0
      %v2018 = vadd.f32 0.0, %v2017
      %2019 = vmatmul.f32.gmra.mxu0 %v1893
      %v2020 = vpop.f32.mrf.mxu0
      %v2021 = vadd.f32 0.0, %v2020
      %2022 = vmatmul.f32.gmra.mxu0 %v1894
      %v2023 = vpop.f32.mrf.mxu0
      %v2024 = vadd.f32 0.0, %v2023
      %2025 = vmatmul.f32.gmra.mxu0 %v1895
      %v2026 = vpop.f32.mrf.mxu0
      %v2027 = vadd.f32 0.0, %v2026
      %2028 = vmatmul.f32.gmra.mxu0 %v1896
      %v2029 = vpop.f32.mrf.mxu0
      %v2030 = vadd.f32 0.0, %v2029
      %2031 = vmatmul.f32.gmra.mxu0 %v1897
      %v2032 = vpop.f32.mrf.mxu0
      %v2033 = vadd.f32 0.0, %v2032
      %2034 = vmatmul.f32.gmra.mxu0 %v1898
      %v2035 = vpop.f32.mrf.mxu0
      %v2036 = vadd.f32 0.0, %v2035
      %2037 = vmatmul.f32.gmra.mxu0 %v1899
      %v2038 = vpop.f32.mrf.mxu0
      %v2039 = vadd.f32 0.0, %v2038
      %2040 = vmatmul.f32.gmra.mxu0 %v1900
      %v2041 = vpop.f32.mrf.mxu0
      %v2042 = vadd.f32 0.0, %v2041
      %2043 = vmatmul.f32.gmra.mxu0 %v1901
      %v2044 = vpop.f32.mrf.mxu0
      %v2045 = vadd.f32 0.0, %v2044
      %2046 = vmatmul.f32.gmra.mxu0 %v1902
      %v2047 = vpop.f32.mrf.mxu0
      %v2048 = vadd.f32 0.0, %v2047
      %2049 = vmatmul.f32.gmra.mxu0 %v1903
      %v2050 = vpop.f32.mrf.mxu0
      %v2051 = vadd.f32 0.0, %v2050
      %2052 = vmatmul.f32.gmra.mxu0 %v1904
      %v2053 = vpop.f32.mrf.mxu0
      %v2054 = vadd.f32 0.0, %v2053
      %2055 = vmatmul.f32.gmra.mxu0 %v1905
      %v2056 = vpop.f32.mrf.mxu0
      %v2057 = vadd.f32 0.0, %v2056
      %2058 = vmatmul.f32.gmra.mxu0 %v1906
      %v2059 = vpop.f32.mrf.mxu0
      %v2060 = vadd.f32 0.0, %v2059
      %2061 = vmatmul.f32.gmra.mxu0 %v1907
      %v2062 = vpop.f32.mrf.mxu0
      %v2063 = vadd.f32 0.0, %v2062
      %2064 = vdwg.mxu0
      %v2065 = vadd.f32 %v1826, %v1943
      %v2066 = vadd.f32 %v1827, %v1946
      %v2067 = vadd.f32 %v1828, %v1949
      %v2068 = vadd.f32 %v1829, %v1952
      %v2069 = vadd.f32 %v1830, %v1955
      %v2070 = vadd.f32 %v1831, %v1958
      %v2071 = vadd.f32 %v1832, %v1961
      %v2072 = vadd.f32 %v1833, %v1964
      %v2073 = vadd.f32 %v1834, %v1967
      %v2074 = vadd.f32 %v1835, %v1970
      %v2075 = vadd.f32 %v1836, %v1973
      %v2076 = vadd.f32 %v1837, %v1976
      %v2077 = vadd.f32 %v1838, %v1979
      %v2078 = vadd.f32 %v1839, %v1982
      %v2079 = vadd.f32 %v1840, %v1985
      %v2080 = vadd.f32 %v1841, %v1988
      %v2081 = vadd.f32 %v1842, %v1991
      %v2082 = vadd.f32 %v1843, %v1994
      %v2083 = vadd.f32 %v1844, %v1997
      %v2084 = vadd.f32 %v1845, %v2000
      %v2085 = vadd.f32 %v1846, %v2003
      %v2086 = vadd.f32 %v1847, %v2006
      %v2087 = vadd.f32 %v1848, %v2009
      %v2088 = vadd.f32 %v1849, %v2012
      %v2089 = vadd.f32 %v1850, %v2015
      %v2090 = vadd.f32 %v1851, %v2018
      %v2091 = vadd.f32 %v1852, %v2021
      %v2092 = vadd.f32 %v1853, %v2024
      %v2093 = vadd.f32 %v1854, %v2027
      %v2094 = vadd.f32 %v1855, %v2030
      %v2095 = vadd.f32 %v1856, %v2033
      %v2096 = vadd.f32 %v1857, %v2036
      %v2097 = vadd.f32 %v1858, %v2039
      %v2098 = vadd.f32 %v1859, %v2042
      %v2099 = vadd.f32 %v1860, %v2045
      %v2100 = vadd.f32 %v1861, %v2048
      %v2101 = vadd.f32 %v1862, %v2051
      %v2102 = vadd.f32 %v1863, %v2054
      %v2103 = vadd.f32 %v1864, %v2057
      %v2104 = vadd.f32 %v1865, %v2060
      %v2105 = vadd.f32 %v1866, %v2063
      %v2106 = vld [vmem:[#allocation2 + $0x35] sm:$0xff]
      %v2107 = vld [vmem:[#allocation2 + $0x3d] sm:$0xff]
      %v2108 = vld [vmem:[#allocation2 + $0x45] sm:$0xff]
      %v2109 = vld [vmem:[#allocation2 + $0x4d] sm:$0xff]
      %v2110 = vld [vmem:[#allocation2 + $0x55] sm:$0xff]
      %v2111 = vld [vmem:[#allocation2 + $0x5d] sm:$0xff]
      %v2112 = vld [vmem:[#allocation2 + $0x65] sm:$0xff]
      %v2113 = vld [vmem:[#allocation2 + $0x6d] sm:$0xff]
      %v2114 = vld [vmem:[#allocation2 + $0x75] sm:$0xff]
      %v2115 = vld [vmem:[#allocation2 + $0x7d] sm:$0xff]
      %v2116 = vld [vmem:[#allocation2 + $0x85] sm:$0xff]
      %v2117 = vld [vmem:[#allocation2 + $0x8d] sm:$0xff]
      %v2118 = vld [vmem:[#allocation2 + $0x95] sm:$0xff]
      %v2119 = vld [vmem:[#allocation2 + $0x9d] sm:$0xff]
      %v2120 = vld [vmem:[#allocation2 + $0xa5] sm:$0xff]
      %v2121 = vld [vmem:[#allocation2 + $0xad] sm:$0xff]
      %v2122 = vld [vmem:[#allocation2 + $0xb5] sm:$0xff]
      %v2123 = vld [vmem:[#allocation2 + $0xbd] sm:$0xff]
      %v2124 = vld [vmem:[#allocation2 + $0xc5] sm:$0xff]
      %v2125 = vld [vmem:[#allocation2 + $0xcd] sm:$0xff]
      %v2126 = vld [vmem:[#allocation2 + $0xd5] sm:$0xff]
      %v2127 = vld [vmem:[#allocation2 + $0xdd] sm:$0xff]
      %v2128 = vld [vmem:[#allocation2 + $0xe5] sm:$0xff]
      %v2129 = vld [vmem:[#allocation2 + $0xed] sm:$0xff]
      %v2130 = vld [vmem:[#allocation2 + $0xf5] sm:$0xff]
      %v2131 = vld [vmem:[#allocation2 + $0xfd] sm:$0xff]
      %v2132 = vld [vmem:[#allocation2 + $0x105] sm:$0xff]
      %v2133 = vld [vmem:[#allocation2 + $0x10d] sm:$0xff]
      %v2134 = vld [vmem:[#allocation2 + $0x115] sm:$0xff]
      %v2135 = vld [vmem:[#allocation2 + $0x11d] sm:$0xff]
      %v2136 = vld [vmem:[#allocation2 + $0x125] sm:$0xff]
      %v2137 = vld [vmem:[#allocation2 + $0x12d] sm:$0xff]
      %v2138 = vld [vmem:[#allocation2 + $0x135] sm:$0xff]
      %v2139 = vld [vmem:[#allocation2 + $0x13d] sm:$0xff]
      %v2140 = vld [vmem:[#allocation2 + $0x145] sm:$0xff]
      %v2141 = vld [vmem:[#allocation2 + $0x14d] sm:$0xff]
      %v2142 = vld [vmem:[#allocation2 + $0x155] sm:$0xff]
      %v2143 = vld [vmem:[#allocation2 + $0x15d] sm:$0xff]
      %v2144 = vld [vmem:[#allocation2 + $0x165] sm:$0xff]
      %v2145 = vld [vmem:[#allocation2 + $0x16d] sm:$0xff]
      %v2146 = vld [vmem:[#allocation2 + $0x175] sm:$0xf]
      %s2147 = scalar_lea.vmem %s2, 768
      %v2148 = vld [vmem:[%s2147] sm:$0xff]
      %v2149 = vld [vmem:[%s2147 + $0x8] sm:$0xff]
      %v2150 = vld [vmem:[%s2147 + $0x10] sm:$0xff]
      %v2151 = vld [vmem:[%s2147 + $0x18] sm:$0xff]
      %v2152 = vld [vmem:[%s2147 + $0x20] sm:$0xff]
      %v2153 = vld [vmem:[%s2147 + $0x28] sm:$0xff]
      %v2154 = vld [vmem:[%s2147 + $0x30] sm:$0xff]
      %v2155 = vld [vmem:[%s2147 + $0x38] sm:$0xff]
      %v2156 = vld [vmem:[%s2147 + $0x40] sm:$0xff]
      %v2157 = vld [vmem:[%s2147 + $0x48] sm:$0xff]
      %v2158 = vld [vmem:[%s2147 + $0x50] sm:$0xff]
      %v2159 = vld [vmem:[%s2147 + $0x58] sm:$0xff]
      %v2160 = vld [vmem:[%s2147 + $0x60] sm:$0xff]
      %v2161 = vld [vmem:[%s2147 + $0x68] sm:$0xff]
      %v2162 = vld [vmem:[%s2147 + $0x70] sm:$0xff]
      %v2163 = vld [vmem:[%s2147 + $0x78] sm:$0xff]
      %2164 = vmatpush.msra.mxu0 %v2163
      %2165 = vmatpush.msra.mxu0 %v2162
      %2166 = vmatpush.msra.mxu0 %v2161
      %2167 = vmatpush.msra.mxu0 %v2160
      %2168 = vmatpush.msra.mxu0 %v2159
      %2169 = vmatpush.msra.mxu0 %v2158
      %2170 = vmatpush.msra.mxu0 %v2157
      %2171 = vmatpush.msra.mxu0 %v2156
      %2172 = vmatpush.msra.mxu0 %v2155
      %2173 = vmatpush.msra.mxu0 %v2154
      %2174 = vmatpush.msra.mxu0 %v2153
      %2175 = vmatpush.msra.mxu0 %v2152
      %2176 = vmatpush.msra.mxu0 %v2151
      %2177 = vmatpush.msra.mxu0 %v2150
      %2178 = vmatpush.msra.mxu0 %v2149
      %2179 = vmatpush.msra.mxu0 %v2148
      %2180 = vmatmul.f32.gmra.mxu0 %v2106
      %v2181 = vpop.f32.mrf.mxu0
      %v2182 = vadd.f32 0.0, %v2181
      %2183 = vmatmul.f32.gmra.mxu0 %v2107
      %v2184 = vpop.f32.mrf.mxu0
      %v2185 = vadd.f32 0.0, %v2184
      %2186 = vmatmul.f32.gmra.mxu0 %v2108
      %v2187 = vpop.f32.mrf.mxu0
      %v2188 = vadd.f32 0.0, %v2187
      %2189 = vmatmul.f32.gmra.mxu0 %v2109
      %v2190 = vpop.f32.mrf.mxu0
      %v2191 = vadd.f32 0.0, %v2190
      %2192 = vmatmul.f32.gmra.mxu0 %v2110
      %v2193 = vpop.f32.mrf.mxu0
      %v2194 = vadd.f32 0.0, %v2193
      %2195 = vmatmul.f32.gmra.mxu0 %v2111
      %v2196 = vpop.f32.mrf.mxu0
      %v2197 = vadd.f32 0.0, %v2196
      %2198 = vmatmul.f32.gmra.mxu0 %v2112
      %v2199 = vpop.f32.mrf.mxu0
      %v2200 = vadd.f32 0.0, %v2199
      %2201 = vmatmul.f32.gmra.mxu0 %v2113
      %v2202 = vpop.f32.mrf.mxu0
      %v2203 = vadd.f32 0.0, %v2202
      %2204 = vmatmul.f32.gmra.mxu0 %v2114
      %v2205 = vpop.f32.mrf.mxu0
      %v2206 = vadd.f32 0.0, %v2205
      %2207 = vmatmul.f32.gmra.mxu0 %v2115
      %v2208 = vpop.f32.mrf.mxu0
      %v2209 = vadd.f32 0.0, %v2208
      %2210 = vmatmul.f32.gmra.mxu0 %v2116
      %v2211 = vpop.f32.mrf.mxu0
      %v2212 = vadd.f32 0.0, %v2211
      %2213 = vmatmul.f32.gmra.mxu0 %v2117
      %v2214 = vpop.f32.mrf.mxu0
      %v2215 = vadd.f32 0.0, %v2214
      %2216 = vmatmul.f32.gmra.mxu0 %v2118
      %v2217 = vpop.f32.mrf.mxu0
      %v2218 = vadd.f32 0.0, %v2217
      %2219 = vmatmul.f32.gmra.mxu0 %v2119
      %v2220 = vpop.f32.mrf.mxu0
      %v2221 = vadd.f32 0.0, %v2220
      %2222 = vmatmul.f32.gmra.mxu0 %v2120
      %v2223 = vpop.f32.mrf.mxu0
      %v2224 = vadd.f32 0.0, %v2223
      %2225 = vmatmul.f32.gmra.mxu0 %v2121
      %v2226 = vpop.f32.mrf.mxu0
      %v2227 = vadd.f32 0.0, %v2226
      %2228 = vmatmul.f32.gmra.mxu0 %v2122
      %v2229 = vpop.f32.mrf.mxu0
      %v2230 = vadd.f32 0.0, %v2229
      %2231 = vmatmul.f32.gmra.mxu0 %v2123
      %v2232 = vpop.f32.mrf.mxu0
      %v2233 = vadd.f32 0.0, %v2232
      %2234 = vmatmul.f32.gmra.mxu0 %v2124
      %v2235 = vpop.f32.mrf.mxu0
      %v2236 = vadd.f32 0.0, %v2235
      %2237 = vmatmul.f32.gmra.mxu0 %v2125
      %v2238 = vpop.f32.mrf.mxu0
      %v2239 = vadd.f32 0.0, %v2238
      %2240 = vmatmul.f32.gmra.mxu0 %v2126
      %v2241 = vpop.f32.mrf.mxu0
      %v2242 = vadd.f32 0.0, %v2241
      %2243 = vmatmul.f32.gmra.mxu0 %v2127
      %v2244 = vpop.f32.mrf.mxu0
      %v2245 = vadd.f32 0.0, %v2244
      %2246 = vmatmul.f32.gmra.mxu0 %v2128
      %v2247 = vpop.f32.mrf.mxu0
      %v2248 = vadd.f32 0.0, %v2247
      %2249 = vmatmul.f32.gmra.mxu0 %v2129
      %v2250 = vpop.f32.mrf.mxu0
      %v2251 = vadd.f32 0.0, %v2250
      %2252 = vmatmul.f32.gmra.mxu0 %v2130
      %v2253 = vpop.f32.mrf.mxu0
      %v2254 = vadd.f32 0.0, %v2253
      %2255 = vmatmul.f32.gmra.mxu0 %v2131
      %v2256 = vpop.f32.mrf.mxu0
      %v2257 = vadd.f32 0.0, %v2256
      %2258 = vmatmul.f32.gmra.mxu0 %v2132
      %v2259 = vpop.f32.mrf.mxu0
      %v2260 = vadd.f32 0.0, %v2259
      %2261 = vmatmul.f32.gmra.mxu0 %v2133
      %v2262 = vpop.f32.mrf.mxu0
      %v2263 = vadd.f32 0.0, %v2262
      %2264 = vmatmul.f32.gmra.mxu0 %v2134
      %v2265 = vpop.f32.mrf.mxu0
      %v2266 = vadd.f32 0.0, %v2265
      %2267 = vmatmul.f32.gmra.mxu0 %v2135
      %v2268 = vpop.f32.mrf.mxu0
      %v2269 = vadd.f32 0.0, %v2268
      %2270 = vmatmul.f32.gmra.mxu0 %v2136
      %v2271 = vpop.f32.mrf.mxu0
      %v2272 = vadd.f32 0.0, %v2271
      %2273 = vmatmul.f32.gmra.mxu0 %v2137
      %v2274 = vpop.f32.mrf.mxu0
      %v2275 = vadd.f32 0.0, %v2274
      %2276 = vmatmul.f32.gmra.mxu0 %v2138
      %v2277 = vpop.f32.mrf.mxu0
      %v2278 = vadd.f32 0.0, %v2277
      %2279 = vmatmul.f32.gmra.mxu0 %v2139
      %v2280 = vpop.f32.mrf.mxu0
      %v2281 = vadd.f32 0.0, %v2280
      %2282 = vmatmul.f32.gmra.mxu0 %v2140
      %v2283 = vpop.f32.mrf.mxu0
      %v2284 = vadd.f32 0.0, %v2283
      %2285 = vmatmul.f32.gmra.mxu0 %v2141
      %v2286 = vpop.f32.mrf.mxu0
      %v2287 = vadd.f32 0.0, %v2286
      %2288 = vmatmul.f32.gmra.mxu0 %v2142
      %v2289 = vpop.f32.mrf.mxu0
      %v2290 = vadd.f32 0.0, %v2289
      %2291 = vmatmul.f32.gmra.mxu0 %v2143
      %v2292 = vpop.f32.mrf.mxu0
      %v2293 = vadd.f32 0.0, %v2292
      %2294 = vmatmul.f32.gmra.mxu0 %v2144
      %v2295 = vpop.f32.mrf.mxu0
      %v2296 = vadd.f32 0.0, %v2295
      %2297 = vmatmul.f32.gmra.mxu0 %v2145
      %v2298 = vpop.f32.mrf.mxu0
      %v2299 = vadd.f32 0.0, %v2298
      %2300 = vmatmul.f32.gmra.mxu0 %v2146
      %v2301 = vpop.f32.mrf.mxu0
      %v2302 = vadd.f32 0.0, %v2301
      %2303 = vdwg.mxu0
      %v2304 = vadd.f32 %v2065, %v2182
      %v2305 = vadd.f32 %v2066, %v2185
      %v2306 = vadd.f32 %v2067, %v2188
      %v2307 = vadd.f32 %v2068, %v2191
      %v2308 = vadd.f32 %v2069, %v2194
      %v2309 = vadd.f32 %v2070, %v2197
      %v2310 = vadd.f32 %v2071, %v2200
      %v2311 = vadd.f32 %v2072, %v2203
      %v2312 = vadd.f32 %v2073, %v2206
      %v2313 = vadd.f32 %v2074, %v2209
      %v2314 = vadd.f32 %v2075, %v2212
      %v2315 = vadd.f32 %v2076, %v2215
      %v2316 = vadd.f32 %v2077, %v2218
      %v2317 = vadd.f32 %v2078, %v2221
      %v2318 = vadd.f32 %v2079, %v2224
      %v2319 = vadd.f32 %v2080, %v2227
      %v2320 = vadd.f32 %v2081, %v2230
      %v2321 = vadd.f32 %v2082, %v2233
      %v2322 = vadd.f32 %v2083, %v2236
      %v2323 = vadd.f32 %v2084, %v2239
      %v2324 = vadd.f32 %v2085, %v2242
      %v2325 = vadd.f32 %v2086, %v2245
      %v2326 = vadd.f32 %v2087, %v2248
      %v2327 = vadd.f32 %v2088, %v2251
      %v2328 = vadd.f32 %v2089, %v2254
      %v2329 = vadd.f32 %v2090, %v2257
      %v2330 = vadd.f32 %v2091, %v2260
      %v2331 = vadd.f32 %v2092, %v2263
      %v2332 = vadd.f32 %v2093, %v2266
      %v2333 = vadd.f32 %v2094, %v2269
      %v2334 = vadd.f32 %v2095, %v2272
      %v2335 = vadd.f32 %v2096, %v2275
      %v2336 = vadd.f32 %v2097, %v2278
      %v2337 = vadd.f32 %v2098, %v2281
      %v2338 = vadd.f32 %v2099, %v2284
      %v2339 = vadd.f32 %v2100, %v2287
      %v2340 = vadd.f32 %v2101, %v2290
      %v2341 = vadd.f32 %v2102, %v2293
      %v2342 = vadd.f32 %v2103, %v2296
      %v2343 = vadd.f32 %v2104, %v2299
      %v2344 = vadd.f32 %v2105, %v2302
      %v2345 = vld [vmem:[#allocation2 + $0x36] sm:$0xff]
      %v2346 = vld [vmem:[#allocation2 + $0x3e] sm:$0xff]
      %v2347 = vld [vmem:[#allocation2 + $0x46] sm:$0xff]
      %v2348 = vld [vmem:[#allocation2 + $0x4e] sm:$0xff]
      %v2349 = vld [vmem:[#allocation2 + $0x56] sm:$0xff]
      %v2350 = vld [vmem:[#allocation2 + $0x5e] sm:$0xff]
      %v2351 = vld [vmem:[#allocation2 + $0x66] sm:$0xff]
      %v2352 = vld [vmem:[#allocation2 + $0x6e] sm:$0xff]
      %v2353 = vld [vmem:[#allocation2 + $0x76] sm:$0xff]
      %v2354 = vld [vmem:[#allocation2 + $0x7e] sm:$0xff]
      %v2355 = vld [vmem:[#allocation2 + $0x86] sm:$0xff]
      %v2356 = vld [vmem:[#allocation2 + $0x8e] sm:$0xff]
      %v2357 = vld [vmem:[#allocation2 + $0x96] sm:$0xff]
      %v2358 = vld [vmem:[#allocation2 + $0x9e] sm:$0xff]
      %v2359 = vld [vmem:[#allocation2 + $0xa6] sm:$0xff]
      %v2360 = vld [vmem:[#allocation2 + $0xae] sm:$0xff]
      %v2361 = vld [vmem:[#allocation2 + $0xb6] sm:$0xff]
      %v2362 = vld [vmem:[#allocation2 + $0xbe] sm:$0xff]
      %v2363 = vld [vmem:[#allocation2 + $0xc6] sm:$0xff]
      %v2364 = vld [vmem:[#allocation2 + $0xce] sm:$0xff]
      %v2365 = vld [vmem:[#allocation2 + $0xd6] sm:$0xff]
      %v2366 = vld [vmem:[#allocation2 + $0xde] sm:$0xff]
      %v2367 = vld [vmem:[#allocation2 + $0xe6] sm:$0xff]
      %v2368 = vld [vmem:[#allocation2 + $0xee] sm:$0xff]
      %v2369 = vld [vmem:[#allocation2 + $0xf6] sm:$0xff]
      %v2370 = vld [vmem:[#allocation2 + $0xfe] sm:$0xff]
      %v2371 = vld [vmem:[#allocation2 + $0x106] sm:$0xff]
      %v2372 = vld [vmem:[#allocation2 + $0x10e] sm:$0xff]
      %v2373 = vld [vmem:[#allocation2 + $0x116] sm:$0xff]
      %v2374 = vld [vmem:[#allocation2 + $0x11e] sm:$0xff]
      %v2375 = vld [vmem:[#allocation2 + $0x126] sm:$0xff]
      %v2376 = vld [vmem:[#allocation2 + $0x12e] sm:$0xff]
      %v2377 = vld [vmem:[#allocation2 + $0x136] sm:$0xff]
      %v2378 = vld [vmem:[#allocation2 + $0x13e] sm:$0xff]
      %v2379 = vld [vmem:[#allocation2 + $0x146] sm:$0xff]
      %v2380 = vld [vmem:[#allocation2 + $0x14e] sm:$0xff]
      %v2381 = vld [vmem:[#allocation2 + $0x156] sm:$0xff]
      %v2382 = vld [vmem:[#allocation2 + $0x15e] sm:$0xff]
      %v2383 = vld [vmem:[#allocation2 + $0x166] sm:$0xff]
      %v2384 = vld [vmem:[#allocation2 + $0x16e] sm:$0xff]
      %v2385 = vld [vmem:[#allocation2 + $0x176] sm:$0xf]
      %s2386 = scalar_lea.vmem %s2, 896
      %v2387 = vld [vmem:[%s2386] sm:$0xff]
      %v2388 = vld [vmem:[%s2386 + $0x8] sm:$0xff]
      %v2389 = vld [vmem:[%s2386 + $0x10] sm:$0xff]
      %v2390 = vld [vmem:[%s2386 + $0x18] sm:$0xff]
      %v2391 = vld [vmem:[%s2386 + $0x20] sm:$0xff]
      %v2392 = vld [vmem:[%s2386 + $0x28] sm:$0xff]
      %v2393 = vld [vmem:[%s2386 + $0x30] sm:$0xff]
      %v2394 = vld [vmem:[%s2386 + $0x38] sm:$0xff]
      %v2395 = vld [vmem:[%s2386 + $0x40] sm:$0xff]
      %v2396 = vld [vmem:[%s2386 + $0x48] sm:$0xff]
      %v2397 = vld [vmem:[%s2386 + $0x50] sm:$0xff]
      %v2398 = vld [vmem:[%s2386 + $0x58] sm:$0xff]
      %v2399 = vld [vmem:[%s2386 + $0x60] sm:$0xff]
      %v2400 = vld [vmem:[%s2386 + $0x68] sm:$0xff]
      %v2401 = vld [vmem:[%s2386 + $0x70] sm:$0xff]
      %v2402 = vld [vmem:[%s2386 + $0x78] sm:$0xff]
      %2403 = vmatpush.msra.mxu0 %v2402
      %2404 = vmatpush.msra.mxu0 %v2401
      %2405 = vmatpush.msra.mxu0 %v2400
      %2406 = vmatpush.msra.mxu0 %v2399
      %2407 = vmatpush.msra.mxu0 %v2398
      %2408 = vmatpush.msra.mxu0 %v2397
      %2409 = vmatpush.msra.mxu0 %v2396
      %2410 = vmatpush.msra.mxu0 %v2395
      %2411 = vmatpush.msra.mxu0 %v2394
      %2412 = vmatpush.msra.mxu0 %v2393
      %2413 = vmatpush.msra.mxu0 %v2392
      %2414 = vmatpush.msra.mxu0 %v2391
      %2415 = vmatpush.msra.mxu0 %v2390
      %2416 = vmatpush.msra.mxu0 %v2389
      %2417 = vmatpush.msra.mxu0 %v2388
      %2418 = vmatpush.msra.mxu0 %v2387
      %2419 = vmatmul.f32.gmra.mxu0 %v2345
      %v2420 = vpop.f32.mrf.mxu0
      %v2421 = vadd.f32 0.0, %v2420
      %2422 = vmatmul.f32.gmra.mxu0 %v2346
      %v2423 = vpop.f32.mrf.mxu0
      %v2424 = vadd.f32 0.0, %v2423
      %2425 = vmatmul.f32.gmra.mxu0 %v2347
      %v2426 = vpop.f32.mrf.mxu0
      %v2427 = vadd.f32 0.0, %v2426
      %2428 = vmatmul.f32.gmra.mxu0 %v2348
      %v2429 = vpop.f32.mrf.mxu0
      %v2430 = vadd.f32 0.0, %v2429
      %2431 = vmatmul.f32.gmra.mxu0 %v2349
      %v2432 = vpop.f32.mrf.mxu0
      %v2433 = vadd.f32 0.0, %v2432
      %2434 = vmatmul.f32.gmra.mxu0 %v2350
      %v2435 = vpop.f32.mrf.mxu0
      %v2436 = vadd.f32 0.0, %v2435
      %2437 = vmatmul.f32.gmra.mxu0 %v2351
      %v2438 = vpop.f32.mrf.mxu0
      %v2439 = vadd.f32 0.0, %v2438
      %2440 = vmatmul.f32.gmra.mxu0 %v2352
      %v2441 = vpop.f32.mrf.mxu0
      %v2442 = vadd.f32 0.0, %v2441
      %2443 = vmatmul.f32.gmra.mxu0 %v2353
      %v2444 = vpop.f32.mrf.mxu0
      %v2445 = vadd.f32 0.0, %v2444
      %2446 = vmatmul.f32.gmra.mxu0 %v2354
      %v2447 = vpop.f32.mrf.mxu0
      %v2448 = vadd.f32 0.0, %v2447
      %2449 = vmatmul.f32.gmra.mxu0 %v2355
      %v2450 = vpop.f32.mrf.mxu0
      %v2451 = vadd.f32 0.0, %v2450
      %2452 = vmatmul.f32.gmra.mxu0 %v2356
      %v2453 = vpop.f32.mrf.mxu0
      %v2454 = vadd.f32 0.0, %v2453
      %2455 = vmatmul.f32.gmra.mxu0 %v2357
      %v2456 = vpop.f32.mrf.mxu0
      %v2457 = vadd.f32 0.0, %v2456
      %2458 = vmatmul.f32.gmra.mxu0 %v2358
      %v2459 = vpop.f32.mrf.mxu0
      %v2460 = vadd.f32 0.0, %v2459
      %2461 = vmatmul.f32.gmra.mxu0 %v2359
      %v2462 = vpop.f32.mrf.mxu0
      %v2463 = vadd.f32 0.0, %v2462
      %2464 = vmatmul.f32.gmra.mxu0 %v2360
      %v2465 = vpop.f32.mrf.mxu0
      %v2466 = vadd.f32 0.0, %v2465
      %2467 = vmatmul.f32.gmra.mxu0 %v2361
      %v2468 = vpop.f32.mrf.mxu0
      %v2469 = vadd.f32 0.0, %v2468
      %2470 = vmatmul.f32.gmra.mxu0 %v2362
      %v2471 = vpop.f32.mrf.mxu0
      %v2472 = vadd.f32 0.0, %v2471
      %2473 = vmatmul.f32.gmra.mxu0 %v2363
      %v2474 = vpop.f32.mrf.mxu0
      %v2475 = vadd.f32 0.0, %v2474
      %2476 = vmatmul.f32.gmra.mxu0 %v2364
      %v2477 = vpop.f32.mrf.mxu0
      %v2478 = vadd.f32 0.0, %v2477
      %2479 = vmatmul.f32.gmra.mxu0 %v2365
      %v2480 = vpop.f32.mrf.mxu0
      %v2481 = vadd.f32 0.0, %v2480
      %2482 = vmatmul.f32.gmra.mxu0 %v2366
      %v2483 = vpop.f32.mrf.mxu0
      %v2484 = vadd.f32 0.0, %v2483
      %2485 = vmatmul.f32.gmra.mxu0 %v2367
      %v2486 = vpop.f32.mrf.mxu0
      %v2487 = vadd.f32 0.0, %v2486
      %2488 = vmatmul.f32.gmra.mxu0 %v2368
      %v2489 = vpop.f32.mrf.mxu0
      %v2490 = vadd.f32 0.0, %v2489
      %2491 = vmatmul.f32.gmra.mxu0 %v2369
      %v2492 = vpop.f32.mrf.mxu0
      %v2493 = vadd.f32 0.0, %v2492
      %2494 = vmatmul.f32.gmra.mxu0 %v2370
      %v2495 = vpop.f32.mrf.mxu0
      %v2496 = vadd.f32 0.0, %v2495
      %2497 = vmatmul.f32.gmra.mxu0 %v2371
      %v2498 = vpop.f32.mrf.mxu0
      %v2499 = vadd.f32 0.0, %v2498
      %2500 = vmatmul.f32.gmra.mxu0 %v2372
      %v2501 = vpop.f32.mrf.mxu0
      %v2502 = vadd.f32 0.0, %v2501
      %2503 = vmatmul.f32.gmra.mxu0 %v2373
      %v2504 = vpop.f32.mrf.mxu0
      %v2505 = vadd.f32 0.0, %v2504
      %2506 = vmatmul.f32.gmra.mxu0 %v2374
      %v2507 = vpop.f32.mrf.mxu0
      %v2508 = vadd.f32 0.0, %v2507
      %2509 = vmatmul.f32.gmra.mxu0 %v2375
      %v2510 = vpop.f32.mrf.mxu0
      %v2511 = vadd.f32 0.0, %v2510
      %2512 = vmatmul.f32.gmra.mxu0 %v2376
      %v2513 = vpop.f32.mrf.mxu0
      %v2514 = vadd.f32 0.0, %v2513
      %2515 = vmatmul.f32.gmra.mxu0 %v2377
      %v2516 = vpop.f32.mrf.mxu0
      %v2517 = vadd.f32 0.0, %v2516
      %2518 = vmatmul.f32.gmra.mxu0 %v2378
      %v2519 = vpop.f32.mrf.mxu0
      %v2520 = vadd.f32 0.0, %v2519
      %2521 = vmatmul.f32.gmra.mxu0 %v2379
      %v2522 = vpop.f32.mrf.mxu0
      %v2523 = vadd.f32 0.0, %v2522
      %2524 = vmatmul.f32.gmra.mxu0 %v2380
      %v2525 = vpop.f32.mrf.mxu0
      %v2526 = vadd.f32 0.0, %v2525
      %2527 = vmatmul.f32.gmra.mxu0 %v2381
      %v2528 = vpop.f32.mrf.mxu0
      %v2529 = vadd.f32 0.0, %v2528
      %2530 = vmatmul.f32.gmra.mxu0 %v2382
      %v2531 = vpop.f32.mrf.mxu0
      %v2532 = vadd.f32 0.0, %v2531
      %2533 = vmatmul.f32.gmra.mxu0 %v2383
      %v2534 = vpop.f32.mrf.mxu0
      %v2535 = vadd.f32 0.0, %v2534
      %2536 = vmatmul.f32.gmra.mxu0 %v2384
      %v2537 = vpop.f32.mrf.mxu0
      %v2538 = vadd.f32 0.0, %v2537
      %2539 = vmatmul.f32.gmra.mxu0 %v2385
      %v2540 = vpop.f32.mrf.mxu0
      %v2541 = vadd.f32 0.0, %v2540
      %2542 = vdwg.mxu0
      %v2543 = vadd.f32 %v2304, %v2421
      %v2544 = vadd.f32 %v2305, %v2424
      %v2545 = vadd.f32 %v2306, %v2427
      %v2546 = vadd.f32 %v2307, %v2430
      %v2547 = vadd.f32 %v2308, %v2433
      %v2548 = vadd.f32 %v2309, %v2436
      %v2549 = vadd.f32 %v2310, %v2439
      %v2550 = vadd.f32 %v2311, %v2442
      %v2551 = vadd.f32 %v2312, %v2445
      %v2552 = vadd.f32 %v2313, %v2448
      %v2553 = vadd.f32 %v2314, %v2451
      %v2554 = vadd.f32 %v2315, %v2454
      %v2555 = vadd.f32 %v2316, %v2457
      %v2556 = vadd.f32 %v2317, %v2460
      %v2557 = vadd.f32 %v2318, %v2463
      %v2558 = vadd.f32 %v2319, %v2466
      %v2559 = vadd.f32 %v2320, %v2469
      %v2560 = vadd.f32 %v2321, %v2472
      %v2561 = vadd.f32 %v2322, %v2475
      %v2562 = vadd.f32 %v2323, %v2478
      %v2563 = vadd.f32 %v2324, %v2481
      %v2564 = vadd.f32 %v2325, %v2484
      %v2565 = vadd.f32 %v2326, %v2487
      %v2566 = vadd.f32 %v2327, %v2490
      %v2567 = vadd.f32 %v2328, %v2493
      %v2568 = vadd.f32 %v2329, %v2496
      %v2569 = vadd.f32 %v2330, %v2499
      %v2570 = vadd.f32 %v2331, %v2502
      %v2571 = vadd.f32 %v2332, %v2505
      %v2572 = vadd.f32 %v2333, %v2508
      %v2573 = vadd.f32 %v2334, %v2511
      %v2574 = vadd.f32 %v2335, %v2514
      %v2575 = vadd.f32 %v2336, %v2517
      %v2576 = vadd.f32 %v2337, %v2520
      %v2577 = vadd.f32 %v2338, %v2523
      %v2578 = vadd.f32 %v2339, %v2526
      %v2579 = vadd.f32 %v2340, %v2529
      %v2580 = vadd.f32 %v2341, %v2532
      %v2581 = vadd.f32 %v2342, %v2535
      %v2582 = vadd.f32 %v2343, %v2538
      %v2583 = vadd.f32 %v2344, %v2541
      %v2584 = vld [vmem:[#allocation2 + $0x37] sm:$0xff]
      %v2585 = vld [vmem:[#allocation2 + $0x3f] sm:$0xff]
      %v2586 = vld [vmem:[#allocation2 + $0x47] sm:$0xff]
      %v2587 = vld [vmem:[#allocation2 + $0x4f] sm:$0xff]
      %v2588 = vld [vmem:[#allocation2 + $0x57] sm:$0xff]
      %v2589 = vld [vmem:[#allocation2 + $0x5f] sm:$0xff]
      %v2590 = vld [vmem:[#allocation2 + $0x67] sm:$0xff]
      %v2591 = vld [vmem:[#allocation2 + $0x6f] sm:$0xff]
      %v2592 = vld [vmem:[#allocation2 + $0x77] sm:$0xff]
      %v2593 = vld [vmem:[#allocation2 + $0x7f] sm:$0xff]
      %v2594 = vld [vmem:[#allocation2 + $0x87] sm:$0xff]
      %v2595 = vld [vmem:[#allocation2 + $0x8f] sm:$0xff]
      %v2596 = vld [vmem:[#allocation2 + $0x97] sm:$0xff]
      %v2597 = vld [vmem:[#allocation2 + $0x9f] sm:$0xff]
      %v2598 = vld [vmem:[#allocation2 + $0xa7] sm:$0xff]
      %v2599 = vld [vmem:[#allocation2 + $0xaf] sm:$0xff]
      %v2600 = vld [vmem:[#allocation2 + $0xb7] sm:$0xff]
      %v2601 = vld [vmem:[#allocation2 + $0xbf] sm:$0xff]
      %v2602 = vld [vmem:[#allocation2 + $0xc7] sm:$0xff]
      %v2603 = vld [vmem:[#allocation2 + $0xcf] sm:$0xff]
      %v2604 = vld [vmem:[#allocation2 + $0xd7] sm:$0xff]
      %v2605 = vld [vmem:[#allocation2 + $0xdf] sm:$0xff]
      %v2606 = vld [vmem:[#allocation2 + $0xe7] sm:$0xff]
      %v2607 = vld [vmem:[#allocation2 + $0xef] sm:$0xff]
      %v2608 = vld [vmem:[#allocation2 + $0xf7] sm:$0xff]
      %v2609 = vld [vmem:[#allocation2 + $0xff] sm:$0xff]
      %v2610 = vld [vmem:[#allocation2 + $0x107] sm:$0xff]
      %v2611 = vld [vmem:[#allocation2 + $0x10f] sm:$0xff]
      %v2612 = vld [vmem:[#allocation2 + $0x117] sm:$0xff]
      %v2613 = vld [vmem:[#allocation2 + $0x11f] sm:$0xff]
      %v2614 = vld [vmem:[#allocation2 + $0x127] sm:$0xff]
      %v2615 = vld [vmem:[#allocation2 + $0x12f] sm:$0xff]
      %v2616 = vld [vmem:[#allocation2 + $0x137] sm:$0xff]
      %v2617 = vld [vmem:[#allocation2 + $0x13f] sm:$0xff]
      %v2618 = vld [vmem:[#allocation2 + $0x147] sm:$0xff]
      %v2619 = vld [vmem:[#allocation2 + $0x14f] sm:$0xff]
      %v2620 = vld [vmem:[#allocation2 + $0x157] sm:$0xff]
      %v2621 = vld [vmem:[#allocation2 + $0x15f] sm:$0xff]
      %v2622 = vld [vmem:[#allocation2 + $0x167] sm:$0xff]
      %v2623 = vld [vmem:[#allocation2 + $0x16f] sm:$0xff]
      %v2624 = vld [vmem:[#allocation2 + $0x177] sm:$0xf]
      %s2625 = scalar_lea.vmem %s2, 1024
      %v2626 = vld [vmem:[%s2625] sm:$0xff]
      %v2627 = vld [vmem:[%s2625 + $0x8] sm:$0xff]
      %v2628 = vld [vmem:[%s2625 + $0x10] sm:$0xff]
      %v2629 = vld [vmem:[%s2625 + $0x18] sm:$0xff]
      %v2630 = vld [vmem:[%s2625 + $0x20] sm:$0xff]
      %v2631 = vld [vmem:[%s2625 + $0x28] sm:$0xff]
      %v2632 = vld [vmem:[%s2625 + $0x30] sm:$0xff]
      %v2633 = vld [vmem:[%s2625 + $0x38] sm:$0xff]
      %v2634 = vld [vmem:[%s2625 + $0x40] sm:$0xff]
      %v2635 = vld [vmem:[%s2625 + $0x48] sm:$0xff]
      %v2636 = vld [vmem:[%s2625 + $0x50] sm:$0xff]
      %v2637 = vld [vmem:[%s2625 + $0x58] sm:$0xff]
      %v2638 = vld [vmem:[%s2625 + $0x60] sm:$0xff]
      %v2639 = vld [vmem:[%s2625 + $0x68] sm:$0xff]
      %v2640 = vld [vmem:[%s2625 + $0x70] sm:$0xff]
      %v2641 = vld [vmem:[%s2625 + $0x78] sm:$0xff]
      %2642 = vmatpush.msra.mxu0 %v2641
      %2643 = vmatpush.msra.mxu0 %v2640
      %2644 = vmatpush.msra.mxu0 %v2639
      %2645 = vmatpush.msra.mxu0 %v2638
      %2646 = vmatpush.msra.mxu0 %v2637
      %2647 = vmatpush.msra.mxu0 %v2636
      %2648 = vmatpush.msra.mxu0 %v2635
      %2649 = vmatpush.msra.mxu0 %v2634
      %2650 = vmatpush.msra.mxu0 %v2633
      %2651 = vmatpush.msra.mxu0 %v2632
      %2652 = vmatpush.msra.mxu0 %v2631
      %2653 = vmatpush.msra.mxu0 %v2630
      %2654 = vmatpush.msra.mxu0 %v2629
      %2655 = vmatpush.msra.mxu0 %v2628
      %2656 = vmatpush.msra.mxu0 %v2627
      %2657 = vmatpush.msra.mxu0 %v2626
      %2658 = vmatmul.f32.gmra.mxu0 %v2584
      %v2659 = vpop.f32.mrf.mxu0
      %v2660 = vadd.f32 0.0, %v2659
      %2661 = vmatmul.f32.gmra.mxu0 %v2585
      %v2662 = vpop.f32.mrf.mxu0
      %v2663 = vadd.f32 0.0, %v2662
      %2664 = vmatmul.f32.gmra.mxu0 %v2586
      %v2665 = vpop.f32.mrf.mxu0
      %v2666 = vadd.f32 0.0, %v2665
      %2667 = vmatmul.f32.gmra.mxu0 %v2587
      %v2668 = vpop.f32.mrf.mxu0
      %v2669 = vadd.f32 0.0, %v2668
      %2670 = vmatmul.f32.gmra.mxu0 %v2588
      %v2671 = vpop.f32.mrf.mxu0
      %v2672 = vadd.f32 0.0, %v2671
      %2673 = vmatmul.f32.gmra.mxu0 %v2589
      %v2674 = vpop.f32.mrf.mxu0
      %v2675 = vadd.f32 0.0, %v2674
      %2676 = vmatmul.f32.gmra.mxu0 %v2590
      %v2677 = vpop.f32.mrf.mxu0
      %v2678 = vadd.f32 0.0, %v2677
      %2679 = vmatmul.f32.gmra.mxu0 %v2591
      %v2680 = vpop.f32.mrf.mxu0
      %v2681 = vadd.f32 0.0, %v2680
      %2682 = vmatmul.f32.gmra.mxu0 %v2592
      %v2683 = vpop.f32.mrf.mxu0
      %v2684 = vadd.f32 0.0, %v2683
      %2685 = vmatmul.f32.gmra.mxu0 %v2593
      %v2686 = vpop.f32.mrf.mxu0
      %v2687 = vadd.f32 0.0, %v2686
      %2688 = vmatmul.f32.gmra.mxu0 %v2594
      %v2689 = vpop.f32.mrf.mxu0
      %v2690 = vadd.f32 0.0, %v2689
      %2691 = vmatmul.f32.gmra.mxu0 %v2595
      %v2692 = vpop.f32.mrf.mxu0
      %v2693 = vadd.f32 0.0, %v2692
      %2694 = vmatmul.f32.gmra.mxu0 %v2596
      %v2695 = vpop.f32.mrf.mxu0
      %v2696 = vadd.f32 0.0, %v2695
      %2697 = vmatmul.f32.gmra.mxu0 %v2597
      %v2698 = vpop.f32.mrf.mxu0
      %v2699 = vadd.f32 0.0, %v2698
      %2700 = vmatmul.f32.gmra.mxu0 %v2598
      %v2701 = vpop.f32.mrf.mxu0
      %v2702 = vadd.f32 0.0, %v2701
      %2703 = vmatmul.f32.gmra.mxu0 %v2599
      %v2704 = vpop.f32.mrf.mxu0
      %v2705 = vadd.f32 0.0, %v2704
      %2706 = vmatmul.f32.gmra.mxu0 %v2600
      %v2707 = vpop.f32.mrf.mxu0
      %v2708 = vadd.f32 0.0, %v2707
      %2709 = vmatmul.f32.gmra.mxu0 %v2601
      %v2710 = vpop.f32.mrf.mxu0
      %v2711 = vadd.f32 0.0, %v2710
      %2712 = vmatmul.f32.gmra.mxu0 %v2602
      %v2713 = vpop.f32.mrf.mxu0
      %v2714 = vadd.f32 0.0, %v2713
      %2715 = vmatmul.f32.gmra.mxu0 %v2603
      %v2716 = vpop.f32.mrf.mxu0
      %v2717 = vadd.f32 0.0, %v2716
      %2718 = vmatmul.f32.gmra.mxu0 %v2604
      %v2719 = vpop.f32.mrf.mxu0
      %v2720 = vadd.f32 0.0, %v2719
      %2721 = vmatmul.f32.gmra.mxu0 %v2605
      %v2722 = vpop.f32.mrf.mxu0
      %v2723 = vadd.f32 0.0, %v2722
      %2724 = vmatmul.f32.gmra.mxu0 %v2606
      %v2725 = vpop.f32.mrf.mxu0
      %v2726 = vadd.f32 0.0, %v2725
      %2727 = vmatmul.f32.gmra.mxu0 %v2607
      %v2728 = vpop.f32.mrf.mxu0
      %v2729 = vadd.f32 0.0, %v2728
      %2730 = vmatmul.f32.gmra.mxu0 %v2608
      %v2731 = vpop.f32.mrf.mxu0
      %v2732 = vadd.f32 0.0, %v2731
      %2733 = vmatmul.f32.gmra.mxu0 %v2609
      %v2734 = vpop.f32.mrf.mxu0
      %v2735 = vadd.f32 0.0, %v2734
      %2736 = vmatmul.f32.gmra.mxu0 %v2610
      %v2737 = vpop.f32.mrf.mxu0
      %v2738 = vadd.f32 0.0, %v2737
      %2739 = vmatmul.f32.gmra.mxu0 %v2611
      %v2740 = vpop.f32.mrf.mxu0
      %v2741 = vadd.f32 0.0, %v2740
      %2742 = vmatmul.f32.gmra.mxu0 %v2612
      %v2743 = vpop.f32.mrf.mxu0
      %v2744 = vadd.f32 0.0, %v2743
      %2745 = vmatmul.f32.gmra.mxu0 %v2613
      %v2746 = vpop.f32.mrf.mxu0
      %v2747 = vadd.f32 0.0, %v2746
      %2748 = vmatmul.f32.gmra.mxu0 %v2614
      %v2749 = vpop.f32.mrf.mxu0
      %v2750 = vadd.f32 0.0, %v2749
      %2751 = vmatmul.f32.gmra.mxu0 %v2615
      %v2752 = vpop.f32.mrf.mxu0
      %v2753 = vadd.f32 0.0, %v2752
      %2754 = vmatmul.f32.gmra.mxu0 %v2616
      %v2755 = vpop.f32.mrf.mxu0
      %v2756 = vadd.f32 0.0, %v2755
      %2757 = vmatmul.f32.gmra.mxu0 %v2617
      %v2758 = vpop.f32.mrf.mxu0
      %v2759 = vadd.f32 0.0, %v2758
      %2760 = vmatmul.f32.gmra.mxu0 %v2618
      %v2761 = vpop.f32.mrf.mxu0
      %v2762 = vadd.f32 0.0, %v2761
      %2763 = vmatmul.f32.gmra.mxu0 %v2619
      %v2764 = vpop.f32.mrf.mxu0
      %v2765 = vadd.f32 0.0, %v2764
      %2766 = vmatmul.f32.gmra.mxu0 %v2620
      %v2767 = vpop.f32.mrf.mxu0
      %v2768 = vadd.f32 0.0, %v2767
      %2769 = vmatmul.f32.gmra.mxu0 %v2621
      %v2770 = vpop.f32.mrf.mxu0
      %v2771 = vadd.f32 0.0, %v2770
      %2772 = vmatmul.f32.gmra.mxu0 %v2622
      %v2773 = vpop.f32.mrf.mxu0
      %v2774 = vadd.f32 0.0, %v2773
      %2775 = vmatmul.f32.gmra.mxu0 %v2623
      %v2776 = vpop.f32.mrf.mxu0
      %v2777 = vadd.f32 0.0, %v2776
      %2778 = vmatmul.f32.gmra.mxu0 %v2624
      %v2779 = vpop.f32.mrf.mxu0
      %v2780 = vadd.f32 0.0, %v2779
      %2781 = vdwg.mxu0
      %v2782 = vadd.f32 %v2543, %v2660
      %v2783 = vadd.f32 %v2544, %v2663
      %v2784 = vadd.f32 %v2545, %v2666
      %v2785 = vadd.f32 %v2546, %v2669
      %v2786 = vadd.f32 %v2547, %v2672
      %v2787 = vadd.f32 %v2548, %v2675
      %v2788 = vadd.f32 %v2549, %v2678
      %v2789 = vadd.f32 %v2550, %v2681
      %v2790 = vadd.f32 %v2551, %v2684
      %v2791 = vadd.f32 %v2552, %v2687
      %v2792 = vadd.f32 %v2553, %v2690
      %v2793 = vadd.f32 %v2554, %v2693
      %v2794 = vadd.f32 %v2555, %v2696
      %v2795 = vadd.f32 %v2556, %v2699
      %v2796 = vadd.f32 %v2557, %v2702
      %v2797 = vadd.f32 %v2558, %v2705
      %v2798 = vadd.f32 %v2559, %v2708
      %v2799 = vadd.f32 %v2560, %v2711
      %v2800 = vadd.f32 %v2561, %v2714
      %v2801 = vadd.f32 %v2562, %v2717
      %v2802 = vadd.f32 %v2563, %v2720
      %v2803 = vadd.f32 %v2564, %v2723
      %v2804 = vadd.f32 %v2565, %v2726
      %v2805 = vadd.f32 %v2566, %v2729
      %v2806 = vadd.f32 %v2567, %v2732
      %v2807 = vadd.f32 %v2568, %v2735
      %v2808 = vadd.f32 %v2569, %v2738
      %v2809 = vadd.f32 %v2570, %v2741
      %v2810 = vadd.f32 %v2571, %v2744
      %v2811 = vadd.f32 %v2572, %v2747
      %v2812 = vadd.f32 %v2573, %v2750
      %v2813 = vadd.f32 %v2574, %v2753
      %v2814 = vadd.f32 %v2575, %v2756
      %v2815 = vadd.f32 %v2576, %v2759
      %v2816 = vadd.f32 %v2577, %v2762
      %v2817 = vadd.f32 %v2578, %v2765
      %v2818 = vadd.f32 %v2579, %v2768
      %v2819 = vadd.f32 %v2580, %v2771
      %v2820 = vadd.f32 %v2581, %v2774
      %v2821 = vadd.f32 %v2582, %v2777
      %v2822 = vadd.f32 %v2583, %v2780
      %v2823 = vld [vmem:[%s3] sm:$0x1]
      %v2825 = vperm.slane %v2823, 0
      %v2827 = vadd.f32 %v2782, %v2825
      %v2828 = vadd.f32 %v2783, %v2825
      %v2829 = vadd.f32 %v2784, %v2825
      %v2830 = vadd.f32 %v2785, %v2825
      %v2831 = vadd.f32 %v2786, %v2825
      %v2832 = vadd.f32 %v2787, %v2825
      %v2833 = vadd.f32 %v2788, %v2825
      %v2834 = vadd.f32 %v2789, %v2825
      %v2835 = vadd.f32 %v2790, %v2825
      %v2836 = vadd.f32 %v2791, %v2825
      %v2837 = vadd.f32 %v2792, %v2825
      %v2838 = vadd.f32 %v2793, %v2825
      %v2839 = vadd.f32 %v2794, %v2825
      %v2840 = vadd.f32 %v2795, %v2825
      %v2841 = vadd.f32 %v2796, %v2825
      %v2842 = vadd.f32 %v2797, %v2825
      %v2843 = vadd.f32 %v2798, %v2825
      %v2844 = vadd.f32 %v2799, %v2825
      %v2845 = vadd.f32 %v2800, %v2825
      %v2846 = vadd.f32 %v2801, %v2825
      %v2847 = vadd.f32 %v2802, %v2825
      %v2848 = vadd.f32 %v2803, %v2825
      %v2849 = vadd.f32 %v2804, %v2825
      %v2850 = vadd.f32 %v2805, %v2825
      %v2851 = vadd.f32 %v2806, %v2825
      %v2852 = vadd.f32 %v2807, %v2825
      %v2853 = vadd.f32 %v2808, %v2825
      %v2854 = vadd.f32 %v2809, %v2825
      %v2855 = vadd.f32 %v2810, %v2825
      %v2856 = vadd.f32 %v2811, %v2825
      %v2857 = vadd.f32 %v2812, %v2825
      %v2858 = vadd.f32 %v2813, %v2825
      %v2859 = vadd.f32 %v2814, %v2825
      %v2860 = vadd.f32 %v2815, %v2825
      %v2861 = vadd.f32 %v2816, %v2825
      %v2862 = vadd.f32 %v2817, %v2825
      %v2863 = vadd.f32 %v2818, %v2825
      %v2864 = vadd.f32 %v2819, %v2825
      %v2865 = vadd.f32 %v2820, %v2825
      %v2866 = vadd.f32 %v2821, %v2825
      %v2867 = vadd.f32 %v2822, %v2825
      %v2868 = vsel %vm622, 1, 0
      %v2869 = vsel %vm623, 1, 0
      %v2870 = vsel %vm624, 1, 0
      %v2871 = vsel %vm625, 1, 0
      %v2872 = vsel %vm626, 1, 0
      %v2873 = vsel %vm627, 1, 0
      %v2874 = vsel %vm628, 1, 0
      %v2875 = vsel %vm629, 1, 0
      %v2876 = vsel %vm630, 1, 0
      %v2877 = vsel %vm631, 1, 0
      %v2878 = vsel %vm632, 1, 0
      %v2879 = vsel %vm633, 1, 0
      %v2880 = vsel %vm634, 1, 0
      %v2881 = vsel %vm635, 1, 0
      %v2882 = vsel %vm636, 1, 0
      %v2883 = vsel %vm637, 1, 0
      %v2884 = vsel %vm638, 1, 0
      %v2885 = vsel %vm639, 1, 0
      %v2886 = vsel %vm640, 1, 0
      %v2887 = vsel %vm641, 1, 0
      %v2888 = vsel %vm642, 1, 0
      %v2889 = vsel %vm643, 1, 0
      %v2890 = vsel %vm644, 1, 0
      %v2891 = vsel %vm645, 1, 0
      %v2892 = vsel %vm646, 1, 0
      %v2893 = vsel %vm647, 1, 0
      %v2894 = vsel %vm648, 1, 0
      %v2895 = vsel %vm649, 1, 0
      %v2896 = vsel %vm650, 1, 0
      %v2897 = vsel %vm651, 1, 0
      %v2898 = vsel %vm652, 1, 0
      %v2899 = vsel %vm653, 1, 0
      %v2900 = vsel %vm654, 1, 0
      %v2901 = vsel %vm655, 1, 0
      %v2902 = vsel %vm656, 1, 0
      %v2903 = vsel %vm657, 1, 0
      %v2904 = vsel %vm658, 1, 0
      %v2905 = vsel %vm659, 1, 0
      %v2906 = vsel %vm660, 1, 0
      %v2907 = vsel %vm661, 1, 0
      %v2908 = vsel %vm662, 1, 0
      %2909 = vset.pattern.permute.xlu0 0
      %2910 = vperm.xlu0 %2909, %v2868
      %v2911 = vpop.permute.xlu0 %2910
      %2912 = vset.pattern.permute.xlu0 0
      %2913 = vperm.xlu0 %2912, %v2869
      %v2914 = vpop.permute.xlu0 %2913
      %2915 = vset.pattern.permute.xlu0 0
      %2916 = vperm.xlu0 %2915, %v2870
      %v2917 = vpop.permute.xlu0 %2916
      %2918 = vset.pattern.permute.xlu0 0
      %2919 = vperm.xlu0 %2918, %v2871
      %v2920 = vpop.permute.xlu0 %2919
      %2921 = vset.pattern.permute.xlu0 0
      %2922 = vperm.xlu0 %2921, %v2872
      %v2923 = vpop.permute.xlu0 %2922
      %2924 = vset.pattern.permute.xlu0 0
      %2925 = vperm.xlu0 %2924, %v2873
      %v2926 = vpop.permute.xlu0 %2925
      %2927 = vset.pattern.permute.xlu0 0
      %2928 = vperm.xlu0 %2927, %v2874
      %v2929 = vpop.permute.xlu0 %2928
      %2930 = vset.pattern.permute.xlu0 0
      %2931 = vperm.xlu0 %2930, %v2875
      %v2932 = vpop.permute.xlu0 %2931
      %2933 = vset.pattern.permute.xlu0 0
      %2934 = vperm.xlu0 %2933, %v2876
      %v2935 = vpop.permute.xlu0 %2934
      %2936 = vset.pattern.permute.xlu0 0
      %2937 = vperm.xlu0 %2936, %v2877
      %v2938 = vpop.permute.xlu0 %2937
      %2939 = vset.pattern.permute.xlu0 0
      %2940 = vperm.xlu0 %2939, %v2878
      %v2941 = vpop.permute.xlu0 %2940
      %2942 = vset.pattern.permute.xlu0 0
      %2943 = vperm.xlu0 %2942, %v2879
      %v2944 = vpop.permute.xlu0 %2943
      %2945 = vset.pattern.permute.xlu0 0
      %2946 = vperm.xlu0 %2945, %v2880
      %v2947 = vpop.permute.xlu0 %2946
      %2948 = vset.pattern.permute.xlu0 0
      %2949 = vperm.xlu0 %2948, %v2881
      %v2950 = vpop.permute.xlu0 %2949
      %2951 = vset.pattern.permute.xlu0 0
      %2952 = vperm.xlu0 %2951, %v2882
      %v2953 = vpop.permute.xlu0 %2952
      %2954 = vset.pattern.permute.xlu0 0
      %2955 = vperm.xlu0 %2954, %v2883
      %v2956 = vpop.permute.xlu0 %2955
      %2957 = vset.pattern.permute.xlu0 0
      %2958 = vperm.xlu0 %2957, %v2884
      %v2959 = vpop.permute.xlu0 %2958
      %2960 = vset.pattern.permute.xlu0 0
      %2961 = vperm.xlu0 %2960, %v2885
      %v2962 = vpop.permute.xlu0 %2961
      %2963 = vset.pattern.permute.xlu0 0
      %2964 = vperm.xlu0 %2963, %v2886
      %v2965 = vpop.permute.xlu0 %2964
      %2966 = vset.pattern.permute.xlu0 0
      %2967 = vperm.xlu0 %2966, %v2887
      %v2968 = vpop.permute.xlu0 %2967
      %2969 = vset.pattern.permute.xlu0 0
      %2970 = vperm.xlu0 %2969, %v2888
      %v2971 = vpop.permute.xlu0 %2970
      %2972 = vset.pattern.permute.xlu0 0
      %2973 = vperm.xlu0 %2972, %v2889
      %v2974 = vpop.permute.xlu0 %2973
      %2975 = vset.pattern.permute.xlu0 0
      %2976 = vperm.xlu0 %2975, %v2890
      %v2977 = vpop.permute.xlu0 %2976
      %2978 = vset.pattern.permute.xlu0 0
      %2979 = vperm.xlu0 %2978, %v2891
      %v2980 = vpop.permute.xlu0 %2979
      %2981 = vset.pattern.permute.xlu0 0
      %2982 = vperm.xlu0 %2981, %v2892
      %v2983 = vpop.permute.xlu0 %2982
      %2984 = vset.pattern.permute.xlu0 0
      %2985 = vperm.xlu0 %2984, %v2893
      %v2986 = vpop.permute.xlu0 %2985
      %2987 = vset.pattern.permute.xlu0 0
      %2988 = vperm.xlu0 %2987, %v2894
      %v2989 = vpop.permute.xlu0 %2988
      %2990 = vset.pattern.permute.xlu0 0
      %2991 = vperm.xlu0 %2990, %v2895
      %v2992 = vpop.permute.xlu0 %2991
      %2993 = vset.pattern.permute.xlu0 0
      %2994 = vperm.xlu0 %2993, %v2896
      %v2995 = vpop.permute.xlu0 %2994
      %2996 = vset.pattern.permute.xlu0 0
      %2997 = vperm.xlu0 %2996, %v2897
      %v2998 = vpop.permute.xlu0 %2997
      %2999 = vset.pattern.permute.xlu0 0
      %3000 = vperm.xlu0 %2999, %v2898
      %v3001 = vpop.permute.xlu0 %3000
      %3002 = vset.pattern.permute.xlu0 0
      %3003 = vperm.xlu0 %3002, %v2899
      %v3004 = vpop.permute.xlu0 %3003
      %3005 = vset.pattern.permute.xlu0 0
      %3006 = vperm.xlu0 %3005, %v2900
      %v3007 = vpop.permute.xlu0 %3006
      %3008 = vset.pattern.permute.xlu0 0
      %3009 = vperm.xlu0 %3008, %v2901
      %v3010 = vpop.permute.xlu0 %3009
      %3011 = vset.pattern.permute.xlu0 0
      %3012 = vperm.xlu0 %3011, %v2902
      %v3013 = vpop.permute.xlu0 %3012
      %3014 = vset.pattern.permute.xlu0 0
      %3015 = vperm.xlu0 %3014, %v2903
      %v3016 = vpop.permute.xlu0 %3015
      %3017 = vset.pattern.permute.xlu0 0
      %3018 = vperm.xlu0 %3017, %v2904
      %v3019 = vpop.permute.xlu0 %3018
      %3020 = vset.pattern.permute.xlu0 0
      %3021 = vperm.xlu0 %3020, %v2905
      %v3022 = vpop.permute.xlu0 %3021
      %3023 = vset.pattern.permute.xlu0 0
      %3024 = vperm.xlu0 %3023, %v2906
      %v3025 = vpop.permute.xlu0 %3024
      %3026 = vset.pattern.permute.xlu0 0
      %3027 = vperm.xlu0 %3026, %v2907
      %v3028 = vpop.permute.xlu0 %3027
      %3029 = vset.pattern.permute.xlu0 0
      %3030 = vperm.xlu0 %3029, %v2908
      %v3031 = vpop.permute.xlu0 %3030
      %vm3032 = vcmp.eq.s32.totalorder %v2911, 1
      %vm3033 = vcmp.eq.s32.totalorder %v2914, 1
      %vm3034 = vcmp.eq.s32.totalorder %v2917, 1
      %vm3035 = vcmp.eq.s32.totalorder %v2920, 1
      %vm3036 = vcmp.eq.s32.totalorder %v2923, 1
      %vm3037 = vcmp.eq.s32.totalorder %v2926, 1
      %vm3038 = vcmp.eq.s32.totalorder %v2929, 1
      %vm3039 = vcmp.eq.s32.totalorder %v2932, 1
      %vm3040 = vcmp.eq.s32.totalorder %v2935, 1
      %vm3041 = vcmp.eq.s32.totalorder %v2938, 1
      %vm3042 = vcmp.eq.s32.totalorder %v2941, 1
      %vm3043 = vcmp.eq.s32.totalorder %v2944, 1
      %vm3044 = vcmp.eq.s32.totalorder %v2947, 1
      %vm3045 = vcmp.eq.s32.totalorder %v2950, 1
      %vm3046 = vcmp.eq.s32.totalorder %v2953, 1
      %vm3047 = vcmp.eq.s32.totalorder %v2956, 1
      %vm3048 = vcmp.eq.s32.totalorder %v2959, 1
      %vm3049 = vcmp.eq.s32.totalorder %v2962, 1
      %vm3050 = vcmp.eq.s32.totalorder %v2965, 1
      %vm3051 = vcmp.eq.s32.totalorder %v2968, 1
      %vm3052 = vcmp.eq.s32.totalorder %v2971, 1
      %vm3053 = vcmp.eq.s32.totalorder %v2974, 1
      %vm3054 = vcmp.eq.s32.totalorder %v2977, 1
      %vm3055 = vcmp.eq.s32.totalorder %v2980, 1
      %vm3056 = vcmp.eq.s32.totalorder %v2983, 1
      %vm3057 = vcmp.eq.s32.totalorder %v2986, 1
      %vm3058 = vcmp.eq.s32.totalorder %v2989, 1
      %vm3059 = vcmp.eq.s32.totalorder %v2992, 1
      %vm3060 = vcmp.eq.s32.totalorder %v2995, 1
      %vm3061 = vcmp.eq.s32.totalorder %v2998, 1
      %vm3062 = vcmp.eq.s32.totalorder %v3001, 1
      %vm3063 = vcmp.eq.s32.totalorder %v3004, 1
      %vm3064 = vcmp.eq.s32.totalorder %v3007, 1
      %vm3065 = vcmp.eq.s32.totalorder %v3010, 1
      %vm3066 = vcmp.eq.s32.totalorder %v3013, 1
      %vm3067 = vcmp.eq.s32.totalorder %v3016, 1
      %vm3068 = vcmp.eq.s32.totalorder %v3019, 1
      %vm3069 = vcmp.eq.s32.totalorder %v3022, 1
      %vm3070 = vcmp.eq.s32.totalorder %v3025, 1
      %vm3071 = vcmp.eq.s32.totalorder %v3028, 1
      %vm3072 = vcmp.eq.s32.totalorder %v3031, 1
      %v3073 = vsel %vm3032, %v2827, 0.0
      %v3074 = vsel %vm3033, %v2828, 0.0
      %v3075 = vsel %vm3034, %v2829, 0.0
      %v3076 = vsel %vm3035, %v2830, 0.0
      %v3077 = vsel %vm3036, %v2831, 0.0
      %v3078 = vsel %vm3037, %v2832, 0.0
      %v3079 = vsel %vm3038, %v2833, 0.0
      %v3080 = vsel %vm3039, %v2834, 0.0
      %v3081 = vsel %vm3040, %v2835, 0.0
      %v3082 = vsel %vm3041, %v2836, 0.0
      %v3083 = vsel %vm3042, %v2837, 0.0
      %v3084 = vsel %vm3043, %v2838, 0.0
      %v3085 = vsel %vm3044, %v2839, 0.0
      %v3086 = vsel %vm3045, %v2840, 0.0
      %v3087 = vsel %vm3046, %v2841, 0.0
      %v3088 = vsel %vm3047, %v2842, 0.0
      %v3089 = vsel %vm3048, %v2843, 0.0
      %v3090 = vsel %vm3049, %v2844, 0.0
      %v3091 = vsel %vm3050, %v2845, 0.0
      %v3092 = vsel %vm3051, %v2846, 0.0
      %v3093 = vsel %vm3052, %v2847, 0.0
      %v3094 = vsel %vm3053, %v2848, 0.0
      %v3095 = vsel %vm3054, %v2849, 0.0
      %v3096 = vsel %vm3055, %v2850, 0.0
      %v3097 = vsel %vm3056, %v2851, 0.0
      %v3098 = vsel %vm3057, %v2852, 0.0
      %v3099 = vsel %vm3058, %v2853, 0.0
      %v3100 = vsel %vm3059, %v2854, 0.0
      %v3101 = vsel %vm3060, %v2855, 0.0
      %v3102 = vsel %vm3061, %v2856, 0.0
      %v3103 = vsel %vm3062, %v2857, 0.0
      %v3104 = vsel %vm3063, %v2858, 0.0
      %v3105 = vsel %vm3064, %v2859, 0.0
      %v3106 = vsel %vm3065, %v2860, 0.0
      %v3107 = vsel %vm3066, %v2861, 0.0
      %v3108 = vsel %vm3067, %v2862, 0.0
      %v3109 = vsel %vm3068, %v2863, 0.0
      %v3110 = vsel %vm3069, %v2864, 0.0
      %v3111 = vsel %vm3070, %v2865, 0.0
      %v3112 = vsel %vm3071, %v2866, 0.0
      %v3113 = vsel %vm3072, %v2867, 0.0
      %v3114 = vadd.f32 %v3073, %v3074
      %v3115 = vadd.f32 %v3114, %v3075
      %v3116 = vadd.f32 %v3115, %v3076
      %v3117 = vadd.f32 %v3116, %v3077
      %v3118 = vadd.f32 %v3117, %v3078
      %v3119 = vadd.f32 %v3118, %v3079
      %v3120 = vadd.f32 %v3119, %v3080
      %v3121 = vadd.f32 %v3120, %v3081
      %v3122 = vadd.f32 %v3121, %v3082
      %v3123 = vadd.f32 %v3122, %v3083
      %v3124 = vadd.f32 %v3123, %v3084
      %v3125 = vadd.f32 %v3124, %v3085
      %v3126 = vadd.f32 %v3125, %v3086
      %v3127 = vadd.f32 %v3126, %v3087
      %v3128 = vadd.f32 %v3127, %v3088
      %v3129 = vadd.f32 %v3128, %v3089
      %v3130 = vadd.f32 %v3129, %v3090
      %v3131 = vadd.f32 %v3130, %v3091
      %v3132 = vadd.f32 %v3131, %v3092
      %v3133 = vadd.f32 %v3132, %v3093
      %v3134 = vadd.f32 %v3133, %v3094
      %v3135 = vadd.f32 %v3134, %v3095
      %v3136 = vadd.f32 %v3135, %v3096
      %v3137 = vadd.f32 %v3136, %v3097
      %v3138 = vadd.f32 %v3137, %v3098
      %v3139 = vadd.f32 %v3138, %v3099
      %v3140 = vadd.f32 %v3139, %v3100
      %v3141 = vadd.f32 %v3140, %v3101
      %v3142 = vadd.f32 %v3141, %v3102
      %v3143 = vadd.f32 %v3142, %v3103
      %v3144 = vadd.f32 %v3143, %v3104
      %v3145 = vadd.f32 %v3144, %v3105
      %v3146 = vadd.f32 %v3145, %v3106
      %v3147 = vadd.f32 %v3146, %v3107
      %v3148 = vadd.f32 %v3147, %v3108
      %v3149 = vadd.f32 %v3148, %v3109
      %v3150 = vadd.f32 %v3149, %v3110
      %v3151 = vadd.f32 %v3150, %v3111
      %v3152 = vadd.f32 %v3151, %v3112
      %vm3153 = vcmask 1043456
      %v3154 = vsel %vm3153, %v3113, 0.0
      %v3155 = vadd.f32 %v3152, %v3154
      %v3156 = vrot.slane %v3155, 4
      %v3157 = vadd.f32 %v3155, %v3156
      %v3158 = vrot.slane %v3157, 2
      %v3159 = vadd.f32 %v3157, %v3158
      %v3160 = vrot.slane %v3159, 1
      %v3161 = vadd.f32 %v3159, %v3160
      %v3162 = vmul.f32 %v3073, %v2827
      %v3163 = vmul.f32 %v3074, %v2828
      %v3164 = vmul.f32 %v3075, %v2829
      %v3165 = vmul.f32 %v3076, %v2830
      %v3166 = vmul.f32 %v3077, %v2831
      %v3167 = vmul.f32 %v3078, %v2832
      %v3168 = vmul.f32 %v3079, %v2833
      %v3169 = vmul.f32 %v3080, %v2834
      %v3170 = vmul.f32 %v3081, %v2835
      %v3171 = vmul.f32 %v3082, %v2836
      %v3172 = vmul.f32 %v3083, %v2837
      %v3173 = vmul.f32 %v3084, %v2838
      %v3174 = vmul.f32 %v3085, %v2839
      %v3175 = vmul.f32 %v3086, %v2840
      %v3176 = vmul.f32 %v3087, %v2841
      %v3177 = vmul.f32 %v3088, %v2842
      %v3178 = vmul.f32 %v3089, %v2843
      %v3179 = vmul.f32 %v3090, %v2844
      %v3180 = vmul.f32 %v3091, %v2845
      %v3181 = vmul.f32 %v3092, %v2846
      %v3182 = vmul.f32 %v3093, %v2847
      %v3183 = vmul.f32 %v3094, %v2848
      %v3184 = vmul.f32 %v3095, %v2849
      %v3185 = vmul.f32 %v3096, %v2850
      %v3186 = vmul.f32 %v3097, %v2851
      %v3187 = vmul.f32 %v3098, %v2852
      %v3188 = vmul.f32 %v3099, %v2853
      %v3189 = vmul.f32 %v3100, %v2854
      %v3190 = vmul.f32 %v3101, %v2855
      %v3191 = vmul.f32 %v3102, %v2856
      %v3192 = vmul.f32 %v3103, %v2857
      %v3193 = vmul.f32 %v3104, %v2858
      %v3194 = vmul.f32 %v3105, %v2859
      %v3195 = vmul.f32 %v3106, %v2860
      %v3196 = vmul.f32 %v3107, %v2861
      %v3197 = vmul.f32 %v3108, %v2862
      %v3198 = vmul.f32 %v3109, %v2863
      %v3199 = vmul.f32 %v3110, %v2864
      %v3200 = vmul.f32 %v3111, %v2865
      %v3201 = vmul.f32 %v3112, %v2866
      %v3202 = vmul.f32 %v3113, %v2867
      %v3203 = vadd.f32 %v3162, %v3163
      %v3204 = vadd.f32 %v3203, %v3164
      %v3205 = vadd.f32 %v3204, %v3165
      %v3206 = vadd.f32 %v3205, %v3166
      %v3207 = vadd.f32 %v3206, %v3167
      %v3208 = vadd.f32 %v3207, %v3168
      %v3209 = vadd.f32 %v3208, %v3169
      %v3210 = vadd.f32 %v3209, %v3170
      %v3211 = vadd.f32 %v3210, %v3171
      %v3212 = vadd.f32 %v3211, %v3172
      %v3213 = vadd.f32 %v3212, %v3173
      %v3214 = vadd.f32 %v3213, %v3174
      %v3215 = vadd.f32 %v3214, %v3175
      %v3216 = vadd.f32 %v3215, %v3176
      %v3217 = vadd.f32 %v3216, %v3177
      %v3218 = vadd.f32 %v3217, %v3178
      %v3219 = vadd.f32 %v3218, %v3179
      %v3220 = vadd.f32 %v3219, %v3180
      %v3221 = vadd.f32 %v3220, %v3181
      %v3222 = vadd.f32 %v3221, %v3182
      %v3223 = vadd.f32 %v3222, %v3183
      %v3224 = vadd.f32 %v3223, %v3184
      %v3225 = vadd.f32 %v3224, %v3185
      %v3226 = vadd.f32 %v3225, %v3186
      %v3227 = vadd.f32 %v3226, %v3187
      %v3228 = vadd.f32 %v3227, %v3188
      %v3229 = vadd.f32 %v3228, %v3189
      %v3230 = vadd.f32 %v3229, %v3190
      %v3231 = vadd.f32 %v3230, %v3191
      %v3232 = vadd.f32 %v3231, %v3192
      %v3233 = vadd.f32 %v3232, %v3193
      %v3234 = vadd.f32 %v3233, %v3194
      %v3235 = vadd.f32 %v3234, %v3195
      %v3236 = vadd.f32 %v3235, %v3196
      %v3237 = vadd.f32 %v3236, %v3197
      %v3238 = vadd.f32 %v3237, %v3198
      %v3239 = vadd.f32 %v3238, %v3199
      %v3240 = vadd.f32 %v3239, %v3200
      %v3241 = vadd.f32 %v3240, %v3201
      %v3242 = vsel %vm3153, %v3202, 0.0
      %v3243 = vadd.f32 %v3241, %v3242
      %v3244 = vrot.slane %v3243, 4
      %v3245 = vadd.f32 %v3243, %v3244
      %v3246 = vrot.slane %v3245, 2
      %v3247 = vadd.f32 %v3245, %v3246
      %v3248 = vrot.slane %v3247, 1
      %v3249 = vadd.f32 %v3247, %v3248
      %v3250 = vmul.f32 %v3161, 0.00390625
      %v3251 = vmul.f32 %v3249, 0.00390625
      %v3252 = vmul.f32 %v3250, %v3250
      %v3253 = vsub.f32 %v3251, %v3252
      %v3254 = vmax.f32 %v3253, 0.0
      %v3255 = vsub.f32 %v2827, %v3250
      %v3256 = vsub.f32 %v2828, %v3250
      %v3257 = vsub.f32 %v2829, %v3250
      %v3258 = vsub.f32 %v2830, %v3250
      %v3259 = vsub.f32 %v2831, %v3250
      %v3260 = vsub.f32 %v2832, %v3250
      %v3261 = vsub.f32 %v2833, %v3250
      %v3262 = vsub.f32 %v2834, %v3250
      %v3263 = vsub.f32 %v2835, %v3250
      %v3264 = vsub.f32 %v2836, %v3250
      %v3265 = vsub.f32 %v2837, %v3250
      %v3266 = vsub.f32 %v2838, %v3250
      %v3267 = vsub.f32 %v2839, %v3250
      %v3268 = vsub.f32 %v2840, %v3250
      %v3269 = vsub.f32 %v2841, %v3250
      %v3270 = vsub.f32 %v2842, %v3250
      %v3271 = vsub.f32 %v2843, %v3250
      %v3272 = vsub.f32 %v2844, %v3250
      %v3273 = vsub.f32 %v2845, %v3250
      %v3274 = vsub.f32 %v2846, %v3250
      %v3275 = vsub.f32 %v2847, %v3250
      %v3276 = vsub.f32 %v2848, %v3250
      %v3277 = vsub.f32 %v2849, %v3250
      %v3278 = vsub.f32 %v2850, %v3250
      %v3279 = vsub.f32 %v2851, %v3250
      %v3280 = vsub.f32 %v2852, %v3250
      %v3281 = vsub.f32 %v2853, %v3250
      %v3282 = vsub.f32 %v2854, %v3250
      %v3283 = vsub.f32 %v2855, %v3250
      %v3284 = vsub.f32 %v2856, %v3250
      %v3285 = vsub.f32 %v2857, %v3250
      %v3286 = vsub.f32 %v2858, %v3250
      %v3287 = vsub.f32 %v2859, %v3250
      %v3288 = vsub.f32 %v2860, %v3250
      %v3289 = vsub.f32 %v2861, %v3250
      %v3290 = vsub.f32 %v2862, %v3250
      %v3291 = vsub.f32 %v2863, %v3250
      %v3292 = vsub.f32 %v2864, %v3250
      %v3293 = vsub.f32 %v2865, %v3250
      %v3294 = vsub.f32 %v2866, %v3250
      %v3295 = vsub.f32 %v2867, %v3250
      %v3296 = vadd.f32 %v3254, 1e-05
      %v3297 = vrsqrt.pop %v3296
      %v3298 = vmul.f32 %v3297, %v3296
      %v3299 = vmul.f32 %v3298, %v3297
      %v3300 = vmul.f32 0.5, %v3299
      %v3301 = vsub.f32 1.5, %v3300
      %v3302 = vmul.f32 %v3297, %v3301
      %vm3303 = vweird.f32 %v3296
      %vm3304 = vweird.f32 %v3297
      %vm3305 = vmor %vm3303, %vm3304
      %v3306 = vsel %vm3305, %v3297, %v3302
      %v3307 = vmul.f32 %v3255, %v3306
      %v3308 = vmul.f32 %v3256, %v3306
      %v3309 = vmul.f32 %v3257, %v3306
      %v3310 = vmul.f32 %v3258, %v3306
      %v3311 = vmul.f32 %v3259, %v3306
      %v3312 = vmul.f32 %v3260, %v3306
      %v3313 = vmul.f32 %v3261, %v3306
      %v3314 = vmul.f32 %v3262, %v3306
      %v3315 = vmul.f32 %v3263, %v3306
      %v3316 = vmul.f32 %v3264, %v3306
      %v3317 = vmul.f32 %v3265, %v3306
      %v3318 = vmul.f32 %v3266, %v3306
      %v3319 = vmul.f32 %v3267, %v3306
      %v3320 = vmul.f32 %v3268, %v3306
      %v3321 = vmul.f32 %v3269, %v3306
      %v3322 = vmul.f32 %v3270, %v3306
      %v3323 = vmul.f32 %v3271, %v3306
      %v3324 = vmul.f32 %v3272, %v3306
      %v3325 = vmul.f32 %v3273, %v3306
      %v3326 = vmul.f32 %v3274, %v3306
      %v3327 = vmul.f32 %v3275, %v3306
      %v3328 = vmul.f32 %v3276, %v3306
      %v3329 = vmul.f32 %v3277, %v3306
      %v3330 = vmul.f32 %v3278, %v3306
      %v3331 = vmul.f32 %v3279, %v3306
      %v3332 = vmul.f32 %v3280, %v3306
      %v3333 = vmul.f32 %v3281, %v3306
      %v3334 = vmul.f32 %v3282, %v3306
      %v3335 = vmul.f32 %v3283, %v3306
      %v3336 = vmul.f32 %v3284, %v3306
      %v3337 = vmul.f32 %v3285, %v3306
      %v3338 = vmul.f32 %v3286, %v3306
      %v3339 = vmul.f32 %v3287, %v3306
      %v3340 = vmul.f32 %v3288, %v3306
      %v3341 = vmul.f32 %v3289, %v3306
      %v3342 = vmul.f32 %v3290, %v3306
      %v3343 = vmul.f32 %v3291, %v3306
      %v3344 = vmul.f32 %v3292, %v3306
      %v3345 = vmul.f32 %v3293, %v3306
      %v3346 = vmul.f32 %v3294, %v3306
      %v3347 = vmul.f32 %v3295, %v3306
      %v3348 = vmax.f32 %v3307, 0.0
      %v3349 = vmax.f32 %v3308, 0.0
      %v3350 = vmax.f32 %v3309, 0.0
      %v3351 = vmax.f32 %v3310, 0.0
      %v3352 = vmax.f32 %v3311, 0.0
      %v3353 = vmax.f32 %v3312, 0.0
      %v3354 = vmax.f32 %v3313, 0.0
      %v3355 = vmax.f32 %v3314, 0.0
      %v3356 = vmax.f32 %v3315, 0.0
      %v3357 = vmax.f32 %v3316, 0.0
      %v3358 = vmax.f32 %v3317, 0.0
      %v3359 = vmax.f32 %v3318, 0.0
      %v3360 = vmax.f32 %v3319, 0.0
      %v3361 = vmax.f32 %v3320, 0.0
      %v3362 = vmax.f32 %v3321, 0.0
      %v3363 = vmax.f32 %v3322, 0.0
      %v3364 = vmax.f32 %v3323, 0.0
      %v3365 = vmax.f32 %v3324, 0.0
      %v3366 = vmax.f32 %v3325, 0.0
      %v3367 = vmax.f32 %v3326, 0.0
      %v3368 = vmax.f32 %v3327, 0.0
      %v3369 = vmax.f32 %v3328, 0.0
      %v3370 = vmax.f32 %v3329, 0.0
      %v3371 = vmax.f32 %v3330, 0.0
      %v3372 = vmax.f32 %v3331, 0.0
      %v3373 = vmax.f32 %v3332, 0.0
      %v3374 = vmax.f32 %v3333, 0.0
      %v3375 = vmax.f32 %v3334, 0.0
      %v3376 = vmax.f32 %v3335, 0.0
      %v3377 = vmax.f32 %v3336, 0.0
      %v3378 = vmax.f32 %v3337, 0.0
      %v3379 = vmax.f32 %v3338, 0.0
      %v3380 = vmax.f32 %v3339, 0.0
      %v3381 = vmax.f32 %v3340, 0.0
      %v3382 = vmax.f32 %v3341, 0.0
      %v3383 = vmax.f32 %v3342, 0.0
      %v3384 = vmax.f32 %v3343, 0.0
      %v3385 = vmax.f32 %v3344, 0.0
      %v3386 = vmax.f32 %v3345, 0.0
      %v3387 = vmax.f32 %v3346, 0.0
      %v3388 = vmax.f32 %v3347, 0.0
      %3389 = vst [vmem:[#allocation2 + $0x24] sm:$0xff] %v3348
      %3390 = vst [vmem:[#allocation2 + $0x2c] sm:$0xff] %v3349
      %3391 = vst [vmem:[#allocation2 + $0x34] sm:$0xff] %v3350
      %3392 = vst [vmem:[#allocation2 + $0x3c] sm:$0xff] %v3351
      %3393 = vst [vmem:[#allocation2 + $0x44] sm:$0xff] %v3352
      %3394 = vst [vmem:[#allocation2 + $0x4c] sm:$0xff] %v3353
      %3395 = vst [vmem:[#allocation2 + $0x54] sm:$0xff] %v3354
      %3396 = vst [vmem:[#allocation2 + $0x5c] sm:$0xff] %v3355
      %3397 = vst [vmem:[#allocation2 + $0x64] sm:$0xff] %v3356
      %3398 = vst [vmem:[#allocation2 + $0x6c] sm:$0xff] %v3357
      %3399 = vst [vmem:[#allocation2 + $0x74] sm:$0xff] %v3358
      %3400 = vst [vmem:[#allocation2 + $0x7c] sm:$0xff] %v3359
      %3401 = vst [vmem:[#allocation2 + $0x84] sm:$0xff] %v3360
      %3402 = vst [vmem:[#allocation2 + $0x8c] sm:$0xff] %v3361
      %3403 = vst [vmem:[#allocation2 + $0x94] sm:$0xff] %v3362
      %3404 = vst [vmem:[#allocation2 + $0x9c] sm:$0xff] %v3363
      %3405 = vst [vmem:[#allocation2 + $0xa4] sm:$0xff] %v3364
      %3406 = vst [vmem:[#allocation2 + $0xac] sm:$0xff] %v3365
      %3407 = vst [vmem:[#allocation2 + $0xb4] sm:$0xff] %v3366
      %3408 = vst [vmem:[#allocation2 + $0xbc] sm:$0xff] %v3367
      %3409 = vst [vmem:[#allocation2 + $0xc4] sm:$0xff] %v3368
      %3410 = vst [vmem:[#allocation2 + $0xcc] sm:$0xff] %v3369
      %3411 = vst [vmem:[#allocation2 + $0xd4] sm:$0xff] %v3370
      %3412 = vst [vmem:[#allocation2 + $0xdc] sm:$0xff] %v3371
      %3413 = vst [vmem:[#allocation2 + $0xe4] sm:$0xff] %v3372
      %3414 = vst [vmem:[#allocation2 + $0xec] sm:$0xff] %v3373
      %3415 = vst [vmem:[#allocation2 + $0xf4] sm:$0xff] %v3374
      %3416 = vst [vmem:[#allocation2 + $0xfc] sm:$0xff] %v3375
      %3417 = vst [vmem:[#allocation2 + $0x104] sm:$0xff] %v3376
      %3418 = vst [vmem:[#allocation2 + $0x10c] sm:$0xff] %v3377
      %3419 = vst [vmem:[#allocation2 + $0x114] sm:$0xff] %v3378
      %3420 = vst [vmem:[#allocation2 + $0x11c] sm:$0xff] %v3379
      %3421 = vst [vmem:[#allocation2 + $0x124] sm:$0xff] %v3380
      %3422 = vst [vmem:[#allocation2 + $0x12c] sm:$0xff] %v3381
      %3423 = vst [vmem:[#allocation2 + $0x134] sm:$0xff] %v3382
      %3424 = vst [vmem:[#allocation2 + $0x13c] sm:$0xff] %v3383
      %3425 = vst [vmem:[#allocation2 + $0x144] sm:$0xff] %v3384
      %3426 = vst [vmem:[#allocation2 + $0x14c] sm:$0xff] %v3385
      %3427 = vst [vmem:[#allocation2 + $0x154] sm:$0xff] %v3386
      %3428 = vst [vmem:[#allocation2 + $0x15c] sm:$0xff] %v3387
      %3429 = vst [vmem:[#allocation2 + $0x164] sm:$0xf] %v3388
      %v3430 = vld [vmem:[#allocation2 + $0x26] sm:$0xff]
      %v3431 = vld [vmem:[#allocation2 + $0x2e] sm:$0xff]
      %v3432 = vld [vmem:[#allocation2 + $0x36] sm:$0xff]
      %v3433 = vld [vmem:[#allocation2 + $0x3e] sm:$0xff]
      %v3434 = vld [vmem:[#allocation2 + $0x46] sm:$0xff]
      %v3435 = vld [vmem:[#allocation2 + $0x4e] sm:$0xff]
      %v3436 = vld [vmem:[#allocation2 + $0x56] sm:$0xff]
      %v3437 = vld [vmem:[#allocation2 + $0x5e] sm:$0xff]
      %v3438 = vld [vmem:[#allocation2 + $0x66] sm:$0xff]
      %v3439 = vld [vmem:[#allocation2 + $0x6e] sm:$0xff]
      %v3440 = vld [vmem:[#allocation2 + $0x76] sm:$0xff]
      %v3441 = vld [vmem:[#allocation2 + $0x7e] sm:$0xff]
      %v3442 = vld [vmem:[#allocation2 + $0x86] sm:$0xff]
      %v3443 = vld [vmem:[#allocation2 + $0x8e] sm:$0xff]
      %v3444 = vld [vmem:[#allocation2 + $0x96] sm:$0xff]
      %v3445 = vld [vmem:[#allocation2 + $0x9e] sm:$0xff]
      %v3446 = vld [vmem:[#allocation2 + $0xa6] sm:$0xff]
      %v3447 = vld [vmem:[#allocation2 + $0xae] sm:$0xff]
      %v3448 = vld [vmem:[#allocation2 + $0xb6] sm:$0xff]
      %v3449 = vld [vmem:[#allocation2 + $0xbe] sm:$0xff]
      %v3450 = vld [vmem:[#allocation2 + $0xc6] sm:$0xff]
      %v3451 = vld [vmem:[#allocation2 + $0xce] sm:$0xff]
      %v3452 = vld [vmem:[#allocation2 + $0xd6] sm:$0xff]
      %v3453 = vld [vmem:[#allocation2 + $0xde] sm:$0xff]
      %v3454 = vld [vmem:[#allocation2 + $0xe6] sm:$0xff]
      %v3455 = vld [vmem:[#allocation2 + $0xee] sm:$0xff]
      %v3456 = vld [vmem:[#allocation2 + $0xf6] sm:$0xff]
      %v3457 = vld [vmem:[#allocation2 + $0xfe] sm:$0xff]
      %v3458 = vld [vmem:[#allocation2 + $0x106] sm:$0xff]
      %v3459 = vld [vmem:[#allocation2 + $0x10e] sm:$0xff]
      %v3460 = vld [vmem:[#allocation2 + $0x116] sm:$0xff]
      %v3461 = vld [vmem:[#allocation2 + $0x11e] sm:$0xff]
      %v3462 = vld [vmem:[#allocation2 + $0x126] sm:$0xff]
      %v3463 = vld [vmem:[#allocation2 + $0x12e] sm:$0xff]
      %v3464 = vld [vmem:[#allocation2 + $0x136] sm:$0xff]
      %v3465 = vld [vmem:[#allocation2 + $0x13e] sm:$0xff]
      %v3466 = vld [vmem:[#allocation2 + $0x146] sm:$0xff]
      %v3467 = vld [vmem:[#allocation2 + $0x14e] sm:$0xff]
      %v3468 = vld [vmem:[#allocation2 + $0x156] sm:$0xff]
      %v3469 = vld [vmem:[#allocation2 + $0x15e] sm:$0xff]
      %v3470 = vld [vmem:[#allocation2 + $0x166] sm:$0xf]
      %v3471 = vld [vmem:[#allocation2 + $0x22] sm:$0xff]
      %v3472 = vld [vmem:[#allocation2 + $0x2a] sm:$0xff]
      %v3473 = vld [vmem:[#allocation2 + $0x32] sm:$0xff]
      %v3474 = vld [vmem:[#allocation2 + $0x3a] sm:$0xff]
      %v3475 = vld [vmem:[#allocation2 + $0x42] sm:$0xff]
      %v3476 = vld [vmem:[#allocation2 + $0x4a] sm:$0xff]
      %v3477 = vld [vmem:[#allocation2 + $0x52] sm:$0xff]
      %v3478 = vld [vmem:[#allocation2 + $0x5a] sm:$0xff]
      %v3479 = vld [vmem:[#allocation2 + $0x62] sm:$0xff]
      %v3480 = vld [vmem:[#allocation2 + $0x6a] sm:$0xff]
      %v3481 = vld [vmem:[#allocation2 + $0x72] sm:$0xff]
      %v3482 = vld [vmem:[#allocation2 + $0x7a] sm:$0xff]
      %v3483 = vld [vmem:[#allocation2 + $0x82] sm:$0xff]
      %v3484 = vld [vmem:[#allocation2 + $0x8a] sm:$0xff]
      %v3485 = vld [vmem:[#allocation2 + $0x92] sm:$0xff]
      %v3486 = vld [vmem:[#allocation2 + $0x9a] sm:$0xff]
      %v3487 = vld [vmem:[#allocation2 + $0xa2] sm:$0xff]
      %v3488 = vld [vmem:[#allocation2 + $0xaa] sm:$0xff]
      %v3489 = vld [vmem:[#allocation2 + $0xb2] sm:$0xff]
      %v3490 = vld [vmem:[#allocation2 + $0xba] sm:$0xff]
      %v3491 = vld [vmem:[#allocation2 + $0xc2] sm:$0xff]
      %v3492 = vld [vmem:[#allocation2 + $0xca] sm:$0xff]
      %v3493 = vld [vmem:[#allocation2 + $0xd2] sm:$0xff]
      %v3494 = vld [vmem:[#allocation2 + $0xda] sm:$0xff]
      %v3495 = vld [vmem:[#allocation2 + $0xe2] sm:$0xff]
      %v3496 = vld [vmem:[#allocation2 + $0xea] sm:$0xff]
      %v3497 = vld [vmem:[#allocation2 + $0xf2] sm:$0xff]
      %v3498 = vld [vmem:[#allocation2 + $0xfa] sm:$0xff]
      %v3499 = vld [vmem:[#allocation2 + $0x102] sm:$0xff]
      %v3500 = vld [vmem:[#allocation2 + $0x10a] sm:$0xff]
      %v3501 = vld [vmem:[#allocation2 + $0x112] sm:$0xff]
      %v3502 = vld [vmem:[#allocation2 + $0x11a] sm:$0xff]
      %v3503 = vld [vmem:[#allocation2 + $0x122] sm:$0xff]
      %v3504 = vld [vmem:[#allocation2 + $0x12a] sm:$0xff]
      %v3505 = vld [vmem:[#allocation2 + $0x132] sm:$0xff]
      %v3506 = vld [vmem:[#allocation2 + $0x13a] sm:$0xff]
      %v3507 = vld [vmem:[#allocation2 + $0x142] sm:$0xff]
      %v3508 = vld [vmem:[#allocation2 + $0x14a] sm:$0xff]
      %v3509 = vld [vmem:[#allocation2 + $0x152] sm:$0xff]
      %v3510 = vld [vmem:[#allocation2 + $0x15a] sm:$0xff]
      %v3511 = vld [vmem:[#allocation2 + $0x162] sm:$0xf]
      %v3512 = vsel %vm458, 1, 0
      %v3513 = vsel %vm459, 1, 0
      %v3514 = vsel %vm460, 1, 0
      %v3515 = vsel %vm461, 1, 0
      %v3516 = vsel %vm462, 1, 0
      %v3517 = vsel %vm463, 1, 0
      %v3518 = vsel %vm464, 1, 0
      %v3519 = vsel %vm465, 1, 0
      %v3520 = vsel %vm466, 1, 0
      %v3521 = vsel %vm467, 1, 0
      %v3522 = vsel %vm468, 1, 0
      %v3523 = vsel %vm469, 1, 0
      %v3524 = vsel %vm470, 1, 0
      %v3525 = vsel %vm471, 1, 0
      %v3526 = vsel %vm472, 1, 0
      %v3527 = vsel %vm473, 1, 0
      %v3528 = vsel %vm474, 1, 0
      %v3529 = vsel %vm475, 1, 0
      %v3530 = vsel %vm476, 1, 0
      %v3531 = vsel %vm477, 1, 0
      %v3532 = vsel %vm478, 1, 0
      %v3533 = vsel %vm479, 1, 0
      %v3534 = vsel %vm480, 1, 0
      %v3535 = vsel %vm481, 1, 0
      %v3536 = vsel %vm482, 1, 0
      %v3537 = vsel %vm483, 1, 0
      %v3538 = vsel %vm484, 1, 0
      %v3539 = vsel %vm485, 1, 0
      %v3540 = vsel %vm486, 1, 0
      %v3541 = vsel %vm487, 1, 0
      %v3542 = vsel %vm488, 1, 0
      %v3543 = vsel %vm489, 1, 0
      %v3544 = vsel %vm490, 1, 0
      %v3545 = vsel %vm491, 1, 0
      %v3546 = vsel %vm492, 1, 0
      %v3547 = vsel %vm493, 1, 0
      %v3548 = vsel %vm494, 1, 0
      %v3549 = vsel %vm495, 1, 0
      %v3550 = vsel %vm496, 1, 0
      %v3551 = vsel %vm497, 1, 0
      %v3552 = vsel %vm498, 1, 0
      %3553 = vset.pattern.permute.xlu0 0
      %3554 = vperm.xlu0 %3553, %v3512
      %v3555 = vpop.permute.xlu0 %3554
      %3556 = vset.pattern.permute.xlu0 0
      %3557 = vperm.xlu0 %3556, %v3513
      %v3558 = vpop.permute.xlu0 %3557
      %3559 = vset.pattern.permute.xlu0 0
      %3560 = vperm.xlu0 %3559, %v3514
      %v3561 = vpop.permute.xlu0 %3560
      %3562 = vset.pattern.permute.xlu0 0
      %3563 = vperm.xlu0 %3562, %v3515
      %v3564 = vpop.permute.xlu0 %3563
      %3565 = vset.pattern.permute.xlu0 0
      %3566 = vperm.xlu0 %3565, %v3516
      %v3567 = vpop.permute.xlu0 %3566
      %3568 = vset.pattern.permute.xlu0 0
      %3569 = vperm.xlu0 %3568, %v3517
      %v3570 = vpop.permute.xlu0 %3569
      %3571 = vset.pattern.permute.xlu0 0
      %3572 = vperm.xlu0 %3571, %v3518
      %v3573 = vpop.permute.xlu0 %3572
      %3574 = vset.pattern.permute.xlu0 0
      %3575 = vperm.xlu0 %3574, %v3519
      %v3576 = vpop.permute.xlu0 %3575
      %3577 = vset.pattern.permute.xlu0 0
      %3578 = vperm.xlu0 %3577, %v3520
      %v3579 = vpop.permute.xlu0 %3578
      %3580 = vset.pattern.permute.xlu0 0
      %3581 = vperm.xlu0 %3580, %v3521
      %v3582 = vpop.permute.xlu0 %3581
      %3583 = vset.pattern.permute.xlu0 0
      %3584 = vperm.xlu0 %3583, %v3522
      %v3585 = vpop.permute.xlu0 %3584
      %3586 = vset.pattern.permute.xlu0 0
      %3587 = vperm.xlu0 %3586, %v3523
      %v3588 = vpop.permute.xlu0 %3587
      %3589 = vset.pattern.permute.xlu0 0
      %3590 = vperm.xlu0 %3589, %v3524
      %v3591 = vpop.permute.xlu0 %3590
      %3592 = vset.pattern.permute.xlu0 0
      %3593 = vperm.xlu0 %3592, %v3525
      %v3594 = vpop.permute.xlu0 %3593
      %3595 = vset.pattern.permute.xlu0 0
      %3596 = vperm.xlu0 %3595, %v3526
      %v3597 = vpop.permute.xlu0 %3596
      %3598 = vset.pattern.permute.xlu0 0
      %3599 = vperm.xlu0 %3598, %v3527
      %v3600 = vpop.permute.xlu0 %3599
      %3601 = vset.pattern.permute.xlu0 0
      %3602 = vperm.xlu0 %3601, %v3528
      %v3603 = vpop.permute.xlu0 %3602
      %3604 = vset.pattern.permute.xlu0 0
      %3605 = vperm.xlu0 %3604, %v3529
      %v3606 = vpop.permute.xlu0 %3605
      %3607 = vset.pattern.permute.xlu0 0
      %3608 = vperm.xlu0 %3607, %v3530
      %v3609 = vpop.permute.xlu0 %3608
      %3610 = vset.pattern.permute.xlu0 0
      %3611 = vperm.xlu0 %3610, %v3531
      %v3612 = vpop.permute.xlu0 %3611
      %3613 = vset.pattern.permute.xlu0 0
      %3614 = vperm.xlu0 %3613, %v3532
      %v3615 = vpop.permute.xlu0 %3614
      %3616 = vset.pattern.permute.xlu0 0
      %3617 = vperm.xlu0 %3616, %v3533
      %v3618 = vpop.permute.xlu0 %3617
      %3619 = vset.pattern.permute.xlu0 0
      %3620 = vperm.xlu0 %3619, %v3534
      %v3621 = vpop.permute.xlu0 %3620
      %3622 = vset.pattern.permute.xlu0 0
      %3623 = vperm.xlu0 %3622, %v3535
      %v3624 = vpop.permute.xlu0 %3623
      %3625 = vset.pattern.permute.xlu0 0
      %3626 = vperm.xlu0 %3625, %v3536
      %v3627 = vpop.permute.xlu0 %3626
      %3628 = vset.pattern.permute.xlu0 0
      %3629 = vperm.xlu0 %3628, %v3537
      %v3630 = vpop.permute.xlu0 %3629
      %3631 = vset.pattern.permute.xlu0 0
      %3632 = vperm.xlu0 %3631, %v3538
      %v3633 = vpop.permute.xlu0 %3632
      %3634 = vset.pattern.permute.xlu0 0
      %3635 = vperm.xlu0 %3634, %v3539
      %v3636 = vpop.permute.xlu0 %3635
      %3637 = vset.pattern.permute.xlu0 0
      %3638 = vperm.xlu0 %3637, %v3540
      %v3639 = vpop.permute.xlu0 %3638
      %3640 = vset.pattern.permute.xlu0 0
      %3641 = vperm.xlu0 %3640, %v3541
      %v3642 = vpop.permute.xlu0 %3641
      %3643 = vset.pattern.permute.xlu0 0
      %3644 = vperm.xlu0 %3643, %v3542
      %v3645 = vpop.permute.xlu0 %3644
      %3646 = vset.pattern.permute.xlu0 0
      %3647 = vperm.xlu0 %3646, %v3543
      %v3648 = vpop.permute.xlu0 %3647
      %3649 = vset.pattern.permute.xlu0 0
      %3650 = vperm.xlu0 %3649, %v3544
      %v3651 = vpop.permute.xlu0 %3650
      %3652 = vset.pattern.permute.xlu0 0
      %3653 = vperm.xlu0 %3652, %v3545
      %v3654 = vpop.permute.xlu0 %3653
      %3655 = vset.pattern.permute.xlu0 0
      %3656 = vperm.xlu0 %3655, %v3546
      %v3657 = vpop.permute.xlu0 %3656
      %3658 = vset.pattern.permute.xlu0 0
      %3659 = vperm.xlu0 %3658, %v3547
      %v3660 = vpop.permute.xlu0 %3659
      %3661 = vset.pattern.permute.xlu0 0
      %3662 = vperm.xlu0 %3661, %v3548
      %v3663 = vpop.permute.xlu0 %3662
      %3664 = vset.pattern.permute.xlu0 0
      %3665 = vperm.xlu0 %3664, %v3549
      %v3666 = vpop.permute.xlu0 %3665
      %3667 = vset.pattern.permute.xlu0 0
      %3668 = vperm.xlu0 %3667, %v3550
      %v3669 = vpop.permute.xlu0 %3668
      %3670 = vset.pattern.permute.xlu0 0
      %3671 = vperm.xlu0 %3670, %v3551
      %v3672 = vpop.permute.xlu0 %3671
      %3673 = vset.pattern.permute.xlu0 0
      %3674 = vperm.xlu0 %3673, %v3552
      %v3675 = vpop.permute.xlu0 %3674
      %vm3676 = vcmp.eq.s32.totalorder %v3555, 1
      %vm3677 = vcmp.eq.s32.totalorder %v3558, 1
      %vm3678 = vcmp.eq.s32.totalorder %v3561, 1
      %vm3679 = vcmp.eq.s32.totalorder %v3564, 1
      %vm3680 = vcmp.eq.s32.totalorder %v3567, 1
      %vm3681 = vcmp.eq.s32.totalorder %v3570, 1
      %vm3682 = vcmp.eq.s32.totalorder %v3573, 1
      %vm3683 = vcmp.eq.s32.totalorder %v3576, 1
      %vm3684 = vcmp.eq.s32.totalorder %v3579, 1
      %vm3685 = vcmp.eq.s32.totalorder %v3582, 1
      %vm3686 = vcmp.eq.s32.totalorder %v3585, 1
      %vm3687 = vcmp.eq.s32.totalorder %v3588, 1
      %vm3688 = vcmp.eq.s32.totalorder %v3591, 1
      %vm3689 = vcmp.eq.s32.totalorder %v3594, 1
      %vm3690 = vcmp.eq.s32.totalorder %v3597, 1
      %vm3691 = vcmp.eq.s32.totalorder %v3600, 1
      %vm3692 = vcmp.eq.s32.totalorder %v3603, 1
      %vm3693 = vcmp.eq.s32.totalorder %v3606, 1
      %vm3694 = vcmp.eq.s32.totalorder %v3609, 1
      %vm3695 = vcmp.eq.s32.totalorder %v3612, 1
      %vm3696 = vcmp.eq.s32.totalorder %v3615, 1
      %vm3697 = vcmp.eq.s32.totalorder %v3618, 1
      %vm3698 = vcmp.eq.s32.totalorder %v3621, 1
      %vm3699 = vcmp.eq.s32.totalorder %v3624, 1
      %vm3700 = vcmp.eq.s32.totalorder %v3627, 1
      %vm3701 = vcmp.eq.s32.totalorder %v3630, 1
      %vm3702 = vcmp.eq.s32.totalorder %v3633, 1
      %vm3703 = vcmp.eq.s32.totalorder %v3636, 1
      %vm3704 = vcmp.eq.s32.totalorder %v3639, 1
      %vm3705 = vcmp.eq.s32.totalorder %v3642, 1
      %vm3706 = vcmp.eq.s32.totalorder %v3645, 1
      %vm3707 = vcmp.eq.s32.totalorder %v3648, 1
      %vm3708 = vcmp.eq.s32.totalorder %v3651, 1
      %vm3709 = vcmp.eq.s32.totalorder %v3654, 1
      %vm3710 = vcmp.eq.s32.totalorder %v3657, 1
      %vm3711 = vcmp.eq.s32.totalorder %v3660, 1
      %vm3712 = vcmp.eq.s32.totalorder %v3663, 1
      %vm3713 = vcmp.eq.s32.totalorder %v3666, 1
      %vm3714 = vcmp.eq.s32.totalorder %v3669, 1
      %vm3715 = vcmp.eq.s32.totalorder %v3672, 1
      %vm3716 = vcmp.eq.s32.totalorder %v3675, 1
      %v3717 = vsel %vm3676, %v3471, %v3348
      %v3718 = vsel %vm3677, %v3472, %v3349
      %v3719 = vsel %vm3678, %v3473, %v3350
      %v3720 = vsel %vm3679, %v3474, %v3351
      %v3721 = vsel %vm3680, %v3475, %v3352
      %v3722 = vsel %vm3681, %v3476, %v3353
      %v3723 = vsel %vm3682, %v3477, %v3354
      %v3724 = vsel %vm3683, %v3478, %v3355
      %v3725 = vsel %vm3684, %v3479, %v3356
      %v3726 = vsel %vm3685, %v3480, %v3357
      %v3727 = vsel %vm3686, %v3481, %v3358
      %v3728 = vsel %vm3687, %v3482, %v3359
      %v3729 = vsel %vm3688, %v3483, %v3360
      %v3730 = vsel %vm3689, %v3484, %v3361
      %v3731 = vsel %vm3690, %v3485, %v3362
      %v3732 = vsel %vm3691, %v3486, %v3363
      %v3733 = vsel %vm3692, %v3487, %v3364
      %v3734 = vsel %vm3693, %v3488, %v3365
      %v3735 = vsel %vm3694, %v3489, %v3366
      %v3736 = vsel %vm3695, %v3490, %v3367
      %v3737 = vsel %vm3696, %v3491, %v3368
      %v3738 = vsel %vm3697, %v3492, %v3369
      %v3739 = vsel %vm3698, %v3493, %v3370
      %v3740 = vsel %vm3699, %v3494, %v3371
      %v3741 = vsel %vm3700, %v3495, %v3372
      %v3742 = vsel %vm3701, %v3496, %v3373
      %v3743 = vsel %vm3702, %v3497, %v3374
      %v3744 = vsel %vm3703, %v3498, %v3375
      %v3745 = vsel %vm3704, %v3499, %v3376
      %v3746 = vsel %vm3705, %v3500, %v3377
      %v3747 = vsel %vm3706, %v3501, %v3378
      %v3748 = vsel %vm3707, %v3502, %v3379
      %v3749 = vsel %vm3708, %v3503, %v3380
      %v3750 = vsel %vm3709, %v3504, %v3381
      %v3751 = vsel %vm3710, %v3505, %v3382
      %v3752 = vsel %vm3711, %v3506, %v3383
      %v3753 = vsel %vm3712, %v3507, %v3384
      %v3754 = vsel %vm3713, %v3508, %v3385
      %v3755 = vsel %vm3714, %v3509, %v3386
      %v3756 = vsel %vm3715, %v3510, %v3387
      %v3757 = vsel %vm3716, %v3511, %v3388
      %v3758 = vsel %vm417, 1, 0
      %v3759 = vsel %vm418, 1, 0
      %v3760 = vsel %vm419, 1, 0
      %v3761 = vsel %vm420, 1, 0
      %v3762 = vsel %vm421, 1, 0
      %v3763 = vsel %vm422, 1, 0
      %v3764 = vsel %vm423, 1, 0
      %v3765 = vsel %vm424, 1, 0
      %v3766 = vsel %vm425, 1, 0
      %v3767 = vsel %vm426, 1, 0
      %v3768 = vsel %vm427, 1, 0
      %v3769 = vsel %vm428, 1, 0
      %v3770 = vsel %vm429, 1, 0
      %v3771 = vsel %vm430, 1, 0
      %v3772 = vsel %vm431, 1, 0
      %v3773 = vsel %vm432, 1, 0
      %v3774 = vsel %vm433, 1, 0
      %v3775 = vsel %vm434, 1, 0
      %v3776 = vsel %vm435, 1, 0
      %v3777 = vsel %vm436, 1, 0
      %v3778 = vsel %vm437, 1, 0
      %v3779 = vsel %vm438, 1, 0
      %v3780 = vsel %vm439, 1, 0
      %v3781 = vsel %vm440, 1, 0
      %v3782 = vsel %vm441, 1, 0
      %v3783 = vsel %vm442, 1, 0
      %v3784 = vsel %vm443, 1, 0
      %v3785 = vsel %vm444, 1, 0
      %v3786 = vsel %vm445, 1, 0
      %v3787 = vsel %vm446, 1, 0
      %v3788 = vsel %vm447, 1, 0
      %v3789 = vsel %vm448, 1, 0
      %v3790 = vsel %vm449, 1, 0
      %v3791 = vsel %vm450, 1, 0
      %v3792 = vsel %vm451, 1, 0
      %v3793 = vsel %vm452, 1, 0
      %v3794 = vsel %vm453, 1, 0
      %v3795 = vsel %vm454, 1, 0
      %v3796 = vsel %vm455, 1, 0
      %v3797 = vsel %vm456, 1, 0
      %v3798 = vsel %vm457, 1, 0
      %3799 = vset.pattern.permute.xlu0 0
      %3800 = vperm.xlu0 %3799, %v3758
      %v3801 = vpop.permute.xlu0 %3800
      %3802 = vset.pattern.permute.xlu0 0
      %3803 = vperm.xlu0 %3802, %v3759
      %v3804 = vpop.permute.xlu0 %3803
      %3805 = vset.pattern.permute.xlu0 0
      %3806 = vperm.xlu0 %3805, %v3760
      %v3807 = vpop.permute.xlu0 %3806
      %3808 = vset.pattern.permute.xlu0 0
      %3809 = vperm.xlu0 %3808, %v3761
      %v3810 = vpop.permute.xlu0 %3809
      %3811 = vset.pattern.permute.xlu0 0
      %3812 = vperm.xlu0 %3811, %v3762
      %v3813 = vpop.permute.xlu0 %3812
      %3814 = vset.pattern.permute.xlu0 0
      %3815 = vperm.xlu0 %3814, %v3763
      %v3816 = vpop.permute.xlu0 %3815
      %3817 = vset.pattern.permute.xlu0 0
      %3818 = vperm.xlu0 %3817, %v3764
      %v3819 = vpop.permute.xlu0 %3818
      %3820 = vset.pattern.permute.xlu0 0
      %3821 = vperm.xlu0 %3820, %v3765
      %v3822 = vpop.permute.xlu0 %3821
      %3823 = vset.pattern.permute.xlu0 0
      %3824 = vperm.xlu0 %3823, %v3766
      %v3825 = vpop.permute.xlu0 %3824
      %3826 = vset.pattern.permute.xlu0 0
      %3827 = vperm.xlu0 %3826, %v3767
      %v3828 = vpop.permute.xlu0 %3827
      %3829 = vset.pattern.permute.xlu0 0
      %3830 = vperm.xlu0 %3829, %v3768
      %v3831 = vpop.permute.xlu0 %3830
      %3832 = vset.pattern.permute.xlu0 0
      %3833 = vperm.xlu0 %3832, %v3769
      %v3834 = vpop.permute.xlu0 %3833
      %3835 = vset.pattern.permute.xlu0 0
      %3836 = vperm.xlu0 %3835, %v3770
      %v3837 = vpop.permute.xlu0 %3836
      %3838 = vset.pattern.permute.xlu0 0
      %3839 = vperm.xlu0 %3838, %v3771
      %v3840 = vpop.permute.xlu0 %3839
      %3841 = vset.pattern.permute.xlu0 0
      %3842 = vperm.xlu0 %3841, %v3772
      %v3843 = vpop.permute.xlu0 %3842
      %3844 = vset.pattern.permute.xlu0 0
      %3845 = vperm.xlu0 %3844, %v3773
      %v3846 = vpop.permute.xlu0 %3845
      %3847 = vset.pattern.permute.xlu0 0
      %3848 = vperm.xlu0 %3847, %v3774
      %v3849 = vpop.permute.xlu0 %3848
      %3850 = vset.pattern.permute.xlu0 0
      %3851 = vperm.xlu0 %3850, %v3775
      %v3852 = vpop.permute.xlu0 %3851
      %3853 = vset.pattern.permute.xlu0 0
      %3854 = vperm.xlu0 %3853, %v3776
      %v3855 = vpop.permute.xlu0 %3854
      %3856 = vset.pattern.permute.xlu0 0
      %3857 = vperm.xlu0 %3856, %v3777
      %v3858 = vpop.permute.xlu0 %3857
      %3859 = vset.pattern.permute.xlu0 0
      %3860 = vperm.xlu0 %3859, %v3778
      %v3861 = vpop.permute.xlu0 %3860
      %3862 = vset.pattern.permute.xlu0 0
      %3863 = vperm.xlu0 %3862, %v3779
      %v3864 = vpop.permute.xlu0 %3863
      %3865 = vset.pattern.permute.xlu0 0
      %3866 = vperm.xlu0 %3865, %v3780
      %v3867 = vpop.permute.xlu0 %3866
      %3868 = vset.pattern.permute.xlu0 0
      %3869 = vperm.xlu0 %3868, %v3781
      %v3870 = vpop.permute.xlu0 %3869
      %3871 = vset.pattern.permute.xlu0 0
      %3872 = vperm.xlu0 %3871, %v3782
      %v3873 = vpop.permute.xlu0 %3872
      %3874 = vset.pattern.permute.xlu0 0
      %3875 = vperm.xlu0 %3874, %v3783
      %v3876 = vpop.permute.xlu0 %3875
      %3877 = vset.pattern.permute.xlu0 0
      %3878 = vperm.xlu0 %3877, %v3784
      %v3879 = vpop.permute.xlu0 %3878
      %3880 = vset.pattern.permute.xlu0 0
      %3881 = vperm.xlu0 %3880, %v3785
      %v3882 = vpop.permute.xlu0 %3881
      %3883 = vset.pattern.permute.xlu0 0
      %3884 = vperm.xlu0 %3883, %v3786
      %v3885 = vpop.permute.xlu0 %3884
      %3886 = vset.pattern.permute.xlu0 0
      %3887 = vperm.xlu0 %3886, %v3787
      %v3888 = vpop.permute.xlu0 %3887
      %3889 = vset.pattern.permute.xlu0 0
      %3890 = vperm.xlu0 %3889, %v3788
      %v3891 = vpop.permute.xlu0 %3890
      %3892 = vset.pattern.permute.xlu0 0
      %3893 = vperm.xlu0 %3892, %v3789
      %v3894 = vpop.permute.xlu0 %3893
      %3895 = vset.pattern.permute.xlu0 0
      %3896 = vperm.xlu0 %3895, %v3790
      %v3897 = vpop.permute.xlu0 %3896
      %3898 = vset.pattern.permute.xlu0 0
      %3899 = vperm.xlu0 %3898, %v3791
      %v3900 = vpop.permute.xlu0 %3899
      %3901 = vset.pattern.permute.xlu0 0
      %3902 = vperm.xlu0 %3901, %v3792
      %v3903 = vpop.permute.xlu0 %3902
      %3904 = vset.pattern.permute.xlu0 0
      %3905 = vperm.xlu0 %3904, %v3793
      %v3906 = vpop.permute.xlu0 %3905
      %3907 = vset.pattern.permute.xlu0 0
      %3908 = vperm.xlu0 %3907, %v3794
      %v3909 = vpop.permute.xlu0 %3908
      %3910 = vset.pattern.permute.xlu0 0
      %3911 = vperm.xlu0 %3910, %v3795
      %v3912 = vpop.permute.xlu0 %3911
      %3913 = vset.pattern.permute.xlu0 0
      %3914 = vperm.xlu0 %3913, %v3796
      %v3915 = vpop.permute.xlu0 %3914
      %3916 = vset.pattern.permute.xlu0 0
      %3917 = vperm.xlu0 %3916, %v3797
      %v3918 = vpop.permute.xlu0 %3917
      %3919 = vset.pattern.permute.xlu0 0
      %3920 = vperm.xlu0 %3919, %v3798
      %v3921 = vpop.permute.xlu0 %3920
      %vm3922 = vcmp.eq.s32.totalorder %v3801, 1
      %vm3923 = vcmp.eq.s32.totalorder %v3804, 1
      %vm3924 = vcmp.eq.s32.totalorder %v3807, 1
      %vm3925 = vcmp.eq.s32.totalorder %v3810, 1
      %vm3926 = vcmp.eq.s32.totalorder %v3813, 1
      %vm3927 = vcmp.eq.s32.totalorder %v3816, 1
      %vm3928 = vcmp.eq.s32.totalorder %v3819, 1
      %vm3929 = vcmp.eq.s32.totalorder %v3822, 1
      %vm3930 = vcmp.eq.s32.totalorder %v3825, 1
      %vm3931 = vcmp.eq.s32.totalorder %v3828, 1
      %vm3932 = vcmp.eq.s32.totalorder %v3831, 1
      %vm3933 = vcmp.eq.s32.totalorder %v3834, 1
      %vm3934 = vcmp.eq.s32.totalorder %v3837, 1
      %vm3935 = vcmp.eq.s32.totalorder %v3840, 1
      %vm3936 = vcmp.eq.s32.totalorder %v3843, 1
      %vm3937 = vcmp.eq.s32.totalorder %v3846, 1
      %vm3938 = vcmp.eq.s32.totalorder %v3849, 1
      %vm3939 = vcmp.eq.s32.totalorder %v3852, 1
      %vm3940 = vcmp.eq.s32.totalorder %v3855, 1
      %vm3941 = vcmp.eq.s32.totalorder %v3858, 1
      %vm3942 = vcmp.eq.s32.totalorder %v3861, 1
      %vm3943 = vcmp.eq.s32.totalorder %v3864, 1
      %vm3944 = vcmp.eq.s32.totalorder %v3867, 1
      %vm3945 = vcmp.eq.s32.totalorder %v3870, 1
      %vm3946 = vcmp.eq.s32.totalorder %v3873, 1
      %vm3947 = vcmp.eq.s32.totalorder %v3876, 1
      %vm3948 = vcmp.eq.s32.totalorder %v3879, 1
      %vm3949 = vcmp.eq.s32.totalorder %v3882, 1
      %vm3950 = vcmp.eq.s32.totalorder %v3885, 1
      %vm3951 = vcmp.eq.s32.totalorder %v3888, 1
      %vm3952 = vcmp.eq.s32.totalorder %v3891, 1
      %vm3953 = vcmp.eq.s32.totalorder %v3894, 1
      %vm3954 = vcmp.eq.s32.totalorder %v3897, 1
      %vm3955 = vcmp.eq.s32.totalorder %v3900, 1
      %vm3956 = vcmp.eq.s32.totalorder %v3903, 1
      %vm3957 = vcmp.eq.s32.totalorder %v3906, 1
      %vm3958 = vcmp.eq.s32.totalorder %v3909, 1
      %vm3959 = vcmp.eq.s32.totalorder %v3912, 1
      %vm3960 = vcmp.eq.s32.totalorder %v3915, 1
      %vm3961 = vcmp.eq.s32.totalorder %v3918, 1
      %vm3962 = vcmp.eq.s32.totalorder %v3921, 1
      %v3963 = vsel %vm3922, %v3430, %v3717
      %v3964 = vsel %vm3923, %v3431, %v3718
      %v3965 = vsel %vm3924, %v3432, %v3719
      %v3966 = vsel %vm3925, %v3433, %v3720
      %v3967 = vsel %vm3926, %v3434, %v3721
      %v3968 = vsel %vm3927, %v3435, %v3722
      %v3969 = vsel %vm3928, %v3436, %v3723
      %v3970 = vsel %vm3929, %v3437, %v3724
      %v3971 = vsel %vm3930, %v3438, %v3725
      %v3972 = vsel %vm3931, %v3439, %v3726
      %v3973 = vsel %vm3932, %v3440, %v3727
      %v3974 = vsel %vm3933, %v3441, %v3728
      %v3975 = vsel %vm3934, %v3442, %v3729
      %v3976 = vsel %vm3935, %v3443, %v3730
      %v3977 = vsel %vm3936, %v3444, %v3731
      %v3978 = vsel %vm3937, %v3445, %v3732
      %v3979 = vsel %vm3938, %v3446, %v3733
      %v3980 = vsel %vm3939, %v3447, %v3734
      %v3981 = vsel %vm3940, %v3448, %v3735
      %v3982 = vsel %vm3941, %v3449, %v3736
      %v3983 = vsel %vm3942, %v3450, %v3737
      %v3984 = vsel %vm3943, %v3451, %v3738
      %v3985 = vsel %vm3944, %v3452, %v3739
      %v3986 = vsel %vm3945, %v3453, %v3740
      %v3987 = vsel %vm3946, %v3454, %v3741
      %v3988 = vsel %vm3947, %v3455, %v3742
      %v3989 = vsel %vm3948, %v3456, %v3743
      %v3990 = vsel %vm3949, %v3457, %v3744
      %v3991 = vsel %vm3950, %v3458, %v3745
      %v3992 = vsel %vm3951, %v3459, %v3746
      %v3993 = vsel %vm3952, %v3460, %v3747
      %v3994 = vsel %vm3953, %v3461, %v3748
      %v3995 = vsel %vm3954, %v3462, %v3749
      %v3996 = vsel %vm3955, %v3463, %v3750
      %v3997 = vsel %vm3956, %v3464, %v3751
      %v3998 = vsel %vm3957, %v3465, %v3752
      %v3999 = vsel %vm3958, %v3466, %v3753
      %v4000 = vsel %vm3959, %v3467, %v3754
      %v4001 = vsel %vm3960, %v3468, %v3755
      %v4002 = vsel %vm3961, %v3469, %v3756
      %v4003 = vsel %vm3962, %v3470, %v3757
      %4004 = vst [vmem:[#allocation2 + $0x24] sm:$0xff] %v3963
      %4005 = vst [vmem:[#allocation2 + $0x2c] sm:$0xff] %v3964
      %4006 = vst [vmem:[#allocation2 + $0x34] sm:$0xff] %v3965
      %4007 = vst [vmem:[#allocation2 + $0x3c] sm:$0xff] %v3966
      %4008 = vst [vmem:[#allocation2 + $0x44] sm:$0xff] %v3967
      %4009 = vst [vmem:[#allocation2 + $0x4c] sm:$0xff] %v3968
      %4010 = vst [vmem:[#allocation2 + $0x54] sm:$0xff] %v3969
      %4011 = vst [vmem:[#allocation2 + $0x5c] sm:$0xff] %v3970
      %4012 = vst [vmem:[#allocation2 + $0x64] sm:$0xff] %v3971
      %4013 = vst [vmem:[#allocation2 + $0x6c] sm:$0xff] %v3972
      %4014 = vst [vmem:[#allocation2 + $0x74] sm:$0xff] %v3973
      %4015 = vst [vmem:[#allocation2 + $0x7c] sm:$0xff] %v3974
      %4016 = vst [vmem:[#allocation2 + $0x84] sm:$0xff] %v3975
      %4017 = vst [vmem:[#allocation2 + $0x8c] sm:$0xff] %v3976
      %4018 = vst [vmem:[#allocation2 + $0x94] sm:$0xff] %v3977
      %4019 = vst [vmem:[#allocation2 + $0x9c] sm:$0xff] %v3978
      %4020 = vst [vmem:[#allocation2 + $0xa4] sm:$0xff] %v3979
      %4021 = vst [vmem:[#allocation2 + $0xac] sm:$0xff] %v3980
      %4022 = vst [vmem:[#allocation2 + $0xb4] sm:$0xff] %v3981
      %4023 = vst [vmem:[#allocation2 + $0xbc] sm:$0xff] %v3982
      %4024 = vst [vmem:[#allocation2 + $0xc4] sm:$0xff] %v3983
      %4025 = vst [vmem:[#allocation2 + $0xcc] sm:$0xff] %v3984
      %4026 = vst [vmem:[#allocation2 + $0xd4] sm:$0xff] %v3985
      %4027 = vst [vmem:[#allocation2 + $0xdc] sm:$0xff] %v3986
      %4028 = vst [vmem:[#allocation2 + $0xe4] sm:$0xff] %v3987
      %4029 = vst [vmem:[#allocation2 + $0xec] sm:$0xff] %v3988
      %4030 = vst [vmem:[#allocation2 + $0xf4] sm:$0xff] %v3989
      %4031 = vst [vmem:[#allocation2 + $0xfc] sm:$0xff] %v3990
      %4032 = vst [vmem:[#allocation2 + $0x104] sm:$0xff] %v3991
      %4033 = vst [vmem:[#allocation2 + $0x10c] sm:$0xff] %v3992
      %4034 = vst [vmem:[#allocation2 + $0x114] sm:$0xff] %v3993
      %4035 = vst [vmem:[#allocation2 + $0x11c] sm:$0xff] %v3994
      %4036 = vst [vmem:[#allocation2 + $0x124] sm:$0xff] %v3995
      %4037 = vst [vmem:[#allocation2 + $0x12c] sm:$0xff] %v3996
      %4038 = vst [vmem:[#allocation2 + $0x134] sm:$0xff] %v3997
      %4039 = vst [vmem:[#allocation2 + $0x13c] sm:$0xff] %v3998
      %4040 = vst [vmem:[#allocation2 + $0x144] sm:$0xff] %v3999
      %4041 = vst [vmem:[#allocation2 + $0x14c] sm:$0xff] %v4000
      %4042 = vst [vmem:[#allocation2 + $0x154] sm:$0xff] %v4001
      %4043 = vst [vmem:[#allocation2 + $0x15c] sm:$0xff] %v4002
      %4044 = vst [vmem:[#allocation2 + $0x164] sm:$0xf] %v4003
      %v4045 = vld [vmem:[#allocation2 + $0x48] sm:$0xff]
      %v4046 = vld [vmem:[#allocation2 + $0x50] sm:$0xff]
      %v4047 = vld [vmem:[#allocation2 + $0x58] sm:$0x3]
      %4048 = vst [vmem:[#allocation2 + $0x24] sm:$0xff] %v4045
      %4049 = vst [vmem:[#allocation2 + $0x2c] sm:$0xff] %v4046
      %4050 = vst [vmem:[#allocation2 + $0x34] sm:$0x3] %v4047
      %v4051 = vld [vmem:[#allocation2 + $0x132] sm:$0xff]
      %v4052 = vld [vmem:[#allocation2 + $0x13a] sm:$0xff]
      %v4053 = vld [vmem:[#allocation2 + $0x142] sm:$0x3]
      %4054 = vst [vmem:[#allocation2 + $0x156] sm:$0xff] %v4051
      %4055 = vst [vmem:[#allocation2 + $0x15e] sm:$0xff] %v4052
      %4056 = vst [vmem:[#allocation2 + $0x166] sm:$0x3] %v4053
      %v4057 = vld [vmem:[#allocation2 + $0x11] sm:$0xff]
      %v4058 = vld [vmem:[#allocation2 + $0x19] sm:$0xff]
      %v4059 = vld [vmem:[#allocation2 + $0x21] sm:$0xff]
      %v4060 = vld [vmem:[#allocation2 + $0x29] sm:$0xff]
      %v4061 = vld [vmem:[#allocation2 + $0x31] sm:$0xff]
      %v4062 = vld [vmem:[#allocation2 + $0x39] sm:$0xff]
      %v4063 = vld [vmem:[#allocation2 + $0x41] sm:$0xff]
      %v4064 = vld [vmem:[#allocation2 + $0x49] sm:$0xff]
      %v4065 = vld [vmem:[#allocation2 + $0x51] sm:$0xff]
      %v4066 = vld [vmem:[#allocation2 + $0x59] sm:$0xff]
      %v4067 = vld [vmem:[#allocation2 + $0x61] sm:$0xff]
      %v4068 = vld [vmem:[#allocation2 + $0x69] sm:$0xff]
      %v4069 = vld [vmem:[#allocation2 + $0x71] sm:$0xff]
      %v4070 = vld [vmem:[#allocation2 + $0x79] sm:$0xff]
      %v4071 = vld [vmem:[#allocation2 + $0x81] sm:$0xff]
      %v4072 = vld [vmem:[#allocation2 + $0x89] sm:$0xff]
      %v4073 = vld [vmem:[#allocation2 + $0x91] sm:$0xff]
      %v4074 = vld [vmem:[#allocation2 + $0x99] sm:$0xff]
      %v4075 = vld [vmem:[#allocation2 + $0xa1] sm:$0xff]
      %v4076 = vld [vmem:[#allocation2 + $0xa9] sm:$0xff]
      %v4077 = vld [vmem:[#allocation2 + $0xb1] sm:$0xff]
      %v4078 = vld [vmem:[#allocation2 + $0xb9] sm:$0xff]
      %v4079 = vld [vmem:[#allocation2 + $0xc1] sm:$0xff]
      %v4080 = vld [vmem:[#allocation2 + $0xc9] sm:$0xff]
      %v4081 = vld [vmem:[#allocation2 + $0xd1] sm:$0xff]
      %v4082 = vld [vmem:[#allocation2 + $0xd9] sm:$0xff]
      %v4083 = vld [vmem:[#allocation2 + $0xe1] sm:$0xff]
      %v4084 = vld [vmem:[#allocation2 + $0xe9] sm:$0xff]
      %v4085 = vld [vmem:[#allocation2 + $0xf1] sm:$0xff]
      %v4086 = vld [vmem:[#allocation2 + $0xf9] sm:$0xff]
      %v4087 = vld [vmem:[#allocation2 + $0x101] sm:$0xff]
      %v4088 = vld [vmem:[#allocation2 + $0x109] sm:$0xff]
      %v4089 = vld [vmem:[#allocation2 + $0x111] sm:$0xff]
      %v4090 = vld [vmem:[#allocation2 + $0x119] sm:$0xff]
      %v4091 = vld [vmem:[#allocation2 + $0x121] sm:$0xff]
      %v4092 = vld [vmem:[#allocation2 + $0x129] sm:$0xff]
      %v4093 = vld [vmem:[#allocation2 + $0x131] sm:$0xff]
      %v4094 = vld [vmem:[#allocation2 + $0x139] sm:$0xff]
      %v4095 = vld [vmem:[#allocation2 + $0x141] sm:$0xff]
      %v4096 = vld [vmem:[#allocation2 + $0x149] sm:$0xff]
      %v4097 = vld [vmem:[#allocation2 + $0x151] sm:$0xf]
      %v4098 = vld [vmem:[%s4] sm:$0xff]
      %v4099 = vld [vmem:[%s4 + $0x8] sm:$0xff]
      %v4100 = vld [vmem:[%s4 + $0x10] sm:$0xff]
      %v4101 = vld [vmem:[%s4 + $0x18] sm:$0xff]
      %v4102 = vld [vmem:[%s4 + $0x20] sm:$0xff]
      %v4103 = vld [vmem:[%s4 + $0x28] sm:$0xff]
      %v4104 = vld [vmem:[%s4 + $0x30] sm:$0xff]
      %v4105 = vld [vmem:[%s4 + $0x38] sm:$0xff]
      %v4106 = vld [vmem:[%s4 + $0x40] sm:$0xff]
      %v4107 = vld [vmem:[%s4 + $0x48] sm:$0xff]
      %v4108 = vld [vmem:[%s4 + $0x50] sm:$0xff]
      %v4109 = vld [vmem:[%s4 + $0x58] sm:$0xff]
      %v4110 = vld [vmem:[%s4 + $0x60] sm:$0xff]
      %v4111 = vld [vmem:[%s4 + $0x68] sm:$0xff]
      %v4112 = vld [vmem:[%s4 + $0x70] sm:$0xff]
      %v4113 = vld [vmem:[%s4 + $0x78] sm:$0xff]
      %v4114 = vld [vmem:[#allocation2 + $0x12] sm:$0xff]
      %v4115 = vld [vmem:[#allocation2 + $0x1a] sm:$0xff]
      %v4116 = vld [vmem:[#allocation2 + $0x22] sm:$0xff]
      %v4117 = vld [vmem:[#allocation2 + $0x2a] sm:$0xff]
      %v4118 = vld [vmem:[#allocation2 + $0x32] sm:$0xff]
      %v4119 = vld [vmem:[#allocation2 + $0x3a] sm:$0xff]
      %v4120 = vld [vmem:[#allocation2 + $0x42] sm:$0xff]
      %v4121 = vld [vmem:[#allocation2 + $0x4a] sm:$0xff]
      %v4122 = vld [vmem:[#allocation2 + $0x52] sm:$0xff]
      %v4123 = vld [vmem:[#allocation2 + $0x5a] sm:$0xff]
      %v4124 = vld [vmem:[#allocation2 + $0x62] sm:$0xff]
      %v4125 = vld [vmem:[#allocation2 + $0x6a] sm:$0xff]
      %v4126 = vld [vmem:[#allocation2 + $0x72] sm:$0xff]
      %v4127 = vld [vmem:[#allocation2 + $0x7a] sm:$0xff]
      %v4128 = vld [vmem:[#allocation2 + $0x82] sm:$0xff]
      %v4129 = vld [vmem:[#allocation2 + $0x8a] sm:$0xff]
      %v4130 = vld [vmem:[#allocation2 + $0x92] sm:$0xff]
      %v4131 = vld [vmem:[#allocation2 + $0x9a] sm:$0xff]
      %v4132 = vld [vmem:[#allocation2 + $0xa2] sm:$0xff]
      %v4133 = vld [vmem:[#allocation2 + $0xaa] sm:$0xff]
      %v4134 = vld [vmem:[#allocation2 + $0xb2] sm:$0xff]
      %v4135 = vld [vmem:[#allocation2 + $0xba] sm:$0xff]
      %v4136 = vld [vmem:[#allocation2 + $0xc2] sm:$0xff]
      %v4137 = vld [vmem:[#allocation2 + $0xca] sm:$0xff]
      %v4138 = vld [vmem:[#allocation2 + $0xd2] sm:$0xff]
      %v4139 = vld [vmem:[#allocation2 + $0xda] sm:$0xff]
      %v4140 = vld [vmem:[#allocation2 + $0xe2] sm:$0xff]
      %v4141 = vld [vmem:[#allocation2 + $0xea] sm:$0xff]
      %v4142 = vld [vmem:[#allocation2 + $0xf2] sm:$0xff]
      %v4143 = vld [vmem:[#allocation2 + $0xfa] sm:$0xff]
      %v4144 = vld [vmem:[#allocation2 + $0x102] sm:$0xff]
      %v4145 = vld [vmem:[#allocation2 + $0x10a] sm:$0xff]
      %v4146 = vld [vmem:[#allocation2 + $0x112] sm:$0xff]
      %v4147 = vld [vmem:[#allocation2 + $0x11a] sm:$0xff]
      %v4148 = vld [vmem:[#allocation2 + $0x122] sm:$0xff]
      %v4149 = vld [vmem:[#allocation2 + $0x12a] sm:$0xff]
      %v4150 = vld [vmem:[#allocation2 + $0x132] sm:$0xff]
      %v4151 = vld [vmem:[#allocation2 + $0x13a] sm:$0xff]
      %v4152 = vld [vmem:[#allocation2 + $0x142] sm:$0xff]
      %v4153 = vld [vmem:[#allocation2 + $0x14a] sm:$0xff]
      %v4154 = vld [vmem:[#allocation2 + $0x152] sm:$0xf]
      %s4155 = scalar_lea.vmem %s4, 128
      %v4156 = vld [vmem:[%s4155] sm:$0xff]
      %v4157 = vld [vmem:[%s4155 + $0x8] sm:$0xff]
      %v4158 = vld [vmem:[%s4155 + $0x10] sm:$0xff]
      %v4159 = vld [vmem:[%s4155 + $0x18] sm:$0xff]
      %v4160 = vld [vmem:[%s4155 + $0x20] sm:$0xff]
      %v4161 = vld [vmem:[%s4155 + $0x28] sm:$0xff]
      %v4162 = vld [vmem:[%s4155 + $0x30] sm:$0xff]
      %v4163 = vld [vmem:[%s4155 + $0x38] sm:$0xff]
      %v4164 = vld [vmem:[%s4155 + $0x40] sm:$0xff]
      %v4165 = vld [vmem:[%s4155 + $0x48] sm:$0xff]
      %v4166 = vld [vmem:[%s4155 + $0x50] sm:$0xff]
      %v4167 = vld [vmem:[%s4155 + $0x58] sm:$0xff]
      %v4168 = vld [vmem:[%s4155 + $0x60] sm:$0xff]
      %v4169 = vld [vmem:[%s4155 + $0x68] sm:$0xff]
      %v4170 = vld [vmem:[%s4155 + $0x70] sm:$0xff]
      %v4171 = vld [vmem:[%s4155 + $0x78] sm:$0xff]
      %4172 = vmatpush.msra.mxu0 %v4171
      %4173 = vmatpush.msra.mxu0 %v4170
      %4174 = vmatpush.msra.mxu0 %v4169
      %4175 = vmatpush.msra.mxu0 %v4168
      %4176 = vmatpush.msra.mxu0 %v4167
      %4177 = vmatpush.msra.mxu0 %v4166
      %4178 = vmatpush.msra.mxu0 %v4165
      %4179 = vmatpush.msra.mxu0 %v4164
      %4180 = vmatpush.msra.mxu0 %v4163
      %4181 = vmatpush.msra.mxu0 %v4162
      %4182 = vmatpush.msra.mxu0 %v4161
      %4183 = vmatpush.msra.mxu0 %v4160
      %4184 = vmatpush.msra.mxu0 %v4159
      %4185 = vmatpush.msra.mxu0 %v4158
      %4186 = vmatpush.msra.mxu0 %v4157
      %4187 = vmatpush.msra.mxu0 %v4156
      %4188 = vmatmul.f32.gmra.mxu0 %v4114
      %v4189 = vpop.f32.mrf.mxu0
      %v4190 = vadd.f32 0.0, %v4189
      %4191 = vmatmul.f32.gmra.mxu0 %v4115
      %v4192 = vpop.f32.mrf.mxu0
      %v4193 = vadd.f32 0.0, %v4192
      %4194 = vmatmul.f32.gmra.mxu0 %v4116
      %v4195 = vpop.f32.mrf.mxu0
      %v4196 = vadd.f32 0.0, %v4195
      %4197 = vmatmul.f32.gmra.mxu0 %v4117
      %v4198 = vpop.f32.mrf.mxu0
      %v4199 = vadd.f32 0.0, %v4198
      %4200 = vmatmul.f32.gmra.mxu0 %v4118
      %v4201 = vpop.f32.mrf.mxu0
      %v4202 = vadd.f32 0.0, %v4201
      %4203 = vmatmul.f32.gmra.mxu0 %v4119
      %v4204 = vpop.f32.mrf.mxu0
      %v4205 = vadd.f32 0.0, %v4204
      %4206 = vmatmul.f32.gmra.mxu0 %v4120
      %v4207 = vpop.f32.mrf.mxu0
      %v4208 = vadd.f32 0.0, %v4207
      %4209 = vmatmul.f32.gmra.mxu0 %v4121
      %v4210 = vpop.f32.mrf.mxu0
      %v4211 = vadd.f32 0.0, %v4210
      %4212 = vmatmul.f32.gmra.mxu0 %v4122
      %v4213 = vpop.f32.mrf.mxu0
      %v4214 = vadd.f32 0.0, %v4213
      %4215 = vmatmul.f32.gmra.mxu0 %v4123
      %v4216 = vpop.f32.mrf.mxu0
      %v4217 = vadd.f32 0.0, %v4216
      %4218 = vmatmul.f32.gmra.mxu0 %v4124
      %v4219 = vpop.f32.mrf.mxu0
      %v4220 = vadd.f32 0.0, %v4219
      %4221 = vmatmul.f32.gmra.mxu0 %v4125
      %v4222 = vpop.f32.mrf.mxu0
      %v4223 = vadd.f32 0.0, %v4222
      %4224 = vmatmul.f32.gmra.mxu0 %v4126
      %v4225 = vpop.f32.mrf.mxu0
      %v4226 = vadd.f32 0.0, %v4225
      %4227 = vmatmul.f32.gmra.mxu0 %v4127
      %v4228 = vpop.f32.mrf.mxu0
      %v4229 = vadd.f32 0.0, %v4228
      %4230 = vmatmul.f32.gmra.mxu0 %v4128
      %v4231 = vpop.f32.mrf.mxu0
      %v4232 = vadd.f32 0.0, %v4231
      %4233 = vmatmul.f32.gmra.mxu0 %v4129
      %v4234 = vpop.f32.mrf.mxu0
      %v4235 = vadd.f32 0.0, %v4234
      %4236 = vmatmul.f32.gmra.mxu0 %v4130
      %v4237 = vpop.f32.mrf.mxu0
      %v4238 = vadd.f32 0.0, %v4237
      %4239 = vmatmul.f32.gmra.mxu0 %v4131
      %v4240 = vpop.f32.mrf.mxu0
      %v4241 = vadd.f32 0.0, %v4240
      %4242 = vmatmul.f32.gmra.mxu0 %v4132
      %v4243 = vpop.f32.mrf.mxu0
      %v4244 = vadd.f32 0.0, %v4243
      %4245 = vmatmul.f32.gmra.mxu0 %v4133
      %v4246 = vpop.f32.mrf.mxu0
      %v4247 = vadd.f32 0.0, %v4246
      %4248 = vmatmul.f32.gmra.mxu0 %v4134
      %v4249 = vpop.f32.mrf.mxu0
      %v4250 = vadd.f32 0.0, %v4249
      %4251 = vmatmul.f32.gmra.mxu0 %v4135
      %v4252 = vpop.f32.mrf.mxu0
      %v4253 = vadd.f32 0.0, %v4252
      %4254 = vmatmul.f32.gmra.mxu0 %v4136
      %v4255 = vpop.f32.mrf.mxu0
      %v4256 = vadd.f32 0.0, %v4255
      %4257 = vmatmul.f32.gmra.mxu0 %v4137
      %v4258 = vpop.f32.mrf.mxu0
      %v4259 = vadd.f32 0.0, %v4258
      %4260 = vmatmul.f32.gmra.mxu0 %v4138
      %v4261 = vpop.f32.mrf.mxu0
      %v4262 = vadd.f32 0.0, %v4261
      %4263 = vmatmul.f32.gmra.mxu0 %v4139
      %v4264 = vpop.f32.mrf.mxu0
      %v4265 = vadd.f32 0.0, %v4264
      %4266 = vmatmul.f32.gmra.mxu0 %v4140
      %v4267 = vpop.f32.mrf.mxu0
      %v4268 = vadd.f32 0.0, %v4267
      %4269 = vmatmul.f32.gmra.mxu0 %v4141
      %v4270 = vpop.f32.mrf.mxu0
      %v4271 = vadd.f32 0.0, %v4270
      %4272 = vmatmul.f32.gmra.mxu0 %v4142
      %v4273 = vpop.f32.mrf.mxu0
      %v4274 = vadd.f32 0.0, %v4273
      %4275 = vmatmul.f32.gmra.mxu0 %v4143
      %v4276 = vpop.f32.mrf.mxu0
      %v4277 = vadd.f32 0.0, %v4276
      %4278 = vmatmul.f32.gmra.mxu0 %v4144
      %v4279 = vpop.f32.mrf.mxu0
      %v4280 = vadd.f32 0.0, %v4279
      %4281 = vmatmul.f32.gmra.mxu0 %v4145
      %v4282 = vpop.f32.mrf.mxu0
      %v4283 = vadd.f32 0.0, %v4282
      %4284 = vmatmul.f32.gmra.mxu0 %v4146
      %v4285 = vpop.f32.mrf.mxu0
      %v4286 = vadd.f32 0.0, %v4285
      %4287 = vmatmul.f32.gmra.mxu0 %v4147
      %v4288 = vpop.f32.mrf.mxu0
      %v4289 = vadd.f32 0.0, %v4288
      %4290 = vmatmul.f32.gmra.mxu0 %v4148
      %v4291 = vpop.f32.mrf.mxu0
      %v4292 = vadd.f32 0.0, %v4291
      %4293 = vmatmul.f32.gmra.mxu0 %v4149
      %v4294 = vpop.f32.mrf.mxu0
      %v4295 = vadd.f32 0.0, %v4294
      %4296 = vmatmul.f32.gmra.mxu0 %v4150
      %v4297 = vpop.f32.mrf.mxu0
      %v4298 = vadd.f32 0.0, %v4297
      %4299 = vmatmul.f32.gmra.mxu0 %v4151
      %v4300 = vpop.f32.mrf.mxu0
      %v4301 = vadd.f32 0.0, %v4300
      %4302 = vmatmul.f32.gmra.mxu0 %v4152
      %v4303 = vpop.f32.mrf.mxu0
      %v4304 = vadd.f32 0.0, %v4303
      %4305 = vmatmul.f32.gmra.mxu0 %v4153
      %v4306 = vpop.f32.mrf.mxu0
      %v4307 = vadd.f32 0.0, %v4306
      %4308 = vmatmul.f32.gmra.mxu0 %v4154
      %v4309 = vpop.f32.mrf.mxu0
      %v4310 = vadd.f32 0.0, %v4309
      %4311 = vdwg.mxu0
      %4312 = vmatpush.msra.mxu0 %v4113
      %4313 = vmatpush.msra.mxu0 %v4112
      %4314 = vmatpush.msra.mxu0 %v4111
      %4315 = vmatpush.msra.mxu0 %v4110
      %4316 = vmatpush.msra.mxu0 %v4109
      %4317 = vmatpush.msra.mxu0 %v4108
      %4318 = vmatpush.msra.mxu0 %v4107
      %4319 = vmatpush.msra.mxu0 %v4106
      %4320 = vmatpush.msra.mxu0 %v4105
      %4321 = vmatpush.msra.mxu0 %v4104
      %4322 = vmatpush.msra.mxu0 %v4103
      %4323 = vmatpush.msra.mxu0 %v4102
      %4324 = vmatpush.msra.mxu0 %v4101
      %4325 = vmatpush.msra.mxu0 %v4100
      %4326 = vmatpush.msra.mxu0 %v4099
      %4327 = vmatpush.msra.mxu0 %v4098
      %4328 = vmatmul.f32.gmra.mxu0 %v4057
      %v4329 = vpop.f32.mrf.mxu0
      %v4330 = vadd.f32 %v4190, %v4329
      %4331 = vmatmul.f32.gmra.mxu0 %v4058
      %v4332 = vpop.f32.mrf.mxu0
      %v4333 = vadd.f32 %v4193, %v4332
      %4334 = vmatmul.f32.gmra.mxu0 %v4059
      %v4335 = vpop.f32.mrf.mxu0
      %v4336 = vadd.f32 %v4196, %v4335
      %4337 = vmatmul.f32.gmra.mxu0 %v4060
      %v4338 = vpop.f32.mrf.mxu0
      %v4339 = vadd.f32 %v4199, %v4338
      %4340 = vmatmul.f32.gmra.mxu0 %v4061
      %v4341 = vpop.f32.mrf.mxu0
      %v4342 = vadd.f32 %v4202, %v4341
      %4343 = vmatmul.f32.gmra.mxu0 %v4062
      %v4344 = vpop.f32.mrf.mxu0
      %v4345 = vadd.f32 %v4205, %v4344
      %4346 = vmatmul.f32.gmra.mxu0 %v4063
      %v4347 = vpop.f32.mrf.mxu0
      %v4348 = vadd.f32 %v4208, %v4347
      %4349 = vmatmul.f32.gmra.mxu0 %v4064
      %v4350 = vpop.f32.mrf.mxu0
      %v4351 = vadd.f32 %v4211, %v4350
      %4352 = vmatmul.f32.gmra.mxu0 %v4065
      %v4353 = vpop.f32.mrf.mxu0
      %v4354 = vadd.f32 %v4214, %v4353
      %4355 = vmatmul.f32.gmra.mxu0 %v4066
      %v4356 = vpop.f32.mrf.mxu0
      %v4357 = vadd.f32 %v4217, %v4356
      %4358 = vmatmul.f32.gmra.mxu0 %v4067
      %v4359 = vpop.f32.mrf.mxu0
      %v4360 = vadd.f32 %v4220, %v4359
      %4361 = vmatmul.f32.gmra.mxu0 %v4068
      %v4362 = vpop.f32.mrf.mxu0
      %v4363 = vadd.f32 %v4223, %v4362
      %4364 = vmatmul.f32.gmra.mxu0 %v4069
      %v4365 = vpop.f32.mrf.mxu0
      %v4366 = vadd.f32 %v4226, %v4365
      %4367 = vmatmul.f32.gmra.mxu0 %v4070
      %v4368 = vpop.f32.mrf.mxu0
      %v4369 = vadd.f32 %v4229, %v4368
      %4370 = vmatmul.f32.gmra.mxu0 %v4071
      %v4371 = vpop.f32.mrf.mxu0
      %v4372 = vadd.f32 %v4232, %v4371
      %4373 = vmatmul.f32.gmra.mxu0 %v4072
      %v4374 = vpop.f32.mrf.mxu0
      %v4375 = vadd.f32 %v4235, %v4374
      %4376 = vmatmul.f32.gmra.mxu0 %v4073
      %v4377 = vpop.f32.mrf.mxu0
      %v4378 = vadd.f32 %v4238, %v4377
      %4379 = vmatmul.f32.gmra.mxu0 %v4074
      %v4380 = vpop.f32.mrf.mxu0
      %v4381 = vadd.f32 %v4241, %v4380
      %4382 = vmatmul.f32.gmra.mxu0 %v4075
      %v4383 = vpop.f32.mrf.mxu0
      %v4384 = vadd.f32 %v4244, %v4383
      %4385 = vmatmul.f32.gmra.mxu0 %v4076
      %v4386 = vpop.f32.mrf.mxu0
      %v4387 = vadd.f32 %v4247, %v4386
      %4388 = vmatmul.f32.gmra.mxu0 %v4077
      %v4389 = vpop.f32.mrf.mxu0
      %v4390 = vadd.f32 %v4250, %v4389
      %4391 = vmatmul.f32.gmra.mxu0 %v4078
      %v4392 = vpop.f32.mrf.mxu0
      %v4393 = vadd.f32 %v4253, %v4392
      %4394 = vmatmul.f32.gmra.mxu0 %v4079
      %v4395 = vpop.f32.mrf.mxu0
      %v4396 = vadd.f32 %v4256, %v4395
      %4397 = vmatmul.f32.gmra.mxu0 %v4080
      %v4398 = vpop.f32.mrf.mxu0
      %v4399 = vadd.f32 %v4259, %v4398
      %4400 = vmatmul.f32.gmra.mxu0 %v4081
      %v4401 = vpop.f32.mrf.mxu0
      %v4402 = vadd.f32 %v4262, %v4401
      %4403 = vmatmul.f32.gmra.mxu0 %v4082
      %v4404 = vpop.f32.mrf.mxu0
      %v4405 = vadd.f32 %v4265, %v4404
      %4406 = vmatmul.f32.gmra.mxu0 %v4083
      %v4407 = vpop.f32.mrf.mxu0
      %v4408 = vadd.f32 %v4268, %v4407
      %4409 = vmatmul.f32.gmra.mxu0 %v4084
      %v4410 = vpop.f32.mrf.mxu0
      %v4411 = vadd.f32 %v4271, %v4410
      %4412 = vmatmul.f32.gmra.mxu0 %v4085
      %v4413 = vpop.f32.mrf.mxu0
      %v4414 = vadd.f32 %v4274, %v4413
      %4415 = vmatmul.f32.gmra.mxu0 %v4086
      %v4416 = vpop.f32.mrf.mxu0
      %v4417 = vadd.f32 %v4277, %v4416
      %4418 = vmatmul.f32.gmra.mxu0 %v4087
      %v4419 = vpop.f32.mrf.mxu0
      %v4420 = vadd.f32 %v4280, %v4419
      %4421 = vmatmul.f32.gmra.mxu0 %v4088
      %v4422 = vpop.f32.mrf.mxu0
      %v4423 = vadd.f32 %v4283, %v4422
      %4424 = vmatmul.f32.gmra.mxu0 %v4089
      %v4425 = vpop.f32.mrf.mxu0
      %v4426 = vadd.f32 %v4286, %v4425
      %4427 = vmatmul.f32.gmra.mxu0 %v4090
      %v4428 = vpop.f32.mrf.mxu0
      %v4429 = vadd.f32 %v4289, %v4428
      %4430 = vmatmul.f32.gmra.mxu0 %v4091
      %v4431 = vpop.f32.mrf.mxu0
      %v4432 = vadd.f32 %v4292, %v4431
      %4433 = vmatmul.f32.gmra.mxu0 %v4092
      %v4434 = vpop.f32.mrf.mxu0
      %v4435 = vadd.f32 %v4295, %v4434
      %4436 = vmatmul.f32.gmra.mxu0 %v4093
      %v4437 = vpop.f32.mrf.mxu0
      %v4438 = vadd.f32 %v4298, %v4437
      %4439 = vmatmul.f32.gmra.mxu0 %v4094
      %v4440 = vpop.f32.mrf.mxu0
      %v4441 = vadd.f32 %v4301, %v4440
      %4442 = vmatmul.f32.gmra.mxu0 %v4095
      %v4443 = vpop.f32.mrf.mxu0
      %v4444 = vadd.f32 %v4304, %v4443
      %4445 = vmatmul.f32.gmra.mxu0 %v4096
      %v4446 = vpop.f32.mrf.mxu0
      %v4447 = vadd.f32 %v4307, %v4446
      %4448 = vmatmul.f32.gmra.mxu0 %v4097
      %v4449 = vpop.f32.mrf.mxu0
      %v4450 = vadd.f32 %v4310, %v4449
      %4451 = vdwg.mxu0
      %v4452 = vld [vmem:[#allocation2 + $0x13] sm:$0xff]
      %v4453 = vld [vmem:[#allocation2 + $0x1b] sm:$0xff]
      %v4454 = vld [vmem:[#allocation2 + $0x23] sm:$0xff]
      %v4455 = vld [vmem:[#allocation2 + $0x2b] sm:$0xff]
      %v4456 = vld [vmem:[#allocation2 + $0x33] sm:$0xff]
      %v4457 = vld [vmem:[#allocation2 + $0x3b] sm:$0xff]
      %v4458 = vld [vmem:[#allocation2 + $0x43] sm:$0xff]
      %v4459 = vld [vmem:[#allocation2 + $0x4b] sm:$0xff]
      %v4460 = vld [vmem:[#allocation2 + $0x53] sm:$0xff]
      %v4461 = vld [vmem:[#allocation2 + $0x5b] sm:$0xff]
      %v4462 = vld [vmem:[#allocation2 + $0x63] sm:$0xff]
      %v4463 = vld [vmem:[#allocation2 + $0x6b] sm:$0xff]
      %v4464 = vld [vmem:[#allocation2 + $0x73] sm:$0xff]
      %v4465 = vld [vmem:[#allocation2 + $0x7b] sm:$0xff]
      %v4466 = vld [vmem:[#allocation2 + $0x83] sm:$0xff]
      %v4467 = vld [vmem:[#allocation2 + $0x8b] sm:$0xff]
      %v4468 = vld [vmem:[#allocation2 + $0x93] sm:$0xff]
      %v4469 = vld [vmem:[#allocation2 + $0x9b] sm:$0xff]
      %v4470 = vld [vmem:[#allocation2 + $0xa3] sm:$0xff]
      %v4471 = vld [vmem:[#allocation2 + $0xab] sm:$0xff]
      %v4472 = vld [vmem:[#allocation2 + $0xb3] sm:$0xff]
      %v4473 = vld [vmem:[#allocation2 + $0xbb] sm:$0xff]
      %v4474 = vld [vmem:[#allocation2 + $0xc3] sm:$0xff]
      %v4475 = vld [vmem:[#allocation2 + $0xcb] sm:$0xff]
      %v4476 = vld [vmem:[#allocation2 + $0xd3] sm:$0xff]
      %v4477 = vld [vmem:[#allocation2 + $0xdb] sm:$0xff]
      %v4478 = vld [vmem:[#allocation2 + $0xe3] sm:$0xff]
      %v4479 = vld [vmem:[#allocation2 + $0xeb] sm:$0xff]
      %v4480 = vld [vmem:[#allocation2 + $0xf3] sm:$0xff]
      %v4481 = vld [vmem:[#allocation2 + $0xfb] sm:$0xff]
      %v4482 = vld [vmem:[#allocation2 + $0x103] sm:$0xff]
      %v4483 = vld [vmem:[#allocation2 + $0x10b] sm:$0xff]
      %v4484 = vld [vmem:[#allocation2 + $0x113] sm:$0xff]
      %v4485 = vld [vmem:[#allocation2 + $0x11b] sm:$0xff]
      %v4486 = vld [vmem:[#allocation2 + $0x123] sm:$0xff]
      %v4487 = vld [vmem:[#allocation2 + $0x12b] sm:$0xff]
      %v4488 = vld [vmem:[#allocation2 + $0x133] sm:$0xff]
      %v4489 = vld [vmem:[#allocation2 + $0x13b] sm:$0xff]
      %v4490 = vld [vmem:[#allocation2 + $0x143] sm:$0xff]
      %v4491 = vld [vmem:[#allocation2 + $0x14b] sm:$0xff]
      %v4492 = vld [vmem:[#allocation2 + $0x153] sm:$0xf]
      %s4493 = scalar_lea.vmem %s4, 256
      %v4494 = vld [vmem:[%s4493] sm:$0xff]
      %v4495 = vld [vmem:[%s4493 + $0x8] sm:$0xff]
      %v4496 = vld [vmem:[%s4493 + $0x10] sm:$0xff]
      %v4497 = vld [vmem:[%s4493 + $0x18] sm:$0xff]
      %v4498 = vld [vmem:[%s4493 + $0x20] sm:$0xff]
      %v4499 = vld [vmem:[%s4493 + $0x28] sm:$0xff]
      %v4500 = vld [vmem:[%s4493 + $0x30] sm:$0xff]
      %v4501 = vld [vmem:[%s4493 + $0x38] sm:$0xff]
      %v4502 = vld [vmem:[%s4493 + $0x40] sm:$0xff]
      %v4503 = vld [vmem:[%s4493 + $0x48] sm:$0xff]
      %v4504 = vld [vmem:[%s4493 + $0x50] sm:$0xff]
      %v4505 = vld [vmem:[%s4493 + $0x58] sm:$0xff]
      %v4506 = vld [vmem:[%s4493 + $0x60] sm:$0xff]
      %v4507 = vld [vmem:[%s4493 + $0x68] sm:$0xff]
      %v4508 = vld [vmem:[%s4493 + $0x70] sm:$0xff]
      %v4509 = vld [vmem:[%s4493 + $0x78] sm:$0xff]
      %4510 = vmatpush.msra.mxu0 %v4509
      %4511 = vmatpush.msra.mxu0 %v4508
      %4512 = vmatpush.msra.mxu0 %v4507
      %4513 = vmatpush.msra.mxu0 %v4506
      %4514 = vmatpush.msra.mxu0 %v4505
      %4515 = vmatpush.msra.mxu0 %v4504
      %4516 = vmatpush.msra.mxu0 %v4503
      %4517 = vmatpush.msra.mxu0 %v4502
      %4518 = vmatpush.msra.mxu0 %v4501
      %4519 = vmatpush.msra.mxu0 %v4500
      %4520 = vmatpush.msra.mxu0 %v4499
      %4521 = vmatpush.msra.mxu0 %v4498
      %4522 = vmatpush.msra.mxu0 %v4497
      %4523 = vmatpush.msra.mxu0 %v4496
      %4524 = vmatpush.msra.mxu0 %v4495
      %4525 = vmatpush.msra.mxu0 %v4494
      %4526 = vmatmul.f32.gmra.mxu0 %v4452
      %v4527 = vpop.f32.mrf.mxu0
      %v4528 = vadd.f32 0.0, %v4527
      %4529 = vmatmul.f32.gmra.mxu0 %v4453
      %v4530 = vpop.f32.mrf.mxu0
      %v4531 = vadd.f32 0.0, %v4530
      %4532 = vmatmul.f32.gmra.mxu0 %v4454
      %v4533 = vpop.f32.mrf.mxu0
      %v4534 = vadd.f32 0.0, %v4533
      %4535 = vmatmul.f32.gmra.mxu0 %v4455
      %v4536 = vpop.f32.mrf.mxu0
      %v4537 = vadd.f32 0.0, %v4536
      %4538 = vmatmul.f32.gmra.mxu0 %v4456
      %v4539 = vpop.f32.mrf.mxu0
      %v4540 = vadd.f32 0.0, %v4539
      %4541 = vmatmul.f32.gmra.mxu0 %v4457
      %v4542 = vpop.f32.mrf.mxu0
      %v4543 = vadd.f32 0.0, %v4542
      %4544 = vmatmul.f32.gmra.mxu0 %v4458
      %v4545 = vpop.f32.mrf.mxu0
      %v4546 = vadd.f32 0.0, %v4545
      %4547 = vmatmul.f32.gmra.mxu0 %v4459
      %v4548 = vpop.f32.mrf.mxu0
      %v4549 = vadd.f32 0.0, %v4548
      %4550 = vmatmul.f32.gmra.mxu0 %v4460
      %v4551 = vpop.f32.mrf.mxu0
      %v4552 = vadd.f32 0.0, %v4551
      %4553 = vmatmul.f32.gmra.mxu0 %v4461
      %v4554 = vpop.f32.mrf.mxu0
      %v4555 = vadd.f32 0.0, %v4554
      %4556 = vmatmul.f32.gmra.mxu0 %v4462
      %v4557 = vpop.f32.mrf.mxu0
      %v4558 = vadd.f32 0.0, %v4557
      %4559 = vmatmul.f32.gmra.mxu0 %v4463
      %v4560 = vpop.f32.mrf.mxu0
      %v4561 = vadd.f32 0.0, %v4560
      %4562 = vmatmul.f32.gmra.mxu0 %v4464
      %v4563 = vpop.f32.mrf.mxu0
      %v4564 = vadd.f32 0.0, %v4563
      %4565 = vmatmul.f32.gmra.mxu0 %v4465
      %v4566 = vpop.f32.mrf.mxu0
      %v4567 = vadd.f32 0.0, %v4566
      %4568 = vmatmul.f32.gmra.mxu0 %v4466
      %v4569 = vpop.f32.mrf.mxu0
      %v4570 = vadd.f32 0.0, %v4569
      %4571 = vmatmul.f32.gmra.mxu0 %v4467
      %v4572 = vpop.f32.mrf.mxu0
      %v4573 = vadd.f32 0.0, %v4572
      %4574 = vmatmul.f32.gmra.mxu0 %v4468
      %v4575 = vpop.f32.mrf.mxu0
      %v4576 = vadd.f32 0.0, %v4575
      %4577 = vmatmul.f32.gmra.mxu0 %v4469
      %v4578 = vpop.f32.mrf.mxu0
      %v4579 = vadd.f32 0.0, %v4578
      %4580 = vmatmul.f32.gmra.mxu0 %v4470
      %v4581 = vpop.f32.mrf.mxu0
      %v4582 = vadd.f32 0.0, %v4581
      %4583 = vmatmul.f32.gmra.mxu0 %v4471
      %v4584 = vpop.f32.mrf.mxu0
      %v4585 = vadd.f32 0.0, %v4584
      %4586 = vmatmul.f32.gmra.mxu0 %v4472
      %v4587 = vpop.f32.mrf.mxu0
      %v4588 = vadd.f32 0.0, %v4587
      %4589 = vmatmul.f32.gmra.mxu0 %v4473
      %v4590 = vpop.f32.mrf.mxu0
      %v4591 = vadd.f32 0.0, %v4590
      %4592 = vmatmul.f32.gmra.mxu0 %v4474
      %v4593 = vpop.f32.mrf.mxu0
      %v4594 = vadd.f32 0.0, %v4593
      %4595 = vmatmul.f32.gmra.mxu0 %v4475
      %v4596 = vpop.f32.mrf.mxu0
      %v4597 = vadd.f32 0.0, %v4596
      %4598 = vmatmul.f32.gmra.mxu0 %v4476
      %v4599 = vpop.f32.mrf.mxu0
      %v4600 = vadd.f32 0.0, %v4599
      %4601 = vmatmul.f32.gmra.mxu0 %v4477
      %v4602 = vpop.f32.mrf.mxu0
      %v4603 = vadd.f32 0.0, %v4602
      %4604 = vmatmul.f32.gmra.mxu0 %v4478
      %v4605 = vpop.f32.mrf.mxu0
      %v4606 = vadd.f32 0.0, %v4605
      %4607 = vmatmul.f32.gmra.mxu0 %v4479
      %v4608 = vpop.f32.mrf.mxu0
      %v4609 = vadd.f32 0.0, %v4608
      %4610 = vmatmul.f32.gmra.mxu0 %v4480
      %v4611 = vpop.f32.mrf.mxu0
      %v4612 = vadd.f32 0.0, %v4611
      %4613 = vmatmul.f32.gmra.mxu0 %v4481
      %v4614 = vpop.f32.mrf.mxu0
      %v4615 = vadd.f32 0.0, %v4614
      %4616 = vmatmul.f32.gmra.mxu0 %v4482
      %v4617 = vpop.f32.mrf.mxu0
      %v4618 = vadd.f32 0.0, %v4617
      %4619 = vmatmul.f32.gmra.mxu0 %v4483
      %v4620 = vpop.f32.mrf.mxu0
      %v4621 = vadd.f32 0.0, %v4620
      %4622 = vmatmul.f32.gmra.mxu0 %v4484
      %v4623 = vpop.f32.mrf.mxu0
      %v4624 = vadd.f32 0.0, %v4623
      %4625 = vmatmul.f32.gmra.mxu0 %v4485
      %v4626 = vpop.f32.mrf.mxu0
      %v4627 = vadd.f32 0.0, %v4626
      %4628 = vmatmul.f32.gmra.mxu0 %v4486
      %v4629 = vpop.f32.mrf.mxu0
      %v4630 = vadd.f32 0.0, %v4629
      %4631 = vmatmul.f32.gmra.mxu0 %v4487
      %v4632 = vpop.f32.mrf.mxu0
      %v4633 = vadd.f32 0.0, %v4632
      %4634 = vmatmul.f32.gmra.mxu0 %v4488
      %v4635 = vpop.f32.mrf.mxu0
      %v4636 = vadd.f32 0.0, %v4635
      %4637 = vmatmul.f32.gmra.mxu0 %v4489
      %v4638 = vpop.f32.mrf.mxu0
      %v4639 = vadd.f32 0.0, %v4638
      %4640 = vmatmul.f32.gmra.mxu0 %v4490
      %v4641 = vpop.f32.mrf.mxu0
      %v4642 = vadd.f32 0.0, %v4641
      %4643 = vmatmul.f32.gmra.mxu0 %v4491
      %v4644 = vpop.f32.mrf.mxu0
      %v4645 = vadd.f32 0.0, %v4644
      %4646 = vmatmul.f32.gmra.mxu0 %v4492
      %v4647 = vpop.f32.mrf.mxu0
      %v4648 = vadd.f32 0.0, %v4647
      %4649 = vdwg.mxu0
      %v4650 = vadd.f32 %v4330, %v4528
      %v4651 = vadd.f32 %v4333, %v4531
      %v4652 = vadd.f32 %v4336, %v4534
      %v4653 = vadd.f32 %v4339, %v4537
      %v4654 = vadd.f32 %v4342, %v4540
      %v4655 = vadd.f32 %v4345, %v4543
      %v4656 = vadd.f32 %v4348, %v4546
      %v4657 = vadd.f32 %v4351, %v4549
      %v4658 = vadd.f32 %v4354, %v4552
      %v4659 = vadd.f32 %v4357, %v4555
      %v4660 = vadd.f32 %v4360, %v4558
      %v4661 = vadd.f32 %v4363, %v4561
      %v4662 = vadd.f32 %v4366, %v4564
      %v4663 = vadd.f32 %v4369, %v4567
      %v4664 = vadd.f32 %v4372, %v4570
      %v4665 = vadd.f32 %v4375, %v4573
      %v4666 = vadd.f32 %v4378, %v4576
      %v4667 = vadd.f32 %v4381, %v4579
      %v4668 = vadd.f32 %v4384, %v4582
      %v4669 = vadd.f32 %v4387, %v4585
      %v4670 = vadd.f32 %v4390, %v4588
      %v4671 = vadd.f32 %v4393, %v4591
      %v4672 = vadd.f32 %v4396, %v4594
      %v4673 = vadd.f32 %v4399, %v4597
      %v4674 = vadd.f32 %v4402, %v4600
      %v4675 = vadd.f32 %v4405, %v4603
      %v4676 = vadd.f32 %v4408, %v4606
      %v4677 = vadd.f32 %v4411, %v4609
      %v4678 = vadd.f32 %v4414, %v4612
      %v4679 = vadd.f32 %v4417, %v4615
      %v4680 = vadd.f32 %v4420, %v4618
      %v4681 = vadd.f32 %v4423, %v4621
      %v4682 = vadd.f32 %v4426, %v4624
      %v4683 = vadd.f32 %v4429, %v4627
      %v4684 = vadd.f32 %v4432, %v4630
      %v4685 = vadd.f32 %v4435, %v4633
      %v4686 = vadd.f32 %v4438, %v4636
      %v4687 = vadd.f32 %v4441, %v4639
      %v4688 = vadd.f32 %v4444, %v4642
      %v4689 = vadd.f32 %v4447, %v4645
      %v4690 = vadd.f32 %v4450, %v4648
      %v4691 = vld [vmem:[#allocation2 + $0x23] sm:$0xff]
      %v4692 = vld [vmem:[#allocation2 + $0x2b] sm:$0xff]
      %v4693 = vld [vmem:[#allocation2 + $0x33] sm:$0xff]
      %v4694 = vld [vmem:[#allocation2 + $0x3b] sm:$0xff]
      %v4695 = vld [vmem:[#allocation2 + $0x43] sm:$0xff]
      %v4696 = vld [vmem:[#allocation2 + $0x4b] sm:$0xff]
      %v4697 = vld [vmem:[#allocation2 + $0x53] sm:$0xff]
      %v4698 = vld [vmem:[#allocation2 + $0x5b] sm:$0xff]
      %v4699 = vld [vmem:[#allocation2 + $0x63] sm:$0xff]
      %v4700 = vld [vmem:[#allocation2 + $0x6b] sm:$0xff]
      %v4701 = vld [vmem:[#allocation2 + $0x73] sm:$0xff]
      %v4702 = vld [vmem:[#allocation2 + $0x7b] sm:$0xff]
      %v4703 = vld [vmem:[#allocation2 + $0x83] sm:$0xff]
      %v4704 = vld [vmem:[#allocation2 + $0x8b] sm:$0xff]
      %v4705 = vld [vmem:[#allocation2 + $0x93] sm:$0xff]
      %v4706 = vld [vmem:[#allocation2 + $0x9b] sm:$0xff]
      %v4707 = vld [vmem:[#allocation2 + $0xa3] sm:$0xff]
      %v4708 = vld [vmem:[#allocation2 + $0xab] sm:$0xff]
      %v4709 = vld [vmem:[#allocation2 + $0xb3] sm:$0xff]
      %v4710 = vld [vmem:[#allocation2 + $0xbb] sm:$0xff]
      %v4711 = vld [vmem:[#allocation2 + $0xc3] sm:$0xff]
      %v4712 = vld [vmem:[#allocation2 + $0xcb] sm:$0xff]
      %v4713 = vld [vmem:[#allocation2 + $0xd3] sm:$0xff]
      %v4714 = vld [vmem:[#allocation2 + $0xdb] sm:$0xff]
      %v4715 = vld [vmem:[#allocation2 + $0xe3] sm:$0xff]
      %v4716 = vld [vmem:[#allocation2 + $0xeb] sm:$0xff]
      %v4717 = vld [vmem:[#allocation2 + $0xf3] sm:$0xff]
      %v4718 = vld [vmem:[#allocation2 + $0xfb] sm:$0xff]
      %v4719 = vld [vmem:[#allocation2 + $0x103] sm:$0xff]
      %v4720 = vld [vmem:[#allocation2 + $0x10b] sm:$0xff]
      %v4721 = vld [vmem:[#allocation2 + $0x113] sm:$0xff]
      %v4722 = vld [vmem:[#allocation2 + $0x11b] sm:$0xff]
      %v4723 = vld [vmem:[#allocation2 + $0x123] sm:$0xff]
      %v4724 = vld [vmem:[#allocation2 + $0x12b] sm:$0xff]
      %v4725 = vld [vmem:[#allocation2 + $0x133] sm:$0xff]
      %v4726 = vld [vmem:[#allocation2 + $0x13b] sm:$0xff]
      %v4727 = vld [vmem:[#allocation2 + $0x143] sm:$0xff]
      %v4728 = vld [vmem:[#allocation2 + $0x14b] sm:$0xff]
      %v4729 = vld [vmem:[#allocation2 + $0x153] sm:$0xff]
      %v4730 = vld [vmem:[#allocation2 + $0x15b] sm:$0xff]
      %v4731 = vld [vmem:[#allocation2 + $0x163] sm:$0xf]
      %s4732 = scalar_lea.vmem %s4, 384
      %v4733 = vld [vmem:[%s4732] sm:$0xff]
      %v4734 = vld [vmem:[%s4732 + $0x8] sm:$0xff]
      %v4735 = vld [vmem:[%s4732 + $0x10] sm:$0xff]
      %v4736 = vld [vmem:[%s4732 + $0x18] sm:$0xff]
      %v4737 = vld [vmem:[%s4732 + $0x20] sm:$0xff]
      %v4738 = vld [vmem:[%s4732 + $0x28] sm:$0xff]
      %v4739 = vld [vmem:[%s4732 + $0x30] sm:$0xff]
      %v4740 = vld [vmem:[%s4732 + $0x38] sm:$0xff]
      %v4741 = vld [vmem:[%s4732 + $0x40] sm:$0xff]
      %v4742 = vld [vmem:[%s4732 + $0x48] sm:$0xff]
      %v4743 = vld [vmem:[%s4732 + $0x50] sm:$0xff]
      %v4744 = vld [vmem:[%s4732 + $0x58] sm:$0xff]
      %v4745 = vld [vmem:[%s4732 + $0x60] sm:$0xff]
      %v4746 = vld [vmem:[%s4732 + $0x68] sm:$0xff]
      %v4747 = vld [vmem:[%s4732 + $0x70] sm:$0xff]
      %v4748 = vld [vmem:[%s4732 + $0x78] sm:$0xff]
      %4749 = vmatpush.msra.mxu0 %v4748
      %4750 = vmatpush.msra.mxu0 %v4747
      %4751 = vmatpush.msra.mxu0 %v4746
      %4752 = vmatpush.msra.mxu0 %v4745
      %4753 = vmatpush.msra.mxu0 %v4744
      %4754 = vmatpush.msra.mxu0 %v4743
      %4755 = vmatpush.msra.mxu0 %v4742
      %4756 = vmatpush.msra.mxu0 %v4741
      %4757 = vmatpush.msra.mxu0 %v4740
      %4758 = vmatpush.msra.mxu0 %v4739
      %4759 = vmatpush.msra.mxu0 %v4738
      %4760 = vmatpush.msra.mxu0 %v4737
      %4761 = vmatpush.msra.mxu0 %v4736
      %4762 = vmatpush.msra.mxu0 %v4735
      %4763 = vmatpush.msra.mxu0 %v4734
      %4764 = vmatpush.msra.mxu0 %v4733
      %4765 = vmatmul.f32.gmra.mxu0 %v4691
      %v4766 = vpop.f32.mrf.mxu0
      %v4767 = vadd.f32 0.0, %v4766
      %4768 = vmatmul.f32.gmra.mxu0 %v4692
      %v4769 = vpop.f32.mrf.mxu0
      %v4770 = vadd.f32 0.0, %v4769
      %4771 = vmatmul.f32.gmra.mxu0 %v4693
      %v4772 = vpop.f32.mrf.mxu0
      %v4773 = vadd.f32 0.0, %v4772
      %4774 = vmatmul.f32.gmra.mxu0 %v4694
      %v4775 = vpop.f32.mrf.mxu0
      %v4776 = vadd.f32 0.0, %v4775
      %4777 = vmatmul.f32.gmra.mxu0 %v4695
      %v4778 = vpop.f32.mrf.mxu0
      %v4779 = vadd.f32 0.0, %v4778
      %4780 = vmatmul.f32.gmra.mxu0 %v4696
      %v4781 = vpop.f32.mrf.mxu0
      %v4782 = vadd.f32 0.0, %v4781
      %4783 = vmatmul.f32.gmra.mxu0 %v4697
      %v4784 = vpop.f32.mrf.mxu0
      %v4785 = vadd.f32 0.0, %v4784
      %4786 = vmatmul.f32.gmra.mxu0 %v4698
      %v4787 = vpop.f32.mrf.mxu0
      %v4788 = vadd.f32 0.0, %v4787
      %4789 = vmatmul.f32.gmra.mxu0 %v4699
      %v4790 = vpop.f32.mrf.mxu0
      %v4791 = vadd.f32 0.0, %v4790
      %4792 = vmatmul.f32.gmra.mxu0 %v4700
      %v4793 = vpop.f32.mrf.mxu0
      %v4794 = vadd.f32 0.0, %v4793
      %4795 = vmatmul.f32.gmra.mxu0 %v4701
      %v4796 = vpop.f32.mrf.mxu0
      %v4797 = vadd.f32 0.0, %v4796
      %4798 = vmatmul.f32.gmra.mxu0 %v4702
      %v4799 = vpop.f32.mrf.mxu0
      %v4800 = vadd.f32 0.0, %v4799
      %4801 = vmatmul.f32.gmra.mxu0 %v4703
      %v4802 = vpop.f32.mrf.mxu0
      %v4803 = vadd.f32 0.0, %v4802
      %4804 = vmatmul.f32.gmra.mxu0 %v4704
      %v4805 = vpop.f32.mrf.mxu0
      %v4806 = vadd.f32 0.0, %v4805
      %4807 = vmatmul.f32.gmra.mxu0 %v4705
      %v4808 = vpop.f32.mrf.mxu0
      %v4809 = vadd.f32 0.0, %v4808
      %4810 = vmatmul.f32.gmra.mxu0 %v4706
      %v4811 = vpop.f32.mrf.mxu0
      %v4812 = vadd.f32 0.0, %v4811
      %4813 = vmatmul.f32.gmra.mxu0 %v4707
      %v4814 = vpop.f32.mrf.mxu0
      %v4815 = vadd.f32 0.0, %v4814
      %4816 = vmatmul.f32.gmra.mxu0 %v4708
      %v4817 = vpop.f32.mrf.mxu0
      %v4818 = vadd.f32 0.0, %v4817
      %4819 = vmatmul.f32.gmra.mxu0 %v4709
      %v4820 = vpop.f32.mrf.mxu0
      %v4821 = vadd.f32 0.0, %v4820
      %4822 = vmatmul.f32.gmra.mxu0 %v4710
      %v4823 = vpop.f32.mrf.mxu0
      %v4824 = vadd.f32 0.0, %v4823
      %4825 = vmatmul.f32.gmra.mxu0 %v4711
      %v4826 = vpop.f32.mrf.mxu0
      %v4827 = vadd.f32 0.0, %v4826
      %4828 = vmatmul.f32.gmra.mxu0 %v4712
      %v4829 = vpop.f32.mrf.mxu0
      %v4830 = vadd.f32 0.0, %v4829
      %4831 = vmatmul.f32.gmra.mxu0 %v4713
      %v4832 = vpop.f32.mrf.mxu0
      %v4833 = vadd.f32 0.0, %v4832
      %4834 = vmatmul.f32.gmra.mxu0 %v4714
      %v4835 = vpop.f32.mrf.mxu0
      %v4836 = vadd.f32 0.0, %v4835
      %4837 = vmatmul.f32.gmra.mxu0 %v4715
      %v4838 = vpop.f32.mrf.mxu0
      %v4839 = vadd.f32 0.0, %v4838
      %4840 = vmatmul.f32.gmra.mxu0 %v4716
      %v4841 = vpop.f32.mrf.mxu0
      %v4842 = vadd.f32 0.0, %v4841
      %4843 = vmatmul.f32.gmra.mxu0 %v4717
      %v4844 = vpop.f32.mrf.mxu0
      %v4845 = vadd.f32 0.0, %v4844
      %4846 = vmatmul.f32.gmra.mxu0 %v4718
      %v4847 = vpop.f32.mrf.mxu0
      %v4848 = vadd.f32 0.0, %v4847
      %4849 = vmatmul.f32.gmra.mxu0 %v4719
      %v4850 = vpop.f32.mrf.mxu0
      %v4851 = vadd.f32 0.0, %v4850
      %4852 = vmatmul.f32.gmra.mxu0 %v4720
      %v4853 = vpop.f32.mrf.mxu0
      %v4854 = vadd.f32 0.0, %v4853
      %4855 = vmatmul.f32.gmra.mxu0 %v4721
      %v4856 = vpop.f32.mrf.mxu0
      %v4857 = vadd.f32 0.0, %v4856
      %4858 = vmatmul.f32.gmra.mxu0 %v4722
      %v4859 = vpop.f32.mrf.mxu0
      %v4860 = vadd.f32 0.0, %v4859
      %4861 = vmatmul.f32.gmra.mxu0 %v4723
      %v4862 = vpop.f32.mrf.mxu0
      %v4863 = vadd.f32 0.0, %v4862
      %4864 = vmatmul.f32.gmra.mxu0 %v4724
      %v4865 = vpop.f32.mrf.mxu0
      %v4866 = vadd.f32 0.0, %v4865
      %4867 = vmatmul.f32.gmra.mxu0 %v4725
      %v4868 = vpop.f32.mrf.mxu0
      %v4869 = vadd.f32 0.0, %v4868
      %4870 = vmatmul.f32.gmra.mxu0 %v4726
      %v4871 = vpop.f32.mrf.mxu0
      %v4872 = vadd.f32 0.0, %v4871
      %4873 = vmatmul.f32.gmra.mxu0 %v4727
      %v4874 = vpop.f32.mrf.mxu0
      %v4875 = vadd.f32 0.0, %v4874
      %4876 = vmatmul.f32.gmra.mxu0 %v4728
      %v4877 = vpop.f32.mrf.mxu0
      %v4878 = vadd.f32 0.0, %v4877
      %4879 = vmatmul.f32.gmra.mxu0 %v4729
      %v4880 = vpop.f32.mrf.mxu0
      %v4881 = vadd.f32 0.0, %v4880
      %4882 = vmatmul.f32.gmra.mxu0 %v4730
      %v4883 = vpop.f32.mrf.mxu0
      %v4884 = vadd.f32 0.0, %v4883
      %4885 = vmatmul.f32.gmra.mxu0 %v4731
      %v4886 = vpop.f32.mrf.mxu0
      %v4887 = vadd.f32 0.0, %v4886
      %4888 = vdwg.mxu0
      %v4889 = vadd.f32 %v4650, %v4767
      %v4890 = vadd.f32 %v4651, %v4770
      %v4891 = vadd.f32 %v4652, %v4773
      %v4892 = vadd.f32 %v4653, %v4776
      %v4893 = vadd.f32 %v4654, %v4779
      %v4894 = vadd.f32 %v4655, %v4782
      %v4895 = vadd.f32 %v4656, %v4785
      %v4896 = vadd.f32 %v4657, %v4788
      %v4897 = vadd.f32 %v4658, %v4791
      %v4898 = vadd.f32 %v4659, %v4794
      %v4899 = vadd.f32 %v4660, %v4797
      %v4900 = vadd.f32 %v4661, %v4800
      %v4901 = vadd.f32 %v4662, %v4803
      %v4902 = vadd.f32 %v4663, %v4806
      %v4903 = vadd.f32 %v4664, %v4809
      %v4904 = vadd.f32 %v4665, %v4812
      %v4905 = vadd.f32 %v4666, %v4815
      %v4906 = vadd.f32 %v4667, %v4818
      %v4907 = vadd.f32 %v4668, %v4821
      %v4908 = vadd.f32 %v4669, %v4824
      %v4909 = vadd.f32 %v4670, %v4827
      %v4910 = vadd.f32 %v4671, %v4830
      %v4911 = vadd.f32 %v4672, %v4833
      %v4912 = vadd.f32 %v4673, %v4836
      %v4913 = vadd.f32 %v4674, %v4839
      %v4914 = vadd.f32 %v4675, %v4842
      %v4915 = vadd.f32 %v4676, %v4845
      %v4916 = vadd.f32 %v4677, %v4848
      %v4917 = vadd.f32 %v4678, %v4851
      %v4918 = vadd.f32 %v4679, %v4854
      %v4919 = vadd.f32 %v4680, %v4857
      %v4920 = vadd.f32 %v4681, %v4860
      %v4921 = vadd.f32 %v4682, %v4863
      %v4922 = vadd.f32 %v4683, %v4866
      %v4923 = vadd.f32 %v4684, %v4869
      %v4924 = vadd.f32 %v4685, %v4872
      %v4925 = vadd.f32 %v4686, %v4875
      %v4926 = vadd.f32 %v4687, %v4878
      %v4927 = vadd.f32 %v4688, %v4881
      %v4928 = vadd.f32 %v4689, %v4884
      %v4929 = vadd.f32 %v4690, %v4887
      %v4930 = vld [vmem:[#allocation2 + $0x24] sm:$0xff]
      %v4931 = vld [vmem:[#allocation2 + $0x2c] sm:$0xff]
      %v4932 = vld [vmem:[#allocation2 + $0x34] sm:$0xff]
      %v4933 = vld [vmem:[#allocation2 + $0x3c] sm:$0xff]
      %v4934 = vld [vmem:[#allocation2 + $0x44] sm:$0xff]
      %v4935 = vld [vmem:[#allocation2 + $0x4c] sm:$0xff]
      %v4936 = vld [vmem:[#allocation2 + $0x54] sm:$0xff]
      %v4937 = vld [vmem:[#allocation2 + $0x5c] sm:$0xff]
      %v4938 = vld [vmem:[#allocation2 + $0x64] sm:$0xff]
      %v4939 = vld [vmem:[#allocation2 + $0x6c] sm:$0xff]
      %v4940 = vld [vmem:[#allocation2 + $0x74] sm:$0xff]
      %v4941 = vld [vmem:[#allocation2 + $0x7c] sm:$0xff]
      %v4942 = vld [vmem:[#allocation2 + $0x84] sm:$0xff]
      %v4943 = vld [vmem:[#allocation2 + $0x8c] sm:$0xff]
      %v4944 = vld [vmem:[#allocation2 + $0x94] sm:$0xff]
      %v4945 = vld [vmem:[#allocation2 + $0x9c] sm:$0xff]
      %v4946 = vld [vmem:[#allocation2 + $0xa4] sm:$0xff]
      %v4947 = vld [vmem:[#allocation2 + $0xac] sm:$0xff]
      %v4948 = vld [vmem:[#allocation2 + $0xb4] sm:$0xff]
      %v4949 = vld [vmem:[#allocation2 + $0xbc] sm:$0xff]
      %v4950 = vld [vmem:[#allocation2 + $0xc4] sm:$0xff]
      %v4951 = vld [vmem:[#allocation2 + $0xcc] sm:$0xff]
      %v4952 = vld [vmem:[#allocation2 + $0xd4] sm:$0xff]
      %v4953 = vld [vmem:[#allocation2 + $0xdc] sm:$0xff]
      %v4954 = vld [vmem:[#allocation2 + $0xe4] sm:$0xff]
      %v4955 = vld [vmem:[#allocation2 + $0xec] sm:$0xff]
      %v4956 = vld [vmem:[#allocation2 + $0xf4] sm:$0xff]
      %v4957 = vld [vmem:[#allocation2 + $0xfc] sm:$0xff]
      %v4958 = vld [vmem:[#allocation2 + $0x104] sm:$0xff]
      %v4959 = vld [vmem:[#allocation2 + $0x10c] sm:$0xff]
      %v4960 = vld [vmem:[#allocation2 + $0x114] sm:$0xff]
      %v4961 = vld [vmem:[#allocation2 + $0x11c] sm:$0xff]
      %v4962 = vld [vmem:[#allocation2 + $0x124] sm:$0xff]
      %v4963 = vld [vmem:[#allocation2 + $0x12c] sm:$0xff]
      %v4964 = vld [vmem:[#allocation2 + $0x134] sm:$0xff]
      %v4965 = vld [vmem:[#allocation2 + $0x13c] sm:$0xff]
      %v4966 = vld [vmem:[#allocation2 + $0x144] sm:$0xff]
      %v4967 = vld [vmem:[#allocation2 + $0x14c] sm:$0xff]
      %v4968 = vld [vmem:[#allocation2 + $0x154] sm:$0xff]
      %v4969 = vld [vmem:[#allocation2 + $0x15c] sm:$0xff]
      %v4970 = vld [vmem:[#allocation2 + $0x164] sm:$0xf]
      %s4971 = scalar_lea.vmem %s4, 512
      %v4972 = vld [vmem:[%s4971] sm:$0xff]
      %v4973 = vld [vmem:[%s4971 + $0x8] sm:$0xff]
      %v4974 = vld [vmem:[%s4971 + $0x10] sm:$0xff]
      %v4975 = vld [vmem:[%s4971 + $0x18] sm:$0xff]
      %v4976 = vld [vmem:[%s4971 + $0x20] sm:$0xff]
      %v4977 = vld [vmem:[%s4971 + $0x28] sm:$0xff]
      %v4978 = vld [vmem:[%s4971 + $0x30] sm:$0xff]
      %v4979 = vld [vmem:[%s4971 + $0x38] sm:$0xff]
      %v4980 = vld [vmem:[%s4971 + $0x40] sm:$0xff]
      %v4981 = vld [vmem:[%s4971 + $0x48] sm:$0xff]
      %v4982 = vld [vmem:[%s4971 + $0x50] sm:$0xff]
      %v4983 = vld [vmem:[%s4971 + $0x58] sm:$0xff]
      %v4984 = vld [vmem:[%s4971 + $0x60] sm:$0xff]
      %v4985 = vld [vmem:[%s4971 + $0x68] sm:$0xff]
      %v4986 = vld [vmem:[%s4971 + $0x70] sm:$0xff]
      %v4987 = vld [vmem:[%s4971 + $0x78] sm:$0xff]
      %4988 = vmatpush.msra.mxu0 %v4987
      %4989 = vmatpush.msra.mxu0 %v4986
      %4990 = vmatpush.msra.mxu0 %v4985
      %4991 = vmatpush.msra.mxu0 %v4984
      %4992 = vmatpush.msra.mxu0 %v4983
      %4993 = vmatpush.msra.mxu0 %v4982
      %4994 = vmatpush.msra.mxu0 %v4981
      %4995 = vmatpush.msra.mxu0 %v4980
      %4996 = vmatpush.msra.mxu0 %v4979
      %4997 = vmatpush.msra.mxu0 %v4978
      %4998 = vmatpush.msra.mxu0 %v4977
      %4999 = vmatpush.msra.mxu0 %v4976
      %5000 = vmatpush.msra.mxu0 %v4975
      %5001 = vmatpush.msra.mxu0 %v4974
      %5002 = vmatpush.msra.mxu0 %v4973
      %5003 = vmatpush.msra.mxu0 %v4972
      %5004 = vmatmul.f32.gmra.mxu0 %v4930
      %v5005 = vpop.f32.mrf.mxu0
      %v5006 = vadd.f32 0.0, %v5005
      %5007 = vmatmul.f32.gmra.mxu0 %v4931
      %v5008 = vpop.f32.mrf.mxu0
      %v5009 = vadd.f32 0.0, %v5008
      %5010 = vmatmul.f32.gmra.mxu0 %v4932
      %v5011 = vpop.f32.mrf.mxu0
      %v5012 = vadd.f32 0.0, %v5011
      %5013 = vmatmul.f32.gmra.mxu0 %v4933
      %v5014 = vpop.f32.mrf.mxu0
      %v5015 = vadd.f32 0.0, %v5014
      %5016 = vmatmul.f32.gmra.mxu0 %v4934
      %v5017 = vpop.f32.mrf.mxu0
      %v5018 = vadd.f32 0.0, %v5017
      %5019 = vmatmul.f32.gmra.mxu0 %v4935
      %v5020 = vpop.f32.mrf.mxu0
      %v5021 = vadd.f32 0.0, %v5020
      %5022 = vmatmul.f32.gmra.mxu0 %v4936
      %v5023 = vpop.f32.mrf.mxu0
      %v5024 = vadd.f32 0.0, %v5023
      %5025 = vmatmul.f32.gmra.mxu0 %v4937
      %v5026 = vpop.f32.mrf.mxu0
      %v5027 = vadd.f32 0.0, %v5026
      %5028 = vmatmul.f32.gmra.mxu0 %v4938
      %v5029 = vpop.f32.mrf.mxu0
      %v5030 = vadd.f32 0.0, %v5029
      %5031 = vmatmul.f32.gmra.mxu0 %v4939
      %v5032 = vpop.f32.mrf.mxu0
      %v5033 = vadd.f32 0.0, %v5032
      %5034 = vmatmul.f32.gmra.mxu0 %v4940
      %v5035 = vpop.f32.mrf.mxu0
      %v5036 = vadd.f32 0.0, %v5035
      %5037 = vmatmul.f32.gmra.mxu0 %v4941
      %v5038 = vpop.f32.mrf.mxu0
      %v5039 = vadd.f32 0.0, %v5038
      %5040 = vmatmul.f32.gmra.mxu0 %v4942
      %v5041 = vpop.f32.mrf.mxu0
      %v5042 = vadd.f32 0.0, %v5041
      %5043 = vmatmul.f32.gmra.mxu0 %v4943
      %v5044 = vpop.f32.mrf.mxu0
      %v5045 = vadd.f32 0.0, %v5044
      %5046 = vmatmul.f32.gmra.mxu0 %v4944
      %v5047 = vpop.f32.mrf.mxu0
      %v5048 = vadd.f32 0.0, %v5047
      %5049 = vmatmul.f32.gmra.mxu0 %v4945
      %v5050 = vpop.f32.mrf.mxu0
      %v5051 = vadd.f32 0.0, %v5050
      %5052 = vmatmul.f32.gmra.mxu0 %v4946
      %v5053 = vpop.f32.mrf.mxu0
      %v5054 = vadd.f32 0.0, %v5053
      %5055 = vmatmul.f32.gmra.mxu0 %v4947
      %v5056 = vpop.f32.mrf.mxu0
      %v5057 = vadd.f32 0.0, %v5056
      %5058 = vmatmul.f32.gmra.mxu0 %v4948
      %v5059 = vpop.f32.mrf.mxu0
      %v5060 = vadd.f32 0.0, %v5059
      %5061 = vmatmul.f32.gmra.mxu0 %v4949
      %v5062 = vpop.f32.mrf.mxu0
      %v5063 = vadd.f32 0.0, %v5062
      %5064 = vmatmul.f32.gmra.mxu0 %v4950
      %v5065 = vpop.f32.mrf.mxu0
      %v5066 = vadd.f32 0.0, %v5065
      %5067 = vmatmul.f32.gmra.mxu0 %v4951
      %v5068 = vpop.f32.mrf.mxu0
      %v5069 = vadd.f32 0.0, %v5068
      %5070 = vmatmul.f32.gmra.mxu0 %v4952
      %v5071 = vpop.f32.mrf.mxu0
      %v5072 = vadd.f32 0.0, %v5071
      %5073 = vmatmul.f32.gmra.mxu0 %v4953
      %v5074 = vpop.f32.mrf.mxu0
      %v5075 = vadd.f32 0.0, %v5074
      %5076 = vmatmul.f32.gmra.mxu0 %v4954
      %v5077 = vpop.f32.mrf.mxu0
      %v5078 = vadd.f32 0.0, %v5077
      %5079 = vmatmul.f32.gmra.mxu0 %v4955
      %v5080 = vpop.f32.mrf.mxu0
      %v5081 = vadd.f32 0.0, %v5080
      %5082 = vmatmul.f32.gmra.mxu0 %v4956
      %v5083 = vpop.f32.mrf.mxu0
      %v5084 = vadd.f32 0.0, %v5083
      %5085 = vmatmul.f32.gmra.mxu0 %v4957
      %v5086 = vpop.f32.mrf.mxu0
      %v5087 = vadd.f32 0.0, %v5086
      %5088 = vmatmul.f32.gmra.mxu0 %v4958
      %v5089 = vpop.f32.mrf.mxu0
      %v5090 = vadd.f32 0.0, %v5089
      %5091 = vmatmul.f32.gmra.mxu0 %v4959
      %v5092 = vpop.f32.mrf.mxu0
      %v5093 = vadd.f32 0.0, %v5092
      %5094 = vmatmul.f32.gmra.mxu0 %v4960
      %v5095 = vpop.f32.mrf.mxu0
      %v5096 = vadd.f32 0.0, %v5095
      %5097 = vmatmul.f32.gmra.mxu0 %v4961
      %v5098 = vpop.f32.mrf.mxu0
      %v5099 = vadd.f32 0.0, %v5098
      %5100 = vmatmul.f32.gmra.mxu0 %v4962
      %v5101 = vpop.f32.mrf.mxu0
      %v5102 = vadd.f32 0.0, %v5101
      %5103 = vmatmul.f32.gmra.mxu0 %v4963
      %v5104 = vpop.f32.mrf.mxu0
      %v5105 = vadd.f32 0.0, %v5104
      %5106 = vmatmul.f32.gmra.mxu0 %v4964
      %v5107 = vpop.f32.mrf.mxu0
      %v5108 = vadd.f32 0.0, %v5107
      %5109 = vmatmul.f32.gmra.mxu0 %v4965
      %v5110 = vpop.f32.mrf.mxu0
      %v5111 = vadd.f32 0.0, %v5110
      %5112 = vmatmul.f32.gmra.mxu0 %v4966
      %v5113 = vpop.f32.mrf.mxu0
      %v5114 = vadd.f32 0.0, %v5113
      %5115 = vmatmul.f32.gmra.mxu0 %v4967
      %v5116 = vpop.f32.mrf.mxu0
      %v5117 = vadd.f32 0.0, %v5116
      %5118 = vmatmul.f32.gmra.mxu0 %v4968
      %v5119 = vpop.f32.mrf.mxu0
      %v5120 = vadd.f32 0.0, %v5119
      %5121 = vmatmul.f32.gmra.mxu0 %v4969
      %v5122 = vpop.f32.mrf.mxu0
      %v5123 = vadd.f32 0.0, %v5122
      %5124 = vmatmul.f32.gmra.mxu0 %v4970
      %v5125 = vpop.f32.mrf.mxu0
      %v5126 = vadd.f32 0.0, %v5125
      %5127 = vdwg.mxu0
      %v5128 = vadd.f32 %v4889, %v5006
      %v5129 = vadd.f32 %v4890, %v5009
      %v5130 = vadd.f32 %v4891, %v5012
      %v5131 = vadd.f32 %v4892, %v5015
      %v5132 = vadd.f32 %v4893, %v5018
      %v5133 = vadd.f32 %v4894, %v5021
      %v5134 = vadd.f32 %v4895, %v5024
      %v5135 = vadd.f32 %v4896, %v5027
      %v5136 = vadd.f32 %v4897, %v5030
      %v5137 = vadd.f32 %v4898, %v5033
      %v5138 = vadd.f32 %v4899, %v5036
      %v5139 = vadd.f32 %v4900, %v5039
      %v5140 = vadd.f32 %v4901, %v5042
      %v5141 = vadd.f32 %v4902, %v5045
      %v5142 = vadd.f32 %v4903, %v5048
      %v5143 = vadd.f32 %v4904, %v5051
      %v5144 = vadd.f32 %v4905, %v5054
      %v5145 = vadd.f32 %v4906, %v5057
      %v5146 = vadd.f32 %v4907, %v5060
      %v5147 = vadd.f32 %v4908, %v5063
      %v5148 = vadd.f32 %v4909, %v5066
      %v5149 = vadd.f32 %v4910, %v5069
      %v5150 = vadd.f32 %v4911, %v5072
      %v5151 = vadd.f32 %v4912, %v5075
      %v5152 = vadd.f32 %v4913, %v5078
      %v5153 = vadd.f32 %v4914, %v5081
      %v5154 = vadd.f32 %v4915, %v5084
      %v5155 = vadd.f32 %v4916, %v5087
      %v5156 = vadd.f32 %v4917, %v5090
      %v5157 = vadd.f32 %v4918, %v5093
      %v5158 = vadd.f32 %v4919, %v5096
      %v5159 = vadd.f32 %v4920, %v5099
      %v5160 = vadd.f32 %v4921, %v5102
      %v5161 = vadd.f32 %v4922, %v5105
      %v5162 = vadd.f32 %v4923, %v5108
      %v5163 = vadd.f32 %v4924, %v5111
      %v5164 = vadd.f32 %v4925, %v5114
      %v5165 = vadd.f32 %v4926, %v5117
      %v5166 = vadd.f32 %v4927, %v5120
      %v5167 = vadd.f32 %v4928, %v5123
      %v5168 = vadd.f32 %v4929, %v5126
      %v5169 = vld [vmem:[#allocation2 + $0x25] sm:$0xff]
      %v5170 = vld [vmem:[#allocation2 + $0x2d] sm:$0xff]
      %v5171 = vld [vmem:[#allocation2 + $0x35] sm:$0xff]
      %v5172 = vld [vmem:[#allocation2 + $0x3d] sm:$0xff]
      %v5173 = vld [vmem:[#allocation2 + $0x45] sm:$0xff]
      %v5174 = vld [vmem:[#allocation2 + $0x4d] sm:$0xff]
      %v5175 = vld [vmem:[#allocation2 + $0x55] sm:$0xff]
      %v5176 = vld [vmem:[#allocation2 + $0x5d] sm:$0xff]
      %v5177 = vld [vmem:[#allocation2 + $0x65] sm:$0xff]
      %v5178 = vld [vmem:[#allocation2 + $0x6d] sm:$0xff]
      %v5179 = vld [vmem:[#allocation2 + $0x75] sm:$0xff]
      %v5180 = vld [vmem:[#allocation2 + $0x7d] sm:$0xff]
      %v5181 = vld [vmem:[#allocation2 + $0x85] sm:$0xff]
      %v5182 = vld [vmem:[#allocation2 + $0x8d] sm:$0xff]
      %v5183 = vld [vmem:[#allocation2 + $0x95] sm:$0xff]
      %v5184 = vld [vmem:[#allocation2 + $0x9d] sm:$0xff]
      %v5185 = vld [vmem:[#allocation2 + $0xa5] sm:$0xff]
      %v5186 = vld [vmem:[#allocation2 + $0xad] sm:$0xff]
      %v5187 = vld [vmem:[#allocation2 + $0xb5] sm:$0xff]
      %v5188 = vld [vmem:[#allocation2 + $0xbd] sm:$0xff]
      %v5189 = vld [vmem:[#allocation2 + $0xc5] sm:$0xff]
      %v5190 = vld [vmem:[#allocation2 + $0xcd] sm:$0xff]
      %v5191 = vld [vmem:[#allocation2 + $0xd5] sm:$0xff]
      %v5192 = vld [vmem:[#allocation2 + $0xdd] sm:$0xff]
      %v5193 = vld [vmem:[#allocation2 + $0xe5] sm:$0xff]
      %v5194 = vld [vmem:[#allocation2 + $0xed] sm:$0xff]
      %v5195 = vld [vmem:[#allocation2 + $0xf5] sm:$0xff]
      %v5196 = vld [vmem:[#allocation2 + $0xfd] sm:$0xff]
      %v5197 = vld [vmem:[#allocation2 + $0x105] sm:$0xff]
      %v5198 = vld [vmem:[#allocation2 + $0x10d] sm:$0xff]
      %v5199 = vld [vmem:[#allocation2 + $0x115] sm:$0xff]
      %v5200 = vld [vmem:[#allocation2 + $0x11d] sm:$0xff]
      %v5201 = vld [vmem:[#allocation2 + $0x125] sm:$0xff]
      %v5202 = vld [vmem:[#allocation2 + $0x12d] sm:$0xff]
      %v5203 = vld [vmem:[#allocation2 + $0x135] sm:$0xff]
      %v5204 = vld [vmem:[#allocation2 + $0x13d] sm:$0xff]
      %v5205 = vld [vmem:[#allocation2 + $0x145] sm:$0xff]
      %v5206 = vld [vmem:[#allocation2 + $0x14d] sm:$0xff]
      %v5207 = vld [vmem:[#allocation2 + $0x155] sm:$0xff]
      %v5208 = vld [vmem:[#allocation2 + $0x15d] sm:$0xff]
      %v5209 = vld [vmem:[#allocation2 + $0x165] sm:$0xf]
      %s5210 = scalar_lea.vmem %s4, 640
      %v5211 = vld [vmem:[%s5210] sm:$0xff]
      %v5212 = vld [vmem:[%s5210 + $0x8] sm:$0xff]
      %v5213 = vld [vmem:[%s5210 + $0x10] sm:$0xff]
      %v5214 = vld [vmem:[%s5210 + $0x18] sm:$0xff]
      %v5215 = vld [vmem:[%s5210 + $0x20] sm:$0xff]
      %v5216 = vld [vmem:[%s5210 + $0x28] sm:$0xff]
      %v5217 = vld [vmem:[%s5210 + $0x30] sm:$0xff]
      %v5218 = vld [vmem:[%s5210 + $0x38] sm:$0xff]
      %v5219 = vld [vmem:[%s5210 + $0x40] sm:$0xff]
      %v5220 = vld [vmem:[%s5210 + $0x48] sm:$0xff]
      %v5221 = vld [vmem:[%s5210 + $0x50] sm:$0xff]
      %v5222 = vld [vmem:[%s5210 + $0x58] sm:$0xff]
      %v5223 = vld [vmem:[%s5210 + $0x60] sm:$0xff]
      %v5224 = vld [vmem:[%s5210 + $0x68] sm:$0xff]
      %v5225 = vld [vmem:[%s5210 + $0x70] sm:$0xff]
      %v5226 = vld [vmem:[%s5210 + $0x78] sm:$0xff]
      %5227 = vmatpush.msra.mxu0 %v5226
      %5228 = vmatpush.msra.mxu0 %v5225
      %5229 = vmatpush.msra.mxu0 %v5224
      %5230 = vmatpush.msra.mxu0 %v5223
      %5231 = vmatpush.msra.mxu0 %v5222
      %5232 = vmatpush.msra.mxu0 %v5221
      %5233 = vmatpush.msra.mxu0 %v5220
      %5234 = vmatpush.msra.mxu0 %v5219
      %5235 = vmatpush.msra.mxu0 %v5218
      %5236 = vmatpush.msra.mxu0 %v5217
      %5237 = vmatpush.msra.mxu0 %v5216
      %5238 = vmatpush.msra.mxu0 %v5215
      %5239 = vmatpush.msra.mxu0 %v5214
      %5240 = vmatpush.msra.mxu0 %v5213
      %5241 = vmatpush.msra.mxu0 %v5212
      %5242 = vmatpush.msra.mxu0 %v5211
      %5243 = vmatmul.f32.gmra.mxu0 %v5169
      %v5244 = vpop.f32.mrf.mxu0
      %v5245 = vadd.f32 0.0, %v5244
      %5246 = vmatmul.f32.gmra.mxu0 %v5170
      %v5247 = vpop.f32.mrf.mxu0
      %v5248 = vadd.f32 0.0, %v5247
      %5249 = vmatmul.f32.gmra.mxu0 %v5171
      %v5250 = vpop.f32.mrf.mxu0
      %v5251 = vadd.f32 0.0, %v5250
      %5252 = vmatmul.f32.gmra.mxu0 %v5172
      %v5253 = vpop.f32.mrf.mxu0
      %v5254 = vadd.f32 0.0, %v5253
      %5255 = vmatmul.f32.gmra.mxu0 %v5173
      %v5256 = vpop.f32.mrf.mxu0
      %v5257 = vadd.f32 0.0, %v5256
      %5258 = vmatmul.f32.gmra.mxu0 %v5174
      %v5259 = vpop.f32.mrf.mxu0
      %v5260 = vadd.f32 0.0, %v5259
      %5261 = vmatmul.f32.gmra.mxu0 %v5175
      %v5262 = vpop.f32.mrf.mxu0
      %v5263 = vadd.f32 0.0, %v5262
      %5264 = vmatmul.f32.gmra.mxu0 %v5176
      %v5265 = vpop.f32.mrf.mxu0
      %v5266 = vadd.f32 0.0, %v5265
      %5267 = vmatmul.f32.gmra.mxu0 %v5177
      %v5268 = vpop.f32.mrf.mxu0
      %v5269 = vadd.f32 0.0, %v5268
      %5270 = vmatmul.f32.gmra.mxu0 %v5178
      %v5271 = vpop.f32.mrf.mxu0
      %v5272 = vadd.f32 0.0, %v5271
      %5273 = vmatmul.f32.gmra.mxu0 %v5179
      %v5274 = vpop.f32.mrf.mxu0
      %v5275 = vadd.f32 0.0, %v5274
      %5276 = vmatmul.f32.gmra.mxu0 %v5180
      %v5277 = vpop.f32.mrf.mxu0
      %v5278 = vadd.f32 0.0, %v5277
      %5279 = vmatmul.f32.gmra.mxu0 %v5181
      %v5280 = vpop.f32.mrf.mxu0
      %v5281 = vadd.f32 0.0, %v5280
      %5282 = vmatmul.f32.gmra.mxu0 %v5182
      %v5283 = vpop.f32.mrf.mxu0
      %v5284 = vadd.f32 0.0, %v5283
      %5285 = vmatmul.f32.gmra.mxu0 %v5183
      %v5286 = vpop.f32.mrf.mxu0
      %v5287 = vadd.f32 0.0, %v5286
      %5288 = vmatmul.f32.gmra.mxu0 %v5184
      %v5289 = vpop.f32.mrf.mxu0
      %v5290 = vadd.f32 0.0, %v5289
      %5291 = vmatmul.f32.gmra.mxu0 %v5185
      %v5292 = vpop.f32.mrf.mxu0
      %v5293 = vadd.f32 0.0, %v5292
      %5294 = vmatmul.f32.gmra.mxu0 %v5186
      %v5295 = vpop.f32.mrf.mxu0
      %v5296 = vadd.f32 0.0, %v5295
      %5297 = vmatmul.f32.gmra.mxu0 %v5187
      %v5298 = vpop.f32.mrf.mxu0
      %v5299 = vadd.f32 0.0, %v5298
      %5300 = vmatmul.f32.gmra.mxu0 %v5188
      %v5301 = vpop.f32.mrf.mxu0
      %v5302 = vadd.f32 0.0, %v5301
      %5303 = vmatmul.f32.gmra.mxu0 %v5189
      %v5304 = vpop.f32.mrf.mxu0
      %v5305 = vadd.f32 0.0, %v5304
      %5306 = vmatmul.f32.gmra.mxu0 %v5190
      %v5307 = vpop.f32.mrf.mxu0
      %v5308 = vadd.f32 0.0, %v5307
      %5309 = vmatmul.f32.gmra.mxu0 %v5191
      %v5310 = vpop.f32.mrf.mxu0
      %v5311 = vadd.f32 0.0, %v5310
      %5312 = vmatmul.f32.gmra.mxu0 %v5192
      %v5313 = vpop.f32.mrf.mxu0
      %v5314 = vadd.f32 0.0, %v5313
      %5315 = vmatmul.f32.gmra.mxu0 %v5193
      %v5316 = vpop.f32.mrf.mxu0
      %v5317 = vadd.f32 0.0, %v5316
      %5318 = vmatmul.f32.gmra.mxu0 %v5194
      %v5319 = vpop.f32.mrf.mxu0
      %v5320 = vadd.f32 0.0, %v5319
      %5321 = vmatmul.f32.gmra.mxu0 %v5195
      %v5322 = vpop.f32.mrf.mxu0
      %v5323 = vadd.f32 0.0, %v5322
      %5324 = vmatmul.f32.gmra.mxu0 %v5196
      %v5325 = vpop.f32.mrf.mxu0
      %v5326 = vadd.f32 0.0, %v5325
      %5327 = vmatmul.f32.gmra.mxu0 %v5197
      %v5328 = vpop.f32.mrf.mxu0
      %v5329 = vadd.f32 0.0, %v5328
      %5330 = vmatmul.f32.gmra.mxu0 %v5198
      %v5331 = vpop.f32.mrf.mxu0
      %v5332 = vadd.f32 0.0, %v5331
      %5333 = vmatmul.f32.gmra.mxu0 %v5199
      %v5334 = vpop.f32.mrf.mxu0
      %v5335 = vadd.f32 0.0, %v5334
      %5336 = vmatmul.f32.gmra.mxu0 %v5200
      %v5337 = vpop.f32.mrf.mxu0
      %v5338 = vadd.f32 0.0, %v5337
      %5339 = vmatmul.f32.gmra.mxu0 %v5201
      %v5340 = vpop.f32.mrf.mxu0
      %v5341 = vadd.f32 0.0, %v5340
      %5342 = vmatmul.f32.gmra.mxu0 %v5202
      %v5343 = vpop.f32.mrf.mxu0
      %v5344 = vadd.f32 0.0, %v5343
      %5345 = vmatmul.f32.gmra.mxu0 %v5203
      %v5346 = vpop.f32.mrf.mxu0
      %v5347 = vadd.f32 0.0, %v5346
      %5348 = vmatmul.f32.gmra.mxu0 %v5204
      %v5349 = vpop.f32.mrf.mxu0
      %v5350 = vadd.f32 0.0, %v5349
      %5351 = vmatmul.f32.gmra.mxu0 %v5205
      %v5352 = vpop.f32.mrf.mxu0
      %v5353 = vadd.f32 0.0, %v5352
      %5354 = vmatmul.f32.gmra.mxu0 %v5206
      %v5355 = vpop.f32.mrf.mxu0
      %v5356 = vadd.f32 0.0, %v5355
      %5357 = vmatmul.f32.gmra.mxu0 %v5207
      %v5358 = vpop.f32.mrf.mxu0
      %v5359 = vadd.f32 0.0, %v5358
      %5360 = vmatmul.f32.gmra.mxu0 %v5208
      %v5361 = vpop.f32.mrf.mxu0
      %v5362 = vadd.f32 0.0, %v5361
      %5363 = vmatmul.f32.gmra.mxu0 %v5209
      %v5364 = vpop.f32.mrf.mxu0
      %v5365 = vadd.f32 0.0, %v5364
      %5366 = vdwg.mxu0
      %v5367 = vadd.f32 %v5128, %v5245
      %v5368 = vadd.f32 %v5129, %v5248
      %v5369 = vadd.f32 %v5130, %v5251
      %v5370 = vadd.f32 %v5131, %v5254
      %v5371 = vadd.f32 %v5132, %v5257
      %v5372 = vadd.f32 %v5133, %v5260
      %v5373 = vadd.f32 %v5134, %v5263
      %v5374 = vadd.f32 %v5135, %v5266
      %v5375 = vadd.f32 %v5136, %v5269
      %v5376 = vadd.f32 %v5137, %v5272
      %v5377 = vadd.f32 %v5138, %v5275
      %v5378 = vadd.f32 %v5139, %v5278
      %v5379 = vadd.f32 %v5140, %v5281
      %v5380 = vadd.f32 %v5141, %v5284
      %v5381 = vadd.f32 %v5142, %v5287
      %v5382 = vadd.f32 %v5143, %v5290
      %v5383 = vadd.f32 %v5144, %v5293
      %v5384 = vadd.f32 %v5145, %v5296
      %v5385 = vadd.f32 %v5146, %v5299
      %v5386 = vadd.f32 %v5147, %v5302
      %v5387 = vadd.f32 %v5148, %v5305
      %v5388 = vadd.f32 %v5149, %v5308
      %v5389 = vadd.f32 %v5150, %v5311
      %v5390 = vadd.f32 %v5151, %v5314
      %v5391 = vadd.f32 %v5152, %v5317
      %v5392 = vadd.f32 %v5153, %v5320
      %v5393 = vadd.f32 %v5154, %v5323
      %v5394 = vadd.f32 %v5155, %v5326
      %v5395 = vadd.f32 %v5156, %v5329
      %v5396 = vadd.f32 %v5157, %v5332
      %v5397 = vadd.f32 %v5158, %v5335
      %v5398 = vadd.f32 %v5159, %v5338
      %v5399 = vadd.f32 %v5160, %v5341
      %v5400 = vadd.f32 %v5161, %v5344
      %v5401 = vadd.f32 %v5162, %v5347
      %v5402 = vadd.f32 %v5163, %v5350
      %v5403 = vadd.f32 %v5164, %v5353
      %v5404 = vadd.f32 %v5165, %v5356
      %v5405 = vadd.f32 %v5166, %v5359
      %v5406 = vadd.f32 %v5167, %v5362
      %v5407 = vadd.f32 %v5168, %v5365
      %v5408 = vld [vmem:[#allocation2 + $0x35] sm:$0xff]
      %v5409 = vld [vmem:[#allocation2 + $0x3d] sm:$0xff]
      %v5410 = vld [vmem:[#allocation2 + $0x45] sm:$0xff]
      %v5411 = vld [vmem:[#allocation2 + $0x4d] sm:$0xff]
      %v5412 = vld [vmem:[#allocation2 + $0x55] sm:$0xff]
      %v5413 = vld [vmem:[#allocation2 + $0x5d] sm:$0xff]
      %v5414 = vld [vmem:[#allocation2 + $0x65] sm:$0xff]
      %v5415 = vld [vmem:[#allocation2 + $0x6d] sm:$0xff]
      %v5416 = vld [vmem:[#allocation2 + $0x75] sm:$0xff]
      %v5417 = vld [vmem:[#allocation2 + $0x7d] sm:$0xff]
      %v5418 = vld [vmem:[#allocation2 + $0x85] sm:$0xff]
      %v5419 = vld [vmem:[#allocation2 + $0x8d] sm:$0xff]
      %v5420 = vld [vmem:[#allocation2 + $0x95] sm:$0xff]
      %v5421 = vld [vmem:[#allocation2 + $0x9d] sm:$0xff]
      %v5422 = vld [vmem:[#allocation2 + $0xa5] sm:$0xff]
      %v5423 = vld [vmem:[#allocation2 + $0xad] sm:$0xff]
      %v5424 = vld [vmem:[#allocation2 + $0xb5] sm:$0xff]
      %v5425 = vld [vmem:[#allocation2 + $0xbd] sm:$0xff]
      %v5426 = vld [vmem:[#allocation2 + $0xc5] sm:$0xff]
      %v5427 = vld [vmem:[#allocation2 + $0xcd] sm:$0xff]
      %v5428 = vld [vmem:[#allocation2 + $0xd5] sm:$0xff]
      %v5429 = vld [vmem:[#allocation2 + $0xdd] sm:$0xff]
      %v5430 = vld [vmem:[#allocation2 + $0xe5] sm:$0xff]
      %v5431 = vld [vmem:[#allocation2 + $0xed] sm:$0xff]
      %v5432 = vld [vmem:[#allocation2 + $0xf5] sm:$0xff]
      %v5433 = vld [vmem:[#allocation2 + $0xfd] sm:$0xff]
      %v5434 = vld [vmem:[#allocation2 + $0x105] sm:$0xff]
      %v5435 = vld [vmem:[#allocation2 + $0x10d] sm:$0xff]
      %v5436 = vld [vmem:[#allocation2 + $0x115] sm:$0xff]
      %v5437 = vld [vmem:[#allocation2 + $0x11d] sm:$0xff]
      %v5438 = vld [vmem:[#allocation2 + $0x125] sm:$0xff]
      %v5439 = vld [vmem:[#allocation2 + $0x12d] sm:$0xff]
      %v5440 = vld [vmem:[#allocation2 + $0x135] sm:$0xff]
      %v5441 = vld [vmem:[#allocation2 + $0x13d] sm:$0xff]
      %v5442 = vld [vmem:[#allocation2 + $0x145] sm:$0xff]
      %v5443 = vld [vmem:[#allocation2 + $0x14d] sm:$0xff]
      %v5444 = vld [vmem:[#allocation2 + $0x155] sm:$0xff]
      %v5445 = vld [vmem:[#allocation2 + $0x15d] sm:$0xff]
      %v5446 = vld [vmem:[#allocation2 + $0x165] sm:$0xff]
      %v5447 = vld [vmem:[#allocation2 + $0x16d] sm:$0xff]
      %v5448 = vld [vmem:[#allocation2 + $0x175] sm:$0xf]
      %s5449 = scalar_lea.vmem %s4, 768
      %v5450 = vld [vmem:[%s5449] sm:$0xff]
      %v5451 = vld [vmem:[%s5449 + $0x8] sm:$0xff]
      %v5452 = vld [vmem:[%s5449 + $0x10] sm:$0xff]
      %v5453 = vld [vmem:[%s5449 + $0x18] sm:$0xff]
      %v5454 = vld [vmem:[%s5449 + $0x20] sm:$0xff]
      %v5455 = vld [vmem:[%s5449 + $0x28] sm:$0xff]
      %v5456 = vld [vmem:[%s5449 + $0x30] sm:$0xff]
      %v5457 = vld [vmem:[%s5449 + $0x38] sm:$0xff]
      %v5458 = vld [vmem:[%s5449 + $0x40] sm:$0xff]
      %v5459 = vld [vmem:[%s5449 + $0x48] sm:$0xff]
      %v5460 = vld [vmem:[%s5449 + $0x50] sm:$0xff]
      %v5461 = vld [vmem:[%s5449 + $0x58] sm:$0xff]
      %v5462 = vld [vmem:[%s5449 + $0x60] sm:$0xff]
      %v5463 = vld [vmem:[%s5449 + $0x68] sm:$0xff]
      %v5464 = vld [vmem:[%s5449 + $0x70] sm:$0xff]
      %v5465 = vld [vmem:[%s5449 + $0x78] sm:$0xff]
      %5466 = vmatpush.msra.mxu0 %v5465
      %5467 = vmatpush.msra.mxu0 %v5464
      %5468 = vmatpush.msra.mxu0 %v5463
      %5469 = vmatpush.msra.mxu0 %v5462
      %5470 = vmatpush.msra.mxu0 %v5461
      %5471 = vmatpush.msra.mxu0 %v5460
      %5472 = vmatpush.msra.mxu0 %v5459
      %5473 = vmatpush.msra.mxu0 %v5458
      %5474 = vmatpush.msra.mxu0 %v5457
      %5475 = vmatpush.msra.mxu0 %v5456
      %5476 = vmatpush.msra.mxu0 %v5455
      %5477 = vmatpush.msra.mxu0 %v5454
      %5478 = vmatpush.msra.mxu0 %v5453
      %5479 = vmatpush.msra.mxu0 %v5452
      %5480 = vmatpush.msra.mxu0 %v5451
      %5481 = vmatpush.msra.mxu0 %v5450
      %5482 = vmatmul.f32.gmra.mxu0 %v5408
      %v5483 = vpop.f32.mrf.mxu0
      %v5484 = vadd.f32 0.0, %v5483
      %5485 = vmatmul.f32.gmra.mxu0 %v5409
      %v5486 = vpop.f32.mrf.mxu0
      %v5487 = vadd.f32 0.0, %v5486
      %5488 = vmatmul.f32.gmra.mxu0 %v5410
      %v5489 = vpop.f32.mrf.mxu0
      %v5490 = vadd.f32 0.0, %v5489
      %5491 = vmatmul.f32.gmra.mxu0 %v5411
      %v5492 = vpop.f32.mrf.mxu0
      %v5493 = vadd.f32 0.0, %v5492
      %5494 = vmatmul.f32.gmra.mxu0 %v5412
      %v5495 = vpop.f32.mrf.mxu0
      %v5496 = vadd.f32 0.0, %v5495
      %5497 = vmatmul.f32.gmra.mxu0 %v5413
      %v5498 = vpop.f32.mrf.mxu0
      %v5499 = vadd.f32 0.0, %v5498
      %5500 = vmatmul.f32.gmra.mxu0 %v5414
      %v5501 = vpop.f32.mrf.mxu0
      %v5502 = vadd.f32 0.0, %v5501
      %5503 = vmatmul.f32.gmra.mxu0 %v5415
      %v5504 = vpop.f32.mrf.mxu0
      %v5505 = vadd.f32 0.0, %v5504
      %5506 = vmatmul.f32.gmra.mxu0 %v5416
      %v5507 = vpop.f32.mrf.mxu0
      %v5508 = vadd.f32 0.0, %v5507
      %5509 = vmatmul.f32.gmra.mxu0 %v5417
      %v5510 = vpop.f32.mrf.mxu0
      %v5511 = vadd.f32 0.0, %v5510
      %5512 = vmatmul.f32.gmra.mxu0 %v5418
      %v5513 = vpop.f32.mrf.mxu0
      %v5514 = vadd.f32 0.0, %v5513
      %5515 = vmatmul.f32.gmra.mxu0 %v5419
      %v5516 = vpop.f32.mrf.mxu0
      %v5517 = vadd.f32 0.0, %v5516
      %5518 = vmatmul.f32.gmra.mxu0 %v5420
      %v5519 = vpop.f32.mrf.mxu0
      %v5520 = vadd.f32 0.0, %v5519
      %5521 = vmatmul.f32.gmra.mxu0 %v5421
      %v5522 = vpop.f32.mrf.mxu0
      %v5523 = vadd.f32 0.0, %v5522
      %5524 = vmatmul.f32.gmra.mxu0 %v5422
      %v5525 = vpop.f32.mrf.mxu0
      %v5526 = vadd.f32 0.0, %v5525
      %5527 = vmatmul.f32.gmra.mxu0 %v5423
      %v5528 = vpop.f32.mrf.mxu0
      %v5529 = vadd.f32 0.0, %v5528
      %5530 = vmatmul.f32.gmra.mxu0 %v5424
      %v5531 = vpop.f32.mrf.mxu0
      %v5532 = vadd.f32 0.0, %v5531
      %5533 = vmatmul.f32.gmra.mxu0 %v5425
      %v5534 = vpop.f32.mrf.mxu0
      %v5535 = vadd.f32 0.0, %v5534
      %5536 = vmatmul.f32.gmra.mxu0 %v5426
      %v5537 = vpop.f32.mrf.mxu0
      %v5538 = vadd.f32 0.0, %v5537
      %5539 = vmatmul.f32.gmra.mxu0 %v5427
      %v5540 = vpop.f32.mrf.mxu0
      %v5541 = vadd.f32 0.0, %v5540
      %5542 = vmatmul.f32.gmra.mxu0 %v5428
      %v5543 = vpop.f32.mrf.mxu0
      %v5544 = vadd.f32 0.0, %v5543
      %5545 = vmatmul.f32.gmra.mxu0 %v5429
      %v5546 = vpop.f32.mrf.mxu0
      %v5547 = vadd.f32 0.0, %v5546
      %5548 = vmatmul.f32.gmra.mxu0 %v5430
      %v5549 = vpop.f32.mrf.mxu0
      %v5550 = vadd.f32 0.0, %v5549
      %5551 = vmatmul.f32.gmra.mxu0 %v5431
      %v5552 = vpop.f32.mrf.mxu0
      %v5553 = vadd.f32 0.0, %v5552
      %5554 = vmatmul.f32.gmra.mxu0 %v5432
      %v5555 = vpop.f32.mrf.mxu0
      %v5556 = vadd.f32 0.0, %v5555
      %5557 = vmatmul.f32.gmra.mxu0 %v5433
      %v5558 = vpop.f32.mrf.mxu0
      %v5559 = vadd.f32 0.0, %v5558
      %5560 = vmatmul.f32.gmra.mxu0 %v5434
      %v5561 = vpop.f32.mrf.mxu0
      %v5562 = vadd.f32 0.0, %v5561
      %5563 = vmatmul.f32.gmra.mxu0 %v5435
      %v5564 = vpop.f32.mrf.mxu0
      %v5565 = vadd.f32 0.0, %v5564
      %5566 = vmatmul.f32.gmra.mxu0 %v5436
      %v5567 = vpop.f32.mrf.mxu0
      %v5568 = vadd.f32 0.0, %v5567
      %5569 = vmatmul.f32.gmra.mxu0 %v5437
      %v5570 = vpop.f32.mrf.mxu0
      %v5571 = vadd.f32 0.0, %v5570
      %5572 = vmatmul.f32.gmra.mxu0 %v5438
      %v5573 = vpop.f32.mrf.mxu0
      %v5574 = vadd.f32 0.0, %v5573
      %5575 = vmatmul.f32.gmra.mxu0 %v5439
      %v5576 = vpop.f32.mrf.mxu0
      %v5577 = vadd.f32 0.0, %v5576
      %5578 = vmatmul.f32.gmra.mxu0 %v5440
      %v5579 = vpop.f32.mrf.mxu0
      %v5580 = vadd.f32 0.0, %v5579
      %5581 = vmatmul.f32.gmra.mxu0 %v5441
      %v5582 = vpop.f32.mrf.mxu0
      %v5583 = vadd.f32 0.0, %v5582
      %5584 = vmatmul.f32.gmra.mxu0 %v5442
      %v5585 = vpop.f32.mrf.mxu0
      %v5586 = vadd.f32 0.0, %v5585
      %5587 = vmatmul.f32.gmra.mxu0 %v5443
      %v5588 = vpop.f32.mrf.mxu0
      %v5589 = vadd.f32 0.0, %v5588
      %5590 = vmatmul.f32.gmra.mxu0 %v5444
      %v5591 = vpop.f32.mrf.mxu0
      %v5592 = vadd.f32 0.0, %v5591
      %5593 = vmatmul.f32.gmra.mxu0 %v5445
      %v5594 = vpop.f32.mrf.mxu0
      %v5595 = vadd.f32 0.0, %v5594
      %5596 = vmatmul.f32.gmra.mxu0 %v5446
      %v5597 = vpop.f32.mrf.mxu0
      %v5598 = vadd.f32 0.0, %v5597
      %5599 = vmatmul.f32.gmra.mxu0 %v5447
      %v5600 = vpop.f32.mrf.mxu0
      %v5601 = vadd.f32 0.0, %v5600
      %5602 = vmatmul.f32.gmra.mxu0 %v5448
      %v5603 = vpop.f32.mrf.mxu0
      %v5604 = vadd.f32 0.0, %v5603
      %5605 = vdwg.mxu0
      %v5606 = vadd.f32 %v5367, %v5484
      %v5607 = vadd.f32 %v5368, %v5487
      %v5608 = vadd.f32 %v5369, %v5490
      %v5609 = vadd.f32 %v5370, %v5493
      %v5610 = vadd.f32 %v5371, %v5496
      %v5611 = vadd.f32 %v5372, %v5499
      %v5612 = vadd.f32 %v5373, %v5502
      %v5613 = vadd.f32 %v5374, %v5505
      %v5614 = vadd.f32 %v5375, %v5508
      %v5615 = vadd.f32 %v5376, %v5511
      %v5616 = vadd.f32 %v5377, %v5514
      %v5617 = vadd.f32 %v5378, %v5517
      %v5618 = vadd.f32 %v5379, %v5520
      %v5619 = vadd.f32 %v5380, %v5523
      %v5620 = vadd.f32 %v5381, %v5526
      %v5621 = vadd.f32 %v5382, %v5529
      %v5622 = vadd.f32 %v5383, %v5532
      %v5623 = vadd.f32 %v5384, %v5535
      %v5624 = vadd.f32 %v5385, %v5538
      %v5625 = vadd.f32 %v5386, %v5541
      %v5626 = vadd.f32 %v5387, %v5544
      %v5627 = vadd.f32 %v5388, %v5547
      %v5628 = vadd.f32 %v5389, %v5550
      %v5629 = vadd.f32 %v5390, %v5553
      %v5630 = vadd.f32 %v5391, %v5556
      %v5631 = vadd.f32 %v5392, %v5559
      %v5632 = vadd.f32 %v5393, %v5562
      %v5633 = vadd.f32 %v5394, %v5565
      %v5634 = vadd.f32 %v5395, %v5568
      %v5635 = vadd.f32 %v5396, %v5571
      %v5636 = vadd.f32 %v5397, %v5574
      %v5637 = vadd.f32 %v5398, %v5577
      %v5638 = vadd.f32 %v5399, %v5580
      %v5639 = vadd.f32 %v5400, %v5583
      %v5640 = vadd.f32 %v5401, %v5586
      %v5641 = vadd.f32 %v5402, %v5589
      %v5642 = vadd.f32 %v5403, %v5592
      %v5643 = vadd.f32 %v5404, %v5595
      %v5644 = vadd.f32 %v5405, %v5598
      %v5645 = vadd.f32 %v5406, %v5601
      %v5646 = vadd.f32 %v5407, %v5604
      %v5647 = vld [vmem:[#allocation2 + $0x36] sm:$0xff]
      %v5648 = vld [vmem:[#allocation2 + $0x3e] sm:$0xff]
      %v5649 = vld [vmem:[#allocation2 + $0x46] sm:$0xff]
      %v5650 = vld [vmem:[#allocation2 + $0x4e] sm:$0xff]
      %v5651 = vld [vmem:[#allocation2 + $0x56] sm:$0xff]
      %v5652 = vld [vmem:[#allocation2 + $0x5e] sm:$0xff]
      %v5653 = vld [vmem:[#allocation2 + $0x66] sm:$0xff]
      %v5654 = vld [vmem:[#allocation2 + $0x6e] sm:$0xff]
      %v5655 = vld [vmem:[#allocation2 + $0x76] sm:$0xff]
      %v5656 = vld [vmem:[#allocation2 + $0x7e] sm:$0xff]
      %v5657 = vld [vmem:[#allocation2 + $0x86] sm:$0xff]
      %v5658 = vld [vmem:[#allocation2 + $0x8e] sm:$0xff]
      %v5659 = vld [vmem:[#allocation2 + $0x96] sm:$0xff]
      %v5660 = vld [vmem:[#allocation2 + $0x9e] sm:$0xff]
      %v5661 = vld [vmem:[#allocation2 + $0xa6] sm:$0xff]
      %v5662 = vld [vmem:[#allocation2 + $0xae] sm:$0xff]
      %v5663 = vld [vmem:[#allocation2 + $0xb6] sm:$0xff]
      %v5664 = vld [vmem:[#allocation2 + $0xbe] sm:$0xff]
      %v5665 = vld [vmem:[#allocation2 + $0xc6] sm:$0xff]
      %v5666 = vld [vmem:[#allocation2 + $0xce] sm:$0xff]
      %v5667 = vld [vmem:[#allocation2 + $0xd6] sm:$0xff]
      %v5668 = vld [vmem:[#allocation2 + $0xde] sm:$0xff]
      %v5669 = vld [vmem:[#allocation2 + $0xe6] sm:$0xff]
      %v5670 = vld [vmem:[#allocation2 + $0xee] sm:$0xff]
      %v5671 = vld [vmem:[#allocation2 + $0xf6] sm:$0xff]
      %v5672 = vld [vmem:[#allocation2 + $0xfe] sm:$0xff]
      %v5673 = vld [vmem:[#allocation2 + $0x106] sm:$0xff]
      %v5674 = vld [vmem:[#allocation2 + $0x10e] sm:$0xff]
      %v5675 = vld [vmem:[#allocation2 + $0x116] sm:$0xff]
      %v5676 = vld [vmem:[#allocation2 + $0x11e] sm:$0xff]
      %v5677 = vld [vmem:[#allocation2 + $0x126] sm:$0xff]
      %v5678 = vld [vmem:[#allocation2 + $0x12e] sm:$0xff]
      %v5679 = vld [vmem:[#allocation2 + $0x136] sm:$0xff]
      %v5680 = vld [vmem:[#allocation2 + $0x13e] sm:$0xff]
      %v5681 = vld [vmem:[#allocation2 + $0x146] sm:$0xff]
      %v5682 = vld [vmem:[#allocation2 + $0x14e] sm:$0xff]
      %v5683 = vld [vmem:[#allocation2 + $0x156] sm:$0xff]
      %v5684 = vld [vmem:[#allocation2 + $0x15e] sm:$0xff]
      %v5685 = vld [vmem:[#allocation2 + $0x166] sm:$0xff]
      %v5686 = vld [vmem:[#allocation2 + $0x16e] sm:$0xff]
      %v5687 = vld [vmem:[#allocation2 + $0x176] sm:$0xf]
      %s5688 = scalar_lea.vmem %s4, 896
      %v5689 = vld [vmem:[%s5688] sm:$0xff]
      %v5690 = vld [vmem:[%s5688 + $0x8] sm:$0xff]
      %v5691 = vld [vmem:[%s5688 + $0x10] sm:$0xff]
      %v5692 = vld [vmem:[%s5688 + $0x18] sm:$0xff]
      %v5693 = vld [vmem:[%s5688 + $0x20] sm:$0xff]
      %v5694 = vld [vmem:[%s5688 + $0x28] sm:$0xff]
      %v5695 = vld [vmem:[%s5688 + $0x30] sm:$0xff]
      %v5696 = vld [vmem:[%s5688 + $0x38] sm:$0xff]
      %v5697 = vld [vmem:[%s5688 + $0x40] sm:$0xff]
      %v5698 = vld [vmem:[%s5688 + $0x48] sm:$0xff]
      %v5699 = vld [vmem:[%s5688 + $0x50] sm:$0xff]
      %v5700 = vld [vmem:[%s5688 + $0x58] sm:$0xff]
      %v5701 = vld [vmem:[%s5688 + $0x60] sm:$0xff]
      %v5702 = vld [vmem:[%s5688 + $0x68] sm:$0xff]
      %v5703 = vld [vmem:[%s5688 + $0x70] sm:$0xff]
      %v5704 = vld [vmem:[%s5688 + $0x78] sm:$0xff]
      %5705 = vmatpush.msra.mxu0 %v5704
      %5706 = vmatpush.msra.mxu0 %v5703
      %5707 = vmatpush.msra.mxu0 %v5702
      %5708 = vmatpush.msra.mxu0 %v5701
      %5709 = vmatpush.msra.mxu0 %v5700
      %5710 = vmatpush.msra.mxu0 %v5699
      %5711 = vmatpush.msra.mxu0 %v5698
      %5712 = vmatpush.msra.mxu0 %v5697
      %5713 = vmatpush.msra.mxu0 %v5696
      %5714 = vmatpush.msra.mxu0 %v5695
      %5715 = vmatpush.msra.mxu0 %v5694
      %5716 = vmatpush.msra.mxu0 %v5693
      %5717 = vmatpush.msra.mxu0 %v5692
      %5718 = vmatpush.msra.mxu0 %v5691
      %5719 = vmatpush.msra.mxu0 %v5690
      %5720 = vmatpush.msra.mxu0 %v5689
      %5721 = vmatmul.f32.gmra.mxu0 %v5647
      %v5722 = vpop.f32.mrf.mxu0
      %v5723 = vadd.f32 0.0, %v5722
      %5724 = vmatmul.f32.gmra.mxu0 %v5648
      %v5725 = vpop.f32.mrf.mxu0
      %v5726 = vadd.f32 0.0, %v5725
      %5727 = vmatmul.f32.gmra.mxu0 %v5649
      %v5728 = vpop.f32.mrf.mxu0
      %v5729 = vadd.f32 0.0, %v5728
      %5730 = vmatmul.f32.gmra.mxu0 %v5650
      %v5731 = vpop.f32.mrf.mxu0
      %v5732 = vadd.f32 0.0, %v5731
      %5733 = vmatmul.f32.gmra.mxu0 %v5651
      %v5734 = vpop.f32.mrf.mxu0
      %v5735 = vadd.f32 0.0, %v5734
      %5736 = vmatmul.f32.gmra.mxu0 %v5652
      %v5737 = vpop.f32.mrf.mxu0
      %v5738 = vadd.f32 0.0, %v5737
      %5739 = vmatmul.f32.gmra.mxu0 %v5653
      %v5740 = vpop.f32.mrf.mxu0
      %v5741 = vadd.f32 0.0, %v5740
      %5742 = vmatmul.f32.gmra.mxu0 %v5654
      %v5743 = vpop.f32.mrf.mxu0
      %v5744 = vadd.f32 0.0, %v5743
      %5745 = vmatmul.f32.gmra.mxu0 %v5655
      %v5746 = vpop.f32.mrf.mxu0
      %v5747 = vadd.f32 0.0, %v5746
      %5748 = vmatmul.f32.gmra.mxu0 %v5656
      %v5749 = vpop.f32.mrf.mxu0
      %v5750 = vadd.f32 0.0, %v5749
      %5751 = vmatmul.f32.gmra.mxu0 %v5657
      %v5752 = vpop.f32.mrf.mxu0
      %v5753 = vadd.f32 0.0, %v5752
      %5754 = vmatmul.f32.gmra.mxu0 %v5658
      %v5755 = vpop.f32.mrf.mxu0
      %v5756 = vadd.f32 0.0, %v5755
      %5757 = vmatmul.f32.gmra.mxu0 %v5659
      %v5758 = vpop.f32.mrf.mxu0
      %v5759 = vadd.f32 0.0, %v5758
      %5760 = vmatmul.f32.gmra.mxu0 %v5660
      %v5761 = vpop.f32.mrf.mxu0
      %v5762 = vadd.f32 0.0, %v5761
      %5763 = vmatmul.f32.gmra.mxu0 %v5661
      %v5764 = vpop.f32.mrf.mxu0
      %v5765 = vadd.f32 0.0, %v5764
      %5766 = vmatmul.f32.gmra.mxu0 %v5662
      %v5767 = vpop.f32.mrf.mxu0
      %v5768 = vadd.f32 0.0, %v5767
      %5769 = vmatmul.f32.gmra.mxu0 %v5663
      %v5770 = vpop.f32.mrf.mxu0
      %v5771 = vadd.f32 0.0, %v5770
      %5772 = vmatmul.f32.gmra.mxu0 %v5664
      %v5773 = vpop.f32.mrf.mxu0
      %v5774 = vadd.f32 0.0, %v5773
      %5775 = vmatmul.f32.gmra.mxu0 %v5665
      %v5776 = vpop.f32.mrf.mxu0
      %v5777 = vadd.f32 0.0, %v5776
      %5778 = vmatmul.f32.gmra.mxu0 %v5666
      %v5779 = vpop.f32.mrf.mxu0
      %v5780 = vadd.f32 0.0, %v5779
      %5781 = vmatmul.f32.gmra.mxu0 %v5667
      %v5782 = vpop.f32.mrf.mxu0
      %v5783 = vadd.f32 0.0, %v5782
      %5784 = vmatmul.f32.gmra.mxu0 %v5668
      %v5785 = vpop.f32.mrf.mxu0
      %v5786 = vadd.f32 0.0, %v5785
      %5787 = vmatmul.f32.gmra.mxu0 %v5669
      %v5788 = vpop.f32.mrf.mxu0
      %v5789 = vadd.f32 0.0, %v5788
      %5790 = vmatmul.f32.gmra.mxu0 %v5670
      %v5791 = vpop.f32.mrf.mxu0
      %v5792 = vadd.f32 0.0, %v5791
      %5793 = vmatmul.f32.gmra.mxu0 %v5671
      %v5794 = vpop.f32.mrf.mxu0
      %v5795 = vadd.f32 0.0, %v5794
      %5796 = vmatmul.f32.gmra.mxu0 %v5672
      %v5797 = vpop.f32.mrf.mxu0
      %v5798 = vadd.f32 0.0, %v5797
      %5799 = vmatmul.f32.gmra.mxu0 %v5673
      %v5800 = vpop.f32.mrf.mxu0
      %v5801 = vadd.f32 0.0, %v5800
      %5802 = vmatmul.f32.gmra.mxu0 %v5674
      %v5803 = vpop.f32.mrf.mxu0
      %v5804 = vadd.f32 0.0, %v5803
      %5805 = vmatmul.f32.gmra.mxu0 %v5675
      %v5806 = vpop.f32.mrf.mxu0
      %v5807 = vadd.f32 0.0, %v5806
      %5808 = vmatmul.f32.gmra.mxu0 %v5676
      %v5809 = vpop.f32.mrf.mxu0
      %v5810 = vadd.f32 0.0, %v5809
      %5811 = vmatmul.f32.gmra.mxu0 %v5677
      %v5812 = vpop.f32.mrf.mxu0
      %v5813 = vadd.f32 0.0, %v5812
      %5814 = vmatmul.f32.gmra.mxu0 %v5678
      %v5815 = vpop.f32.mrf.mxu0
      %v5816 = vadd.f32 0.0, %v5815
      %5817 = vmatmul.f32.gmra.mxu0 %v5679
      %v5818 = vpop.f32.mrf.mxu0
      %v5819 = vadd.f32 0.0, %v5818
      %5820 = vmatmul.f32.gmra.mxu0 %v5680
      %v5821 = vpop.f32.mrf.mxu0
      %v5822 = vadd.f32 0.0, %v5821
      %5823 = vmatmul.f32.gmra.mxu0 %v5681
      %v5824 = vpop.f32.mrf.mxu0
      %v5825 = vadd.f32 0.0, %v5824
      %5826 = vmatmul.f32.gmra.mxu0 %v5682
      %v5827 = vpop.f32.mrf.mxu0
      %v5828 = vadd.f32 0.0, %v5827
      %5829 = vmatmul.f32.gmra.mxu0 %v5683
      %v5830 = vpop.f32.mrf.mxu0
      %v5831 = vadd.f32 0.0, %v5830
      %5832 = vmatmul.f32.gmra.mxu0 %v5684
      %v5833 = vpop.f32.mrf.mxu0
      %v5834 = vadd.f32 0.0, %v5833
      %5835 = vmatmul.f32.gmra.mxu0 %v5685
      %v5836 = vpop.f32.mrf.mxu0
      %v5837 = vadd.f32 0.0, %v5836
      %5838 = vmatmul.f32.gmra.mxu0 %v5686
      %v5839 = vpop.f32.mrf.mxu0
      %v5840 = vadd.f32 0.0, %v5839
      %5841 = vmatmul.f32.gmra.mxu0 %v5687
      %v5842 = vpop.f32.mrf.mxu0
      %v5843 = vadd.f32 0.0, %v5842
      %5844 = vdwg.mxu0
      %v5845 = vadd.f32 %v5606, %v5723
      %v5846 = vadd.f32 %v5607, %v5726
      %v5847 = vadd.f32 %v5608, %v5729
      %v5848 = vadd.f32 %v5609, %v5732
      %v5849 = vadd.f32 %v5610, %v5735
      %v5850 = vadd.f32 %v5611, %v5738
      %v5851 = vadd.f32 %v5612, %v5741
      %v5852 = vadd.f32 %v5613, %v5744
      %v5853 = vadd.f32 %v5614, %v5747
      %v5854 = vadd.f32 %v5615, %v5750
      %v5855 = vadd.f32 %v5616, %v5753
      %v5856 = vadd.f32 %v5617, %v5756
      %v5857 = vadd.f32 %v5618, %v5759
      %v5858 = vadd.f32 %v5619, %v5762
      %v5859 = vadd.f32 %v5620, %v5765
      %v5860 = vadd.f32 %v5621, %v5768
      %v5861 = vadd.f32 %v5622, %v5771
      %v5862 = vadd.f32 %v5623, %v5774
      %v5863 = vadd.f32 %v5624, %v5777
      %v5864 = vadd.f32 %v5625, %v5780
      %v5865 = vadd.f32 %v5626, %v5783
      %v5866 = vadd.f32 %v5627, %v5786
      %v5867 = vadd.f32 %v5628, %v5789
      %v5868 = vadd.f32 %v5629, %v5792
      %v5869 = vadd.f32 %v5630, %v5795
      %v5870 = vadd.f32 %v5631, %v5798
      %v5871 = vadd.f32 %v5632, %v5801
      %v5872 = vadd.f32 %v5633, %v5804
      %v5873 = vadd.f32 %v5634, %v5807
      %v5874 = vadd.f32 %v5635, %v5810
      %v5875 = vadd.f32 %v5636, %v5813
      %v5876 = vadd.f32 %v5637, %v5816
      %v5877 = vadd.f32 %v5638, %v5819
      %v5878 = vadd.f32 %v5639, %v5822
      %v5879 = vadd.f32 %v5640, %v5825
      %v5880 = vadd.f32 %v5641, %v5828
      %v5881 = vadd.f32 %v5642, %v5831
      %v5882 = vadd.f32 %v5643, %v5834
      %v5883 = vadd.f32 %v5644, %v5837
      %v5884 = vadd.f32 %v5645, %v5840
      %v5885 = vadd.f32 %v5646, %v5843
      %v5886 = vld [vmem:[#allocation2 + $0x37] sm:$0xff]
      %v5887 = vld [vmem:[#allocation2 + $0x3f] sm:$0xff]
      %v5888 = vld [vmem:[#allocation2 + $0x47] sm:$0xff]
      %v5889 = vld [vmem:[#allocation2 + $0x4f] sm:$0xff]
      %v5890 = vld [vmem:[#allocation2 + $0x57] sm:$0xff]
      %v5891 = vld [vmem:[#allocation2 + $0x5f] sm:$0xff]
      %v5892 = vld [vmem:[#allocation2 + $0x67] sm:$0xff]
      %v5893 = vld [vmem:[#allocation2 + $0x6f] sm:$0xff]
      %v5894 = vld [vmem:[#allocation2 + $0x77] sm:$0xff]
      %v5895 = vld [vmem:[#allocation2 + $0x7f] sm:$0xff]
      %v5896 = vld [vmem:[#allocation2 + $0x87] sm:$0xff]
      %v5897 = vld [vmem:[#allocation2 + $0x8f] sm:$0xff]
      %v5898 = vld [vmem:[#allocation2 + $0x97] sm:$0xff]
      %v5899 = vld [vmem:[#allocation2 + $0x9f] sm:$0xff]
      %v5900 = vld [vmem:[#allocation2 + $0xa7] sm:$0xff]
      %v5901 = vld [vmem:[#allocation2 + $0xaf] sm:$0xff]
      %v5902 = vld [vmem:[#allocation2 + $0xb7] sm:$0xff]
      %v5903 = vld [vmem:[#allocation2 + $0xbf] sm:$0xff]
      %v5904 = vld [vmem:[#allocation2 + $0xc7] sm:$0xff]
      %v5905 = vld [vmem:[#allocation2 + $0xcf] sm:$0xff]
      %v5906 = vld [vmem:[#allocation2 + $0xd7] sm:$0xff]
      %v5907 = vld [vmem:[#allocation2 + $0xdf] sm:$0xff]
      %v5908 = vld [vmem:[#allocation2 + $0xe7] sm:$0xff]
      %v5909 = vld [vmem:[#allocation2 + $0xef] sm:$0xff]
      %v5910 = vld [vmem:[#allocation2 + $0xf7] sm:$0xff]
      %v5911 = vld [vmem:[#allocation2 + $0xff] sm:$0xff]
      %v5912 = vld [vmem:[#allocation2 + $0x107] sm:$0xff]
      %v5913 = vld [vmem:[#allocation2 + $0x10f] sm:$0xff]
      %v5914 = vld [vmem:[#allocation2 + $0x117] sm:$0xff]
      %v5915 = vld [vmem:[#allocation2 + $0x11f] sm:$0xff]
      %v5916 = vld [vmem:[#allocation2 + $0x127] sm:$0xff]
      %v5917 = vld [vmem:[#allocation2 + $0x12f] sm:$0xff]
      %v5918 = vld [vmem:[#allocation2 + $0x137] sm:$0xff]
      %v5919 = vld [vmem:[#allocation2 + $0x13f] sm:$0xff]
      %v5920 = vld [vmem:[#allocation2 + $0x147] sm:$0xff]
      %v5921 = vld [vmem:[#allocation2 + $0x14f] sm:$0xff]
      %v5922 = vld [vmem:[#allocation2 + $0x157] sm:$0xff]
      %v5923 = vld [vmem:[#allocation2 + $0x15f] sm:$0xff]
      %v5924 = vld [vmem:[#allocation2 + $0x167] sm:$0xff]
      %v5925 = vld [vmem:[#allocation2 + $0x16f] sm:$0xff]
      %v5926 = vld [vmem:[#allocation2 + $0x177] sm:$0xf]
      %s5927 = scalar_lea.vmem %s4, 1024
      %v5928 = vld [vmem:[%s5927] sm:$0xff]
      %v5929 = vld [vmem:[%s5927 + $0x8] sm:$0xff]
      %v5930 = vld [vmem:[%s5927 + $0x10] sm:$0xff]
      %v5931 = vld [vmem:[%s5927 + $0x18] sm:$0xff]
      %v5932 = vld [vmem:[%s5927 + $0x20] sm:$0xff]
      %v5933 = vld [vmem:[%s5927 + $0x28] sm:$0xff]
      %v5934 = vld [vmem:[%s5927 + $0x30] sm:$0xff]
      %v5935 = vld [vmem:[%s5927 + $0x38] sm:$0xff]
      %v5936 = vld [vmem:[%s5927 + $0x40] sm:$0xff]
      %v5937 = vld [vmem:[%s5927 + $0x48] sm:$0xff]
      %v5938 = vld [vmem:[%s5927 + $0x50] sm:$0xff]
      %v5939 = vld [vmem:[%s5927 + $0x58] sm:$0xff]
      %v5940 = vld [vmem:[%s5927 + $0x60] sm:$0xff]
      %v5941 = vld [vmem:[%s5927 + $0x68] sm:$0xff]
      %v5942 = vld [vmem:[%s5927 + $0x70] sm:$0xff]
      %v5943 = vld [vmem:[%s5927 + $0x78] sm:$0xff]
      %5944 = vmatpush.msra.mxu0 %v5943
      %5945 = vmatpush.msra.mxu0 %v5942
      %5946 = vmatpush.msra.mxu0 %v5941
      %5947 = vmatpush.msra.mxu0 %v5940
      %5948 = vmatpush.msra.mxu0 %v5939
      %5949 = vmatpush.msra.mxu0 %v5938
      %5950 = vmatpush.msra.mxu0 %v5937
      %5951 = vmatpush.msra.mxu0 %v5936
      %5952 = vmatpush.msra.mxu0 %v5935
      %5953 = vmatpush.msra.mxu0 %v5934
      %5954 = vmatpush.msra.mxu0 %v5933
      %5955 = vmatpush.msra.mxu0 %v5932
      %5956 = vmatpush.msra.mxu0 %v5931
      %5957 = vmatpush.msra.mxu0 %v5930
      %5958 = vmatpush.msra.mxu0 %v5929
      %5959 = vmatpush.msra.mxu0 %v5928
      %5960 = vmatmul.f32.gmra.mxu0 %v5886
      %v5961 = vpop.f32.mrf.mxu0
      %v5962 = vadd.f32 0.0, %v5961
      %5963 = vmatmul.f32.gmra.mxu0 %v5887
      %v5964 = vpop.f32.mrf.mxu0
      %v5965 = vadd.f32 0.0, %v5964
      %5966 = vmatmul.f32.gmra.mxu0 %v5888
      %v5967 = vpop.f32.mrf.mxu0
      %v5968 = vadd.f32 0.0, %v5967
      %5969 = vmatmul.f32.gmra.mxu0 %v5889
      %v5970 = vpop.f32.mrf.mxu0
      %v5971 = vadd.f32 0.0, %v5970
      %5972 = vmatmul.f32.gmra.mxu0 %v5890
      %v5973 = vpop.f32.mrf.mxu0
      %v5974 = vadd.f32 0.0, %v5973
      %5975 = vmatmul.f32.gmra.mxu0 %v5891
      %v5976 = vpop.f32.mrf.mxu0
      %v5977 = vadd.f32 0.0, %v5976
      %5978 = vmatmul.f32.gmra.mxu0 %v5892
      %v5979 = vpop.f32.mrf.mxu0
      %v5980 = vadd.f32 0.0, %v5979
      %5981 = vmatmul.f32.gmra.mxu0 %v5893
      %v5982 = vpop.f32.mrf.mxu0
      %v5983 = vadd.f32 0.0, %v5982
      %5984 = vmatmul.f32.gmra.mxu0 %v5894
      %v5985 = vpop.f32.mrf.mxu0
      %v5986 = vadd.f32 0.0, %v5985
      %5987 = vmatmul.f32.gmra.mxu0 %v5895
      %v5988 = vpop.f32.mrf.mxu0
      %v5989 = vadd.f32 0.0, %v5988
      %5990 = vmatmul.f32.gmra.mxu0 %v5896
      %v5991 = vpop.f32.mrf.mxu0
      %v5992 = vadd.f32 0.0, %v5991
      %5993 = vmatmul.f32.gmra.mxu0 %v5897
      %v5994 = vpop.f32.mrf.mxu0
      %v5995 = vadd.f32 0.0, %v5994
      %5996 = vmatmul.f32.gmra.mxu0 %v5898
      %v5997 = vpop.f32.mrf.mxu0
      %v5998 = vadd.f32 0.0, %v5997
      %5999 = vmatmul.f32.gmra.mxu0 %v5899
      %v6000 = vpop.f32.mrf.mxu0
      %v6001 = vadd.f32 0.0, %v6000
      %6002 = vmatmul.f32.gmra.mxu0 %v5900
      %v6003 = vpop.f32.mrf.mxu0
      %v6004 = vadd.f32 0.0, %v6003
      %6005 = vmatmul.f32.gmra.mxu0 %v5901
      %v6006 = vpop.f32.mrf.mxu0
      %v6007 = vadd.f32 0.0, %v6006
      %6008 = vmatmul.f32.gmra.mxu0 %v5902
      %v6009 = vpop.f32.mrf.mxu0
      %v6010 = vadd.f32 0.0, %v6009
      %6011 = vmatmul.f32.gmra.mxu0 %v5903
      %v6012 = vpop.f32.mrf.mxu0
      %v6013 = vadd.f32 0.0, %v6012
      %6014 = vmatmul.f32.gmra.mxu0 %v5904
      %v6015 = vpop.f32.mrf.mxu0
      %v6016 = vadd.f32 0.0, %v6015
      %6017 = vmatmul.f32.gmra.mxu0 %v5905
      %v6018 = vpop.f32.mrf.mxu0
      %v6019 = vadd.f32 0.0, %v6018
      %6020 = vmatmul.f32.gmra.mxu0 %v5906
      %v6021 = vpop.f32.mrf.mxu0
      %v6022 = vadd.f32 0.0, %v6021
      %6023 = vmatmul.f32.gmra.mxu0 %v5907
      %v6024 = vpop.f32.mrf.mxu0
      %v6025 = vadd.f32 0.0, %v6024
      %6026 = vmatmul.f32.gmra.mxu0 %v5908
      %v6027 = vpop.f32.mrf.mxu0
      %v6028 = vadd.f32 0.0, %v6027
      %6029 = vmatmul.f32.gmra.mxu0 %v5909
      %v6030 = vpop.f32.mrf.mxu0
      %v6031 = vadd.f32 0.0, %v6030
      %6032 = vmatmul.f32.gmra.mxu0 %v5910
      %v6033 = vpop.f32.mrf.mxu0
      %v6034 = vadd.f32 0.0, %v6033
      %6035 = vmatmul.f32.gmra.mxu0 %v5911
      %v6036 = vpop.f32.mrf.mxu0
      %v6037 = vadd.f32 0.0, %v6036
      %6038 = vmatmul.f32.gmra.mxu0 %v5912
      %v6039 = vpop.f32.mrf.mxu0
      %v6040 = vadd.f32 0.0, %v6039
      %6041 = vmatmul.f32.gmra.mxu0 %v5913
      %v6042 = vpop.f32.mrf.mxu0
      %v6043 = vadd.f32 0.0, %v6042
      %6044 = vmatmul.f32.gmra.mxu0 %v5914
      %v6045 = vpop.f32.mrf.mxu0
      %v6046 = vadd.f32 0.0, %v6045
      %6047 = vmatmul.f32.gmra.mxu0 %v5915
      %v6048 = vpop.f32.mrf.mxu0
      %v6049 = vadd.f32 0.0, %v6048
      %6050 = vmatmul.f32.gmra.mxu0 %v5916
      %v6051 = vpop.f32.mrf.mxu0
      %v6052 = vadd.f32 0.0, %v6051
      %6053 = vmatmul.f32.gmra.mxu0 %v5917
      %v6054 = vpop.f32.mrf.mxu0
      %v6055 = vadd.f32 0.0, %v6054
      %6056 = vmatmul.f32.gmra.mxu0 %v5918
      %v6057 = vpop.f32.mrf.mxu0
      %v6058 = vadd.f32 0.0, %v6057
      %6059 = vmatmul.f32.gmra.mxu0 %v5919
      %v6060 = vpop.f32.mrf.mxu0
      %v6061 = vadd.f32 0.0, %v6060
      %6062 = vmatmul.f32.gmra.mxu0 %v5920
      %v6063 = vpop.f32.mrf.mxu0
      %v6064 = vadd.f32 0.0, %v6063
      %6065 = vmatmul.f32.gmra.mxu0 %v5921
      %v6066 = vpop.f32.mrf.mxu0
      %v6067 = vadd.f32 0.0, %v6066
      %6068 = vmatmul.f32.gmra.mxu0 %v5922
      %v6069 = vpop.f32.mrf.mxu0
      %v6070 = vadd.f32 0.0, %v6069
      %6071 = vmatmul.f32.gmra.mxu0 %v5923
      %v6072 = vpop.f32.mrf.mxu0
      %v6073 = vadd.f32 0.0, %v6072
      %6074 = vmatmul.f32.gmra.mxu0 %v5924
      %v6075 = vpop.f32.mrf.mxu0
      %v6076 = vadd.f32 0.0, %v6075
      %6077 = vmatmul.f32.gmra.mxu0 %v5925
      %v6078 = vpop.f32.mrf.mxu0
      %v6079 = vadd.f32 0.0, %v6078
      %6080 = vmatmul.f32.gmra.mxu0 %v5926
      %v6081 = vpop.f32.mrf.mxu0
      %v6082 = vadd.f32 0.0, %v6081
      %6083 = vdwg.mxu0
      %v6084 = vadd.f32 %v5845, %v5962
      %v6085 = vadd.f32 %v5846, %v5965
      %v6086 = vadd.f32 %v5847, %v5968
      %v6087 = vadd.f32 %v5848, %v5971
      %v6088 = vadd.f32 %v5849, %v5974
      %v6089 = vadd.f32 %v5850, %v5977
      %v6090 = vadd.f32 %v5851, %v5980
      %v6091 = vadd.f32 %v5852, %v5983
      %v6092 = vadd.f32 %v5853, %v5986
      %v6093 = vadd.f32 %v5854, %v5989
      %v6094 = vadd.f32 %v5855, %v5992
      %v6095 = vadd.f32 %v5856, %v5995
      %v6096 = vadd.f32 %v5857, %v5998
      %v6097 = vadd.f32 %v5858, %v6001
      %v6098 = vadd.f32 %v5859, %v6004
      %v6099 = vadd.f32 %v5860, %v6007
      %v6100 = vadd.f32 %v5861, %v6010
      %v6101 = vadd.f32 %v5862, %v6013
      %v6102 = vadd.f32 %v5863, %v6016
      %v6103 = vadd.f32 %v5864, %v6019
      %v6104 = vadd.f32 %v5865, %v6022
      %v6105 = vadd.f32 %v5866, %v6025
      %v6106 = vadd.f32 %v5867, %v6028
      %v6107 = vadd.f32 %v5868, %v6031
      %v6108 = vadd.f32 %v5869, %v6034
      %v6109 = vadd.f32 %v5870, %v6037
      %v6110 = vadd.f32 %v5871, %v6040
      %v6111 = vadd.f32 %v5872, %v6043
      %v6112 = vadd.f32 %v5873, %v6046
      %v6113 = vadd.f32 %v5874, %v6049
      %v6114 = vadd.f32 %v5875, %v6052
      %v6115 = vadd.f32 %v5876, %v6055
      %v6116 = vadd.f32 %v5877, %v6058
      %v6117 = vadd.f32 %v5878, %v6061
      %v6118 = vadd.f32 %v5879, %v6064
      %v6119 = vadd.f32 %v5880, %v6067
      %v6120 = vadd.f32 %v5881, %v6070
      %v6121 = vadd.f32 %v5882, %v6073
      %v6122 = vadd.f32 %v5883, %v6076
      %v6123 = vadd.f32 %v5884, %v6079
      %v6124 = vadd.f32 %v5885, %v6082
      %v6125 = vld [vmem:[%s5] sm:$0x1]
      %v6127 = vperm.slane %v6125, 0
      %v6129 = vadd.f32 %v6084, %v6127
      %v6130 = vadd.f32 %v6085, %v6127
      %v6131 = vadd.f32 %v6086, %v6127
      %v6132 = vadd.f32 %v6087, %v6127
      %v6133 = vadd.f32 %v6088, %v6127
      %v6134 = vadd.f32 %v6089, %v6127
      %v6135 = vadd.f32 %v6090, %v6127
      %v6136 = vadd.f32 %v6091, %v6127
      %v6137 = vadd.f32 %v6092, %v6127
      %v6138 = vadd.f32 %v6093, %v6127
      %v6139 = vadd.f32 %v6094, %v6127
      %v6140 = vadd.f32 %v6095, %v6127
      %v6141 = vadd.f32 %v6096, %v6127
      %v6142 = vadd.f32 %v6097, %v6127
      %v6143 = vadd.f32 %v6098, %v6127
      %v6144 = vadd.f32 %v6099, %v6127
      %v6145 = vadd.f32 %v6100, %v6127
      %v6146 = vadd.f32 %v6101, %v6127
      %v6147 = vadd.f32 %v6102, %v6127
      %v6148 = vadd.f32 %v6103, %v6127
      %v6149 = vadd.f32 %v6104, %v6127
      %v6150 = vadd.f32 %v6105, %v6127
      %v6151 = vadd.f32 %v6106, %v6127
      %v6152 = vadd.f32 %v6107, %v6127
      %v6153 = vadd.f32 %v6108, %v6127
      %v6154 = vadd.f32 %v6109, %v6127
      %v6155 = vadd.f32 %v6110, %v6127
      %v6156 = vadd.f32 %v6111, %v6127
      %v6157 = vadd.f32 %v6112, %v6127
      %v6158 = vadd.f32 %v6113, %v6127
      %v6159 = vadd.f32 %v6114, %v6127
      %v6160 = vadd.f32 %v6115, %v6127
      %v6161 = vadd.f32 %v6116, %v6127
      %v6162 = vadd.f32 %v6117, %v6127
      %v6163 = vadd.f32 %v6118, %v6127
      %v6164 = vadd.f32 %v6119, %v6127
      %v6165 = vadd.f32 %v6120, %v6127
      %v6166 = vadd.f32 %v6121, %v6127
      %v6167 = vadd.f32 %v6122, %v6127
      %v6168 = vadd.f32 %v6123, %v6127
      %v6169 = vadd.f32 %v6124, %v6127
      %v6170 = vsel %vm3032, %v6129, 0.0
      %v6171 = vsel %vm3033, %v6130, 0.0
      %v6172 = vsel %vm3034, %v6131, 0.0
      %v6173 = vsel %vm3035, %v6132, 0.0
      %v6174 = vsel %vm3036, %v6133, 0.0
      %v6175 = vsel %vm3037, %v6134, 0.0
      %v6176 = vsel %vm3038, %v6135, 0.0
      %v6177 = vsel %vm3039, %v6136, 0.0
      %v6178 = vsel %vm3040, %v6137, 0.0
      %v6179 = vsel %vm3041, %v6138, 0.0
      %v6180 = vsel %vm3042, %v6139, 0.0
      %v6181 = vsel %vm3043, %v6140, 0.0
      %v6182 = vsel %vm3044, %v6141, 0.0
      %v6183 = vsel %vm3045, %v6142, 0.0
      %v6184 = vsel %vm3046, %v6143, 0.0
      %v6185 = vsel %vm3047, %v6144, 0.0
      %v6186 = vsel %vm3048, %v6145, 0.0
      %v6187 = vsel %vm3049, %v6146, 0.0
      %v6188 = vsel %vm3050, %v6147, 0.0
      %v6189 = vsel %vm3051, %v6148, 0.0
      %v6190 = vsel %vm3052, %v6149, 0.0
      %v6191 = vsel %vm3053, %v6150, 0.0
      %v6192 = vsel %vm3054, %v6151, 0.0
      %v6193 = vsel %vm3055, %v6152, 0.0
      %v6194 = vsel %vm3056, %v6153, 0.0
      %v6195 = vsel %vm3057, %v6154, 0.0
      %v6196 = vsel %vm3058, %v6155, 0.0
      %v6197 = vsel %vm3059, %v6156, 0.0
      %v6198 = vsel %vm3060, %v6157, 0.0
      %v6199 = vsel %vm3061, %v6158, 0.0
      %v6200 = vsel %vm3062, %v6159, 0.0
      %v6201 = vsel %vm3063, %v6160, 0.0
      %v6202 = vsel %vm3064, %v6161, 0.0
      %v6203 = vsel %vm3065, %v6162, 0.0
      %v6204 = vsel %vm3066, %v6163, 0.0
      %v6205 = vsel %vm3067, %v6164, 0.0
      %v6206 = vsel %vm3068, %v6165, 0.0
      %v6207 = vsel %vm3069, %v6166, 0.0
      %v6208 = vsel %vm3070, %v6167, 0.0
      %v6209 = vsel %vm3071, %v6168, 0.0
      %v6210 = vsel %vm3072, %v6169, 0.0
      %v6211 = vadd.f32 %v6170, %v6171
      %v6212 = vadd.f32 %v6211, %v6172
      %v6213 = vadd.f32 %v6212, %v6173
      %v6214 = vadd.f32 %v6213, %v6174
      %v6215 = vadd.f32 %v6214, %v6175
      %v6216 = vadd.f32 %v6215, %v6176
      %v6217 = vadd.f32 %v6216, %v6177
      %v6218 = vadd.f32 %v6217, %v6178
      %v6219 = vadd.f32 %v6218, %v6179
      %v6220 = vadd.f32 %v6219, %v6180
      %v6221 = vadd.f32 %v6220, %v6181
      %v6222 = vadd.f32 %v6221, %v6182
      %v6223 = vadd.f32 %v6222, %v6183
      %v6224 = vadd.f32 %v6223, %v6184
      %v6225 = vadd.f32 %v6224, %v6185
      %v6226 = vadd.f32 %v6225, %v6186
      %v6227 = vadd.f32 %v6226, %v6187
      %v6228 = vadd.f32 %v6227, %v6188
      %v6229 = vadd.f32 %v6228, %v6189
      %v6230 = vadd.f32 %v6229, %v6190
      %v6231 = vadd.f32 %v6230, %v6191
      %v6232 = vadd.f32 %v6231, %v6192
      %v6233 = vadd.f32 %v6232, %v6193
      %v6234 = vadd.f32 %v6233, %v6194
      %v6235 = vadd.f32 %v6234, %v6195
      %v6236 = vadd.f32 %v6235, %v6196
      %v6237 = vadd.f32 %v6236, %v6197
      %v6238 = vadd.f32 %v6237, %v6198
      %v6239 = vadd.f32 %v6238, %v6199
      %v6240 = vadd.f32 %v6239, %v6200
      %v6241 = vadd.f32 %v6240, %v6201
      %v6242 = vadd.f32 %v6241, %v6202
      %v6243 = vadd.f32 %v6242, %v6203
      %v6244 = vadd.f32 %v6243, %v6204
      %v6245 = vadd.f32 %v6244, %v6205
      %v6246 = vadd.f32 %v6245, %v6206
      %v6247 = vadd.f32 %v6246, %v6207
      %v6248 = vadd.f32 %v6247, %v6208
      %v6249 = vadd.f32 %v6248, %v6209
      %v6250 = vsel %vm3153, %v6210, 0.0
      %v6251 = vadd.f32 %v6249, %v6250
      %v6252 = vrot.slane %v6251, 4
      %v6253 = vadd.f32 %v6251, %v6252
      %v6254 = vrot.slane %v6253, 2
      %v6255 = vadd.f32 %v6253, %v6254
      %v6256 = vrot.slane %v6255, 1
      %v6257 = vadd.f32 %v6255, %v6256
      %v6258 = vmul.f32 %v6170, %v6129
      %v6259 = vmul.f32 %v6171, %v6130
      %v6260 = vmul.f32 %v6172, %v6131
      %v6261 = vmul.f32 %v6173, %v6132
      %v6262 = vmul.f32 %v6174, %v6133
      %v6263 = vmul.f32 %v6175, %v6134
      %v6264 = vmul.f32 %v6176, %v6135
      %v6265 = vmul.f32 %v6177, %v6136
      %v6266 = vmul.f32 %v6178, %v6137
      %v6267 = vmul.f32 %v6179, %v6138
      %v6268 = vmul.f32 %v6180, %v6139
      %v6269 = vmul.f32 %v6181, %v6140
      %v6270 = vmul.f32 %v6182, %v6141
      %v6271 = vmul.f32 %v6183, %v6142
      %v6272 = vmul.f32 %v6184, %v6143
      %v6273 = vmul.f32 %v6185, %v6144
      %v6274 = vmul.f32 %v6186, %v6145
      %v6275 = vmul.f32 %v6187, %v6146
      %v6276 = vmul.f32 %v6188, %v6147
      %v6277 = vmul.f32 %v6189, %v6148
      %v6278 = vmul.f32 %v6190, %v6149
      %v6279 = vmul.f32 %v6191, %v6150
      %v6280 = vmul.f32 %v6192, %v6151
      %v6281 = vmul.f32 %v6193, %v6152
      %v6282 = vmul.f32 %v6194, %v6153
      %v6283 = vmul.f32 %v6195, %v6154
      %v6284 = vmul.f32 %v6196, %v6155
      %v6285 = vmul.f32 %v6197, %v6156
      %v6286 = vmul.f32 %v6198, %v6157
      %v6287 = vmul.f32 %v6199, %v6158
      %v6288 = vmul.f32 %v6200, %v6159
      %v6289 = vmul.f32 %v6201, %v6160
      %v6290 = vmul.f32 %v6202, %v6161
      %v6291 = vmul.f32 %v6203, %v6162
      %v6292 = vmul.f32 %v6204, %v6163
      %v6293 = vmul.f32 %v6205, %v6164
      %v6294 = vmul.f32 %v6206, %v6165
      %v6295 = vmul.f32 %v6207, %v6166
      %v6296 = vmul.f32 %v6208, %v6167
      %v6297 = vmul.f32 %v6209, %v6168
      %v6298 = vmul.f32 %v6210, %v6169
      %v6299 = vadd.f32 %v6258, %v6259
      %v6300 = vadd.f32 %v6299, %v6260
      %v6301 = vadd.f32 %v6300, %v6261
      %v6302 = vadd.f32 %v6301, %v6262
      %v6303 = vadd.f32 %v6302, %v6263
      %v6304 = vadd.f32 %v6303, %v6264
      %v6305 = vadd.f32 %v6304, %v6265
      %v6306 = vadd.f32 %v6305, %v6266
      %v6307 = vadd.f32 %v6306, %v6267
      %v6308 = vadd.f32 %v6307, %v6268
      %v6309 = vadd.f32 %v6308, %v6269
      %v6310 = vadd.f32 %v6309, %v6270
      %v6311 = vadd.f32 %v6310, %v6271
      %v6312 = vadd.f32 %v6311, %v6272
      %v6313 = vadd.f32 %v6312, %v6273
      %v6314 = vadd.f32 %v6313, %v6274
      %v6315 = vadd.f32 %v6314, %v6275
      %v6316 = vadd.f32 %v6315, %v6276
      %v6317 = vadd.f32 %v6316, %v6277
      %v6318 = vadd.f32 %v6317, %v6278
      %v6319 = vadd.f32 %v6318, %v6279
      %v6320 = vadd.f32 %v6319, %v6280
      %v6321 = vadd.f32 %v6320, %v6281
      %v6322 = vadd.f32 %v6321, %v6282
      %v6323 = vadd.f32 %v6322, %v6283
      %v6324 = vadd.f32 %v6323, %v6284
      %v6325 = vadd.f32 %v6324, %v6285
      %v6326 = vadd.f32 %v6325, %v6286
      %v6327 = vadd.f32 %v6326, %v6287
      %v6328 = vadd.f32 %v6327, %v6288
      %v6329 = vadd.f32 %v6328, %v6289
      %v6330 = vadd.f32 %v6329, %v6290
      %v6331 = vadd.f32 %v6330, %v6291
      %v6332 = vadd.f32 %v6331, %v6292
      %v6333 = vadd.f32 %v6332, %v6293
      %v6334 = vadd.f32 %v6333, %v6294
      %v6335 = vadd.f32 %v6334, %v6295
      %v6336 = vadd.f32 %v6335, %v6296
      %v6337 = vadd.f32 %v6336, %v6297
      %v6338 = vsel %vm3153, %v6298, 0.0
      %v6339 = vadd.f32 %v6337, %v6338
      %v6340 = vrot.slane %v6339, 4
      %v6341 = vadd.f32 %v6339, %v6340
      %v6342 = vrot.slane %v6341, 2
      %v6343 = vadd.f32 %v6341, %v6342
      %v6344 = vrot.slane %v6343, 1
      %v6345 = vadd.f32 %v6343, %v6344
      %v6346 = vmul.f32 %v6257, 0.00390625
      %v6347 = vmul.f32 %v6345, 0.00390625
      %v6348 = vmul.f32 %v6346, %v6346
      %v6349 = vsub.f32 %v6347, %v6348
      %v6350 = vmax.f32 %v6349, 0.0
      %v6351 = vsub.f32 %v6129, %v6346
      %v6352 = vsub.f32 %v6130, %v6346
      %v6353 = vsub.f32 %v6131, %v6346
      %v6354 = vsub.f32 %v6132, %v6346
      %v6355 = vsub.f32 %v6133, %v6346
      %v6356 = vsub.f32 %v6134, %v6346
      %v6357 = vsub.f32 %v6135, %v6346
      %v6358 = vsub.f32 %v6136, %v6346
      %v6359 = vsub.f32 %v6137, %v6346
      %v6360 = vsub.f32 %v6138, %v6346
      %v6361 = vsub.f32 %v6139, %v6346
      %v6362 = vsub.f32 %v6140, %v6346
      %v6363 = vsub.f32 %v6141, %v6346
      %v6364 = vsub.f32 %v6142, %v6346
      %v6365 = vsub.f32 %v6143, %v6346
      %v6366 = vsub.f32 %v6144, %v6346
      %v6367 = vsub.f32 %v6145, %v6346
      %v6368 = vsub.f32 %v6146, %v6346
      %v6369 = vsub.f32 %v6147, %v6346
      %v6370 = vsub.f32 %v6148, %v6346
      %v6371 = vsub.f32 %v6149, %v6346
      %v6372 = vsub.f32 %v6150, %v6346
      %v6373 = vsub.f32 %v6151, %v6346
      %v6374 = vsub.f32 %v6152, %v6346
      %v6375 = vsub.f32 %v6153, %v6346
      %v6376 = vsub.f32 %v6154, %v6346
      %v6377 = vsub.f32 %v6155, %v6346
      %v6378 = vsub.f32 %v6156, %v6346
      %v6379 = vsub.f32 %v6157, %v6346
      %v6380 = vsub.f32 %v6158, %v6346
      %v6381 = vsub.f32 %v6159, %v6346
      %v6382 = vsub.f32 %v6160, %v6346
      %v6383 = vsub.f32 %v6161, %v6346
      %v6384 = vsub.f32 %v6162, %v6346
      %v6385 = vsub.f32 %v6163, %v6346
      %v6386 = vsub.f32 %v6164, %v6346
      %v6387 = vsub.f32 %v6165, %v6346
      %v6388 = vsub.f32 %v6166, %v6346
      %v6389 = vsub.f32 %v6167, %v6346
      %v6390 = vsub.f32 %v6168, %v6346
      %v6391 = vsub.f32 %v6169, %v6346
      %v6392 = vadd.f32 %v6350, 1e-05
      %v6393 = vrsqrt.pop %v6392
      %v6394 = vmul.f32 %v6393, %v6392
      %v6395 = vmul.f32 %v6394, %v6393
      %v6396 = vmul.f32 0.5, %v6395
      %v6397 = vsub.f32 1.5, %v6396
      %v6398 = vmul.f32 %v6393, %v6397
      %vm6399 = vweird.f32 %v6392
      %vm6400 = vweird.f32 %v6393
      %vm6401 = vmor %vm6399, %vm6400
      %v6402 = vsel %vm6401, %v6393, %v6398
      %v6403 = vmul.f32 %v6351, %v6402
      %v6404 = vmul.f32 %v6352, %v6402
      %v6405 = vmul.f32 %v6353, %v6402
      %v6406 = vmul.f32 %v6354, %v6402
      %v6407 = vmul.f32 %v6355, %v6402
      %v6408 = vmul.f32 %v6356, %v6402
      %v6409 = vmul.f32 %v6357, %v6402
      %v6410 = vmul.f32 %v6358, %v6402
      %v6411 = vmul.f32 %v6359, %v6402
      %v6412 = vmul.f32 %v6360, %v6402
      %v6413 = vmul.f32 %v6361, %v6402
      %v6414 = vmul.f32 %v6362, %v6402
      %v6415 = vmul.f32 %v6363, %v6402
      %v6416 = vmul.f32 %v6364, %v6402
      %v6417 = vmul.f32 %v6365, %v6402
      %v6418 = vmul.f32 %v6366, %v6402
      %v6419 = vmul.f32 %v6367, %v6402
      %v6420 = vmul.f32 %v6368, %v6402
      %v6421 = vmul.f32 %v6369, %v6402
      %v6422 = vmul.f32 %v6370, %v6402
      %v6423 = vmul.f32 %v6371, %v6402
      %v6424 = vmul.f32 %v6372, %v6402
      %v6425 = vmul.f32 %v6373, %v6402
      %v6426 = vmul.f32 %v6374, %v6402
      %v6427 = vmul.f32 %v6375, %v6402
      %v6428 = vmul.f32 %v6376, %v6402
      %v6429 = vmul.f32 %v6377, %v6402
      %v6430 = vmul.f32 %v6378, %v6402
      %v6431 = vmul.f32 %v6379, %v6402
      %v6432 = vmul.f32 %v6380, %v6402
      %v6433 = vmul.f32 %v6381, %v6402
      %v6434 = vmul.f32 %v6382, %v6402
      %v6435 = vmul.f32 %v6383, %v6402
      %v6436 = vmul.f32 %v6384, %v6402
      %v6437 = vmul.f32 %v6385, %v6402
      %v6438 = vmul.f32 %v6386, %v6402
      %v6439 = vmul.f32 %v6387, %v6402
      %v6440 = vmul.f32 %v6388, %v6402
      %v6441 = vmul.f32 %v6389, %v6402
      %v6442 = vmul.f32 %v6390, %v6402
      %v6443 = vmul.f32 %v6391, %v6402
      %v6444 = vld [vmem:[%s246] sm:$0xff]
      %v6445 = vld [vmem:[%s246 + $0x8] sm:$0xff]
      %v6446 = vld [vmem:[%s246 + $0x10] sm:$0xff]
      %v6447 = vld [vmem:[%s246 + $0x18] sm:$0xff]
      %v6448 = vld [vmem:[%s246 + $0x20] sm:$0xff]
      %v6449 = vld [vmem:[%s246 + $0x28] sm:$0xff]
      %v6450 = vld [vmem:[%s246 + $0x30] sm:$0xff]
      %v6451 = vld [vmem:[%s246 + $0x38] sm:$0xff]
      %v6452 = vld [vmem:[%s246 + $0x40] sm:$0xff]
      %v6453 = vld [vmem:[%s246 + $0x48] sm:$0xff]
      %v6454 = vld [vmem:[%s246 + $0x50] sm:$0xff]
      %v6455 = vld [vmem:[%s246 + $0x58] sm:$0xff]
      %v6456 = vld [vmem:[%s246 + $0x60] sm:$0xff]
      %v6457 = vld [vmem:[%s246 + $0x68] sm:$0xff]
      %v6458 = vld [vmem:[%s246 + $0x70] sm:$0xff]
      %v6459 = vld [vmem:[%s246 + $0x78] sm:$0xff]
      %v6460 = vld [vmem:[%s246 + $0x80] sm:$0xff]
      %v6461 = vld [vmem:[%s246 + $0x88] sm:$0xff]
      %v6462 = vld [vmem:[%s246 + $0x90] sm:$0xff]
      %v6463 = vld [vmem:[%s246 + $0x98] sm:$0xff]
      %v6464 = vld [vmem:[%s246 + $0xa0] sm:$0xff]
      %v6465 = vld [vmem:[%s246 + $0xa8] sm:$0xff]
      %v6466 = vld [vmem:[%s246 + $0xb0] sm:$0xff]
      %v6467 = vld [vmem:[%s246 + $0xb8] sm:$0xff]
      %v6468 = vld [vmem:[%s246 + $0xc0] sm:$0xff]
      %v6469 = vld [vmem:[%s246 + $0xc8] sm:$0xff]
      %v6470 = vld [vmem:[%s246 + $0xd0] sm:$0xff]
      %v6471 = vld [vmem:[%s246 + $0xd8] sm:$0xff]
      %v6472 = vld [vmem:[%s246 + $0xe0] sm:$0xff]
      %v6473 = vld [vmem:[%s246 + $0xe8] sm:$0xff]
      %v6474 = vld [vmem:[%s246 + $0xf0] sm:$0xff]
      %v6475 = vld [vmem:[%s246 + $0xf8] sm:$0xff]
      %v6476 = vld [vmem:[%s246 + $0x100] sm:$0xff]
      %v6477 = vld [vmem:[%s246 + $0x108] sm:$0xff]
      %v6478 = vld [vmem:[%s246 + $0x110] sm:$0xff]
      %v6479 = vld [vmem:[%s246 + $0x118] sm:$0xff]
      %v6480 = vld [vmem:[%s246 + $0x120] sm:$0xff]
      %v6481 = vld [vmem:[%s246 + $0x128] sm:$0xff]
      %v6482 = vld [vmem:[%s246 + $0x130] sm:$0xff]
      %v6483 = vld [vmem:[%s246 + $0x138] sm:$0xff]
      %v6484 = vld [vmem:[%s246 + $0x140] sm:$0xf]
      %v6485 = vadd.f32 %v6444, %v6403
      %v6486 = vadd.f32 %v6445, %v6404
      %v6487 = vadd.f32 %v6446, %v6405
      %v6488 = vadd.f32 %v6447, %v6406
      %v6489 = vadd.f32 %v6448, %v6407
      %v6490 = vadd.f32 %v6449, %v6408
      %v6491 = vadd.f32 %v6450, %v6409
      %v6492 = vadd.f32 %v6451, %v6410
      %v6493 = vadd.f32 %v6452, %v6411
      %v6494 = vadd.f32 %v6453, %v6412
      %v6495 = vadd.f32 %v6454, %v6413
      %v6496 = vadd.f32 %v6455, %v6414
      %v6497 = vadd.f32 %v6456, %v6415
      %v6498 = vadd.f32 %v6457, %v6416
      %v6499 = vadd.f32 %v6458, %v6417
      %v6500 = vadd.f32 %v6459, %v6418
      %v6501 = vadd.f32 %v6460, %v6419
      %v6502 = vadd.f32 %v6461, %v6420
      %v6503 = vadd.f32 %v6462, %v6421
      %v6504 = vadd.f32 %v6463, %v6422
      %v6505 = vadd.f32 %v6464, %v6423
      %v6506 = vadd.f32 %v6465, %v6424
      %v6507 = vadd.f32 %v6466, %v6425
      %v6508 = vadd.f32 %v6467, %v6426
      %v6509 = vadd.f32 %v6468, %v6427
      %v6510 = vadd.f32 %v6469, %v6428
      %v6511 = vadd.f32 %v6470, %v6429
      %v6512 = vadd.f32 %v6471, %v6430
      %v6513 = vadd.f32 %v6472, %v6431
      %v6514 = vadd.f32 %v6473, %v6432
      %v6515 = vadd.f32 %v6474, %v6433
      %v6516 = vadd.f32 %v6475, %v6434
      %v6517 = vadd.f32 %v6476, %v6435
      %v6518 = vadd.f32 %v6477, %v6436
      %v6519 = vadd.f32 %v6478, %v6437
      %v6520 = vadd.f32 %v6479, %v6438
      %v6521 = vadd.f32 %v6480, %v6439
      %v6522 = vadd.f32 %v6481, %v6440
      %v6523 = vadd.f32 %v6482, %v6441
      %v6524 = vadd.f32 %v6483, %v6442
      %v6525 = vadd.f32 %v6484, %v6443
      %6526 = vst [vmem:[%s251] sm:$0xff] %v6485
      %6527 = vst [vmem:[%s251 + $0x8] sm:$0xff] %v6486
      %6528 = vst [vmem:[%s251 + $0x10] sm:$0xff] %v6487
      %6529 = vst [vmem:[%s251 + $0x18] sm:$0xff] %v6488
      %6530 = vst [vmem:[%s251 + $0x20] sm:$0xff] %v6489
      %6531 = vst [vmem:[%s251 + $0x28] sm:$0xff] %v6490
      %6532 = vst [vmem:[%s251 + $0x30] sm:$0xff] %v6491
      %6533 = vst [vmem:[%s251 + $0x38] sm:$0xff] %v6492
      %6534 = vst [vmem:[%s251 + $0x40] sm:$0xff] %v6493
      %6535 = vst [vmem:[%s251 + $0x48] sm:$0xff] %v6494
      %6536 = vst [vmem:[%s251 + $0x50] sm:$0xff] %v6495
      %6537 = vst [vmem:[%s251 + $0x58] sm:$0xff] %v6496
      %6538 = vst [vmem:[%s251 + $0x60] sm:$0xff] %v6497
      %6539 = vst [vmem:[%s251 + $0x68] sm:$0xff] %v6498
      %6540 = vst [vmem:[%s251 + $0x70] sm:$0xff] %v6499
      %6541 = vst [vmem:[%s251 + $0x78] sm:$0xff] %v6500
      %6542 = vst [vmem:[%s251 + $0x80] sm:$0xff] %v6501
      %6543 = vst [vmem:[%s251 + $0x88] sm:$0xff] %v6502
      %6544 = vst [vmem:[%s251 + $0x90] sm:$0xff] %v6503
      %6545 = vst [vmem:[%s251 + $0x98] sm:$0xff] %v6504
      %6546 = vst [vmem:[%s251 + $0xa0] sm:$0xff] %v6505
      %6547 = vst [vmem:[%s251 + $0xa8] sm:$0xff] %v6506
      %6548 = vst [vmem:[%s251 + $0xb0] sm:$0xff] %v6507
      %6549 = vst [vmem:[%s251 + $0xb8] sm:$0xff] %v6508
      %6550 = vst [vmem:[%s251 + $0xc0] sm:$0xff] %v6509
      %6551 = vst [vmem:[%s251 + $0xc8] sm:$0xff] %v6510
      %6552 = vst [vmem:[%s251 + $0xd0] sm:$0xff] %v6511
      %6553 = vst [vmem:[%s251 + $0xd8] sm:$0xff] %v6512
      %6554 = vst [vmem:[%s251 + $0xe0] sm:$0xff] %v6513
      %6555 = vst [vmem:[%s251 + $0xe8] sm:$0xff] %v6514
      %6556 = vst [vmem:[%s251 + $0xf0] sm:$0xff] %v6515
      %6557 = vst [vmem:[%s251 + $0xf8] sm:$0xff] %v6516
      %6558 = vst [vmem:[%s251 + $0x100] sm:$0xff] %v6517
      %6559 = vst [vmem:[%s251 + $0x108] sm:$0xff] %v6518
      %6560 = vst [vmem:[%s251 + $0x110] sm:$0xff] %v6519
      %6561 = vst [vmem:[%s251 + $0x118] sm:$0xff] %v6520
      %6562 = vst [vmem:[%s251 + $0x120] sm:$0xff] %v6521
      %6563 = vst [vmem:[%s251 + $0x128] sm:$0xff] %v6522
      %6564 = vst [vmem:[%s251 + $0x130] sm:$0xff] %v6523
      %6565 = vst [vmem:[%s251 + $0x138] sm:$0xff] %v6524
      %6566 = vst [vmem:[%s251 + $0x140] sm:$0xf] %v6525
      %p6567 = scmp.lt.s32.totalorder %s17, 1
      %s6568 = scalar_select %p6567, %s17, 1
      %s6569 = smul.addr %s6568, 41
      %s6570 = smul.addr %s6569, 8
      %s6571 = scalar_lea.vmem %s6, %s6570
      // Predicated region
      $region45: #{resnet_block_forward.1} parent=43 // pred_check
        %p6572 = pneg %p166
      $region46: #{resnet_block_forward.1} parent=43 // pred_check_branch
        %6574 = sbr.rel (%p6572) target = $region48
      $region47: #{resnet_block_forward.1} parent=43 // pred_region
        _
      $region48: #{resnet_block_forward.1} parent=43 // pred_fallthru
        _
    $region44: #{resnet_block_forward.1} parent=5 // pred_fallthru
      _
    %p6575 = scmp.le.s32.totalorder 2, %s12
    // Predicated region
    $region49: #{resnet_block_forward.1} parent=5 // pred_check
      %p6576 = pneg %p6575
    $region50: #{resnet_block_forward.1} parent=5 // pred_check_branch
      %6578 = sbr.rel (%p6576) target = $region52
    $region51: #{resnet_block_forward.1} parent=5 // pred_region
      %s6579 = ssub.s32 %s12, 2
      // Predicated region
      $region53: #{resnet_block_forward.1} parent=51 // pred_check
        %p6580 = pneg %p172
      $region54: #{resnet_block_forward.1} parent=51 // pred_check_branch
        %6582 = sbr.rel (%p6580) target = $region56
      $region55: #{resnet_block_forward.1} parent=51 // pred_region
        %p6583 = scmp.lt.s32.totalorder %s18, 1
        %s6584 = scalar_select %p6583, %s18, 1
        %s6585 = smul.addr %s6584, 41
        %s6586 = smul.addr %s6585, 8
        %s6587 = scalar_lea.vmem %s6, %s6586
      $region56: #{resnet_block_forward.1} parent=51 // pred_fallthru
        _
    $region52: #{resnet_block_forward.1} parent=5 // pred_fallthru
      _
  $region6: #{resnet_block_forward.1} parent=0 // loop_footer
    %s16 = sadd.s32 1, %s12
  $region7: #{resnet_block_forward.1} parent=0 // loop_footer_branch
    %11 = sbr.rel target = $region3
  $region8: #{resnet_block_forward.1} parent=0 // loop_exit
    _

</llo_original>
